<compile_context>
chip_gen: v7x
topology: tpu7x:2x2x1
jax: 0.10.0
libtpu: 0.0.40
codegen_flags: <defaults>
</compile_context>

<pallas_src>
import functools

import jax
import jax.numpy as jnp
from jax.experimental import pallas as pl
from jax.experimental.pallas import tpu as pltpu


# ----------------------------------------------------------------------------
# In-kernel helpers (traced inside the Pallas body)
# ----------------------------------------------------------------------------
def _layer_norm(y, gamma, beta, eps):
    """Post-norm LayerNorm over the last dim, f32 arithmetic."""
    mu = jnp.mean(y, axis=-1, keepdims=True)
    yc = y - mu
    var = jnp.mean(yc * yc, axis=-1, keepdims=True)
    return (yc * jax.lax.rsqrt(var + eps)) * gamma + beta


def _mha(xq, xkv, bias, wq, bq, wkv, bkv, wo, bo, nhead, scale):
    """Multi-head attention: fused Q proj, fused K|V proj, per-head softmax
    attention, heads concatenated, ONE output-projection matmul.
    Activations f32; MXU operands bf16 with f32 accumulation."""
    d = xq.shape[-1]
    dh = d // nhead

    # Fused projections: (Lq,D)x(D,D) for Q, (Lk,D)x(D,2D) for K|V.
    q = jnp.dot(xq.astype(jnp.bfloat16), wq,
                preferred_element_type=jnp.float32) + bq
    kv = jnp.dot(xkv.astype(jnp.bfloat16), wkv,
                 preferred_element_type=jnp.float32) + bkv
    q = q * scale                       # pre-scale once (not per head)
    k = kv[:, :d]
    v = kv[:, d:]

    heads = []
    for h in range(nhead):
        sl = slice(h * dh, (h + 1) * dh)
        s = jax.lax.dot_general(q[:, sl].astype(jnp.bfloat16),
                                k[:, sl].astype(jnp.bfloat16),
                                (((1,), (1,)), ((), ())),
                                preferred_element_type=jnp.float32)   # (Lq, Lk)
        s = s + bias                                                  # key-pad bias
        s = s - jnp.max(s, axis=-1, keepdims=True)
        p = jnp.exp(s)
        p = p * pl.reciprocal(jnp.sum(p, axis=-1, keepdims=True), approx=True)
        heads.append(jnp.dot(p.astype(jnp.bfloat16),
                             v[:, sl].astype(jnp.bfloat16),
                             preferred_element_type=jnp.float32))     # (Lq, dh)

    attn = jnp.concatenate(heads, axis=-1)                            # (Lq, D)
    # ONE output-projection matmul over the full contraction dim D.
    return jnp.dot(attn.astype(jnp.bfloat16), wo,
                   preferred_element_type=jnp.float32) + bo


# ----------------------------------------------------------------------------
# Fused decoder-layer kernel (one batch element per grid step)
# ----------------------------------------------------------------------------
def _decoder_layer_kernel(tgt_ref, mem_ref, tbias_ref, mbias_ref,
                          sa_wq, sa_bq, sa_wkv, sa_bkv, sa_wo, sa_bo, g1, be1,
                          ca_wq, ca_bq, ca_wkv, ca_bkv, ca_wo, ca_bo, g2, be2,
                          w1, b1, w2, b2, g3, be3,
                          o_ref, *, nhead, scale, eps):
    x = tgt_ref[0]                       # (Lt, D) f32 residual stream
    mem = mem_ref[0]                     # (Lm, D) f32
    tbias = tbias_ref[0]                 # (1, Lt) additive key-padding bias (self)
    mbias = mbias_ref[0]                 # (1, Lm) additive key-padding bias (cross)

    # --- Self-attention + residual + LN1 ---
    sa = _mha(x, x, tbias, sa_wq[...], sa_bq[...], sa_wkv[...], sa_bkv[...],
              sa_wo[...], sa_bo[...], nhead, scale)
    x = _layer_norm(x + sa, g1[...], be1[...], eps)

    # --- Cross-attention + residual + LN2 ---
    ca = _mha(x, mem, mbias, ca_wq[...], ca_bq[...], ca_wkv[...], ca_bkv[...],
              ca_wo[...], ca_bo[...], nhead, scale)
    x = _layer_norm(x + ca, g2[...], be2[...], eps)

    # --- FFN (lin1 + ReLU + lin2) + residual + LN3; hidden stays in VMEM ---
    h = jnp.dot(x.astype(jnp.bfloat16), w1[...],
                preferred_element_type=jnp.float32) + b1[...]
    h = jnp.maximum(h, 0.0)
    ff = jnp.dot(h.astype(jnp.bfloat16), w2[...],
                 preferred_element_type=jnp.float32) + b2[...]
    x = _layer_norm(x + ff, g3[...], be3[...], eps)

    o_ref[0] = x


# ----------------------------------------------------------------------------
# Wrapper: one pallas_call per decoder layer
# ----------------------------------------------------------------------------
def fused_decoder_layer(tgt, mem, tgt_key_bias, mem_key_bias, lp, nhead, eps=1e-6):
    B, Lt, D = tgt.shape
    Lm = mem.shape[1]
    F = lp["lin1"][0].shape[1]
    dh = D // nhead
    rep = lambda b: (0, 0)               # weights replicated across the grid
    wspec = lambda shape: pl.BlockSpec(shape, rep)
    sa, ca = lp["sa"], lp["ca"]

    kern = functools.partial(_decoder_layer_kernel, nhead=nhead,
                             scale=1.0 / (dh ** 0.5), eps=eps)
    return pl.pallas_call(
        kern,
        out_shape=jax.ShapeDtypeStruct((B, Lt, D), jnp.float32),
        grid=(B,),
        in_specs=[
            pl.BlockSpec((1, Lt, D), lambda b: (b, 0, 0)),   # tgt
            pl.BlockSpec((1, Lm, D), lambda b: (b, 0, 0)),   # mem
            pl.BlockSpec((1, 1, Lt), lambda b: (b, 0, 0)),   # tgt key bias
            pl.BlockSpec((1, 1, Lm), lambda b: (b, 0, 0)),   # mem key bias
            # self-attention params
            wspec((D, D)), wspec((1, D)), wspec((D, 2 * D)), wspec((1, 2 * D)),
            wspec((D, D)), wspec((1, D)),
            wspec((1, D)), wspec((1, D)),                    # LN1
            # cross-attention params
            wspec((D, D)), wspec((1, D)), wspec((D, 2 * D)), wspec((1, 2 * D)),
            wspec((D, D)), wspec((1, D)),
            wspec((1, D)), wspec((1, D)),                    # LN2
            # FFN params
            wspec((D, F)), wspec((1, F)), wspec((F, D)), wspec((1, D)),
            wspec((1, D)), wspec((1, D)),                    # LN3
        ],
        out_specs=pl.BlockSpec((1, Lt, D), lambda b: (b, 0, 0)),
        compiler_params=pltpu.CompilerParams(dimension_semantics=("parallel",)),
    )(tgt, mem, tgt_key_bias, mem_key_bias,
      sa["wq"], sa["bq"], sa["wkv"], sa["bkv"], sa["wo"], sa["bo"],
      lp["norm1"][0], lp["norm1"][1],
      ca["wq"], ca["bq"], ca["wkv"], ca["bkv"], ca["wo"], ca["bo"],
      lp["norm2"][0], lp["norm2"][1],
      lp["lin1"][0], lp["lin1"][1], lp["lin2"][0], lp["lin2"][1],
      lp["norm3"][0], lp["norm3"][1])


# ----------------------------------------------------------------------------
# Two towers
# ----------------------------------------------------------------------------
def qv_cross_attn(q_emb, v_emb, q_lens, params, nhead):
    B, Lq, _ = q_emb.shape
    Lv = v_emb.shape[1]

    q_valid = jnp.arange(Lq)[None, :] < q_lens[:, None]               # True = keep
    q_pad_bias = jnp.where(q_valid, 0.0, -1e9).astype(jnp.float32).reshape(B, 1, Lq)
    no_bias_v = jnp.zeros((B, 1, Lv), jnp.float32)

    # vgq: tgt = q_emb, mem = v_emb, tgt_key_padding_mask = ~q_mask
    x = q_emb
    for lp in params["vgq"]:
        x = fused_decoder_layer(x, v_emb, q_pad_bias, no_bias_v, lp, nhead)
    q_out = x

    # qgv: tgt = v_emb, mem = q_out, memory_key_padding_mask = ~q_mask
    y = v_emb
    for lp in params["qgv"]:
        y = fused_decoder_layer(y, q_out, no_bias_v, q_pad_bias, lp, nhead)
    return q_out, y


# ----------------------------------------------------------------------------
# Deterministic parameter init (shapes follow nn.TransformerDecoderLayer)
# Weights stored bf16 (MXU operands / half the DMA bytes); biases & LN in f32.
# ----------------------------------------------------------------------------
def _dense(key, fan_in, fan_out):
    kw, kb = jax.random.split(key)
    w = (jax.random.normal(kw, (fan_in, fan_out), jnp.float32)
         * (fan_in ** -0.5)).astype(jnp.bfloat16)
    b = jax.random.normal(kb, (1, fan_out), jnp.float32) * 0.02
    return w, b


def _attn_params(key, d):
    ks = jax.random.split(key, 4)
    wq, bq = _dense(ks[0], d, d)
    wk, bk = _dense(ks[1], d, d)
    wv, bv = _dense(ks[2], d, d)
    wo, bo = _dense(ks[3], d, d)
    return dict(wq=wq, bq=bq,
                wkv=jnp.concatenate([wk, wv], axis=1),   # (D, 2D) fused K|V weight
                bkv=jnp.concatenate([bk, bv], axis=1),   # (1, 2D)
                wo=wo, bo=bo)


def _layer_params(key, d, ff_dim):
    ks = jax.random.split(key, 4)
    ones = jnp.ones((1, d), jnp.float32)
    zeros = jnp.zeros((1, d), jnp.float32)
    return dict(
        sa=_attn_params(ks[0], d),
        ca=_attn_params(ks[1], d),
        lin1=_dense(ks[2], d, ff_dim),
        lin2=_dense(ks[3], ff_dim, d),
        norm1=(ones, zeros), norm2=(ones, zeros), norm3=(ones, zeros),
    )


def init_params(key, d_model, ff_dim, nlayer):
    kv, kq = jax.random.split(key)
    return dict(
        vgq=[_layer_params(jax.random.fold_in(kv, i), d_model, ff_dim) for i in range(nlayer)],
        qgv=[_layer_params(jax.random.fold_in(kq, i), d_model, ff_dim) for i in range(nlayer)],
    )


# ----------------------------------------------------------------------------
if __name__ == "__main__":
    d_model, nhead, ff_dim, nlayer = 32, 4, 64, 2
    B, Lq, Lv = 2, 8, 16

    root = jax.random.PRNGKey(0)
    k_params, k_q, k_v = jax.random.split(root, 3)

    params = init_params(k_params, d_model, ff_dim, nlayer)
    q_emb = jax.random.normal(k_q, (B, Lq, d_model), jnp.float32)
    v_emb = jax.random.normal(k_v, (B, Lv, d_model), jnp.float32)
    q_lens = jnp.array([Lq, 5], dtype=jnp.int32)

    fwd = jax.jit(lambda q, v, lens: qv_cross_attn(q, v, lens, params, nhead))
    q_out, v_out = fwd(q_emb, v_emb, q_lens)
    jax.block_until_ready((q_out, v_out))

    assert q_out.shape == (B, Lq, d_model)
    assert v_out.shape == (B, Lv, d_model)
    assert bool(jnp.all(jnp.isfinite(q_out))) and bool(jnp.all(jnp.isfinite(v_out)))
    print("KERNEL_OK")
</pallas_src>

<mosaic_0001>
module attributes {stable_mosaic.version = 11 : i64} {
  func.func @_decoder_layer_kernel(%arg0: i32, %arg1: memref<1x8x32xf32, #tpu.memory_space<vmem>>, %arg2: memref<1x16x32xf32, #tpu.memory_space<vmem>>, %arg3: memref<1x1x8xf32, #tpu.memory_space<vmem>>, %arg4: memref<1x1x16xf32, #tpu.memory_space<vmem>>, %arg5: memref<32x32xbf16, #tpu.memory_space<vmem>>, %arg6: memref<1x32xf32, #tpu.memory_space<vmem>>, %arg7: memref<32x64xbf16, #tpu.memory_space<vmem>>, %arg8: memref<1x64xf32, #tpu.memory_space<vmem>>, %arg9: memref<32x32xbf16, #tpu.memory_space<vmem>>, %arg10: memref<1x32xf32, #tpu.memory_space<vmem>>, %arg11: memref<1x32xf32, #tpu.memory_space<vmem>>, %arg12: memref<1x32xf32, #tpu.memory_space<vmem>>, %arg13: memref<32x32xbf16, #tpu.memory_space<vmem>>, %arg14: memref<1x32xf32, #tpu.memory_space<vmem>>, %arg15: memref<32x64xbf16, #tpu.memory_space<vmem>>, %arg16: memref<1x64xf32, #tpu.memory_space<vmem>>, %arg17: memref<32x32xbf16, #tpu.memory_space<vmem>>, %arg18: memref<1x32xf32, #tpu.memory_space<vmem>>, %arg19: memref<1x32xf32, #tpu.memory_space<vmem>>, %arg20: memref<1x32xf32, #tpu.memory_space<vmem>>, %arg21: memref<32x64xbf16, #tpu.memory_space<vmem>>, %arg22: memref<1x64xf32, #tpu.memory_space<vmem>>, %arg23: memref<64x32xbf16, #tpu.memory_space<vmem>>, %arg24: memref<1x32xf32, #tpu.memory_space<vmem>>, %arg25: memref<1x32xf32, #tpu.memory_space<vmem>>, %arg26: memref<1x32xf32, #tpu.memory_space<vmem>>, %arg27: memref<1x8x32xf32, #tpu.memory_space<vmem>>) attributes {dimension_semantics = [#tpu.dimension_semantics<parallel>], iteration_bounds = array<i64: 2>, scalar_prefetch = 0 : i64, scratch_operands = 0 : i64, tpu.core_type = #tpu.core_type<tc>, window_params = [{transform_indices = @transform_0, window_bounds = array<i64: 1, 8, 32>}, {transform_indices = @transform_1, window_bounds = array<i64: 1, 16, 32>}, {transform_indices = @transform_2, window_bounds = array<i64: 1, 1, 8>}, {transform_indices = @transform_3, window_bounds = array<i64: 1, 1, 16>}, {pipeline_mode = #tpu.pipeline_mode<synchronous>, transform_indices = @transform_4, window_bounds = array<i64: 32, 32>}, {pipeline_mode = #tpu.pipeline_mode<synchronous>, transform_indices = @transform_5, window_bounds = array<i64: 1, 32>}, {pipeline_mode = #tpu.pipeline_mode<synchronous>, transform_indices = @transform_6, window_bounds = array<i64: 32, 64>}, {pipeline_mode = #tpu.pipeline_mode<synchronous>, transform_indices = @transform_7, window_bounds = array<i64: 1, 64>}, {pipeline_mode = #tpu.pipeline_mode<synchronous>, transform_indices = @transform_8, window_bounds = array<i64: 32, 32>}, {pipeline_mode = #tpu.pipeline_mode<synchronous>, transform_indices = @transform_9, window_bounds = array<i64: 1, 32>}, {pipeline_mode = #tpu.pipeline_mode<synchronous>, transform_indices = @transform_10, window_bounds = array<i64: 1, 32>}, {pipeline_mode = #tpu.pipeline_mode<synchronous>, transform_indices = @transform_11, window_bounds = array<i64: 1, 32>}, {pipeline_mode = #tpu.pipeline_mode<synchronous>, transform_indices = @transform_12, window_bounds = array<i64: 32, 32>}, {pipeline_mode = #tpu.pipeline_mode<synchronous>, transform_indices = @transform_13, window_bounds = array<i64: 1, 32>}, {pipeline_mode = #tpu.pipeline_mode<synchronous>, transform_indices = @transform_14, window_bounds = array<i64: 32, 64>}, {pipeline_mode = #tpu.pipeline_mode<synchronous>, transform_indices = @transform_15, window_bounds = array<i64: 1, 64>}, {pipeline_mode = #tpu.pipeline_mode<synchronous>, transform_indices = @transform_16, window_bounds = array<i64: 32, 32>}, {pipeline_mode = #tpu.pipeline_mode<synchronous>, transform_indices = @transform_17, window_bounds = array<i64: 1, 32>}, {pipeline_mode = #tpu.pipeline_mode<synchronous>, transform_indices = @transform_18, window_bounds = array<i64: 1, 32>}, {pipeline_mode = #tpu.pipeline_mode<synchronous>, transform_indices = @transform_19, window_bounds = array<i64: 1, 32>}, {pipeline_mode = #tpu.pipeline_mode<synchronous>, transform_indices = @transform_20, window_bounds = array<i64: 32, 64>}, {pipeline_mode = #tpu.pipeline_mode<synchronous>, transform_indices = @transform_21, window_bounds = array<i64: 1, 64>}, {pipeline_mode = #tpu.pipeline_mode<synchronous>, transform_indices = @transform_22, window_bounds = array<i64: 64, 32>}, {pipeline_mode = #tpu.pipeline_mode<synchronous>, transform_indices = @transform_23, window_bounds = array<i64: 1, 32>}, {pipeline_mode = #tpu.pipeline_mode<synchronous>, transform_indices = @transform_24, window_bounds = array<i64: 1, 32>}, {pipeline_mode = #tpu.pipeline_mode<synchronous>, transform_indices = @transform_25, window_bounds = array<i64: 1, 32>}, {transform_indices = @transform_26, window_bounds = array<i64: 1, 8, 32>}]} {
    %c0 = arith.constant 0 : index
    %c0_0 = arith.constant 0 : index
    %c0_1 = arith.constant 0 : index
    %0 = vector.load %arg1[%c0, %c0_0, %c0_1] : memref<1x8x32xf32, #tpu.memory_space<vmem>>, vector<1x8x32xf32>
    %1 = vector.shape_cast %0 : vector<1x8x32xf32> to vector<8x32xf32>
    %c0_2 = arith.constant 0 : index
    %c0_3 = arith.constant 0 : index
    %c0_4 = arith.constant 0 : index
    %2 = vector.load %arg2[%c0_2, %c0_3, %c0_4] : memref<1x16x32xf32, #tpu.memory_space<vmem>>, vector<1x16x32xf32>
    %3 = vector.shape_cast %2 : vector<1x16x32xf32> to vector<16x32xf32>
    %c0_5 = arith.constant 0 : index
    %c0_6 = arith.constant 0 : index
    %c0_7 = arith.constant 0 : index
    %4 = vector.load %arg3[%c0_5, %c0_6, %c0_7] : memref<1x1x8xf32, #tpu.memory_space<vmem>>, vector<1x1x8xf32>
    %5 = vector.shape_cast %4 : vector<1x1x8xf32> to vector<1x8xf32>
    %c0_8 = arith.constant 0 : index
    %c0_9 = arith.constant 0 : index
    %c0_10 = arith.constant 0 : index
    %6 = vector.load %arg4[%c0_8, %c0_9, %c0_10] : memref<1x1x16xf32, #tpu.memory_space<vmem>>, vector<1x1x16xf32>
    %7 = vector.shape_cast %6 : vector<1x1x16xf32> to vector<1x16xf32>
    %c0_11 = arith.constant 0 : index
    %c0_12 = arith.constant 0 : index
    %8 = vector.load %arg5[%c0_11, %c0_12] : memref<32x32xbf16, #tpu.memory_space<vmem>>, vector<32x32xbf16>
    %c0_13 = arith.constant 0 : index
    %c0_14 = arith.constant 0 : index
    %9 = vector.load %arg6[%c0_13, %c0_14] : memref<1x32xf32, #tpu.memory_space<vmem>>, vector<1x32xf32>
    %c0_15 = arith.constant 0 : index
    %c0_16 = arith.constant 0 : index
    %10 = vector.load %arg7[%c0_15, %c0_16] : memref<32x64xbf16, #tpu.memory_space<vmem>>, vector<32x64xbf16>
    %c0_17 = arith.constant 0 : index
    %c0_18 = arith.constant 0 : index
    %11 = vector.load %arg8[%c0_17, %c0_18] : memref<1x64xf32, #tpu.memory_space<vmem>>, vector<1x64xf32>
    %c0_19 = arith.constant 0 : index
    %c0_20 = arith.constant 0 : index
    %12 = vector.load %arg9[%c0_19, %c0_20] : memref<32x32xbf16, #tpu.memory_space<vmem>>, vector<32x32xbf16>
    %c0_21 = arith.constant 0 : index
    %c0_22 = arith.constant 0 : index
    %13 = vector.load %arg10[%c0_21, %c0_22] : memref<1x32xf32, #tpu.memory_space<vmem>>, vector<1x32xf32>
    %14 = arith.truncf %1 : vector<8x32xf32> to vector<8x32xbf16>
    %cst = arith.constant dense<0.000000e+00> : vector<8x32xf32>
    %15 = tpu.matmul %14, %8, %cst {dimension_numbers = #tpu.dot_dimension_numbers<[1], [0], [0], [1], [0, 0, 1, 1], [], []>} : vector<8x32xbf16>, vector<32x32xbf16>, vector<8x32xf32> -> vector<8x32xf32>
    %16 = vector.broadcast %9 : vector<1x32xf32> to vector<8x32xf32>
    %17 = arith.addf %15, %16 : vector<8x32xf32>
    %18 = arith.truncf %1 : vector<8x32xf32> to vector<8x32xbf16>
    %cst_23 = arith.constant dense<0.000000e+00> : vector<8x64xf32>
    %19 = tpu.matmul %18, %10, %cst_23 {dimension_numbers = #tpu.dot_dimension_numbers<[1], [0], [0], [1], [0, 0, 1, 1], [], []>} : vector<8x32xbf16>, vector<32x64xbf16>, vector<8x64xf32> -> vector<8x64xf32>
    %20 = vector.broadcast %11 : vector<1x64xf32> to vector<8x64xf32>
    %21 = arith.addf %19, %20 : vector<8x64xf32>
    %cst_24 = arith.constant 0.353553385 : f32
    %22 = vector.broadcast %cst_24 : f32 to vector<8x32xf32>
    %23 = arith.mulf %17, %22 : vector<8x32xf32>
    %24 = vector.extract_strided_slice %21 {offsets = [0, 0], sizes = [8, 32], strides = [1, 1]} : vector<8x64xf32> to vector<8x32xf32>
    %25 = vector.extract_strided_slice %21 {offsets = [0, 32], sizes = [8, 32], strides = [1, 1]} : vector<8x64xf32> to vector<8x32xf32>
    %26 = vector.extract_strided_slice %23 {offsets = [0, 0], sizes = [8, 8], strides = [1, 1]} : vector<8x32xf32> to vector<8x8xf32>
    %27 = arith.truncf %26 : vector<8x8xf32> to vector<8x8xbf16>
    %28 = vector.extract_strided_slice %24 {offsets = [0, 0], sizes = [8, 8], strides = [1, 1]} : vector<8x32xf32> to vector<8x8xf32>
    %29 = arith.truncf %28 : vector<8x8xf32> to vector<8x8xbf16>
    %cst_25 = arith.constant dense<0.000000e+00> : vector<8x8xf32>
    %30 = tpu.matmul %27, %29, %cst_25 {dimension_numbers = #tpu.dot_dimension_numbers<[1], [1], [0], [0], [0, 0, 1, 0], [], []>} : vector<8x8xbf16>, vector<8x8xbf16>, vector<8x8xf32> -> vector<8x8xf32>
    %31 = vector.broadcast %5 : vector<1x8xf32> to vector<8x8xf32>
    %32 = arith.addf %30, %31 : vector<8x8xf32>
    %cst_26 = arith.constant dense<0xFF800000> : vector<8xf32>
    %33 = vector.multi_reduction <maximumf>, %32, %cst_26 [1] : vector<8x8xf32> to vector<8xf32>
    %34 = vector.shape_cast %33 : vector<8xf32> to vector<8x1xf32>
    %35 = vector.broadcast %34 : vector<8x1xf32> to vector<8x8xf32>
    %36 = arith.subf %32, %35 : vector<8x8xf32>
    %37 = math.exp %36 : vector<8x8xf32>
    %cst_27 = arith.constant dense<0.000000e+00> : vector<8xf32>
    %38 = vector.multi_reduction <add>, %37, %cst_27 [1] : vector<8x8xf32> to vector<8xf32>
    %39 = vector.shape_cast %38 : vector<8xf32> to vector<8x1xf32>
    %40 = tpu.reciprocal %39 {approx = true} : vector<8x1xf32> -> vector<8x1xf32>
    %41 = vector.broadcast %40 : vector<8x1xf32> to vector<8x8xf32>
    %42 = arith.mulf %37, %41 : vector<8x8xf32>
    %43 = arith.truncf %42 : vector<8x8xf32> to vector<8x8xbf16>
    %44 = vector.extract_strided_slice %25 {offsets = [0, 0], sizes = [8, 8], strides = [1, 1]} : vector<8x32xf32> to vector<8x8xf32>
    %45 = arith.truncf %44 : vector<8x8xf32> to vector<8x8xbf16>
    %cst_28 = arith.constant dense<0.000000e+00> : vector<8x8xf32>
    %46 = tpu.matmul %43, %45, %cst_28 {dimension_numbers = #tpu.dot_dimension_numbers<[1], [0], [0], [1], [0, 0, 1, 1], [], []>} : vector<8x8xbf16>, vector<8x8xbf16>, vector<8x8xf32> -> vector<8x8xf32>
    %47 = vector.extract_strided_slice %23 {offsets = [0, 8], sizes = [8, 8], strides = [1, 1]} : vector<8x32xf32> to vector<8x8xf32>
    %48 = arith.truncf %47 : vector<8x8xf32> to vector<8x8xbf16>
    %49 = vector.extract_strided_slice %24 {offsets = [0, 8], sizes = [8, 8], strides = [1, 1]} : vector<8x32xf32> to vector<8x8xf32>
    %50 = arith.truncf %49 : vector<8x8xf32> to vector<8x8xbf16>
    %cst_29 = arith.constant dense<0.000000e+00> : vector<8x8xf32>
    %51 = tpu.matmul %48, %50, %cst_29 {dimension_numbers = #tpu.dot_dimension_numbers<[1], [1], [0], [0], [0, 0, 1, 0], [], []>} : vector<8x8xbf16>, vector<8x8xbf16>, vector<8x8xf32> -> vector<8x8xf32>
    %52 = vector.broadcast %5 : vector<1x8xf32> to vector<8x8xf32>
    %53 = arith.addf %51, %52 : vector<8x8xf32>
    %cst_30 = arith.constant dense<0xFF800000> : vector<8xf32>
    %54 = vector.multi_reduction <maximumf>, %53, %cst_30 [1] : vector<8x8xf32> to vector<8xf32>
    %55 = vector.shape_cast %54 : vector<8xf32> to vector<8x1xf32>
    %56 = vector.broadcast %55 : vector<8x1xf32> to vector<8x8xf32>
    %57 = arith.subf %53, %56 : vector<8x8xf32>
    %58 = math.exp %57 : vector<8x8xf32>
    %cst_31 = arith.constant dense<0.000000e+00> : vector<8xf32>
    %59 = vector.multi_reduction <add>, %58, %cst_31 [1] : vector<8x8xf32> to vector<8xf32>
    %60 = vector.shape_cast %59 : vector<8xf32> to vector<8x1xf32>
    %61 = tpu.reciprocal %60 {approx = true} : vector<8x1xf32> -> vector<8x1xf32>
    %62 = vector.broadcast %61 : vector<8x1xf32> to vector<8x8xf32>
    %63 = arith.mulf %58, %62 : vector<8x8xf32>
    %64 = arith.truncf %63 : vector<8x8xf32> to vector<8x8xbf16>
    %65 = vector.extract_strided_slice %25 {offsets = [0, 8], sizes = [8, 8], strides = [1, 1]} : vector<8x32xf32> to vector<8x8xf32>
    %66 = arith.truncf %65 : vector<8x8xf32> to vector<8x8xbf16>
    %cst_32 = arith.constant dense<0.000000e+00> : vector<8x8xf32>
    %67 = tpu.matmul %64, %66, %cst_32 {dimension_numbers = #tpu.dot_dimension_numbers<[1], [0], [0], [1], [0, 0, 1, 1], [], []>} : vector<8x8xbf16>, vector<8x8xbf16>, vector<8x8xf32> -> vector<8x8xf32>
    %68 = vector.extract_strided_slice %23 {offsets = [0, 16], sizes = [8, 8], strides = [1, 1]} : vector<8x32xf32> to vector<8x8xf32>
    %69 = arith.truncf %68 : vector<8x8xf32> to vector<8x8xbf16>
    %70 = vector.extract_strided_slice %24 {offsets = [0, 16], sizes = [8, 8], strides = [1, 1]} : vector<8x32xf32> to vector<8x8xf32>
    %71 = arith.truncf %70 : vector<8x8xf32> to vector<8x8xbf16>
    %cst_33 = arith.constant dense<0.000000e+00> : vector<8x8xf32>
    %72 = tpu.matmul %69, %71, %cst_33 {dimension_numbers = #tpu.dot_dimension_numbers<[1], [1], [0], [0], [0, 0, 1, 0], [], []>} : vector<8x8xbf16>, vector<8x8xbf16>, vector<8x8xf32> -> vector<8x8xf32>
    %73 = vector.broadcast %5 : vector<1x8xf32> to vector<8x8xf32>
    %74 = arith.addf %72, %73 : vector<8x8xf32>
    %cst_34 = arith.constant dense<0xFF800000> : vector<8xf32>
    %75 = vector.multi_reduction <maximumf>, %74, %cst_34 [1] : vector<8x8xf32> to vector<8xf32>
    %76 = vector.shape_cast %75 : vector<8xf32> to vector<8x1xf32>
    %77 = vector.broadcast %76 : vector<8x1xf32> to vector<8x8xf32>
    %78 = arith.subf %74, %77 : vector<8x8xf32>
    %79 = math.exp %78 : vector<8x8xf32>
    %cst_35 = arith.constant dense<0.000000e+00> : vector<8xf32>
    %80 = vector.multi_reduction <add>, %79, %cst_35 [1] : vector<8x8xf32> to vector<8xf32>
    %81 = vector.shape_cast %80 : vector<8xf32> to vector<8x1xf32>
    %82 = tpu.reciprocal %81 {approx = true} : vector<8x1xf32> -> vector<8x1xf32>
    %83 = vector.broadcast %82 : vector<8x1xf32> to vector<8x8xf32>
    %84 = arith.mulf %79, %83 : vector<8x8xf32>
    %85 = arith.truncf %84 : vector<8x8xf32> to vector<8x8xbf16>
    %86 = vector.extract_strided_slice %25 {offsets = [0, 16], sizes = [8, 8], strides = [1, 1]} : vector<8x32xf32> to vector<8x8xf32>
    %87 = arith.truncf %86 : vector<8x8xf32> to vector<8x8xbf16>
    %cst_36 = arith.constant dense<0.000000e+00> : vector<8x8xf32>
    %88 = tpu.matmul %85, %87, %cst_36 {dimension_numbers = #tpu.dot_dimension_numbers<[1], [0], [0], [1], [0, 0, 1, 1], [], []>} : vector<8x8xbf16>, vector<8x8xbf16>, vector<8x8xf32> -> vector<8x8xf32>
    %89 = vector.extract_strided_slice %23 {offsets = [0, 24], sizes = [8, 8], strides = [1, 1]} : vector<8x32xf32> to vector<8x8xf32>
    %90 = arith.truncf %89 : vector<8x8xf32> to vector<8x8xbf16>
    %91 = vector.extract_strided_slice %24 {offsets = [0, 24], sizes = [8, 8], strides = [1, 1]} : vector<8x32xf32> to vector<8x8xf32>
    %92 = arith.truncf %91 : vector<8x8xf32> to vector<8x8xbf16>
    %cst_37 = arith.constant dense<0.000000e+00> : vector<8x8xf32>
    %93 = tpu.matmul %90, %92, %cst_37 {dimension_numbers = #tpu.dot_dimension_numbers<[1], [1], [0], [0], [0, 0, 1, 0], [], []>} : vector<8x8xbf16>, vector<8x8xbf16>, vector<8x8xf32> -> vector<8x8xf32>
    %94 = vector.broadcast %5 : vector<1x8xf32> to vector<8x8xf32>
    %95 = arith.addf %93, %94 : vector<8x8xf32>
    %cst_38 = arith.constant dense<0xFF800000> : vector<8xf32>
    %96 = vector.multi_reduction <maximumf>, %95, %cst_38 [1] : vector<8x8xf32> to vector<8xf32>
    %97 = vector.shape_cast %96 : vector<8xf32> to vector<8x1xf32>
    %98 = vector.broadcast %97 : vector<8x1xf32> to vector<8x8xf32>
    %99 = arith.subf %95, %98 : vector<8x8xf32>
    %100 = math.exp %99 : vector<8x8xf32>
    %cst_39 = arith.constant dense<0.000000e+00> : vector<8xf32>
    %101 = vector.multi_reduction <add>, %100, %cst_39 [1] : vector<8x8xf32> to vector<8xf32>
    %102 = vector.shape_cast %101 : vector<8xf32> to vector<8x1xf32>
    %103 = tpu.reciprocal %102 {approx = true} : vector<8x1xf32> -> vector<8x1xf32>
    %104 = vector.broadcast %103 : vector<8x1xf32> to vector<8x8xf32>
    %105 = arith.mulf %100, %104 : vector<8x8xf32>
    %106 = arith.truncf %105 : vector<8x8xf32> to vector<8x8xbf16>
    %107 = vector.extract_strided_slice %25 {offsets = [0, 24], sizes = [8, 8], strides = [1, 1]} : vector<8x32xf32> to vector<8x8xf32>
    %108 = arith.truncf %107 : vector<8x8xf32> to vector<8x8xbf16>
    %cst_40 = arith.constant dense<0.000000e+00> : vector<8x8xf32>
    %109 = tpu.matmul %106, %108, %cst_40 {dimension_numbers = #tpu.dot_dimension_numbers<[1], [0], [0], [1], [0, 0, 1, 1], [], []>} : vector<8x8xbf16>, vector<8x8xbf16>, vector<8x8xf32> -> vector<8x8xf32>
    %110 = tpu.concatenate %46, %67, %88, %109 in 1 : vector<8x8xf32>, vector<8x8xf32>, vector<8x8xf32>, vector<8x8xf32> -> vector<8x32xf32>
    %111 = arith.truncf %110 : vector<8x32xf32> to vector<8x32xbf16>
    %cst_41 = arith.constant dense<0.000000e+00> : vector<8x32xf32>
    %112 = tpu.matmul %111, %12, %cst_41 {dimension_numbers = #tpu.dot_dimension_numbers<[1], [0], [0], [1], [0, 0, 1, 1], [], []>} : vector<8x32xbf16>, vector<32x32xbf16>, vector<8x32xf32> -> vector<8x32xf32>
    %113 = vector.broadcast %13 : vector<1x32xf32> to vector<8x32xf32>
    %114 = arith.addf %112, %113 : vector<8x32xf32>
    %115 = arith.addf %1, %114 : vector<8x32xf32>
    %c0_42 = arith.constant 0 : index
    %c0_43 = arith.constant 0 : index
    %116 = vector.load %arg11[%c0_42, %c0_43] : memref<1x32xf32, #tpu.memory_space<vmem>>, vector<1x32xf32>
    %c0_44 = arith.constant 0 : index
    %c0_45 = arith.constant 0 : index
    %117 = vector.load %arg12[%c0_44, %c0_45] : memref<1x32xf32, #tpu.memory_space<vmem>>, vector<1x32xf32>
    %cst_46 = arith.constant dense<0.000000e+00> : vector<8xf32>
    %118 = vector.multi_reduction <add>, %115, %cst_46 [1] : vector<8x32xf32> to vector<8xf32>
    %119 = vector.shape_cast %118 : vector<8xf32> to vector<8x1xf32>
    %cst_47 = arith.constant 3.200000e+01 : f32
    %120 = vector.broadcast %cst_47 : f32 to vector<8x1xf32>
    %121 = arith.divf %119, %120 : vector<8x1xf32>
    %122 = vector.broadcast %121 : vector<8x1xf32> to vector<8x32xf32>
    %123 = arith.subf %115, %122 : vector<8x32xf32>
    %124 = arith.mulf %123, %123 : vector<8x32xf32>
    %cst_48 = arith.constant dense<0.000000e+00> : vector<8xf32>
    %125 = vector.multi_reduction <add>, %124, %cst_48 [1] : vector<8x32xf32> to vector<8xf32>
    %126 = vector.shape_cast %125 : vector<8xf32> to vector<8x1xf32>
    %cst_49 = arith.constant 3.200000e+01 : f32
    %127 = vector.broadcast %cst_49 : f32 to vector<8x1xf32>
    %128 = arith.divf %126, %127 : vector<8x1xf32>
    %cst_50 = arith.constant 9.99999997E-7 : f32
    %129 = vector.broadcast %cst_50 : f32 to vector<8x1xf32>
    %130 = arith.addf %128, %129 : vector<8x1xf32>
    %131 = math.rsqrt %130 : vector<8x1xf32>
    %132 = vector.broadcast %131 : vector<8x1xf32> to vector<8x32xf32>
    %133 = arith.mulf %123, %132 : vector<8x32xf32>
    %134 = vector.broadcast %116 : vector<1x32xf32> to vector<8x32xf32>
    %135 = arith.mulf %133, %134 : vector<8x32xf32>
    %136 = vector.broadcast %117 : vector<1x32xf32> to vector<8x32xf32>
    %137 = arith.addf %135, %136 : vector<8x32xf32>
    %c0_51 = arith.constant 0 : index
    %c0_52 = arith.constant 0 : index
    %138 = vector.load %arg13[%c0_51, %c0_52] : memref<32x32xbf16, #tpu.memory_space<vmem>>, vector<32x32xbf16>
    %c0_53 = arith.constant 0 : index
    %c0_54 = arith.constant 0 : index
    %139 = vector.load %arg14[%c0_53, %c0_54] : memref<1x32xf32, #tpu.memory_space<vmem>>, vector<1x32xf32>
    %c0_55 = arith.constant 0 : index
    %c0_56 = arith.constant 0 : index
    %140 = vector.load %arg15[%c0_55, %c0_56] : memref<32x64xbf16, #tpu.memory_space<vmem>>, vector<32x64xbf16>
    %c0_57 = arith.constant 0 : index
    %c0_58 = arith.constant 0 : index
    %141 = vector.load %arg16[%c0_57, %c0_58] : memref<1x64xf32, #tpu.memory_space<vmem>>, vector<1x64xf32>
    %c0_59 = arith.constant 0 : index
    %c0_60 = arith.constant 0 : index
    %142 = vector.load %arg17[%c0_59, %c0_60] : memref<32x32xbf16, #tpu.memory_space<vmem>>, vector<32x32xbf16>
    %c0_61 = arith.constant 0 : index
    %c0_62 = arith.constant 0 : index
    %143 = vector.load %arg18[%c0_61, %c0_62] : memref<1x32xf32, #tpu.memory_space<vmem>>, vector<1x32xf32>
    %144 = arith.truncf %137 : vector<8x32xf32> to vector<8x32xbf16>
    %cst_63 = arith.constant dense<0.000000e+00> : vector<8x32xf32>
    %145 = tpu.matmul %144, %138, %cst_63 {dimension_numbers = #tpu.dot_dimension_numbers<[1], [0], [0], [1], [0, 0, 1, 1], [], []>} : vector<8x32xbf16>, vector<32x32xbf16>, vector<8x32xf32> -> vector<8x32xf32>
    %146 = vector.broadcast %139 : vector<1x32xf32> to vector<8x32xf32>
    %147 = arith.addf %145, %146 : vector<8x32xf32>
    %148 = arith.truncf %3 : vector<16x32xf32> to vector<16x32xbf16>
    %cst_64 = arith.constant dense<0.000000e+00> : vector<16x64xf32>
    %149 = tpu.matmul %148, %140, %cst_64 {dimension_numbers = #tpu.dot_dimension_numbers<[1], [0], [0], [1], [0, 0, 1, 1], [], []>} : vector<16x32xbf16>, vector<32x64xbf16>, vector<16x64xf32> -> vector<16x64xf32>
    %150 = vector.broadcast %141 : vector<1x64xf32> to vector<16x64xf32>
    %151 = arith.addf %149, %150 : vector<16x64xf32>
    %cst_65 = arith.constant 0.353553385 : f32
    %152 = vector.broadcast %cst_65 : f32 to vector<8x32xf32>
    %153 = arith.mulf %147, %152 : vector<8x32xf32>
    %154 = vector.extract_strided_slice %151 {offsets = [0, 0], sizes = [16, 32], strides = [1, 1]} : vector<16x64xf32> to vector<16x32xf32>
    %155 = vector.extract_strided_slice %151 {offsets = [0, 32], sizes = [16, 32], strides = [1, 1]} : vector<16x64xf32> to vector<16x32xf32>
    %156 = vector.extract_strided_slice %153 {offsets = [0, 0], sizes = [8, 8], strides = [1, 1]} : vector<8x32xf32> to vector<8x8xf32>
    %157 = arith.truncf %156 : vector<8x8xf32> to vector<8x8xbf16>
    %158 = vector.extract_strided_slice %154 {offsets = [0, 0], sizes = [16, 8], strides = [1, 1]} : vector<16x32xf32> to vector<16x8xf32>
    %159 = arith.truncf %158 : vector<16x8xf32> to vector<16x8xbf16>
    %cst_66 = arith.constant dense<0.000000e+00> : vector<8x16xf32>
    %160 = tpu.matmul %157, %159, %cst_66 {dimension_numbers = #tpu.dot_dimension_numbers<[1], [1], [0], [0], [0, 0, 1, 0], [], []>} : vector<8x8xbf16>, vector<16x8xbf16>, vector<8x16xf32> -> vector<8x16xf32>
    %161 = vector.broadcast %7 : vector<1x16xf32> to vector<8x16xf32>
    %162 = arith.addf %160, %161 : vector<8x16xf32>
    %cst_67 = arith.constant dense<0xFF800000> : vector<8xf32>
    %163 = vector.multi_reduction <maximumf>, %162, %cst_67 [1] : vector<8x16xf32> to vector<8xf32>
    %164 = vector.shape_cast %163 : vector<8xf32> to vector<8x1xf32>
    %165 = vector.broadcast %164 : vector<8x1xf32> to vector<8x16xf32>
    %166 = arith.subf %162, %165 : vector<8x16xf32>
    %167 = math.exp %166 : vector<8x16xf32>
    %cst_68 = arith.constant dense<0.000000e+00> : vector<8xf32>
    %168 = vector.multi_reduction <add>, %167, %cst_68 [1] : vector<8x16xf32> to vector<8xf32>
    %169 = vector.shape_cast %168 : vector<8xf32> to vector<8x1xf32>
    %170 = tpu.reciprocal %169 {approx = true} : vector<8x1xf32> -> vector<8x1xf32>
    %171 = vector.broadcast %170 : vector<8x1xf32> to vector<8x16xf32>
    %172 = arith.mulf %167, %171 : vector<8x16xf32>
    %173 = arith.truncf %172 : vector<8x16xf32> to vector<8x16xbf16>
    %174 = vector.extract_strided_slice %155 {offsets = [0, 0], sizes = [16, 8], strides = [1, 1]} : vector<16x32xf32> to vector<16x8xf32>
    %175 = arith.truncf %174 : vector<16x8xf32> to vector<16x8xbf16>
    %cst_69 = arith.constant dense<0.000000e+00> : vector<8x8xf32>
    %176 = tpu.matmul %173, %175, %cst_69 {dimension_numbers = #tpu.dot_dimension_numbers<[1], [0], [0], [1], [0, 0, 1, 1], [], []>} : vector<8x16xbf16>, vector<16x8xbf16>, vector<8x8xf32> -> vector<8x8xf32>
    %177 = vector.extract_strided_slice %153 {offsets = [0, 8], sizes = [8, 8], strides = [1, 1]} : vector<8x32xf32> to vector<8x8xf32>
    %178 = arith.truncf %177 : vector<8x8xf32> to vector<8x8xbf16>
    %179 = vector.extract_strided_slice %154 {offsets = [0, 8], sizes = [16, 8], strides = [1, 1]} : vector<16x32xf32> to vector<16x8xf32>
    %180 = arith.truncf %179 : vector<16x8xf32> to vector<16x8xbf16>
    %cst_70 = arith.constant dense<0.000000e+00> : vector<8x16xf32>
    %181 = tpu.matmul %178, %180, %cst_70 {dimension_numbers = #tpu.dot_dimension_numbers<[1], [1], [0], [0], [0, 0, 1, 0], [], []>} : vector<8x8xbf16>, vector<16x8xbf16>, vector<8x16xf32> -> vector<8x16xf32>
    %182 = vector.broadcast %7 : vector<1x16xf32> to vector<8x16xf32>
    %183 = arith.addf %181, %182 : vector<8x16xf32>
    %cst_71 = arith.constant dense<0xFF800000> : vector<8xf32>
    %184 = vector.multi_reduction <maximumf>, %183, %cst_71 [1] : vector<8x16xf32> to vector<8xf32>
    %185 = vector.shape_cast %184 : vector<8xf32> to vector<8x1xf32>
    %186 = vector.broadcast %185 : vector<8x1xf32> to vector<8x16xf32>
    %187 = arith.subf %183, %186 : vector<8x16xf32>
    %188 = math.exp %187 : vector<8x16xf32>
    %cst_72 = arith.constant dense<0.000000e+00> : vector<8xf32>
    %189 = vector.multi_reduction <add>, %188, %cst_72 [1] : vector<8x16xf32> to vector<8xf32>
    %190 = vector.shape_cast %189 : vector<8xf32> to vector<8x1xf32>
    %191 = tpu.reciprocal %190 {approx = true} : vector<8x1xf32> -> vector<8x1xf32>
    %192 = vector.broadcast %191 : vector<8x1xf32> to vector<8x16xf32>
    %193 = arith.mulf %188, %192 : vector<8x16xf32>
    %194 = arith.truncf %193 : vector<8x16xf32> to vector<8x16xbf16>
    %195 = vector.extract_strided_slice %155 {offsets = [0, 8], sizes = [16, 8], strides = [1, 1]} : vector<16x32xf32> to vector<16x8xf32>
    %196 = arith.truncf %195 : vector<16x8xf32> to vector<16x8xbf16>
    %cst_73 = arith.constant dense<0.000000e+00> : vector<8x8xf32>
    %197 = tpu.matmul %194, %196, %cst_73 {dimension_numbers = #tpu.dot_dimension_numbers<[1], [0], [0], [1], [0, 0, 1, 1], [], []>} : vector<8x16xbf16>, vector<16x8xbf16>, vector<8x8xf32> -> vector<8x8xf32>
    %198 = vector.extract_strided_slice %153 {offsets = [0, 16], sizes = [8, 8], strides = [1, 1]} : vector<8x32xf32> to vector<8x8xf32>
    %199 = arith.truncf %198 : vector<8x8xf32> to vector<8x8xbf16>
    %200 = vector.extract_strided_slice %154 {offsets = [0, 16], sizes = [16, 8], strides = [1, 1]} : vector<16x32xf32> to vector<16x8xf32>
    %201 = arith.truncf %200 : vector<16x8xf32> to vector<16x8xbf16>
    %cst_74 = arith.constant dense<0.000000e+00> : vector<8x16xf32>
    %202 = tpu.matmul %199, %201, %cst_74 {dimension_numbers = #tpu.dot_dimension_numbers<[1], [1], [0], [0], [0, 0, 1, 0], [], []>} : vector<8x8xbf16>, vector<16x8xbf16>, vector<8x16xf32> -> vector<8x16xf32>
    %203 = vector.broadcast %7 : vector<1x16xf32> to vector<8x16xf32>
    %204 = arith.addf %202, %203 : vector<8x16xf32>
    %cst_75 = arith.constant dense<0xFF800000> : vector<8xf32>
    %205 = vector.multi_reduction <maximumf>, %204, %cst_75 [1] : vector<8x16xf32> to vector<8xf32>
    %206 = vector.shape_cast %205 : vector<8xf32> to vector<8x1xf32>
    %207 = vector.broadcast %206 : vector<8x1xf32> to vector<8x16xf32>
    %208 = arith.subf %204, %207 : vector<8x16xf32>
    %209 = math.exp %208 : vector<8x16xf32>
    %cst_76 = arith.constant dense<0.000000e+00> : vector<8xf32>
    %210 = vector.multi_reduction <add>, %209, %cst_76 [1] : vector<8x16xf32> to vector<8xf32>
    %211 = vector.shape_cast %210 : vector<8xf32> to vector<8x1xf32>
    %212 = tpu.reciprocal %211 {approx = true} : vector<8x1xf32> -> vector<8x1xf32>
    %213 = vector.broadcast %212 : vector<8x1xf32> to vector<8x16xf32>
    %214 = arith.mulf %209, %213 : vector<8x16xf32>
    %215 = arith.truncf %214 : vector<8x16xf32> to vector<8x16xbf16>
    %216 = vector.extract_strided_slice %155 {offsets = [0, 16], sizes = [16, 8], strides = [1, 1]} : vector<16x32xf32> to vector<16x8xf32>
    %217 = arith.truncf %216 : vector<16x8xf32> to vector<16x8xbf16>
    %cst_77 = arith.constant dense<0.000000e+00> : vector<8x8xf32>
    %218 = tpu.matmul %215, %217, %cst_77 {dimension_numbers = #tpu.dot_dimension_numbers<[1], [0], [0], [1], [0, 0, 1, 1], [], []>} : vector<8x16xbf16>, vector<16x8xbf16>, vector<8x8xf32> -> vector<8x8xf32>
    %219 = vector.extract_strided_slice %153 {offsets = [0, 24], sizes = [8, 8], strides = [1, 1]} : vector<8x32xf32> to vector<8x8xf32>
    %220 = arith.truncf %219 : vector<8x8xf32> to vector<8x8xbf16>
    %221 = vector.extract_strided_slice %154 {offsets = [0, 24], sizes = [16, 8], strides = [1, 1]} : vector<16x32xf32> to vector<16x8xf32>
    %222 = arith.truncf %221 : vector<16x8xf32> to vector<16x8xbf16>
    %cst_78 = arith.constant dense<0.000000e+00> : vector<8x16xf32>
    %223 = tpu.matmul %220, %222, %cst_78 {dimension_numbers = #tpu.dot_dimension_numbers<[1], [1], [0], [0], [0, 0, 1, 0], [], []>} : vector<8x8xbf16>, vector<16x8xbf16>, vector<8x16xf32> -> vector<8x16xf32>
    %224 = vector.broadcast %7 : vector<1x16xf32> to vector<8x16xf32>
    %225 = arith.addf %223, %224 : vector<8x16xf32>
    %cst_79 = arith.constant dense<0xFF800000> : vector<8xf32>
    %226 = vector.multi_reduction <maximumf>, %225, %cst_79 [1] : vector<8x16xf32> to vector<8xf32>
    %227 = vector.shape_cast %226 : vector<8xf32> to vector<8x1xf32>
    %228 = vector.broadcast %227 : vector<8x1xf32> to vector<8x16xf32>
    %229 = arith.subf %225, %228 : vector<8x16xf32>
    %230 = math.exp %229 : vector<8x16xf32>
    %cst_80 = arith.constant dense<0.000000e+00> : vector<8xf32>
    %231 = vector.multi_reduction <add>, %230, %cst_80 [1] : vector<8x16xf32> to vector<8xf32>
    %232 = vector.shape_cast %231 : vector<8xf32> to vector<8x1xf32>
    %233 = tpu.reciprocal %232 {approx = true} : vector<8x1xf32> -> vector<8x1xf32>
    %234 = vector.broadcast %233 : vector<8x1xf32> to vector<8x16xf32>
    %235 = arith.mulf %230, %234 : vector<8x16xf32>
    %236 = arith.truncf %235 : vector<8x16xf32> to vector<8x16xbf16>
    %237 = vector.extract_strided_slice %155 {offsets = [0, 24], sizes = [16, 8], strides = [1, 1]} : vector<16x32xf32> to vector<16x8xf32>
    %238 = arith.truncf %237 : vector<16x8xf32> to vector<16x8xbf16>
    %cst_81 = arith.constant dense<0.000000e+00> : vector<8x8xf32>
    %239 = tpu.matmul %236, %238, %cst_81 {dimension_numbers = #tpu.dot_dimension_numbers<[1], [0], [0], [1], [0, 0, 1, 1], [], []>} : vector<8x16xbf16>, vector<16x8xbf16>, vector<8x8xf32> -> vector<8x8xf32>
    %240 = tpu.concatenate %176, %197, %218, %239 in 1 : vector<8x8xf32>, vector<8x8xf32>, vector<8x8xf32>, vector<8x8xf32> -> vector<8x32xf32>
    %241 = arith.truncf %240 : vector<8x32xf32> to vector<8x32xbf16>
    %cst_82 = arith.constant dense<0.000000e+00> : vector<8x32xf32>
    %242 = tpu.matmul %241, %142, %cst_82 {dimension_numbers = #tpu.dot_dimension_numbers<[1], [0], [0], [1], [0, 0, 1, 1], [], []>} : vector<8x32xbf16>, vector<32x32xbf16>, vector<8x32xf32> -> vector<8x32xf32>
    %243 = vector.broadcast %143 : vector<1x32xf32> to vector<8x32xf32>
    %244 = arith.addf %242, %243 : vector<8x32xf32>
    %245 = arith.addf %137, %244 : vector<8x32xf32>
    %c0_83 = arith.constant 0 : index
    %c0_84 = arith.constant 0 : index
    %246 = vector.load %arg19[%c0_83, %c0_84] : memref<1x32xf32, #tpu.memory_space<vmem>>, vector<1x32xf32>
    %c0_85 = arith.constant 0 : index
    %c0_86 = arith.constant 0 : index
    %247 = vector.load %arg20[%c0_85, %c0_86] : memref<1x32xf32, #tpu.memory_space<vmem>>, vector<1x32xf32>
    %cst_87 = arith.constant dense<0.000000e+00> : vector<8xf32>
    %248 = vector.multi_reduction <add>, %245, %cst_87 [1] : vector<8x32xf32> to vector<8xf32>
    %249 = vector.shape_cast %248 : vector<8xf32> to vector<8x1xf32>
    %cst_88 = arith.constant 3.200000e+01 : f32
    %250 = vector.broadcast %cst_88 : f32 to vector<8x1xf32>
    %251 = arith.divf %249, %250 : vector<8x1xf32>
    %252 = vector.broadcast %251 : vector<8x1xf32> to vector<8x32xf32>
    %253 = arith.subf %245, %252 : vector<8x32xf32>
    %254 = arith.mulf %253, %253 : vector<8x32xf32>
    %cst_89 = arith.constant dense<0.000000e+00> : vector<8xf32>
    %255 = vector.multi_reduction <add>, %254, %cst_89 [1] : vector<8x32xf32> to vector<8xf32>
    %256 = vector.shape_cast %255 : vector<8xf32> to vector<8x1xf32>
    %cst_90 = arith.constant 3.200000e+01 : f32
    %257 = vector.broadcast %cst_90 : f32 to vector<8x1xf32>
    %258 = arith.divf %256, %257 : vector<8x1xf32>
    %cst_91 = arith.constant 9.99999997E-7 : f32
    %259 = vector.broadcast %cst_91 : f32 to vector<8x1xf32>
    %260 = arith.addf %258, %259 : vector<8x1xf32>
    %261 = math.rsqrt %260 : vector<8x1xf32>
    %262 = vector.broadcast %261 : vector<8x1xf32> to vector<8x32xf32>
    %263 = arith.mulf %253, %262 : vector<8x32xf32>
    %264 = vector.broadcast %246 : vector<1x32xf32> to vector<8x32xf32>
    %265 = arith.mulf %263, %264 : vector<8x32xf32>
    %266 = vector.broadcast %247 : vector<1x32xf32> to vector<8x32xf32>
    %267 = arith.addf %265, %266 : vector<8x32xf32>
    %268 = arith.truncf %267 : vector<8x32xf32> to vector<8x32xbf16>
    %c0_92 = arith.constant 0 : index
    %c0_93 = arith.constant 0 : index
    %269 = vector.load %arg21[%c0_92, %c0_93] : memref<32x64xbf16, #tpu.memory_space<vmem>>, vector<32x64xbf16>
    %cst_94 = arith.constant dense<0.000000e+00> : vector<8x64xf32>
    %270 = tpu.matmul %268, %269, %cst_94 {dimension_numbers = #tpu.dot_dimension_numbers<[1], [0], [0], [1], [0, 0, 1, 1], [], []>} : vector<8x32xbf16>, vector<32x64xbf16>, vector<8x64xf32> -> vector<8x64xf32>
    %c0_95 = arith.constant 0 : index
    %c0_96 = arith.constant 0 : index
    %271 = vector.load %arg22[%c0_95, %c0_96] : memref<1x64xf32, #tpu.memory_space<vmem>>, vector<1x64xf32>
    %272 = vector.broadcast %271 : vector<1x64xf32> to vector<8x64xf32>
    %273 = arith.addf %270, %272 : vector<8x64xf32>
    %cst_97 = arith.constant 0.000000e+00 : f32
    %274 = vector.broadcast %cst_97 : f32 to vector<8x64xf32>
    %275 = arith.maximumf %273, %274 : vector<8x64xf32>
    %276 = arith.truncf %275 : vector<8x64xf32> to vector<8x64xbf16>
    %c0_98 = arith.constant 0 : index
    %c0_99 = arith.constant 0 : index
    %277 = vector.load %arg23[%c0_98, %c0_99] : memref<64x32xbf16, #tpu.memory_space<vmem>>, vector<64x32xbf16>
    %cst_100 = arith.constant dense<0.000000e+00> : vector<8x32xf32>
    %278 = tpu.matmul %276, %277, %cst_100 {dimension_numbers = #tpu.dot_dimension_numbers<[1], [0], [0], [1], [0, 0, 1, 1], [], []>} : vector<8x64xbf16>, vector<64x32xbf16>, vector<8x32xf32> -> vector<8x32xf32>
    %c0_101 = arith.constant 0 : index
    %c0_102 = arith.constant 0 : index
    %279 = vector.load %arg24[%c0_101, %c0_102] : memref<1x32xf32, #tpu.memory_space<vmem>>, vector<1x32xf32>
    %280 = vector.broadcast %279 : vector<1x32xf32> to vector<8x32xf32>
    %281 = arith.addf %278, %280 : vector<8x32xf32>
    %282 = arith.addf %267, %281 : vector<8x32xf32>
    %c0_103 = arith.constant 0 : index
    %c0_104 = arith.constant 0 : index
    %283 = vector.load %arg25[%c0_103, %c0_104] : memref<1x32xf32, #tpu.memory_space<vmem>>, vector<1x32xf32>
    %c0_105 = arith.constant 0 : index
    %c0_106 = arith.constant 0 : index
    %284 = vector.load %arg26[%c0_105, %c0_106] : memref<1x32xf32, #tpu.memory_space<vmem>>, vector<1x32xf32>
    %cst_107 = arith.constant dense<0.000000e+00> : vector<8xf32>
    %285 = vector.multi_reduction <add>, %282, %cst_107 [1] : vector<8x32xf32> to vector<8xf32>
    %286 = vector.shape_cast %285 : vector<8xf32> to vector<8x1xf32>
    %cst_108 = arith.constant 3.200000e+01 : f32
    %287 = vector.broadcast %cst_108 : f32 to vector<8x1xf32>
    %288 = arith.divf %286, %287 : vector<8x1xf32>
    %289 = vector.broadcast %288 : vector<8x1xf32> to vector<8x32xf32>
    %290 = arith.subf %282, %289 : vector<8x32xf32>
    %291 = arith.mulf %290, %290 : vector<8x32xf32>
    %cst_109 = arith.constant dense<0.000000e+00> : vector<8xf32>
    %292 = vector.multi_reduction <add>, %291, %cst_109 [1] : vector<8x32xf32> to vector<8xf32>
    %293 = vector.shape_cast %292 : vector<8xf32> to vector<8x1xf32>
    %cst_110 = arith.constant 3.200000e+01 : f32
    %294 = vector.broadcast %cst_110 : f32 to vector<8x1xf32>
    %295 = arith.divf %293, %294 : vector<8x1xf32>
    %cst_111 = arith.constant 9.99999997E-7 : f32
    %296 = vector.broadcast %cst_111 : f32 to vector<8x1xf32>
    %297 = arith.addf %295, %296 : vector<8x1xf32>
    %298 = math.rsqrt %297 : vector<8x1xf32>
    %299 = vector.broadcast %298 : vector<8x1xf32> to vector<8x32xf32>
    %300 = arith.mulf %290, %299 : vector<8x32xf32>
    %301 = vector.broadcast %283 : vector<1x32xf32> to vector<8x32xf32>
    %302 = arith.mulf %300, %301 : vector<8x32xf32>
    %303 = vector.broadcast %284 : vector<1x32xf32> to vector<8x32xf32>
    %304 = arith.addf %302, %303 : vector<8x32xf32>
    %c0_112 = arith.constant 0 : index
    %c0_113 = arith.constant 0 : index
    %c0_114 = arith.constant 0 : index
    %305 = vector.load %arg27[%c0_112, %c0_113, %c0_114] : memref<1x8x32xf32, #tpu.memory_space<vmem>>, vector<1x8x32xf32>
    %306 = vector.shape_cast %305 : vector<1x8x32xf32> to vector<8x32xf32>
    %307 = vector.shape_cast %304 : vector<8x32xf32> to vector<1x8x32xf32>
    tpu.vector_store %arg27[%c0_112, %c0_113, %c0_114], %307 {strides = array<i32>} : memref<1x8x32xf32, #tpu.memory_space<vmem>>, vector<1x8x32xf32>,
    return
  }
  func.func @transform_0(%arg0: i32) -> (i32, i32, i32) {
    %c0_i32 = arith.constant 0 : i32
    %c0_i32_0 = arith.constant 0 : i32
    %c0_i32_1 = arith.constant 0 : i32
    return %arg0, %c0_i32, %c0_i32_0 : i32, i32, i32
  }
  func.func @transform_1(%arg0: i32) -> (i32, i32, i32) {
    %c0_i32 = arith.constant 0 : i32
    %c0_i32_0 = arith.constant 0 : i32
    %c0_i32_1 = arith.constant 0 : i32
    return %arg0, %c0_i32, %c0_i32_0 : i32, i32, i32
  }
  func.func @transform_2(%arg0: i32) -> (i32, i32, i32) {
    %c0_i32 = arith.constant 0 : i32
    %c0_i32_0 = arith.constant 0 : i32
    %c0_i32_1 = arith.constant 0 : i32
    return %arg0, %c0_i32, %c0_i32_0 : i32, i32, i32
  }
  func.func @transform_3(%arg0: i32) -> (i32, i32, i32) {
    %c0_i32 = arith.constant 0 : i32
    %c0_i32_0 = arith.constant 0 : i32
    %c0_i32_1 = arith.constant 0 : i32
    return %arg0, %c0_i32, %c0_i32_0 : i32, i32, i32
  }
  func.func @transform_4(%arg0: i32) -> (i32, i32) {
    %c0_i32 = arith.constant 0 : i32
    %c0_i32_0 = arith.constant 0 : i32
    %c0_i32_1 = arith.constant 0 : i32
    return %c0_i32, %c0_i32_0 : i32, i32
  }
  func.func @transform_5(%arg0: i32) -> (i32, i32) {
    %c0_i32 = arith.constant 0 : i32
    %c0_i32_0 = arith.constant 0 : i32
    %c0_i32_1 = arith.constant 0 : i32
    return %c0_i32, %c0_i32_0 : i32, i32
  }
  func.func @transform_6(%arg0: i32) -> (i32, i32) {
    %c0_i32 = arith.constant 0 : i32
    %c0_i32_0 = arith.constant 0 : i32
    %c0_i32_1 = arith.constant 0 : i32
    return %c0_i32, %c0_i32_0 : i32, i32
  }
  func.func @transform_7(%arg0: i32) -> (i32, i32) {
    %c0_i32 = arith.constant 0 : i32
    %c0_i32_0 = arith.constant 0 : i32
    %c0_i32_1 = arith.constant 0 : i32
    return %c0_i32, %c0_i32_0 : i32, i32
  }
  func.func @transform_8(%arg0: i32) -> (i32, i32) {
    %c0_i32 = arith.constant 0 : i32
    %c0_i32_0 = arith.constant 0 : i32
    %c0_i32_1 = arith.constant 0 : i32
    return %c0_i32, %c0_i32_0 : i32, i32
  }
  func.func @transform_9(%arg0: i32) -> (i32, i32) {
    %c0_i32 = arith.constant 0 : i32
    %c0_i32_0 = arith.constant 0 : i32
    %c0_i32_1 = arith.constant 0 : i32
    return %c0_i32, %c0_i32_0 : i32, i32
  }
  func.func @transform_10(%arg0: i32) -> (i32, i32) {
    %c0_i32 = arith.constant 0 : i32
    %c0_i32_0 = arith.constant 0 : i32
    %c0_i32_1 = arith.constant 0 : i32
    return %c0_i32, %c0_i32_0 : i32, i32
  }
  func.func @transform_11(%arg0: i32) -> (i32, i32) {
    %c0_i32 = arith.constant 0 : i32
    %c0_i32_0 = arith.constant 0 : i32
    %c0_i32_1 = arith.constant 0 : i32
    return %c0_i32, %c0_i32_0 : i32, i32
  }
  func.func @transform_12(%arg0: i32) -> (i32, i32) {
    %c0_i32 = arith.constant 0 : i32
    %c0_i32_0 = arith.constant 0 : i32
    %c0_i32_1 = arith.constant 0 : i32
    return %c0_i32, %c0_i32_0 : i32, i32
  }
  func.func @transform_13(%arg0: i32) -> (i32, i32) {
    %c0_i32 = arith.constant 0 : i32
    %c0_i32_0 = arith.constant 0 : i32
    %c0_i32_1 = arith.constant 0 : i32
    return %c0_i32, %c0_i32_0 : i32, i32
  }
  func.func @transform_14(%arg0: i32) -> (i32, i32) {
    %c0_i32 = arith.constant 0 : i32
    %c0_i32_0 = arith.constant 0 : i32
    %c0_i32_1 = arith.constant 0 : i32
    return %c0_i32, %c0_i32_0 : i32, i32
  }
  func.func @transform_15(%arg0: i32) -> (i32, i32) {
    %c0_i32 = arith.constant 0 : i32
    %c0_i32_0 = arith.constant 0 : i32
    %c0_i32_1 = arith.constant 0 : i32
    return %c0_i32, %c0_i32_0 : i32, i32
  }
  func.func @transform_16(%arg0: i32) -> (i32, i32) {
    %c0_i32 = arith.constant 0 : i32
    %c0_i32_0 = arith.constant 0 : i32
    %c0_i32_1 = arith.constant 0 : i32
    return %c0_i32, %c0_i32_0 : i32, i32
  }
  func.func @transform_17(%arg0: i32) -> (i32, i32) {
    %c0_i32 = arith.constant 0 : i32
    %c0_i32_0 = arith.constant 0 : i32
    %c0_i32_1 = arith.constant 0 : i32
    return %c0_i32, %c0_i32_0 : i32, i32
  }
  func.func @transform_18(%arg0: i32) -> (i32, i32) {
    %c0_i32 = arith.constant 0 : i32
    %c0_i32_0 = arith.constant 0 : i32
    %c0_i32_1 = arith.constant 0 : i32
    return %c0_i32, %c0_i32_0 : i32, i32
  }
  func.func @transform_19(%arg0: i32) -> (i32, i32) {
    %c0_i32 = arith.constant 0 : i32
    %c0_i32_0 = arith.constant 0 : i32
    %c0_i32_1 = arith.constant 0 : i32
    return %c0_i32, %c0_i32_0 : i32, i32
  }
  func.func @transform_20(%arg0: i32) -> (i32, i32) {
    %c0_i32 = arith.constant 0 : i32
    %c0_i32_0 = arith.constant 0 : i32
    %c0_i32_1 = arith.constant 0 : i32
    return %c0_i32, %c0_i32_0 : i32, i32
  }
  func.func @transform_21(%arg0: i32) -> (i32, i32) {
    %c0_i32 = arith.constant 0 : i32
    %c0_i32_0 = arith.constant 0 : i32
    %c0_i32_1 = arith.constant 0 : i32
    return %c0_i32, %c0_i32_0 : i32, i32
  }
  func.func @transform_22(%arg0: i32) -> (i32, i32) {
    %c0_i32 = arith.constant 0 : i32
    %c0_i32_0 = arith.constant 0 : i32
    %c0_i32_1 = arith.constant 0 : i32
    return %c0_i32, %c0_i32_0 : i32, i32
  }
  func.func @transform_23(%arg0: i32) -> (i32, i32) {
    %c0_i32 = arith.constant 0 : i32
    %c0_i32_0 = arith.constant 0 : i32
    %c0_i32_1 = arith.constant 0 : i32
    return %c0_i32, %c0_i32_0 : i32, i32
  }
  func.func @transform_24(%arg0: i32) -> (i32, i32) {
    %c0_i32 = arith.constant 0 : i32
    %c0_i32_0 = arith.constant 0 : i32
    %c0_i32_1 = arith.constant 0 : i32
    return %c0_i32, %c0_i32_0 : i32, i32
  }
  func.func @transform_25(%arg0: i32) -> (i32, i32) {
    %c0_i32 = arith.constant 0 : i32
    %c0_i32_0 = arith.constant 0 : i32
    %c0_i32_1 = arith.constant 0 : i32
    return %c0_i32, %c0_i32_0 : i32, i32
  }
  func.func @transform_26(%arg0: i32) -> (i32, i32, i32) {
    %c0_i32 = arith.constant 0 : i32
    %c0_i32_0 = arith.constant 0 : i32
    %c0_i32_1 = arith.constant 0 : i32
    return %arg0, %c0_i32, %c0_i32_0 : i32, i32, i32
  }
}

module attributes {stable_mosaic.version = 11 : i64} {
  func.func @_decoder_layer_kernel(%arg0: i32, %arg1: memref<1x16x32xf32, #tpu.memory_space<vmem>>, %arg2: memref<1x8x32xf32, #tpu.memory_space<vmem>>, %arg3: memref<1x1x16xf32, #tpu.memory_space<vmem>>, %arg4: memref<1x1x8xf32, #tpu.memory_space<vmem>>, %arg5: memref<32x32xbf16, #tpu.memory_space<vmem>>, %arg6: memref<1x32xf32, #tpu.memory_space<vmem>>, %arg7: memref<32x64xbf16, #tpu.memory_space<vmem>>, %arg8: memref<1x64xf32, #tpu.memory_space<vmem>>, %arg9: memref<32x32xbf16, #tpu.memory_space<vmem>>, %arg10: memref<1x32xf32, #tpu.memory_space<vmem>>, %arg11: memref<1x32xf32, #tpu.memory_space<vmem>>, %arg12: memref<1x32xf32, #tpu.memory_space<vmem>>, %arg13: memref<32x32xbf16, #tpu.memory_space<vmem>>, %arg14: memref<1x32xf32, #tpu.memory_space<vmem>>, %arg15: memref<32x64xbf16, #tpu.memory_space<vmem>>, %arg16: memref<1x64xf32, #tpu.memory_space<vmem>>, %arg17: memref<32x32xbf16, #tpu.memory_space<vmem>>, %arg18: memref<1x32xf32, #tpu.memory_space<vmem>>, %arg19: memref<1x32xf32, #tpu.memory_space<vmem>>, %arg20: memref<1x32xf32, #tpu.memory_space<vmem>>, %arg21: memref<32x64xbf16, #tpu.memory_space<vmem>>, %arg22: memref<1x64xf32, #tpu.memory_space<vmem>>, %arg23: memref<64x32xbf16, #tpu.memory_space<vmem>>, %arg24: memref<1x32xf32, #tpu.memory_space<vmem>>, %arg25: memref<1x32xf32, #tpu.memory_space<vmem>>, %arg26: memref<1x32xf32, #tpu.memory_space<vmem>>, %arg27: memref<1x16x32xf32, #tpu.memory_space<vmem>>) attributes {dimension_semantics = [#tpu.dimension_semantics<parallel>], iteration_bounds = array<i64: 2>, scalar_prefetch = 0 : i64, scratch_operands = 0 : i64, tpu.core_type = #tpu.core_type<tc>, window_params = [{transform_indices = @transform_0, window_bounds = array<i64: 1, 16, 32>}, {transform_indices = @transform_1, window_bounds = array<i64: 1, 8, 32>}, {transform_indices = @transform_2, window_bounds = array<i64: 1, 1, 16>}, {transform_indices = @transform_3, window_bounds = array<i64: 1, 1, 8>}, {pipeline_mode = #tpu.pipeline_mode<synchronous>, transform_indices = @transform_4, window_bounds = array<i64: 32, 32>}, {pipeline_mode = #tpu.pipeline_mode<synchronous>, transform_indices = @transform_5, window_bounds = array<i64: 1, 32>}, {pipeline_mode = #tpu.pipeline_mode<synchronous>, transform_indices = @transform_6, window_bounds = array<i64: 32, 64>}, {pipeline_mode = #tpu.pipeline_mode<synchronous>, transform_indices = @transform_7, window_bounds = array<i64: 1, 64>}, {pipeline_mode = #tpu.pipeline_mode<synchronous>, transform_indices = @transform_8, window_bounds = array<i64: 32, 32>}, {pipeline_mode = #tpu.pipeline_mode<synchronous>, transform_indices = @transform_9, window_bounds = array<i64: 1, 32>}, {pipeline_mode = #tpu.pipeline_mode<synchronous>, transform_indices = @transform_10, window_bounds = array<i64: 1, 32>}, {pipeline_mode = #tpu.pipeline_mode<synchronous>, transform_indices = @transform_11, window_bounds = array<i64: 1, 32>}, {pipeline_mode = #tpu.pipeline_mode<synchronous>, transform_indices = @transform_12, window_bounds = array<i64: 32, 32>}, {pipeline_mode = #tpu.pipeline_mode<synchronous>, transform_indices = @transform_13, window_bounds = array<i64: 1, 32>}, {pipeline_mode = #tpu.pipeline_mode<synchronous>, transform_indices = @transform_14, window_bounds = array<i64: 32, 64>}, {pipeline_mode = #tpu.pipeline_mode<synchronous>, transform_indices = @transform_15, window_bounds = array<i64: 1, 64>}, {pipeline_mode = #tpu.pipeline_mode<synchronous>, transform_indices = @transform_16, window_bounds = array<i64: 32, 32>}, {pipeline_mode = #tpu.pipeline_mode<synchronous>, transform_indices = @transform_17, window_bounds = array<i64: 1, 32>}, {pipeline_mode = #tpu.pipeline_mode<synchronous>, transform_indices = @transform_18, window_bounds = array<i64: 1, 32>}, {pipeline_mode = #tpu.pipeline_mode<synchronous>, transform_indices = @transform_19, window_bounds = array<i64: 1, 32>}, {pipeline_mode = #tpu.pipeline_mode<synchronous>, transform_indices = @transform_20, window_bounds = array<i64: 32, 64>}, {pipeline_mode = #tpu.pipeline_mode<synchronous>, transform_indices = @transform_21, window_bounds = array<i64: 1, 64>}, {pipeline_mode = #tpu.pipeline_mode<synchronous>, transform_indices = @transform_22, window_bounds = array<i64: 64, 32>}, {pipeline_mode = #tpu.pipeline_mode<synchronous>, transform_indices = @transform_23, window_bounds = array<i64: 1, 32>}, {pipeline_mode = #tpu.pipeline_mode<synchronous>, transform_indices = @transform_24, window_bounds = array<i64: 1, 32>}, {pipeline_mode = #tpu.pipeline_mode<synchronous>, transform_indices = @transform_25, window_bounds = array<i64: 1, 32>}, {transform_indices = @transform_26, window_bounds = array<i64: 1, 16, 32>}]} {
    %c0 = arith.constant 0 : index
    %c0_0 = arith.constant 0 : index
    %c0_1 = arith.constant 0 : index
    %0 = vector.load %arg1[%c0, %c0_0, %c0_1] : memref<1x16x32xf32, #tpu.memory_space<vmem>>, vector<1x16x32xf32>
    %1 = vector.shape_cast %0 : vector<1x16x32xf32> to vector<16x32xf32>
    %c0_2 = arith.constant 0 : index
    %c0_3 = arith.constant 0 : index
    %c0_4 = arith.constant 0 : index
    %2 = vector.load %arg2[%c0_2, %c0_3, %c0_4] : memref<1x8x32xf32, #tpu.memory_space<vmem>>, vector<1x8x32xf32>
    %3 = vector.shape_cast %2 : vector<1x8x32xf32> to vector<8x32xf32>
    %c0_5 = arith.constant 0 : index
    %c0_6 = arith.constant 0 : index
    %c0_7 = arith.constant 0 : index
    %4 = vector.load %arg3[%c0_5, %c0_6, %c0_7] : memref<1x1x16xf32, #tpu.memory_space<vmem>>, vector<1x1x16xf32>
    %5 = vector.shape_cast %4 : vector<1x1x16xf32> to vector<1x16xf32>
    %c0_8 = arith.constant 0 : index
    %c0_9 = arith.constant 0 : index
    %c0_10 = arith.constant 0 : index
    %6 = vector.load %arg4[%c0_8, %c0_9, %c0_10] : memref<1x1x8xf32, #tpu.memory_space<vmem>>, vector<1x1x8xf32>
    %7 = vector.shape_cast %6 : vector<1x1x8xf32> to vector<1x8xf32>
    %c0_11 = arith.constant 0 : index
    %c0_12 = arith.constant 0 : index
    %8 = vector.load %arg5[%c0_11, %c0_12] : memref<32x32xbf16, #tpu.memory_space<vmem>>, vector<32x32xbf16>
    %c0_13 = arith.constant 0 : index
    %c0_14 = arith.constant 0 : index
    %9 = vector.load %arg6[%c0_13, %c0_14] : memref<1x32xf32, #tpu.memory_space<vmem>>, vector<1x32xf32>
    %c0_15 = arith.constant 0 : index
    %c0_16 = arith.constant 0 : index
    %10 = vector.load %arg7[%c0_15, %c0_16] : memref<32x64xbf16, #tpu.memory_space<vmem>>, vector<32x64xbf16>
    %c0_17 = arith.constant 0 : index
    %c0_18 = arith.constant 0 : index
    %11 = vector.load %arg8[%c0_17, %c0_18] : memref<1x64xf32, #tpu.memory_space<vmem>>, vector<1x64xf32>
    %c0_19 = arith.constant 0 : index
    %c0_20 = arith.constant 0 : index
    %12 = vector.load %arg9[%c0_19, %c0_20] : memref<32x32xbf16, #tpu.memory_space<vmem>>, vector<32x32xbf16>
    %c0_21 = arith.constant 0 : index
    %c0_22 = arith.constant 0 : index
    %13 = vector.load %arg10[%c0_21, %c0_22] : memref<1x32xf32, #tpu.memory_space<vmem>>, vector<1x32xf32>
    %14 = arith.truncf %1 : vector<16x32xf32> to vector<16x32xbf16>
    %cst = arith.constant dense<0.000000e+00> : vector<16x32xf32>
    %15 = tpu.matmul %14, %8, %cst {dimension_numbers = #tpu.dot_dimension_numbers<[1], [0], [0], [1], [0, 0, 1, 1], [], []>} : vector<16x32xbf16>, vector<32x32xbf16>, vector<16x32xf32> -> vector<16x32xf32>
    %16 = vector.broadcast %9 : vector<1x32xf32> to vector<16x32xf32>
    %17 = arith.addf %15, %16 : vector<16x32xf32>
    %18 = arith.truncf %1 : vector<16x32xf32> to vector<16x32xbf16>
    %cst_23 = arith.constant dense<0.000000e+00> : vector<16x64xf32>
    %19 = tpu.matmul %18, %10, %cst_23 {dimension_numbers = #tpu.dot_dimension_numbers<[1], [0], [0], [1], [0, 0, 1, 1], [], []>} : vector<16x32xbf16>, vector<32x64xbf16>, vector<16x64xf32> -> vector<16x64xf32>
    %20 = vector.broadcast %11 : vector<1x64xf32> to vector<16x64xf32>
    %21 = arith.addf %19, %20 : vector<16x64xf32>
    %cst_24 = arith.constant 0.353553385 : f32
    %22 = vector.broadcast %cst_24 : f32 to vector<16x32xf32>
    %23 = arith.mulf %17, %22 : vector<16x32xf32>
    %24 = vector.extract_strided_slice %21 {offsets = [0, 0], sizes = [16, 32], strides = [1, 1]} : vector<16x64xf32> to vector<16x32xf32>
    %25 = vector.extract_strided_slice %21 {offsets = [0, 32], sizes = [16, 32], strides = [1, 1]} : vector<16x64xf32> to vector<16x32xf32>
    %26 = vector.extract_strided_slice %23 {offsets = [0, 0], sizes = [16, 8], strides = [1, 1]} : vector<16x32xf32> to vector<16x8xf32>
    %27 = arith.truncf %26 : vector<16x8xf32> to vector<16x8xbf16>
    %28 = vector.extract_strided_slice %24 {offsets = [0, 0], sizes = [16, 8], strides = [1, 1]} : vector<16x32xf32> to vector<16x8xf32>
    %29 = arith.truncf %28 : vector<16x8xf32> to vector<16x8xbf16>
    %cst_25 = arith.constant dense<0.000000e+00> : vector<16x16xf32>
    %30 = tpu.matmul %27, %29, %cst_25 {dimension_numbers = #tpu.dot_dimension_numbers<[1], [1], [0], [0], [0, 0, 1, 0], [], []>} : vector<16x8xbf16>, vector<16x8xbf16>, vector<16x16xf32> -> vector<16x16xf32>
    %31 = vector.broadcast %5 : vector<1x16xf32> to vector<16x16xf32>
    %32 = arith.addf %30, %31 : vector<16x16xf32>
    %cst_26 = arith.constant dense<0xFF800000> : vector<16xf32>
    %33 = vector.multi_reduction <maximumf>, %32, %cst_26 [1] : vector<16x16xf32> to vector<16xf32>
    %34 = vector.shape_cast %33 : vector<16xf32> to vector<16x1xf32>
    %35 = vector.broadcast %34 : vector<16x1xf32> to vector<16x16xf32>
    %36 = arith.subf %32, %35 : vector<16x16xf32>
    %37 = math.exp %36 : vector<16x16xf32>
    %cst_27 = arith.constant dense<0.000000e+00> : vector<16xf32>
    %38 = vector.multi_reduction <add>, %37, %cst_27 [1] : vector<16x16xf32> to vector<16xf32>
    %39 = vector.shape_cast %38 : vector<16xf32> to vector<16x1xf32>
    %40 = tpu.reciprocal %39 {approx = true} : vector<16x1xf32> -> vector<16x1xf32>
    %41 = vector.broadcast %40 : vector<16x1xf32> to vector<16x16xf32>
    %42 = arith.mulf %37, %41 : vector<16x16xf32>
    %43 = arith.truncf %42 : vector<16x16xf32> to vector<16x16xbf16>
    %44 = vector.extract_strided_slice %25 {offsets = [0, 0], sizes = [16, 8], strides = [1, 1]} : vector<16x32xf32> to vector<16x8xf32>
    %45 = arith.truncf %44 : vector<16x8xf32> to vector<16x8xbf16>
    %cst_28 = arith.constant dense<0.000000e+00> : vector<16x8xf32>
    %46 = tpu.matmul %43, %45, %cst_28 {dimension_numbers = #tpu.dot_dimension_numbers<[1], [0], [0], [1], [0, 0, 1, 1], [], []>} : vector<16x16xbf16>, vector<16x8xbf16>, vector<16x8xf32> -> vector<16x8xf32>
    %47 = vector.extract_strided_slice %23 {offsets = [0, 8], sizes = [16, 8], strides = [1, 1]} : vector<16x32xf32> to vector<16x8xf32>
    %48 = arith.truncf %47 : vector<16x8xf32> to vector<16x8xbf16>
    %49 = vector.extract_strided_slice %24 {offsets = [0, 8], sizes = [16, 8], strides = [1, 1]} : vector<16x32xf32> to vector<16x8xf32>
    %50 = arith.truncf %49 : vector<16x8xf32> to vector<16x8xbf16>
    %cst_29 = arith.constant dense<0.000000e+00> : vector<16x16xf32>
    %51 = tpu.matmul %48, %50, %cst_29 {dimension_numbers = #tpu.dot_dimension_numbers<[1], [1], [0], [0], [0, 0, 1, 0], [], []>} : vector<16x8xbf16>, vector<16x8xbf16>, vector<16x16xf32> -> vector<16x16xf32>
    %52 = vector.broadcast %5 : vector<1x16xf32> to vector<16x16xf32>
    %53 = arith.addf %51, %52 : vector<16x16xf32>
    %cst_30 = arith.constant dense<0xFF800000> : vector<16xf32>
    %54 = vector.multi_reduction <maximumf>, %53, %cst_30 [1] : vector<16x16xf32> to vector<16xf32>
    %55 = vector.shape_cast %54 : vector<16xf32> to vector<16x1xf32>
    %56 = vector.broadcast %55 : vector<16x1xf32> to vector<16x16xf32>
    %57 = arith.subf %53, %56 : vector<16x16xf32>
    %58 = math.exp %57 : vector<16x16xf32>
    %cst_31 = arith.constant dense<0.000000e+00> : vector<16xf32>
    %59 = vector.multi_reduction <add>, %58, %cst_31 [1] : vector<16x16xf32> to vector<16xf32>
    %60 = vector.shape_cast %59 : vector<16xf32> to vector<16x1xf32>
    %61 = tpu.reciprocal %60 {approx = true} : vector<16x1xf32> -> vector<16x1xf32>
    %62 = vector.broadcast %61 : vector<16x1xf32> to vector<16x16xf32>
    %63 = arith.mulf %58, %62 : vector<16x16xf32>
    %64 = arith.truncf %63 : vector<16x16xf32> to vector<16x16xbf16>
    %65 = vector.extract_strided_slice %25 {offsets = [0, 8], sizes = [16, 8], strides = [1, 1]} : vector<16x32xf32> to vector<16x8xf32>
    %66 = arith.truncf %65 : vector<16x8xf32> to vector<16x8xbf16>
    %cst_32 = arith.constant dense<0.000000e+00> : vector<16x8xf32>
    %67 = tpu.matmul %64, %66, %cst_32 {dimension_numbers = #tpu.dot_dimension_numbers<[1], [0], [0], [1], [0, 0, 1, 1], [], []>} : vector<16x16xbf16>, vector<16x8xbf16>, vector<16x8xf32> -> vector<16x8xf32>
    %68 = vector.extract_strided_slice %23 {offsets = [0, 16], sizes = [16, 8], strides = [1, 1]} : vector<16x32xf32> to vector<16x8xf32>
    %69 = arith.truncf %68 : vector<16x8xf32> to vector<16x8xbf16>
    %70 = vector.extract_strided_slice %24 {offsets = [0, 16], sizes = [16, 8], strides = [1, 1]} : vector<16x32xf32> to vector<16x8xf32>
    %71 = arith.truncf %70 : vector<16x8xf32> to vector<16x8xbf16>
    %cst_33 = arith.constant dense<0.000000e+00> : vector<16x16xf32>
    %72 = tpu.matmul %69, %71, %cst_33 {dimension_numbers = #tpu.dot_dimension_numbers<[1], [1], [0], [0], [0, 0, 1, 0], [], []>} : vector<16x8xbf16>, vector<16x8xbf16>, vector<16x16xf32> -> vector<16x16xf32>
    %73 = vector.broadcast %5 : vector<1x16xf32> to vector<16x16xf32>
    %74 = arith.addf %72, %73 : vector<16x16xf32>
    %cst_34 = arith.constant dense<0xFF800000> : vector<16xf32>
    %75 = vector.multi_reduction <maximumf>, %74, %cst_34 [1] : vector<16x16xf32> to vector<16xf32>
    %76 = vector.shape_cast %75 : vector<16xf32> to vector<16x1xf32>
    %77 = vector.broadcast %76 : vector<16x1xf32> to vector<16x16xf32>
    %78 = arith.subf %74, %77 : vector<16x16xf32>
    %79 = math.exp %78 : vector<16x16xf32>
    %cst_35 = arith.constant dense<0.000000e+00> : vector<16xf32>
    %80 = vector.multi_reduction <add>, %79, %cst_35 [1] : vector<16x16xf32> to vector<16xf32>
    %81 = vector.shape_cast %80 : vector<16xf32> to vector<16x1xf32>
    %82 = tpu.reciprocal %81 {approx = true} : vector<16x1xf32> -> vector<16x1xf32>
    %83 = vector.broadcast %82 : vector<16x1xf32> to vector<16x16xf32>
    %84 = arith.mulf %79, %83 : vector<16x16xf32>
    %85 = arith.truncf %84 : vector<16x16xf32> to vector<16x16xbf16>
    %86 = vector.extract_strided_slice %25 {offsets = [0, 16], sizes = [16, 8], strides = [1, 1]} : vector<16x32xf32> to vector<16x8xf32>
    %87 = arith.truncf %86 : vector<16x8xf32> to vector<16x8xbf16>
    %cst_36 = arith.constant dense<0.000000e+00> : vector<16x8xf32>
    %88 = tpu.matmul %85, %87, %cst_36 {dimension_numbers = #tpu.dot_dimension_numbers<[1], [0], [0], [1], [0, 0, 1, 1], [], []>} : vector<16x16xbf16>, vector<16x8xbf16>, vector<16x8xf32> -> vector<16x8xf32>
    %89 = vector.extract_strided_slice %23 {offsets = [0, 24], sizes = [16, 8], strides = [1, 1]} : vector<16x32xf32> to vector<16x8xf32>
    %90 = arith.truncf %89 : vector<16x8xf32> to vector<16x8xbf16>
    %91 = vector.extract_strided_slice %24 {offsets = [0, 24], sizes = [16, 8], strides = [1, 1]} : vector<16x32xf32> to vector<16x8xf32>
    %92 = arith.truncf %91 : vector<16x8xf32> to vector<16x8xbf16>
    %cst_37 = arith.constant dense<0.000000e+00> : vector<16x16xf32>
    %93 = tpu.matmul %90, %92, %cst_37 {dimension_numbers = #tpu.dot_dimension_numbers<[1], [1], [0], [0], [0, 0, 1, 0], [], []>} : vector<16x8xbf16>, vector<16x8xbf16>, vector<16x16xf32> -> vector<16x16xf32>
    %94 = vector.broadcast %5 : vector<1x16xf32> to vector<16x16xf32>
    %95 = arith.addf %93, %94 : vector<16x16xf32>
    %cst_38 = arith.constant dense<0xFF800000> : vector<16xf32>
    %96 = vector.multi_reduction <maximumf>, %95, %cst_38 [1] : vector<16x16xf32> to vector<16xf32>
    %97 = vector.shape_cast %96 : vector<16xf32> to vector<16x1xf32>
    %98 = vector.broadcast %97 : vector<16x1xf32> to vector<16x16xf32>
    %99 = arith.subf %95, %98 : vector<16x16xf32>
    %100 = math.exp %99 : vector<16x16xf32>
    %cst_39 = arith.constant dense<0.000000e+00> : vector<16xf32>
    %101 = vector.multi_reduction <add>, %100, %cst_39 [1] : vector<16x16xf32> to vector<16xf32>
    %102 = vector.shape_cast %101 : vector<16xf32> to vector<16x1xf32>
    %103 = tpu.reciprocal %102 {approx = true} : vector<16x1xf32> -> vector<16x1xf32>
    %104 = vector.broadcast %103 : vector<16x1xf32> to vector<16x16xf32>
    %105 = arith.mulf %100, %104 : vector<16x16xf32>
    %106 = arith.truncf %105 : vector<16x16xf32> to vector<16x16xbf16>
    %107 = vector.extract_strided_slice %25 {offsets = [0, 24], sizes = [16, 8], strides = [1, 1]} : vector<16x32xf32> to vector<16x8xf32>
    %108 = arith.truncf %107 : vector<16x8xf32> to vector<16x8xbf16>
    %cst_40 = arith.constant dense<0.000000e+00> : vector<16x8xf32>
    %109 = tpu.matmul %106, %108, %cst_40 {dimension_numbers = #tpu.dot_dimension_numbers<[1], [0], [0], [1], [0, 0, 1, 1], [], []>} : vector<16x16xbf16>, vector<16x8xbf16>, vector<16x8xf32> -> vector<16x8xf32>
    %110 = tpu.concatenate %46, %67, %88, %109 in 1 : vector<16x8xf32>, vector<16x8xf32>, vector<16x8xf32>, vector<16x8xf32> -> vector<16x32xf32>
    %111 = arith.truncf %110 : vector<16x32xf32> to vector<16x32xbf16>
    %cst_41 = arith.constant dense<0.000000e+00> : vector<16x32xf32>
    %112 = tpu.matmul %111, %12, %cst_41 {dimension_numbers = #tpu.dot_dimension_numbers<[1], [0], [0], [1], [0, 0, 1, 1], [], []>} : vector<16x32xbf16>, vector<32x32xbf16>, vector<16x32xf32> -> vector<16x32xf32>
    %113 = vector.broadcast %13 : vector<1x32xf32> to vector<16x32xf32>
    %114 = arith.addf %112, %113 : vector<16x32xf32>
    %115 = arith.addf %1, %114 : vector<16x32xf32>
    %c0_42 = arith.constant 0 : index
    %c0_43 = arith.constant 0 : index
    %116 = vector.load %arg11[%c0_42, %c0_43] : memref<1x32xf32, #tpu.memory_space<vmem>>, vector<1x32xf32>
    %c0_44 = arith.constant 0 : index
    %c0_45 = arith.constant 0 : index
    %117 = vector.load %arg12[%c0_44, %c0_45] : memref<1x32xf32, #tpu.memory_space<vmem>>, vector<1x32xf32>
    %cst_46 = arith.constant dense<0.000000e+00> : vector<16xf32>
    %118 = vector.multi_reduction <add>, %115, %cst_46 [1] : vector<16x32xf32> to vector<16xf32>
    %119 = vector.shape_cast %118 : vector<16xf32> to vector<16x1xf32>
    %cst_47 = arith.constant 3.200000e+01 : f32
    %120 = vector.broadcast %cst_47 : f32 to vector<16x1xf32>
    %121 = arith.divf %119, %120 : vector<16x1xf32>
    %122 = vector.broadcast %121 : vector<16x1xf32> to vector<16x32xf32>
    %123 = arith.subf %115, %122 : vector<16x32xf32>
    %124 = arith.mulf %123, %123 : vector<16x32xf32>
    %cst_48 = arith.constant dense<0.000000e+00> : vector<16xf32>
    %125 = vector.multi_reduction <add>, %124, %cst_48 [1] : vector<16x32xf32> to vector<16xf32>
    %126 = vector.shape_cast %125 : vector<16xf32> to vector<16x1xf32>
    %cst_49 = arith.constant 3.200000e+01 : f32
    %127 = vector.broadcast %cst_49 : f32 to vector<16x1xf32>
    %128 = arith.divf %126, %127 : vector<16x1xf32>
    %cst_50 = arith.constant 9.99999997E-7 : f32
    %129 = vector.broadcast %cst_50 : f32 to vector<16x1xf32>
    %130 = arith.addf %128, %129 : vector<16x1xf32>
    %131 = math.rsqrt %130 : vector<16x1xf32>
    %132 = vector.broadcast %131 : vector<16x1xf32> to vector<16x32xf32>
    %133 = arith.mulf %123, %132 : vector<16x32xf32>
    %134 = vector.broadcast %116 : vector<1x32xf32> to vector<16x32xf32>
    %135 = arith.mulf %133, %134 : vector<16x32xf32>
    %136 = vector.broadcast %117 : vector<1x32xf32> to vector<16x32xf32>
    %137 = arith.addf %135, %136 : vector<16x32xf32>
    %c0_51 = arith.constant 0 : index
    %c0_52 = arith.constant 0 : index
    %138 = vector.load %arg13[%c0_51, %c0_52] : memref<32x32xbf16, #tpu.memory_space<vmem>>, vector<32x32xbf16>
    %c0_53 = arith.constant 0 : index
    %c0_54 = arith.constant 0 : index
    %139 = vector.load %arg14[%c0_53, %c0_54] : memref<1x32xf32, #tpu.memory_space<vmem>>, vector<1x32xf32>
    %c0_55 = arith.constant 0 : index
    %c0_56 = arith.constant 0 : index
    %140 = vector.load %arg15[%c0_55, %c0_56] : memref<32x64xbf16, #tpu.memory_space<vmem>>, vector<32x64xbf16>
    %c0_57 = arith.constant 0 : index
    %c0_58 = arith.constant 0 : index
    %141 = vector.load %arg16[%c0_57, %c0_58] : memref<1x64xf32, #tpu.memory_space<vmem>>, vector<1x64xf32>
    %c0_59 = arith.constant 0 : index
    %c0_60 = arith.constant 0 : index
    %142 = vector.load %arg17[%c0_59, %c0_60] : memref<32x32xbf16, #tpu.memory_space<vmem>>, vector<32x32xbf16>
    %c0_61 = arith.constant 0 : index
    %c0_62 = arith.constant 0 : index
    %143 = vector.load %arg18[%c0_61, %c0_62] : memref<1x32xf32, #tpu.memory_space<vmem>>, vector<1x32xf32>
    %144 = arith.truncf %137 : vector<16x32xf32> to vector<16x32xbf16>
    %cst_63 = arith.constant dense<0.000000e+00> : vector<16x32xf32>
    %145 = tpu.matmul %144, %138, %cst_63 {dimension_numbers = #tpu.dot_dimension_numbers<[1], [0], [0], [1], [0, 0, 1, 1], [], []>} : vector<16x32xbf16>, vector<32x32xbf16>, vector<16x32xf32> -> vector<16x32xf32>
    %146 = vector.broadcast %139 : vector<1x32xf32> to vector<16x32xf32>
    %147 = arith.addf %145, %146 : vector<16x32xf32>
    %148 = arith.truncf %3 : vector<8x32xf32> to vector<8x32xbf16>
    %cst_64 = arith.constant dense<0.000000e+00> : vector<8x64xf32>
    %149 = tpu.matmul %148, %140, %cst_64 {dimension_numbers = #tpu.dot_dimension_numbers<[1], [0], [0], [1], [0, 0, 1, 1], [], []>} : vector<8x32xbf16>, vector<32x64xbf16>, vector<8x64xf32> -> vector<8x64xf32>
    %150 = vector.broadcast %141 : vector<1x64xf32> to vector<8x64xf32>
    %151 = arith.addf %149, %150 : vector<8x64xf32>
    %cst_65 = arith.constant 0.353553385 : f32
    %152 = vector.broadcast %cst_65 : f32 to vector<16x32xf32>
    %153 = arith.mulf %147, %152 : vector<16x32xf32>
    %154 = vector.extract_strided_slice %151 {offsets = [0, 0], sizes = [8, 32], strides = [1, 1]} : vector<8x64xf32> to vector<8x32xf32>
    %155 = vector.extract_strided_slice %151 {offsets = [0, 32], sizes = [8, 32], strides = [1, 1]} : vector<8x64xf32> to vector<8x32xf32>
    %156 = vector.extract_strided_slice %153 {offsets = [0, 0], sizes = [16, 8], strides = [1, 1]} : vector<16x32xf32> to vector<16x8xf32>
    %157 = arith.truncf %156 : vector<16x8xf32> to vector<16x8xbf16>
    %158 = vector.extract_strided_slice %154 {offsets = [0, 0], sizes = [8, 8], strides = [1, 1]} : vector<8x32xf32> to vector<8x8xf32>
    %159 = arith.truncf %158 : vector<8x8xf32> to vector<8x8xbf16>
    %cst_66 = arith.constant dense<0.000000e+00> : vector<16x8xf32>
    %160 = tpu.matmul %157, %159, %cst_66 {dimension_numbers = #tpu.dot_dimension_numbers<[1], [1], [0], [0], [0, 0, 1, 0], [], []>} : vector<16x8xbf16>, vector<8x8xbf16>, vector<16x8xf32> -> vector<16x8xf32>
    %161 = vector.broadcast %7 : vector<1x8xf32> to vector<16x8xf32>
    %162 = arith.addf %160, %161 : vector<16x8xf32>
    %cst_67 = arith.constant dense<0xFF800000> : vector<16xf32>
    %163 = vector.multi_reduction <maximumf>, %162, %cst_67 [1] : vector<16x8xf32> to vector<16xf32>
    %164 = vector.shape_cast %163 : vector<16xf32> to vector<16x1xf32>
    %165 = vector.broadcast %164 : vector<16x1xf32> to vector<16x8xf32>
    %166 = arith.subf %162, %165 : vector<16x8xf32>
    %167 = math.exp %166 : vector<16x8xf32>
    %cst_68 = arith.constant dense<0.000000e+00> : vector<16xf32>
    %168 = vector.multi_reduction <add>, %167, %cst_68 [1] : vector<16x8xf32> to vector<16xf32>
    %169 = vector.shape_cast %168 : vector<16xf32> to vector<16x1xf32>
    %170 = tpu.reciprocal %169 {approx = true} : vector<16x1xf32> -> vector<16x1xf32>
    %171 = vector.broadcast %170 : vector<16x1xf32> to vector<16x8xf32>
    %172 = arith.mulf %167, %171 : vector<16x8xf32>
    %173 = arith.truncf %172 : vector<16x8xf32> to vector<16x8xbf16>
    %174 = vector.extract_strided_slice %155 {offsets = [0, 0], sizes = [8, 8], strides = [1, 1]} : vector<8x32xf32> to vector<8x8xf32>
    %175 = arith.truncf %174 : vector<8x8xf32> to vector<8x8xbf16>
    %cst_69 = arith.constant dense<0.000000e+00> : vector<16x8xf32>
    %176 = tpu.matmul %173, %175, %cst_69 {dimension_numbers = #tpu.dot_dimension_numbers<[1], [0], [0], [1], [0, 0, 1, 1], [], []>} : vector<16x8xbf16>, vector<8x8xbf16>, vector<16x8xf32> -> vector<16x8xf32>
    %177 = vector.extract_strided_slice %153 {offsets = [0, 8], sizes = [16, 8], strides = [1, 1]} : vector<16x32xf32> to vector<16x8xf32>
    %178 = arith.truncf %177 : vector<16x8xf32> to vector<16x8xbf16>
    %179 = vector.extract_strided_slice %154 {offsets = [0, 8], sizes = [8, 8], strides = [1, 1]} : vector<8x32xf32> to vector<8x8xf32>
    %180 = arith.truncf %179 : vector<8x8xf32> to vector<8x8xbf16>
    %cst_70 = arith.constant dense<0.000000e+00> : vector<16x8xf32>
    %181 = tpu.matmul %178, %180, %cst_70 {dimension_numbers = #tpu.dot_dimension_numbers<[1], [1], [0], [0], [0, 0, 1, 0], [], []>} : vector<16x8xbf16>, vector<8x8xbf16>, vector<16x8xf32> -> vector<16x8xf32>
    %182 = vector.broadcast %7 : vector<1x8xf32> to vector<16x8xf32>
    %183 = arith.addf %181, %182 : vector<16x8xf32>
    %cst_71 = arith.constant dense<0xFF800000> : vector<16xf32>
    %184 = vector.multi_reduction <maximumf>, %183, %cst_71 [1] : vector<16x8xf32> to vector<16xf32>
    %185 = vector.shape_cast %184 : vector<16xf32> to vector<16x1xf32>
    %186 = vector.broadcast %185 : vector<16x1xf32> to vector<16x8xf32>
    %187 = arith.subf %183, %186 : vector<16x8xf32>
    %188 = math.exp %187 : vector<16x8xf32>
    %cst_72 = arith.constant dense<0.000000e+00> : vector<16xf32>
    %189 = vector.multi_reduction <add>, %188, %cst_72 [1] : vector<16x8xf32> to vector<16xf32>
    %190 = vector.shape_cast %189 : vector<16xf32> to vector<16x1xf32>
    %191 = tpu.reciprocal %190 {approx = true} : vector<16x1xf32> -> vector<16x1xf32>
    %192 = vector.broadcast %191 : vector<16x1xf32> to vector<16x8xf32>
    %193 = arith.mulf %188, %192 : vector<16x8xf32>
    %194 = arith.truncf %193 : vector<16x8xf32> to vector<16x8xbf16>
    %195 = vector.extract_strided_slice %155 {offsets = [0, 8], sizes = [8, 8], strides = [1, 1]} : vector<8x32xf32> to vector<8x8xf32>
    %196 = arith.truncf %195 : vector<8x8xf32> to vector<8x8xbf16>
    %cst_73 = arith.constant dense<0.000000e+00> : vector<16x8xf32>
    %197 = tpu.matmul %194, %196, %cst_73 {dimension_numbers = #tpu.dot_dimension_numbers<[1], [0], [0], [1], [0, 0, 1, 1], [], []>} : vector<16x8xbf16>, vector<8x8xbf16>, vector<16x8xf32> -> vector<16x8xf32>
    %198 = vector.extract_strided_slice %153 {offsets = [0, 16], sizes = [16, 8], strides = [1, 1]} : vector<16x32xf32> to vector<16x8xf32>
    %199 = arith.truncf %198 : vector<16x8xf32> to vector<16x8xbf16>
    %200 = vector.extract_strided_slice %154 {offsets = [0, 16], sizes = [8, 8], strides = [1, 1]} : vector<8x32xf32> to vector<8x8xf32>
    %201 = arith.truncf %200 : vector<8x8xf32> to vector<8x8xbf16>
    %cst_74 = arith.constant dense<0.000000e+00> : vector<16x8xf32>
    %202 = tpu.matmul %199, %201, %cst_74 {dimension_numbers = #tpu.dot_dimension_numbers<[1], [1], [0], [0], [0, 0, 1, 0], [], []>} : vector<16x8xbf16>, vector<8x8xbf16>, vector<16x8xf32> -> vector<16x8xf32>
    %203 = vector.broadcast %7 : vector<1x8xf32> to vector<16x8xf32>
    %204 = arith.addf %202, %203 : vector<16x8xf32>
    %cst_75 = arith.constant dense<0xFF800000> : vector<16xf32>
    %205 = vector.multi_reduction <maximumf>, %204, %cst_75 [1] : vector<16x8xf32> to vector<16xf32>
    %206 = vector.shape_cast %205 : vector<16xf32> to vector<16x1xf32>
    %207 = vector.broadcast %206 : vector<16x1xf32> to vector<16x8xf32>
    %208 = arith.subf %204, %207 : vector<16x8xf32>
    %209 = math.exp %208 : vector<16x8xf32>
    %cst_76 = arith.constant dense<0.000000e+00> : vector<16xf32>
    %210 = vector.multi_reduction <add>, %209, %cst_76 [1] : vector<16x8xf32> to vector<16xf32>
    %211 = vector.shape_cast %210 : vector<16xf32> to vector<16x1xf32>
    %212 = tpu.reciprocal %211 {approx = true} : vector<16x1xf32> -> vector<16x1xf32>
    %213 = vector.broadcast %212 : vector<16x1xf32> to vector<16x8xf32>
    %214 = arith.mulf %209, %213 : vector<16x8xf32>
    %215 = arith.truncf %214 : vector<16x8xf32> to vector<16x8xbf16>
    %216 = vector.extract_strided_slice %155 {offsets = [0, 16], sizes = [8, 8], strides = [1, 1]} : vector<8x32xf32> to vector<8x8xf32>
    %217 = arith.truncf %216 : vector<8x8xf32> to vector<8x8xbf16>
    %cst_77 = arith.constant dense<0.000000e+00> : vector<16x8xf32>
    %218 = tpu.matmul %215, %217, %cst_77 {dimension_numbers = #tpu.dot_dimension_numbers<[1], [0], [0], [1], [0, 0, 1, 1], [], []>} : vector<16x8xbf16>, vector<8x8xbf16>, vector<16x8xf32> -> vector<16x8xf32>
    %219 = vector.extract_strided_slice %153 {offsets = [0, 24], sizes = [16, 8], strides = [1, 1]} : vector<16x32xf32> to vector<16x8xf32>
    %220 = arith.truncf %219 : vector<16x8xf32> to vector<16x8xbf16>
    %221 = vector.extract_strided_slice %154 {offsets = [0, 24], sizes = [8, 8], strides = [1, 1]} : vector<8x32xf32> to vector<8x8xf32>
    %222 = arith.truncf %221 : vector<8x8xf32> to vector<8x8xbf16>
    %cst_78 = arith.constant dense<0.000000e+00> : vector<16x8xf32>
    %223 = tpu.matmul %220, %222, %cst_78 {dimension_numbers = #tpu.dot_dimension_numbers<[1], [1], [0], [0], [0, 0, 1, 0], [], []>} : vector<16x8xbf16>, vector<8x8xbf16>, vector<16x8xf32> -> vector<16x8xf32>
    %224 = vector.broadcast %7 : vector<1x8xf32> to vector<16x8xf32>
    %225 = arith.addf %223, %224 : vector<16x8xf32>
    %cst_79 = arith.constant dense<0xFF800000> : vector<16xf32>
    %226 = vector.multi_reduction <maximumf>, %225, %cst_79 [1] : vector<16x8xf32> to vector<16xf32>
    %227 = vector.shape_cast %226 : vector<16xf32> to vector<16x1xf32>
    %228 = vector.broadcast %227 : vector<16x1xf32> to vector<16x8xf32>
    %229 = arith.subf %225, %228 : vector<16x8xf32>
    %230 = math.exp %229 : vector<16x8xf32>
    %cst_80 = arith.constant dense<0.000000e+00> : vector<16xf32>
    %231 = vector.multi_reduction <add>, %230, %cst_80 [1] : vector<16x8xf32> to vector<16xf32>
    %232 = vector.shape_cast %231 : vector<16xf32> to vector<16x1xf32>
    %233 = tpu.reciprocal %232 {approx = true} : vector<16x1xf32> -> vector<16x1xf32>
    %234 = vector.broadcast %233 : vector<16x1xf32> to vector<16x8xf32>
    %235 = arith.mulf %230, %234 : vector<16x8xf32>
    %236 = arith.truncf %235 : vector<16x8xf32> to vector<16x8xbf16>
    %237 = vector.extract_strided_slice %155 {offsets = [0, 24], sizes = [8, 8], strides = [1, 1]} : vector<8x32xf32> to vector<8x8xf32>
    %238 = arith.truncf %237 : vector<8x8xf32> to vector<8x8xbf16>
    %cst_81 = arith.constant dense<0.000000e+00> : vector<16x8xf32>
    %239 = tpu.matmul %236, %238, %cst_81 {dimension_numbers = #tpu.dot_dimension_numbers<[1], [0], [0], [1], [0, 0, 1, 1], [], []>} : vector<16x8xbf16>, vector<8x8xbf16>, vector<16x8xf32> -> vector<16x8xf32>
    %240 = tpu.concatenate %176, %197, %218, %239 in 1 : vector<16x8xf32>, vector<16x8xf32>, vector<16x8xf32>, vector<16x8xf32> -> vector<16x32xf32>
    %241 = arith.truncf %240 : vector<16x32xf32> to vector<16x32xbf16>
    %cst_82 = arith.constant dense<0.000000e+00> : vector<16x32xf32>
    %242 = tpu.matmul %241, %142, %cst_82 {dimension_numbers = #tpu.dot_dimension_numbers<[1], [0], [0], [1], [0, 0, 1, 1], [], []>} : vector<16x32xbf16>, vector<32x32xbf16>, vector<16x32xf32> -> vector<16x32xf32>
    %243 = vector.broadcast %143 : vector<1x32xf32> to vector<16x32xf32>
    %244 = arith.addf %242, %243 : vector<16x32xf32>
    %245 = arith.addf %137, %244 : vector<16x32xf32>
    %c0_83 = arith.constant 0 : index
    %c0_84 = arith.constant 0 : index
    %246 = vector.load %arg19[%c0_83, %c0_84] : memref<1x32xf32, #tpu.memory_space<vmem>>, vector<1x32xf32>
    %c0_85 = arith.constant 0 : index
    %c0_86 = arith.constant 0 : index
    %247 = vector.load %arg20[%c0_85, %c0_86] : memref<1x32xf32, #tpu.memory_space<vmem>>, vector<1x32xf32>
    %cst_87 = arith.constant dense<0.000000e+00> : vector<16xf32>
    %248 = vector.multi_reduction <add>, %245, %cst_87 [1] : vector<16x32xf32> to vector<16xf32>
    %249 = vector.shape_cast %248 : vector<16xf32> to vector<16x1xf32>
    %cst_88 = arith.constant 3.200000e+01 : f32
    %250 = vector.broadcast %cst_88 : f32 to vector<16x1xf32>
    %251 = arith.divf %249, %250 : vector<16x1xf32>
    %252 = vector.broadcast %251 : vector<16x1xf32> to vector<16x32xf32>
    %253 = arith.subf %245, %252 : vector<16x32xf32>
    %254 = arith.mulf %253, %253 : vector<16x32xf32>
    %cst_89 = arith.constant dense<0.000000e+00> : vector<16xf32>
    %255 = vector.multi_reduction <add>, %254, %cst_89 [1] : vector<16x32xf32> to vector<16xf32>
    %256 = vector.shape_cast %255 : vector<16xf32> to vector<16x1xf32>
    %cst_90 = arith.constant 3.200000e+01 : f32
    %257 = vector.broadcast %cst_90 : f32 to vector<16x1xf32>
    %258 = arith.divf %256, %257 : vector<16x1xf32>
    %cst_91 = arith.constant 9.99999997E-7 : f32
    %259 = vector.broadcast %cst_91 : f32 to vector<16x1xf32>
    %260 = arith.addf %258, %259 : vector<16x1xf32>
    %261 = math.rsqrt %260 : vector<16x1xf32>
    %262 = vector.broadcast %261 : vector<16x1xf32> to vector<16x32xf32>
    %263 = arith.mulf %253, %262 : vector<16x32xf32>
    %264 = vector.broadcast %246 : vector<1x32xf32> to vector<16x32xf32>
    %265 = arith.mulf %263, %264 : vector<16x32xf32>
    %266 = vector.broadcast %247 : vector<1x32xf32> to vector<16x32xf32>
    %267 = arith.addf %265, %266 : vector<16x32xf32>
    %268 = arith.truncf %267 : vector<16x32xf32> to vector<16x32xbf16>
    %c0_92 = arith.constant 0 : index
    %c0_93 = arith.constant 0 : index
    %269 = vector.load %arg21[%c0_92, %c0_93] : memref<32x64xbf16, #tpu.memory_space<vmem>>, vector<32x64xbf16>
    %cst_94 = arith.constant dense<0.000000e+00> : vector<16x64xf32>
    %270 = tpu.matmul %268, %269, %cst_94 {dimension_numbers = #tpu.dot_dimension_numbers<[1], [0], [0], [1], [0, 0, 1, 1], [], []>} : vector<16x32xbf16>, vector<32x64xbf16>, vector<16x64xf32> -> vector<16x64xf32>
    %c0_95 = arith.constant 0 : index
    %c0_96 = arith.constant 0 : index
    %271 = vector.load %arg22[%c0_95, %c0_96] : memref<1x64xf32, #tpu.memory_space<vmem>>, vector<1x64xf32>
    %272 = vector.broadcast %271 : vector<1x64xf32> to vector<16x64xf32>
    %273 = arith.addf %270, %272 : vector<16x64xf32>
    %cst_97 = arith.constant 0.000000e+00 : f32
    %274 = vector.broadcast %cst_97 : f32 to vector<16x64xf32>
    %275 = arith.maximumf %273, %274 : vector<16x64xf32>
    %276 = arith.truncf %275 : vector<16x64xf32> to vector<16x64xbf16>
    %c0_98 = arith.constant 0 : index
    %c0_99 = arith.constant 0 : index
    %277 = vector.load %arg23[%c0_98, %c0_99] : memref<64x32xbf16, #tpu.memory_space<vmem>>, vector<64x32xbf16>
    %cst_100 = arith.constant dense<0.000000e+00> : vector<16x32xf32>
    %278 = tpu.matmul %276, %277, %cst_100 {dimension_numbers = #tpu.dot_dimension_numbers<[1], [0], [0], [1], [0, 0, 1, 1], [], []>} : vector<16x64xbf16>, vector<64x32xbf16>, vector<16x32xf32> -> vector<16x32xf32>
    %c0_101 = arith.constant 0 : index
    %c0_102 = arith.constant 0 : index
    %279 = vector.load %arg24[%c0_101, %c0_102] : memref<1x32xf32, #tpu.memory_space<vmem>>, vector<1x32xf32>
    %280 = vector.broadcast %279 : vector<1x32xf32> to vector<16x32xf32>
    %281 = arith.addf %278, %280 : vector<16x32xf32>
    %282 = arith.addf %267, %281 : vector<16x32xf32>
    %c0_103 = arith.constant 0 : index
    %c0_104 = arith.constant 0 : index
    %283 = vector.load %arg25[%c0_103, %c0_104] : memref<1x32xf32, #tpu.memory_space<vmem>>, vector<1x32xf32>
    %c0_105 = arith.constant 0 : index
    %c0_106 = arith.constant 0 : index
    %284 = vector.load %arg26[%c0_105, %c0_106] : memref<1x32xf32, #tpu.memory_space<vmem>>, vector<1x32xf32>
    %cst_107 = arith.constant dense<0.000000e+00> : vector<16xf32>
    %285 = vector.multi_reduction <add>, %282, %cst_107 [1] : vector<16x32xf32> to vector<16xf32>
    %286 = vector.shape_cast %285 : vector<16xf32> to vector<16x1xf32>
    %cst_108 = arith.constant 3.200000e+01 : f32
    %287 = vector.broadcast %cst_108 : f32 to vector<16x1xf32>
    %288 = arith.divf %286, %287 : vector<16x1xf32>
    %289 = vector.broadcast %288 : vector<16x1xf32> to vector<16x32xf32>
    %290 = arith.subf %282, %289 : vector<16x32xf32>
    %291 = arith.mulf %290, %290 : vector<16x32xf32>
    %cst_109 = arith.constant dense<0.000000e+00> : vector<16xf32>
    %292 = vector.multi_reduction <add>, %291, %cst_109 [1] : vector<16x32xf32> to vector<16xf32>
    %293 = vector.shape_cast %292 : vector<16xf32> to vector<16x1xf32>
    %cst_110 = arith.constant 3.200000e+01 : f32
    %294 = vector.broadcast %cst_110 : f32 to vector<16x1xf32>
    %295 = arith.divf %293, %294 : vector<16x1xf32>
    %cst_111 = arith.constant 9.99999997E-7 : f32
    %296 = vector.broadcast %cst_111 : f32 to vector<16x1xf32>
    %297 = arith.addf %295, %296 : vector<16x1xf32>
    %298 = math.rsqrt %297 : vector<16x1xf32>
    %299 = vector.broadcast %298 : vector<16x1xf32> to vector<16x32xf32>
    %300 = arith.mulf %290, %299 : vector<16x32xf32>
    %301 = vector.broadcast %283 : vector<1x32xf32> to vector<16x32xf32>
    %302 = arith.mulf %300, %301 : vector<16x32xf32>
    %303 = vector.broadcast %284 : vector<1x32xf32> to vector<16x32xf32>
    %304 = arith.addf %302, %303 : vector<16x32xf32>
    %c0_112 = arith.constant 0 : index
    %c0_113 = arith.constant 0 : index
    %c0_114 = arith.constant 0 : index
    %305 = vector.load %arg27[%c0_112, %c0_113, %c0_114] : memref<1x16x32xf32, #tpu.memory_space<vmem>>, vector<1x16x32xf32>
    %306 = vector.shape_cast %305 : vector<1x16x32xf32> to vector<16x32xf32>
    %307 = vector.shape_cast %304 : vector<16x32xf32> to vector<1x16x32xf32>
    tpu.vector_store %arg27[%c0_112, %c0_113, %c0_114], %307 {strides = array<i32>} : memref<1x16x32xf32, #tpu.memory_space<vmem>>, vector<1x16x32xf32>,
    return
  }
  func.func @transform_0(%arg0: i32) -> (i32, i32, i32) {
    %c0_i32 = arith.constant 0 : i32
    %c0_i32_0 = arith.constant 0 : i32
    %c0_i32_1 = arith.constant 0 : i32
    return %arg0, %c0_i32, %c0_i32_0 : i32, i32, i32
  }
  func.func @transform_1(%arg0: i32) -> (i32, i32, i32) {
    %c0_i32 = arith.constant 0 : i32
    %c0_i32_0 = arith.constant 0 : i32
    %c0_i32_1 = arith.constant 0 : i32
    return %arg0, %c0_i32, %c0_i32_0 : i32, i32, i32
  }
  func.func @transform_2(%arg0: i32) -> (i32, i32, i32) {
    %c0_i32 = arith.constant 0 : i32
    %c0_i32_0 = arith.constant 0 : i32
    %c0_i32_1 = arith.constant 0 : i32
    return %arg0, %c0_i32, %c0_i32_0 : i32, i32, i32
  }
  func.func @transform_3(%arg0: i32) -> (i32, i32, i32) {
    %c0_i32 = arith.constant 0 : i32
    %c0_i32_0 = arith.constant 0 : i32
    %c0_i32_1 = arith.constant 0 : i32
    return %arg0, %c0_i32, %c0_i32_0 : i32, i32, i32
  }
  func.func @transform_4(%arg0: i32) -> (i32, i32) {
    %c0_i32 = arith.constant 0 : i32
    %c0_i32_0 = arith.constant 0 : i32
    %c0_i32_1 = arith.constant 0 : i32
    return %c0_i32, %c0_i32_0 : i32, i32
  }
  func.func @transform_5(%arg0: i32) -> (i32, i32) {
    %c0_i32 = arith.constant 0 : i32
    %c0_i32_0 = arith.constant 0 : i32
    %c0_i32_1 = arith.constant 0 : i32
    return %c0_i32, %c0_i32_0 : i32, i32
  }
  func.func @transform_6(%arg0: i32) -> (i32, i32) {
    %c0_i32 = arith.constant 0 : i32
    %c0_i32_0 = arith.constant 0 : i32
    %c0_i32_1 = arith.constant 0 : i32
    return %c0_i32, %c0_i32_0 : i32, i32
  }
  func.func @transform_7(%arg0: i32) -> (i32, i32) {
    %c0_i32 = arith.constant 0 : i32
    %c0_i32_0 = arith.constant 0 : i32
    %c0_i32_1 = arith.constant 0 : i32
    return %c0_i32, %c0_i32_0 : i32, i32
  }
  func.func @transform_8(%arg0: i32) -> (i32, i32) {
    %c0_i32 = arith.constant 0 : i32
    %c0_i32_0 = arith.constant 0 : i32
    %c0_i32_1 = arith.constant 0 : i32
    return %c0_i32, %c0_i32_0 : i32, i32
  }
  func.func @transform_9(%arg0: i32) -> (i32, i32) {
    %c0_i32 = arith.constant 0 : i32
    %c0_i32_0 = arith.constant 0 : i32
    %c0_i32_1 = arith.constant 0 : i32
    return %c0_i32, %c0_i32_0 : i32, i32
  }
  func.func @transform_10(%arg0: i32) -> (i32, i32) {
    %c0_i32 = arith.constant 0 : i32
    %c0_i32_0 = arith.constant 0 : i32
    %c0_i32_1 = arith.constant 0 : i32
    return %c0_i32, %c0_i32_0 : i32, i32
  }
  func.func @transform_11(%arg0: i32) -> (i32, i32) {
    %c0_i32 = arith.constant 0 : i32
    %c0_i32_0 = arith.constant 0 : i32
    %c0_i32_1 = arith.constant 0 : i32
    return %c0_i32, %c0_i32_0 : i32, i32
  }
  func.func @transform_12(%arg0: i32) -> (i32, i32) {
    %c0_i32 = arith.constant 0 : i32
    %c0_i32_0 = arith.constant 0 : i32
    %c0_i32_1 = arith.constant 0 : i32
    return %c0_i32, %c0_i32_0 : i32, i32
  }
  func.func @transform_13(%arg0: i32) -> (i32, i32) {
    %c0_i32 = arith.constant 0 : i32
    %c0_i32_0 = arith.constant 0 : i32
    %c0_i32_1 = arith.constant 0 : i32
    return %c0_i32, %c0_i32_0 : i32, i32
  }
  func.func @transform_14(%arg0: i32) -> (i32, i32) {
    %c0_i32 = arith.constant 0 : i32
    %c0_i32_0 = arith.constant 0 : i32
    %c0_i32_1 = arith.constant 0 : i32
    return %c0_i32, %c0_i32_0 : i32, i32
  }
  func.func @transform_15(%arg0: i32) -> (i32, i32) {
    %c0_i32 = arith.constant 0 : i32
    %c0_i32_0 = arith.constant 0 : i32
    %c0_i32_1 = arith.constant 0 : i32
    return %c0_i32, %c0_i32_0 : i32, i32
  }
  func.func @transform_16(%arg0: i32) -> (i32, i32) {
    %c0_i32 = arith.constant 0 : i32
    %c0_i32_0 = arith.constant 0 : i32
    %c0_i32_1 = arith.constant 0 : i32
    return %c0_i32, %c0_i32_0 : i32, i32
  }
  func.func @transform_17(%arg0: i32) -> (i32, i32) {
    %c0_i32 = arith.constant 0 : i32
    %c0_i32_0 = arith.constant 0 : i32
    %c0_i32_1 = arith.constant 0 : i32
    return %c0_i32, %c0_i32_0 : i32, i32
  }
  func.func @transform_18(%arg0: i32) -> (i32, i32) {
    %c0_i32 = arith.constant 0 : i32
    %c0_i32_0 = arith.constant 0 : i32
    %c0_i32_1 = arith.constant 0 : i32
    return %c0_i32, %c0_i32_0 : i32, i32
  }
  func.func @transform_19(%arg0: i32) -> (i32, i32) {
    %c0_i32 = arith.constant 0 : i32
    %c0_i32_0 = arith.constant 0 : i32
    %c0_i32_1 = arith.constant 0 : i32
    return %c0_i32, %c0_i32_0 : i32, i32
  }
  func.func @transform_20(%arg0: i32) -> (i32, i32) {
    %c0_i32 = arith.constant 0 : i32
    %c0_i32_0 = arith.constant 0 : i32
    %c0_i32_1 = arith.constant 0 : i32
    return %c0_i32, %c0_i32_0 : i32, i32
  }
  func.func @transform_21(%arg0: i32) -> (i32, i32) {
    %c0_i32 = arith.constant 0 : i32
    %c0_i32_0 = arith.constant 0 : i32
    %c0_i32_1 = arith.constant 0 : i32
    return %c0_i32, %c0_i32_0 : i32, i32
  }
  func.func @transform_22(%arg0: i32) -> (i32, i32) {
    %c0_i32 = arith.constant 0 : i32
    %c0_i32_0 = arith.constant 0 : i32
    %c0_i32_1 = arith.constant 0 : i32
    return %c0_i32, %c0_i32_0 : i32, i32
  }
  func.func @transform_23(%arg0: i32) -> (i32, i32) {
    %c0_i32 = arith.constant 0 : i32
    %c0_i32_0 = arith.constant 0 : i32
    %c0_i32_1 = arith.constant 0 : i32
    return %c0_i32, %c0_i32_0 : i32, i32
  }
  func.func @transform_24(%arg0: i32) -> (i32, i32) {
    %c0_i32 = arith.constant 0 : i32
    %c0_i32_0 = arith.constant 0 : i32
    %c0_i32_1 = arith.constant 0 : i32
    return %c0_i32, %c0_i32_0 : i32, i32
  }
  func.func @transform_25(%arg0: i32) -> (i32, i32) {
    %c0_i32 = arith.constant 0 : i32
    %c0_i32_0 = arith.constant 0 : i32
    %c0_i32_1 = arith.constant 0 : i32
    return %c0_i32, %c0_i32_0 : i32, i32
  }
  func.func @transform_26(%arg0: i32) -> (i32, i32, i32) {
    %c0_i32 = arith.constant 0 : i32
    %c0_i32_0 = arith.constant 0 : i32
    %c0_i32_1 = arith.constant 0 : i32
    return %arg0, %c0_i32, %c0_i32_0 : i32, i32, i32
  }
}

module attributes {stable_mosaic.version = 11 : i64} {
  func.func @_decoder_layer_kernel(%arg0: i32, %arg1: memref<1x16x32xf32, #tpu.memory_space<vmem>>, %arg2: memref<1x8x32xf32, #tpu.memory_space<vmem>>, %arg3: memref<1x1x16xf32, #tpu.memory_space<vmem>>, %arg4: memref<1x1x8xf32, #tpu.memory_space<vmem>>, %arg5: memref<32x32xbf16, #tpu.memory_space<vmem>>, %arg6: memref<1x32xf32, #tpu.memory_space<vmem>>, %arg7: memref<32x64xbf16, #tpu.memory_space<vmem>>, %arg8: memref<1x64xf32, #tpu.memory_space<vmem>>, %arg9: memref<32x32xbf16, #tpu.memory_space<vmem>>, %arg10: memref<1x32xf32, #tpu.memory_space<vmem>>, %arg11: memref<1x32xf32, #tpu.memory_space<vmem>>, %arg12: memref<1x32xf32, #tpu.memory_space<vmem>>, %arg13: memref<32x32xbf16, #tpu.memory_space<vmem>>, %arg14: memref<1x32xf32, #tpu.memory_space<vmem>>, %arg15: memref<32x64xbf16, #tpu.memory_space<vmem>>, %arg16: memref<1x64xf32, #tpu.memory_space<vmem>>, %arg17: memref<32x32xbf16, #tpu.memory_space<vmem>>, %arg18: memref<1x32xf32, #tpu.memory_space<vmem>>, %arg19: memref<1x32xf32, #tpu.memory_space<vmem>>, %arg20: memref<1x32xf32, #tpu.memory_space<vmem>>, %arg21: memref<32x64xbf16, #tpu.memory_space<vmem>>, %arg22: memref<1x64xf32, #tpu.memory_space<vmem>>, %arg23: memref<64x32xbf16, #tpu.memory_space<vmem>>, %arg24: memref<1x32xf32, #tpu.memory_space<vmem>>, %arg25: memref<1x32xf32, #tpu.memory_space<vmem>>, %arg26: memref<1x32xf32, #tpu.memory_space<vmem>>, %arg27: memref<1x16x32xf32, #tpu.memory_space<vmem>>) attributes {dimension_semantics = [#tpu.dimension_semantics<parallel>], iteration_bounds = array<i64: 2>, scalar_prefetch = 0 : i64, scratch_operands = 0 : i64, tpu.core_type = #tpu.core_type<tc>, window_params = [{transform_indices = @transform_0, window_bounds = array<i64: 1, 16, 32>}, {transform_indices = @transform_1, window_bounds = array<i64: 1, 8, 32>}, {transform_indices = @transform_2, window_bounds = array<i64: 1, 1, 16>}, {transform_indices = @transform_3, window_bounds = array<i64: 1, 1, 8>}, {pipeline_mode = #tpu.pipeline_mode<synchronous>, transform_indices = @transform_4, window_bounds = array<i64: 32, 32>}, {pipeline_mode = #tpu.pipeline_mode<synchronous>, transform_indices = @transform_5, window_bounds = array<i64: 1, 32>}, {pipeline_mode = #tpu.pipeline_mode<synchronous>, transform_indices = @transform_6, window_bounds = array<i64: 32, 64>}, {pipeline_mode = #tpu.pipeline_mode<synchronous>, transform_indices = @transform_7, window_bounds = array<i64: 1, 64>}, {pipeline_mode = #tpu.pipeline_mode<synchronous>, transform_indices = @transform_8, window_bounds = array<i64: 32, 32>}, {pipeline_mode = #tpu.pipeline_mode<synchronous>, transform_indices = @transform_9, window_bounds = array<i64: 1, 32>}, {pipeline_mode = #tpu.pipeline_mode<synchronous>, transform_indices = @transform_10, window_bounds = array<i64: 1, 32>}, {pipeline_mode = #tpu.pipeline_mode<synchronous>, transform_indices = @transform_11, window_bounds = array<i64: 1, 32>}, {pipeline_mode = #tpu.pipeline_mode<synchronous>, transform_indices = @transform_12, window_bounds = array<i64: 32, 32>}, {pipeline_mode = #tpu.pipeline_mode<synchronous>, transform_indices = @transform_13, window_bounds = array<i64: 1, 32>}, {pipeline_mode = #tpu.pipeline_mode<synchronous>, transform_indices = @transform_14, window_bounds = array<i64: 32, 64>}, {pipeline_mode = #tpu.pipeline_mode<synchronous>, transform_indices = @transform_15, window_bounds = array<i64: 1, 64>}, {pipeline_mode = #tpu.pipeline_mode<synchronous>, transform_indices = @transform_16, window_bounds = array<i64: 32, 32>}, {pipeline_mode = #tpu.pipeline_mode<synchronous>, transform_indices = @transform_17, window_bounds = array<i64: 1, 32>}, {pipeline_mode = #tpu.pipeline_mode<synchronous>, transform_indices = @transform_18, window_bounds = array<i64: 1, 32>}, {pipeline_mode = #tpu.pipeline_mode<synchronous>, transform_indices = @transform_19, window_bounds = array<i64: 1, 32>}, {pipeline_mode = #tpu.pipeline_mode<synchronous>, transform_indices = @transform_20, window_bounds = array<i64: 32, 64>}, {pipeline_mode = #tpu.pipeline_mode<synchronous>, transform_indices = @transform_21, window_bounds = array<i64: 1, 64>}, {pipeline_mode = #tpu.pipeline_mode<synchronous>, transform_indices = @transform_22, window_bounds = array<i64: 64, 32>}, {pipeline_mode = #tpu.pipeline_mode<synchronous>, transform_indices = @transform_23, window_bounds = array<i64: 1, 32>}, {pipeline_mode = #tpu.pipeline_mode<synchronous>, transform_indices = @transform_24, window_bounds = array<i64: 1, 32>}, {pipeline_mode = #tpu.pipeline_mode<synchronous>, transform_indices = @transform_25, window_bounds = array<i64: 1, 32>}, {transform_indices = @transform_26, window_bounds = array<i64: 1, 16, 32>}]} {
    %c0 = arith.constant 0 : index
    %c0_0 = arith.constant 0 : index
    %c0_1 = arith.constant 0 : index
    %0 = vector.load %arg1[%c0, %c0_0, %c0_1] : memref<1x16x32xf32, #tpu.memory_space<vmem>>, vector<1x16x32xf32>
    %1 = vector.shape_cast %0 : vector<1x16x32xf32> to vector<16x32xf32>
    %c0_2 = arith.constant 0 : index
    %c0_3 = arith.constant 0 : index
    %c0_4 = arith.constant 0 : index
    %2 = vector.load %arg2[%c0_2, %c0_3, %c0_4] : memref<1x8x32xf32, #tpu.memory_space<vmem>>, vector<1x8x32xf32>
    %3 = vector.shape_cast %2 : vector<1x8x32xf32> to vector<8x32xf32>
    %c0_5 = arith.constant 0 : index
    %c0_6 = arith.constant 0 : index
    %c0_7 = arith.constant 0 : index
    %4 = vector.load %arg3[%c0_5, %c0_6, %c0_7] : memref<1x1x16xf32, #tpu.memory_space<vmem>>, vector<1x1x16xf32>
    %5 = vector.shape_cast %4 : vector<1x1x16xf32> to vector<1x16xf32>
    %c0_8 = arith.constant 0 : index
    %c0_9 = arith.constant 0 : index
    %c0_10 = arith.constant 0 : index
    %6 = vector.load %arg4[%c0_8, %c0_9, %c0_10] : memref<1x1x8xf32, #tpu.memory_space<vmem>>, vector<1x1x8xf32>
    %7 = vector.shape_cast %6 : vector<1x1x8xf32> to vector<1x8xf32>
    %c0_11 = arith.constant 0 : index
    %c0_12 = arith.constant 0 : index
    %8 = vector.load %arg5[%c0_11, %c0_12] : memref<32x32xbf16, #tpu.memory_space<vmem>>, vector<32x32xbf16>
    %c0_13 = arith.constant 0 : index
    %c0_14 = arith.constant 0 : index
    %9 = vector.load %arg6[%c0_13, %c0_14] : memref<1x32xf32, #tpu.memory_space<vmem>>, vector<1x32xf32>
    %c0_15 = arith.constant 0 : index
    %c0_16 = arith.constant 0 : index
    %10 = vector.load %arg7[%c0_15, %c0_16] : memref<32x64xbf16, #tpu.memory_space<vmem>>, vector<32x64xbf16>
    %c0_17 = arith.constant 0 : index
    %c0_18 = arith.constant 0 : index
    %11 = vector.load %arg8[%c0_17, %c0_18] : memref<1x64xf32, #tpu.memory_space<vmem>>, vector<1x64xf32>
    %c0_19 = arith.constant 0 : index
    %c0_20 = arith.constant 0 : index
    %12 = vector.load %arg9[%c0_19, %c0_20] : memref<32x32xbf16, #tpu.memory_space<vmem>>, vector<32x32xbf16>
    %c0_21 = arith.constant 0 : index
    %c0_22 = arith.constant 0 : index
    %13 = vector.load %arg10[%c0_21, %c0_22] : memref<1x32xf32, #tpu.memory_space<vmem>>, vector<1x32xf32>
    %14 = arith.truncf %1 : vector<16x32xf32> to vector<16x32xbf16>
    %cst = arith.constant dense<0.000000e+00> : vector<16x32xf32>
    %15 = tpu.matmul %14, %8, %cst {dimension_numbers = #tpu.dot_dimension_numbers<[1], [0], [0], [1], [0, 0, 1, 1], [], []>} : vector<16x32xbf16>, vector<32x32xbf16>, vector<16x32xf32> -> vector<16x32xf32>
    %16 = vector.broadcast %9 : vector<1x32xf32> to vector<16x32xf32>
    %17 = arith.addf %15, %16 : vector<16x32xf32>
    %18 = arith.truncf %1 : vector<16x32xf32> to vector<16x32xbf16>
    %cst_23 = arith.constant dense<0.000000e+00> : vector<16x64xf32>
    %19 = tpu.matmul %18, %10, %cst_23 {dimension_numbers = #tpu.dot_dimension_numbers<[1], [0], [0], [1], [0, 0, 1, 1], [], []>} : vector<16x32xbf16>, vector<32x64xbf16>, vector<16x64xf32> -> vector<16x64xf32>
    %20 = vector.broadcast %11 : vector<1x64xf32> to vector<16x64xf32>
    %21 = arith.addf %19, %20 : vector<16x64xf32>
    %cst_24 = arith.constant 0.353553385 : f32
    %22 = vector.broadcast %cst_24 : f32 to vector<16x32xf32>
    %23 = arith.mulf %17, %22 : vector<16x32xf32>
    %24 = vector.extract_strided_slice %21 {offsets = [0, 0], sizes = [16, 32], strides = [1, 1]} : vector<16x64xf32> to vector<16x32xf32>
    %25 = vector.extract_strided_slice %21 {offsets = [0, 32], sizes = [16, 32], strides = [1, 1]} : vector<16x64xf32> to vector<16x32xf32>
    %26 = vector.extract_strided_slice %23 {offsets = [0, 0], sizes = [16, 8], strides = [1, 1]} : vector<16x32xf32> to vector<16x8xf32>
    %27 = arith.truncf %26 : vector<16x8xf32> to vector<16x8xbf16>
    %28 = vector.extract_strided_slice %24 {offsets = [0, 0], sizes = [16, 8], strides = [1, 1]} : vector<16x32xf32> to vector<16x8xf32>
    %29 = arith.truncf %28 : vector<16x8xf32> to vector<16x8xbf16>
    %cst_25 = arith.constant dense<0.000000e+00> : vector<16x16xf32>
    %30 = tpu.matmul %27, %29, %cst_25 {dimension_numbers = #tpu.dot_dimension_numbers<[1], [1], [0], [0], [0, 0, 1, 0], [], []>} : vector<16x8xbf16>, vector<16x8xbf16>, vector<16x16xf32> -> vector<16x16xf32>
    %31 = vector.broadcast %5 : vector<1x16xf32> to vector<16x16xf32>
    %32 = arith.addf %30, %31 : vector<16x16xf32>
    %cst_26 = arith.constant dense<0xFF800000> : vector<16xf32>
    %33 = vector.multi_reduction <maximumf>, %32, %cst_26 [1] : vector<16x16xf32> to vector<16xf32>
    %34 = vector.shape_cast %33 : vector<16xf32> to vector<16x1xf32>
    %35 = vector.broadcast %34 : vector<16x1xf32> to vector<16x16xf32>
    %36 = arith.subf %32, %35 : vector<16x16xf32>
    %37 = math.exp %36 : vector<16x16xf32>
    %cst_27 = arith.constant dense<0.000000e+00> : vector<16xf32>
    %38 = vector.multi_reduction <add>, %37, %cst_27 [1] : vector<16x16xf32> to vector<16xf32>
    %39 = vector.shape_cast %38 : vector<16xf32> to vector<16x1xf32>
    %40 = tpu.reciprocal %39 {approx = true} : vector<16x1xf32> -> vector<16x1xf32>
    %41 = vector.broadcast %40 : vector<16x1xf32> to vector<16x16xf32>
    %42 = arith.mulf %37, %41 : vector<16x16xf32>
    %43 = arith.truncf %42 : vector<16x16xf32> to vector<16x16xbf16>
    %44 = vector.extract_strided_slice %25 {offsets = [0, 0], sizes = [16, 8], strides = [1, 1]} : vector<16x32xf32> to vector<16x8xf32>
    %45 = arith.truncf %44 : vector<16x8xf32> to vector<16x8xbf16>
    %cst_28 = arith.constant dense<0.000000e+00> : vector<16x8xf32>
    %46 = tpu.matmul %43, %45, %cst_28 {dimension_numbers = #tpu.dot_dimension_numbers<[1], [0], [0], [1], [0, 0, 1, 1], [], []>} : vector<16x16xbf16>, vector<16x8xbf16>, vector<16x8xf32> -> vector<16x8xf32>
    %47 = vector.extract_strided_slice %23 {offsets = [0, 8], sizes = [16, 8], strides = [1, 1]} : vector<16x32xf32> to vector<16x8xf32>
    %48 = arith.truncf %47 : vector<16x8xf32> to vector<16x8xbf16>
    %49 = vector.extract_strided_slice %24 {offsets = [0, 8], sizes = [16, 8], strides = [1, 1]} : vector<16x32xf32> to vector<16x8xf32>
    %50 = arith.truncf %49 : vector<16x8xf32> to vector<16x8xbf16>
    %cst_29 = arith.constant dense<0.000000e+00> : vector<16x16xf32>
    %51 = tpu.matmul %48, %50, %cst_29 {dimension_numbers = #tpu.dot_dimension_numbers<[1], [1], [0], [0], [0, 0, 1, 0], [], []>} : vector<16x8xbf16>, vector<16x8xbf16>, vector<16x16xf32> -> vector<16x16xf32>
    %52 = vector.broadcast %5 : vector<1x16xf32> to vector<16x16xf32>
    %53 = arith.addf %51, %52 : vector<16x16xf32>
    %cst_30 = arith.constant dense<0xFF800000> : vector<16xf32>
    %54 = vector.multi_reduction <maximumf>, %53, %cst_30 [1] : vector<16x16xf32> to vector<16xf32>
    %55 = vector.shape_cast %54 : vector<16xf32> to vector<16x1xf32>
    %56 = vector.broadcast %55 : vector<16x1xf32> to vector<16x16xf32>
    %57 = arith.subf %53, %56 : vector<16x16xf32>
    %58 = math.exp %57 : vector<16x16xf32>
    %cst_31 = arith.constant dense<0.000000e+00> : vector<16xf32>
    %59 = vector.multi_reduction <add>, %58, %cst_31 [1] : vector<16x16xf32> to vector<16xf32>
    %60 = vector.shape_cast %59 : vector<16xf32> to vector<16x1xf32>
    %61 = tpu.reciprocal %60 {approx = true} : vector<16x1xf32> -> vector<16x1xf32>
    %62 = vector.broadcast %61 : vector<16x1xf32> to vector<16x16xf32>
    %63 = arith.mulf %58, %62 : vector<16x16xf32>
    %64 = arith.truncf %63 : vector<16x16xf32> to vector<16x16xbf16>
    %65 = vector.extract_strided_slice %25 {offsets = [0, 8], sizes = [16, 8], strides = [1, 1]} : vector<16x32xf32> to vector<16x8xf32>
    %66 = arith.truncf %65 : vector<16x8xf32> to vector<16x8xbf16>
    %cst_32 = arith.constant dense<0.000000e+00> : vector<16x8xf32>
    %67 = tpu.matmul %64, %66, %cst_32 {dimension_numbers = #tpu.dot_dimension_numbers<[1], [0], [0], [1], [0, 0, 1, 1], [], []>} : vector<16x16xbf16>, vector<16x8xbf16>, vector<16x8xf32> -> vector<16x8xf32>
    %68 = vector.extract_strided_slice %23 {offsets = [0, 16], sizes = [16, 8], strides = [1, 1]} : vector<16x32xf32> to vector<16x8xf32>
    %69 = arith.truncf %68 : vector<16x8xf32> to vector<16x8xbf16>
    %70 = vector.extract_strided_slice %24 {offsets = [0, 16], sizes = [16, 8], strides = [1, 1]} : vector<16x32xf32> to vector<16x8xf32>
    %71 = arith.truncf %70 : vector<16x8xf32> to vector<16x8xbf16>
    %cst_33 = arith.constant dense<0.000000e+00> : vector<16x16xf32>
    %72 = tpu.matmul %69, %71, %cst_33 {dimension_numbers = #tpu.dot_dimension_numbers<[1], [1], [0], [0], [0, 0, 1, 0], [], []>} : vector<16x8xbf16>, vector<16x8xbf16>, vector<16x16xf32> -> vector<16x16xf32>
    %73 = vector.broadcast %5 : vector<1x16xf32> to vector<16x16xf32>
    %74 = arith.addf %72, %73 : vector<16x16xf32>
    %cst_34 = arith.constant dense<0xFF800000> : vector<16xf32>
    %75 = vector.multi_reduction <maximumf>, %74, %cst_34 [1] : vector<16x16xf32> to vector<16xf32>
    %76 = vector.shape_cast %75 : vector<16xf32> to vector<16x1xf32>
    %77 = vector.broadcast %76 : vector<16x1xf32> to vector<16x16xf32>
    %78 = arith.subf %74, %77 : vector<16x16xf32>
    %79 = math.exp %78 : vector<16x16xf32>
    %cst_35 = arith.constant dense<0.000000e+00> : vector<16xf32>
    %80 = vector.multi_reduction <add>, %79, %cst_35 [1] : vector<16x16xf32> to vector<16xf32>
    %81 = vector.shape_cast %80 : vector<16xf32> to vector<16x1xf32>
    %82 = tpu.reciprocal %81 {approx = true} : vector<16x1xf32> -> vector<16x1xf32>
    %83 = vector.broadcast %82 : vector<16x1xf32> to vector<16x16xf32>
    %84 = arith.mulf %79, %83 : vector<16x16xf32>
    %85 = arith.truncf %84 : vector<16x16xf32> to vector<16x16xbf16>
    %86 = vector.extract_strided_slice %25 {offsets = [0, 16], sizes = [16, 8], strides = [1, 1]} : vector<16x32xf32> to vector<16x8xf32>
    %87 = arith.truncf %86 : vector<16x8xf32> to vector<16x8xbf16>
    %cst_36 = arith.constant dense<0.000000e+00> : vector<16x8xf32>
    %88 = tpu.matmul %85, %87, %cst_36 {dimension_numbers = #tpu.dot_dimension_numbers<[1], [0], [0], [1], [0, 0, 1, 1], [], []>} : vector<16x16xbf16>, vector<16x8xbf16>, vector<16x8xf32> -> vector<16x8xf32>
    %89 = vector.extract_strided_slice %23 {offsets = [0, 24], sizes = [16, 8], strides = [1, 1]} : vector<16x32xf32> to vector<16x8xf32>
    %90 = arith.truncf %89 : vector<16x8xf32> to vector<16x8xbf16>
    %91 = vector.extract_strided_slice %24 {offsets = [0, 24], sizes = [16, 8], strides = [1, 1]} : vector<16x32xf32> to vector<16x8xf32>
    %92 = arith.truncf %91 : vector<16x8xf32> to vector<16x8xbf16>
    %cst_37 = arith.constant dense<0.000000e+00> : vector<16x16xf32>
    %93 = tpu.matmul %90, %92, %cst_37 {dimension_numbers = #tpu.dot_dimension_numbers<[1], [1], [0], [0], [0, 0, 1, 0], [], []>} : vector<16x8xbf16>, vector<16x8xbf16>, vector<16x16xf32> -> vector<16x16xf32>
    %94 = vector.broadcast %5 : vector<1x16xf32> to vector<16x16xf32>
    %95 = arith.addf %93, %94 : vector<16x16xf32>
    %cst_38 = arith.constant dense<0xFF800000> : vector<16xf32>
    %96 = vector.multi_reduction <maximumf>, %95, %cst_38 [1] : vector<16x16xf32> to vector<16xf32>
    %97 = vector.shape_cast %96 : vector<16xf32> to vector<16x1xf32>
    %98 = vector.broadcast %97 : vector<16x1xf32> to vector<16x16xf32>
    %99 = arith.subf %95, %98 : vector<16x16xf32>
    %100 = math.exp %99 : vector<16x16xf32>
    %cst_39 = arith.constant dense<0.000000e+00> : vector<16xf32>
    %101 = vector.multi_reduction <add>, %100, %cst_39 [1] : vector<16x16xf32> to vector<16xf32>
    %102 = vector.shape_cast %101 : vector<16xf32> to vector<16x1xf32>
    %103 = tpu.reciprocal %102 {approx = true} : vector<16x1xf32> -> vector<16x1xf32>
    %104 = vector.broadcast %103 : vector<16x1xf32> to vector<16x16xf32>
    %105 = arith.mulf %100, %104 : vector<16x16xf32>
    %106 = arith.truncf %105 : vector<16x16xf32> to vector<16x16xbf16>
    %107 = vector.extract_strided_slice %25 {offsets = [0, 24], sizes = [16, 8], strides = [1, 1]} : vector<16x32xf32> to vector<16x8xf32>
    %108 = arith.truncf %107 : vector<16x8xf32> to vector<16x8xbf16>
    %cst_40 = arith.constant dense<0.000000e+00> : vector<16x8xf32>
    %109 = tpu.matmul %106, %108, %cst_40 {dimension_numbers = #tpu.dot_dimension_numbers<[1], [0], [0], [1], [0, 0, 1, 1], [], []>} : vector<16x16xbf16>, vector<16x8xbf16>, vector<16x8xf32> -> vector<16x8xf32>
    %110 = tpu.concatenate %46, %67, %88, %109 in 1 : vector<16x8xf32>, vector<16x8xf32>, vector<16x8xf32>, vector<16x8xf32> -> vector<16x32xf32>
    %111 = arith.truncf %110 : vector<16x32xf32> to vector<16x32xbf16>
    %cst_41 = arith.constant dense<0.000000e+00> : vector<16x32xf32>
    %112 = tpu.matmul %111, %12, %cst_41 {dimension_numbers = #tpu.dot_dimension_numbers<[1], [0], [0], [1], [0, 0, 1, 1], [], []>} : vector<16x32xbf16>, vector<32x32xbf16>, vector<16x32xf32> -> vector<16x32xf32>
    %113 = vector.broadcast %13 : vector<1x32xf32> to vector<16x32xf32>
    %114 = arith.addf %112, %113 : vector<16x32xf32>
    %115 = arith.addf %1, %114 : vector<16x32xf32>
    %c0_42 = arith.constant 0 : index
    %c0_43 = arith.constant 0 : index
    %116 = vector.load %arg11[%c0_42, %c0_43] : memref<1x32xf32, #tpu.memory_space<vmem>>, vector<1x32xf32>
    %c0_44 = arith.constant 0 : index
    %c0_45 = arith.constant 0 : index
    %117 = vector.load %arg12[%c0_44, %c0_45] : memref<1x32xf32, #tpu.memory_space<vmem>>, vector<1x32xf32>
    %cst_46 = arith.constant dense<0.000000e+00> : vector<16xf32>
    %118 = vector.multi_reduction <add>, %115, %cst_46 [1] : vector<16x32xf32> to vector<16xf32>
    %119 = vector.shape_cast %118 : vector<16xf32> to vector<16x1xf32>
    %cst_47 = arith.constant 3.200000e+01 : f32
    %120 = vector.broadcast %cst_47 : f32 to vector<16x1xf32>
    %121 = arith.divf %119, %120 : vector<16x1xf32>
    %122 = vector.broadcast %121 : vector<16x1xf32> to vector<16x32xf32>
    %123 = arith.subf %115, %122 : vector<16x32xf32>
    %124 = arith.mulf %123, %123 : vector<16x32xf32>
    %cst_48 = arith.constant dense<0.000000e+00> : vector<16xf32>
    %125 = vector.multi_reduction <add>, %124, %cst_48 [1] : vector<16x32xf32> to vector<16xf32>
    %126 = vector.shape_cast %125 : vector<16xf32> to vector<16x1xf32>
    %cst_49 = arith.constant 3.200000e+01 : f32
    %127 = vector.broadcast %cst_49 : f32 to vector<16x1xf32>
    %128 = arith.divf %126, %127 : vector<16x1xf32>
    %cst_50 = arith.constant 9.99999997E-7 : f32
    %129 = vector.broadcast %cst_50 : f32 to vector<16x1xf32>
    %130 = arith.addf %128, %129 : vector<16x1xf32>
    %131 = math.rsqrt %130 : vector<16x1xf32>
    %132 = vector.broadcast %131 : vector<16x1xf32> to vector<16x32xf32>
    %133 = arith.mulf %123, %132 : vector<16x32xf32>
    %134 = vector.broadcast %116 : vector<1x32xf32> to vector<16x32xf32>
    %135 = arith.mulf %133, %134 : vector<16x32xf32>
    %136 = vector.broadcast %117 : vector<1x32xf32> to vector<16x32xf32>
    %137 = arith.addf %135, %136 : vector<16x32xf32>
    %c0_51 = arith.constant 0 : index
    %c0_52 = arith.constant 0 : index
    %138 = vector.load %arg13[%c0_51, %c0_52] : memref<32x32xbf16, #tpu.memory_space<vmem>>, vector<32x32xbf16>
    %c0_53 = arith.constant 0 : index
    %c0_54 = arith.constant 0 : index
    %139 = vector.load %arg14[%c0_53, %c0_54] : memref<1x32xf32, #tpu.memory_space<vmem>>, vector<1x32xf32>
    %c0_55 = arith.constant 0 : index
    %c0_56 = arith.constant 0 : index
    %140 = vector.load %arg15[%c0_55, %c0_56] : memref<32x64xbf16, #tpu.memory_space<vmem>>, vector<32x64xbf16>
    %c0_57 = arith.constant 0 : index
    %c0_58 = arith.constant 0 : index
    %141 = vector.load %arg16[%c0_57, %c0_58] : memref<1x64xf32, #tpu.memory_space<vmem>>, vector<1x64xf32>
    %c0_59 = arith.constant 0 : index
    %c0_60 = arith.constant 0 : index
    %142 = vector.load %arg17[%c0_59, %c0_60] : memref<32x32xbf16, #tpu.memory_space<vmem>>, vector<32x32xbf16>
    %c0_61 = arith.constant 0 : index
    %c0_62 = arith.constant 0 : index
    %143 = vector.load %arg18[%c0_61, %c0_62] : memref<1x32xf32, #tpu.memory_space<vmem>>, vector<1x32xf32>
    %144 = arith.truncf %137 : vector<16x32xf32> to vector<16x32xbf16>
    %cst_63 = arith.constant dense<0.000000e+00> : vector<16x32xf32>
    %145 = tpu.matmul %144, %138, %cst_63 {dimension_numbers = #tpu.dot_dimension_numbers<[1], [0], [0], [1], [0, 0, 1, 1], [], []>} : vector<16x32xbf16>, vector<32x32xbf16>, vector<16x32xf32> -> vector<16x32xf32>
    %146 = vector.broadcast %139 : vector<1x32xf32> to vector<16x32xf32>
    %147 = arith.addf %145, %146 : vector<16x32xf32>
    %148 = arith.truncf %3 : vector<8x32xf32> to vector<8x32xbf16>
    %cst_64 = arith.constant dense<0.000000e+00> : vector<8x64xf32>
    %149 = tpu.matmul %148, %140, %cst_64 {dimension_numbers = #tpu.dot_dimension_numbers<[1], [0], [0], [1], [0, 0, 1, 1], [], []>} : vector<8x32xbf16>, vector<32x64xbf16>, vector<8x64xf32> -> vector<8x64xf32>
    %150 = vector.broadcast %141 : vector<1x64xf32> to vector<8x64xf32>
    %151 = arith.addf %149, %150 : vector<8x64xf32>
    %cst_65 = arith.constant 0.353553385 : f32
    %152 = vector.broadcast %cst_65 : f32 to vector<16x32xf32>
    %153 = arith.mulf %147, %152 : vector<16x32xf32>
    %154 = vector.extract_strided_slice %151 {offsets = [0, 0], sizes = [8, 32], strides = [1, 1]} : vector<8x64xf32> to vector<8x32xf32>
    %155 = vector.extract_strided_slice %151 {offsets = [0, 32], sizes = [8, 32], strides = [1, 1]} : vector<8x64xf32> to vector<8x32xf32>
    %156 = vector.extract_strided_slice %153 {offsets = [0, 0], sizes = [16, 8], strides = [1, 1]} : vector<16x32xf32> to vector<16x8xf32>
    %157 = arith.truncf %156 : vector<16x8xf32> to vector<16x8xbf16>
    %158 = vector.extract_strided_slice %154 {offsets = [0, 0], sizes = [8, 8], strides = [1, 1]} : vector<8x32xf32> to vector<8x8xf32>
    %159 = arith.truncf %158 : vector<8x8xf32> to vector<8x8xbf16>
    %cst_66 = arith.constant dense<0.000000e+00> : vector<16x8xf32>
    %160 = tpu.matmul %157, %159, %cst_66 {dimension_numbers = #tpu.dot_dimension_numbers<[1], [1], [0], [0], [0, 0, 1, 0], [], []>} : vector<16x8xbf16>, vector<8x8xbf16>, vector<16x8xf32> -> vector<16x8xf32>
    %161 = vector.broadcast %7 : vector<1x8xf32> to vector<16x8xf32>
    %162 = arith.addf %160, %161 : vector<16x8xf32>
    %cst_67 = arith.constant dense<0xFF800000> : vector<16xf32>
    %163 = vector.multi_reduction <maximumf>, %162, %cst_67 [1] : vector<16x8xf32> to vector<16xf32>
    %164 = vector.shape_cast %163 : vector<16xf32> to vector<16x1xf32>
    %165 = vector.broadcast %164 : vector<16x1xf32> to vector<16x8xf32>
    %166 = arith.subf %162, %165 : vector<16x8xf32>
    %167 = math.exp %166 : vector<16x8xf32>
    %cst_68 = arith.constant dense<0.000000e+00> : vector<16xf32>
    %168 = vector.multi_reduction <add>, %167, %cst_68 [1] : vector<16x8xf32> to vector<16xf32>
    %169 = vector.shape_cast %168 : vector<16xf32> to vector<16x1xf32>
    %170 = tpu.reciprocal %169 {approx = true} : vector<16x1xf32> -> vector<16x1xf32>
    %171 = vector.broadcast %170 : vector<16x1xf32> to vector<16x8xf32>
    %172 = arith.mulf %167, %171 : vector<16x8xf32>
    %173 = arith.truncf %172 : vector<16x8xf32> to vector<16x8xbf16>
    %174 = vector.extract_strided_slice %155 {offsets = [0, 0], sizes = [8, 8], strides = [1, 1]} : vector<8x32xf32> to vector<8x8xf32>
    %175 = arith.truncf %174 : vector<8x8xf32> to vector<8x8xbf16>
    %cst_69 = arith.constant dense<0.000000e+00> : vector<16x8xf32>
    %176 = tpu.matmul %173, %175, %cst_69 {dimension_numbers = #tpu.dot_dimension_numbers<[1], [0], [0], [1], [0, 0, 1, 1], [], []>} : vector<16x8xbf16>, vector<8x8xbf16>, vector<16x8xf32> -> vector<16x8xf32>
    %177 = vector.extract_strided_slice %153 {offsets = [0, 8], sizes = [16, 8], strides = [1, 1]} : vector<16x32xf32> to vector<16x8xf32>
    %178 = arith.truncf %177 : vector<16x8xf32> to vector<16x8xbf16>
    %179 = vector.extract_strided_slice %154 {offsets = [0, 8], sizes = [8, 8], strides = [1, 1]} : vector<8x32xf32> to vector<8x8xf32>
    %180 = arith.truncf %179 : vector<8x8xf32> to vector<8x8xbf16>
    %cst_70 = arith.constant dense<0.000000e+00> : vector<16x8xf32>
    %181 = tpu.matmul %178, %180, %cst_70 {dimension_numbers = #tpu.dot_dimension_numbers<[1], [1], [0], [0], [0, 0, 1, 0], [], []>} : vector<16x8xbf16>, vector<8x8xbf16>, vector<16x8xf32> -> vector<16x8xf32>
    %182 = vector.broadcast %7 : vector<1x8xf32> to vector<16x8xf32>
    %183 = arith.addf %181, %182 : vector<16x8xf32>
    %cst_71 = arith.constant dense<0xFF800000> : vector<16xf32>
    %184 = vector.multi_reduction <maximumf>, %183, %cst_71 [1] : vector<16x8xf32> to vector<16xf32>
    %185 = vector.shape_cast %184 : vector<16xf32> to vector<16x1xf32>
    %186 = vector.broadcast %185 : vector<16x1xf32> to vector<16x8xf32>
    %187 = arith.subf %183, %186 : vector<16x8xf32>
    %188 = math.exp %187 : vector<16x8xf32>
    %cst_72 = arith.constant dense<0.000000e+00> : vector<16xf32>
    %189 = vector.multi_reduction <add>, %188, %cst_72 [1] : vector<16x8xf32> to vector<16xf32>
    %190 = vector.shape_cast %189 : vector<16xf32> to vector<16x1xf32>
    %191 = tpu.reciprocal %190 {approx = true} : vector<16x1xf32> -> vector<16x1xf32>
    %192 = vector.broadcast %191 : vector<16x1xf32> to vector<16x8xf32>
    %193 = arith.mulf %188, %192 : vector<16x8xf32>
    %194 = arith.truncf %193 : vector<16x8xf32> to vector<16x8xbf16>
    %195 = vector.extract_strided_slice %155 {offsets = [0, 8], sizes = [8, 8], strides = [1, 1]} : vector<8x32xf32> to vector<8x8xf32>
    %196 = arith.truncf %195 : vector<8x8xf32> to vector<8x8xbf16>
    %cst_73 = arith.constant dense<0.000000e+00> : vector<16x8xf32>
    %197 = tpu.matmul %194, %196, %cst_73 {dimension_numbers = #tpu.dot_dimension_numbers<[1], [0], [0], [1], [0, 0, 1, 1], [], []>} : vector<16x8xbf16>, vector<8x8xbf16>, vector<16x8xf32> -> vector<16x8xf32>
    %198 = vector.extract_strided_slice %153 {offsets = [0, 16], sizes = [16, 8], strides = [1, 1]} : vector<16x32xf32> to vector<16x8xf32>
    %199 = arith.truncf %198 : vector<16x8xf32> to vector<16x8xbf16>
    %200 = vector.extract_strided_slice %154 {offsets = [0, 16], sizes = [8, 8], strides = [1, 1]} : vector<8x32xf32> to vector<8x8xf32>
    %201 = arith.truncf %200 : vector<8x8xf32> to vector<8x8xbf16>
    %cst_74 = arith.constant dense<0.000000e+00> : vector<16x8xf32>
    %202 = tpu.matmul %199, %201, %cst_74 {dimension_numbers = #tpu.dot_dimension_numbers<[1], [1], [0], [0], [0, 0, 1, 0], [], []>} : vector<16x8xbf16>, vector<8x8xbf16>, vector<16x8xf32> -> vector<16x8xf32>
    %203 = vector.broadcast %7 : vector<1x8xf32> to vector<16x8xf32>
    %204 = arith.addf %202, %203 : vector<16x8xf32>
    %cst_75 = arith.constant dense<0xFF800000> : vector<16xf32>
    %205 = vector.multi_reduction <maximumf>, %204, %cst_75 [1] : vector<16x8xf32> to vector<16xf32>
    %206 = vector.shape_cast %205 : vector<16xf32> to vector<16x1xf32>
    %207 = vector.broadcast %206 : vector<16x1xf32> to vector<16x8xf32>
    %208 = arith.subf %204, %207 : vector<16x8xf32>
    %209 = math.exp %208 : vector<16x8xf32>
    %cst_76 = arith.constant dense<0.000000e+00> : vector<16xf32>
    %210 = vector.multi_reduction <add>, %209, %cst_76 [1] : vector<16x8xf32> to vector<16xf32>
    %211 = vector.shape_cast %210 : vector<16xf32> to vector<16x1xf32>
    %212 = tpu.reciprocal %211 {approx = true} : vector<16x1xf32> -> vector<16x1xf32>
    %213 = vector.broadcast %212 : vector<16x1xf32> to vector<16x8xf32>
    %214 = arith.mulf %209, %213 : vector<16x8xf32>
    %215 = arith.truncf %214 : vector<16x8xf32> to vector<16x8xbf16>
    %216 = vector.extract_strided_slice %155 {offsets = [0, 16], sizes = [8, 8], strides = [1, 1]} : vector<8x32xf32> to vector<8x8xf32>
    %217 = arith.truncf %216 : vector<8x8xf32> to vector<8x8xbf16>
    %cst_77 = arith.constant dense<0.000000e+00> : vector<16x8xf32>
    %218 = tpu.matmul %215, %217, %cst_77 {dimension_numbers = #tpu.dot_dimension_numbers<[1], [0], [0], [1], [0, 0, 1, 1], [], []>} : vector<16x8xbf16>, vector<8x8xbf16>, vector<16x8xf32> -> vector<16x8xf32>
    %219 = vector.extract_strided_slice %153 {offsets = [0, 24], sizes = [16, 8], strides = [1, 1]} : vector<16x32xf32> to vector<16x8xf32>
    %220 = arith.truncf %219 : vector<16x8xf32> to vector<16x8xbf16>
    %221 = vector.extract_strided_slice %154 {offsets = [0, 24], sizes = [8, 8], strides = [1, 1]} : vector<8x32xf32> to vector<8x8xf32>
    %222 = arith.truncf %221 : vector<8x8xf32> to vector<8x8xbf16>
    %cst_78 = arith.constant dense<0.000000e+00> : vector<16x8xf32>
    %223 = tpu.matmul %220, %222, %cst_78 {dimension_numbers = #tpu.dot_dimension_numbers<[1], [1], [0], [0], [0, 0, 1, 0], [], []>} : vector<16x8xbf16>, vector<8x8xbf16>, vector<16x8xf32> -> vector<16x8xf32>
    %224 = vector.broadcast %7 : vector<1x8xf32> to vector<16x8xf32>
    %225 = arith.addf %223, %224 : vector<16x8xf32>
    %cst_79 = arith.constant dense<0xFF800000> : vector<16xf32>
    %226 = vector.multi_reduction <maximumf>, %225, %cst_79 [1] : vector<16x8xf32> to vector<16xf32>
    %227 = vector.shape_cast %226 : vector<16xf32> to vector<16x1xf32>
    %228 = vector.broadcast %227 : vector<16x1xf32> to vector<16x8xf32>
    %229 = arith.subf %225, %228 : vector<16x8xf32>
    %230 = math.exp %229 : vector<16x8xf32>
    %cst_80 = arith.constant dense<0.000000e+00> : vector<16xf32>
    %231 = vector.multi_reduction <add>, %230, %cst_80 [1] : vector<16x8xf32> to vector<16xf32>
    %232 = vector.shape_cast %231 : vector<16xf32> to vector<16x1xf32>
    %233 = tpu.reciprocal %232 {approx = true} : vector<16x1xf32> -> vector<16x1xf32>
    %234 = vector.broadcast %233 : vector<16x1xf32> to vector<16x8xf32>
    %235 = arith.mulf %230, %234 : vector<16x8xf32>
    %236 = arith.truncf %235 : vector<16x8xf32> to vector<16x8xbf16>
    %237 = vector.extract_strided_slice %155 {offsets = [0, 24], sizes = [8, 8], strides = [1, 1]} : vector<8x32xf32> to vector<8x8xf32>
    %238 = arith.truncf %237 : vector<8x8xf32> to vector<8x8xbf16>
    %cst_81 = arith.constant dense<0.000000e+00> : vector<16x8xf32>
    %239 = tpu.matmul %236, %238, %cst_81 {dimension_numbers = #tpu.dot_dimension_numbers<[1], [0], [0], [1], [0, 0, 1, 1], [], []>} : vector<16x8xbf16>, vector<8x8xbf16>, vector<16x8xf32> -> vector<16x8xf32>
    %240 = tpu.concatenate %176, %197, %218, %239 in 1 : vector<16x8xf32>, vector<16x8xf32>, vector<16x8xf32>, vector<16x8xf32> -> vector<16x32xf32>
    %241 = arith.truncf %240 : vector<16x32xf32> to vector<16x32xbf16>
    %cst_82 = arith.constant dense<0.000000e+00> : vector<16x32xf32>
    %242 = tpu.matmul %241, %142, %cst_82 {dimension_numbers = #tpu.dot_dimension_numbers<[1], [0], [0], [1], [0, 0, 1, 1], [], []>} : vector<16x32xbf16>, vector<32x32xbf16>, vector<16x32xf32> -> vector<16x32xf32>
    %243 = vector.broadcast %143 : vector<1x32xf32> to vector<16x32xf32>
    %244 = arith.addf %242, %243 : vector<16x32xf32>
    %245 = arith.addf %137, %244 : vector<16x32xf32>
    %c0_83 = arith.constant 0 : index
    %c0_84 = arith.constant 0 : index
    %246 = vector.load %arg19[%c0_83, %c0_84] : memref<1x32xf32, #tpu.memory_space<vmem>>, vector<1x32xf32>
    %c0_85 = arith.constant 0 : index
    %c0_86 = arith.constant 0 : index
    %247 = vector.load %arg20[%c0_85, %c0_86] : memref<1x32xf32, #tpu.memory_space<vmem>>, vector<1x32xf32>
    %cst_87 = arith.constant dense<0.000000e+00> : vector<16xf32>
    %248 = vector.multi_reduction <add>, %245, %cst_87 [1] : vector<16x32xf32> to vector<16xf32>
    %249 = vector.shape_cast %248 : vector<16xf32> to vector<16x1xf32>
    %cst_88 = arith.constant 3.200000e+01 : f32
    %250 = vector.broadcast %cst_88 : f32 to vector<16x1xf32>
    %251 = arith.divf %249, %250 : vector<16x1xf32>
    %252 = vector.broadcast %251 : vector<16x1xf32> to vector<16x32xf32>
    %253 = arith.subf %245, %252 : vector<16x32xf32>
    %254 = arith.mulf %253, %253 : vector<16x32xf32>
    %cst_89 = arith.constant dense<0.000000e+00> : vector<16xf32>
    %255 = vector.multi_reduction <add>, %254, %cst_89 [1] : vector<16x32xf32> to vector<16xf32>
    %256 = vector.shape_cast %255 : vector<16xf32> to vector<16x1xf32>
    %cst_90 = arith.constant 3.200000e+01 : f32
    %257 = vector.broadcast %cst_90 : f32 to vector<16x1xf32>
    %258 = arith.divf %256, %257 : vector<16x1xf32>
    %cst_91 = arith.constant 9.99999997E-7 : f32
    %259 = vector.broadcast %cst_91 : f32 to vector<16x1xf32>
    %260 = arith.addf %258, %259 : vector<16x1xf32>
    %261 = math.rsqrt %260 : vector<16x1xf32>
    %262 = vector.broadcast %261 : vector<16x1xf32> to vector<16x32xf32>
    %263 = arith.mulf %253, %262 : vector<16x32xf32>
    %264 = vector.broadcast %246 : vector<1x32xf32> to vector<16x32xf32>
    %265 = arith.mulf %263, %264 : vector<16x32xf32>
    %266 = vector.broadcast %247 : vector<1x32xf32> to vector<16x32xf32>
    %267 = arith.addf %265, %266 : vector<16x32xf32>
    %268 = arith.truncf %267 : vector<16x32xf32> to vector<16x32xbf16>
    %c0_92 = arith.constant 0 : index
    %c0_93 = arith.constant 0 : index
    %269 = vector.load %arg21[%c0_92, %c0_93] : memref<32x64xbf16, #tpu.memory_space<vmem>>, vector<32x64xbf16>
    %cst_94 = arith.constant dense<0.000000e+00> : vector<16x64xf32>
    %270 = tpu.matmul %268, %269, %cst_94 {dimension_numbers = #tpu.dot_dimension_numbers<[1], [0], [0], [1], [0, 0, 1, 1], [], []>} : vector<16x32xbf16>, vector<32x64xbf16>, vector<16x64xf32> -> vector<16x64xf32>
    %c0_95 = arith.constant 0 : index
    %c0_96 = arith.constant 0 : index
    %271 = vector.load %arg22[%c0_95, %c0_96] : memref<1x64xf32, #tpu.memory_space<vmem>>, vector<1x64xf32>
    %272 = vector.broadcast %271 : vector<1x64xf32> to vector<16x64xf32>
    %273 = arith.addf %270, %272 : vector<16x64xf32>
    %cst_97 = arith.constant 0.000000e+00 : f32
    %274 = vector.broadcast %cst_97 : f32 to vector<16x64xf32>
    %275 = arith.maximumf %273, %274 : vector<16x64xf32>
    %276 = arith.truncf %275 : vector<16x64xf32> to vector<16x64xbf16>
    %c0_98 = arith.constant 0 : index
    %c0_99 = arith.constant 0 : index
    %277 = vector.load %arg23[%c0_98, %c0_99] : memref<64x32xbf16, #tpu.memory_space<vmem>>, vector<64x32xbf16>
    %cst_100 = arith.constant dense<0.000000e+00> : vector<16x32xf32>
    %278 = tpu.matmul %276, %277, %cst_100 {dimension_numbers = #tpu.dot_dimension_numbers<[1], [0], [0], [1], [0, 0, 1, 1], [], []>} : vector<16x64xbf16>, vector<64x32xbf16>, vector<16x32xf32> -> vector<16x32xf32>
    %c0_101 = arith.constant 0 : index
    %c0_102 = arith.constant 0 : index
    %279 = vector.load %arg24[%c0_101, %c0_102] : memref<1x32xf32, #tpu.memory_space<vmem>>, vector<1x32xf32>
    %280 = vector.broadcast %279 : vector<1x32xf32> to vector<16x32xf32>
    %281 = arith.addf %278, %280 : vector<16x32xf32>
    %282 = arith.addf %267, %281 : vector<16x32xf32>
    %c0_103 = arith.constant 0 : index
    %c0_104 = arith.constant 0 : index
    %283 = vector.load %arg25[%c0_103, %c0_104] : memref<1x32xf32, #tpu.memory_space<vmem>>, vector<1x32xf32>
    %c0_105 = arith.constant 0 : index
    %c0_106 = arith.constant 0 : index
    %284 = vector.load %arg26[%c0_105, %c0_106] : memref<1x32xf32, #tpu.memory_space<vmem>>, vector<1x32xf32>
    %cst_107 = arith.constant dense<0.000000e+00> : vector<16xf32>
    %285 = vector.multi_reduction <add>, %282, %cst_107 [1] : vector<16x32xf32> to vector<16xf32>
    %286 = vector.shape_cast %285 : vector<16xf32> to vector<16x1xf32>
    %cst_108 = arith.constant 3.200000e+01 : f32
    %287 = vector.broadcast %cst_108 : f32 to vector<16x1xf32>
    %288 = arith.divf %286, %287 : vector<16x1xf32>
    %289 = vector.broadcast %288 : vector<16x1xf32> to vector<16x32xf32>
    %290 = arith.subf %282, %289 : vector<16x32xf32>
    %291 = arith.mulf %290, %290 : vector<16x32xf32>
    %cst_109 = arith.constant dense<0.000000e+00> : vector<16xf32>
    %292 = vector.multi_reduction <add>, %291, %cst_109 [1] : vector<16x32xf32> to vector<16xf32>
    %293 = vector.shape_cast %292 : vector<16xf32> to vector<16x1xf32>
    %cst_110 = arith.constant 3.200000e+01 : f32
    %294 = vector.broadcast %cst_110 : f32 to vector<16x1xf32>
    %295 = arith.divf %293, %294 : vector<16x1xf32>
    %cst_111 = arith.constant 9.99999997E-7 : f32
    %296 = vector.broadcast %cst_111 : f32 to vector<16x1xf32>
    %297 = arith.addf %295, %296 : vector<16x1xf32>
    %298 = math.rsqrt %297 : vector<16x1xf32>
    %299 = vector.broadcast %298 : vector<16x1xf32> to vector<16x32xf32>
    %300 = arith.mulf %290, %299 : vector<16x32xf32>
    %301 = vector.broadcast %283 : vector<1x32xf32> to vector<16x32xf32>
    %302 = arith.mulf %300, %301 : vector<16x32xf32>
    %303 = vector.broadcast %284 : vector<1x32xf32> to vector<16x32xf32>
    %304 = arith.addf %302, %303 : vector<16x32xf32>
    %c0_112 = arith.constant 0 : index
    %c0_113 = arith.constant 0 : index
    %c0_114 = arith.constant 0 : index
    %305 = vector.load %arg27[%c0_112, %c0_113, %c0_114] : memref<1x16x32xf32, #tpu.memory_space<vmem>>, vector<1x16x32xf32>
    %306 = vector.shape_cast %305 : vector<1x16x32xf32> to vector<16x32xf32>
    %307 = vector.shape_cast %304 : vector<16x32xf32> to vector<1x16x32xf32>
    tpu.vector_store %arg27[%c0_112, %c0_113, %c0_114], %307 {strides = array<i32>} : memref<1x16x32xf32, #tpu.memory_space<vmem>>, vector<1x16x32xf32>,
    return
  }
  func.func @transform_0(%arg0: i32) -> (i32, i32, i32) {
    %c0_i32 = arith.constant 0 : i32
    %c0_i32_0 = arith.constant 0 : i32
    %c0_i32_1 = arith.constant 0 : i32
    return %arg0, %c0_i32, %c0_i32_0 : i32, i32, i32
  }
  func.func @transform_1(%arg0: i32) -> (i32, i32, i32) {
    %c0_i32 = arith.constant 0 : i32
    %c0_i32_0 = arith.constant 0 : i32
    %c0_i32_1 = arith.constant 0 : i32
    return %arg0, %c0_i32, %c0_i32_0 : i32, i32, i32
  }
  func.func @transform_2(%arg0: i32) -> (i32, i32, i32) {
    %c0_i32 = arith.constant 0 : i32
    %c0_i32_0 = arith.constant 0 : i32
    %c0_i32_1 = arith.constant 0 : i32
    return %arg0, %c0_i32, %c0_i32_0 : i32, i32, i32
  }
  func.func @transform_3(%arg0: i32) -> (i32, i32, i32) {
    %c0_i32 = arith.constant 0 : i32
    %c0_i32_0 = arith.constant 0 : i32
    %c0_i32_1 = arith.constant 0 : i32
    return %arg0, %c0_i32, %c0_i32_0 : i32, i32, i32
  }
  func.func @transform_4(%arg0: i32) -> (i32, i32) {
    %c0_i32 = arith.constant 0 : i32
    %c0_i32_0 = arith.constant 0 : i32
    %c0_i32_1 = arith.constant 0 : i32
    return %c0_i32, %c0_i32_0 : i32, i32
  }
  func.func @transform_5(%arg0: i32) -> (i32, i32) {
    %c0_i32 = arith.constant 0 : i32
    %c0_i32_0 = arith.constant 0 : i32
    %c0_i32_1 = arith.constant 0 : i32
    return %c0_i32, %c0_i32_0 : i32, i32
  }
  func.func @transform_6(%arg0: i32) -> (i32, i32) {
    %c0_i32 = arith.constant 0 : i32
    %c0_i32_0 = arith.constant 0 : i32
    %c0_i32_1 = arith.constant 0 : i32
    return %c0_i32, %c0_i32_0 : i32, i32
  }
  func.func @transform_7(%arg0: i32) -> (i32, i32) {
    %c0_i32 = arith.constant 0 : i32
    %c0_i32_0 = arith.constant 0 : i32
    %c0_i32_1 = arith.constant 0 : i32
    return %c0_i32, %c0_i32_0 : i32, i32
  }
  func.func @transform_8(%arg0: i32) -> (i32, i32) {
    %c0_i32 = arith.constant 0 : i32
    %c0_i32_0 = arith.constant 0 : i32
    %c0_i32_1 = arith.constant 0 : i32
    return %c0_i32, %c0_i32_0 : i32, i32
  }
  func.func @transform_9(%arg0: i32) -> (i32, i32) {
    %c0_i32 = arith.constant 0 : i32
    %c0_i32_0 = arith.constant 0 : i32
    %c0_i32_1 = arith.constant 0 : i32
    return %c0_i32, %c0_i32_0 : i32, i32
  }
  func.func @transform_10(%arg0: i32) -> (i32, i32) {
    %c0_i32 = arith.constant 0 : i32
    %c0_i32_0 = arith.constant 0 : i32
    %c0_i32_1 = arith.constant 0 : i32
    return %c0_i32, %c0_i32_0 : i32, i32
  }
  func.func @transform_11(%arg0: i32) -> (i32, i32) {
    %c0_i32 = arith.constant 0 : i32
    %c0_i32_0 = arith.constant 0 : i32
    %c0_i32_1 = arith.constant 0 : i32
    return %c0_i32, %c0_i32_0 : i32, i32
  }
  func.func @transform_12(%arg0: i32) -> (i32, i32) {
    %c0_i32 = arith.constant 0 : i32
    %c0_i32_0 = arith.constant 0 : i32
    %c0_i32_1 = arith.constant 0 : i32
    return %c0_i32, %c0_i32_0 : i32, i32
  }
  func.func @transform_13(%arg0: i32) -> (i32, i32) {
    %c0_i32 = arith.constant 0 : i32
    %c0_i32_0 = arith.constant 0 : i32
    %c0_i32_1 = arith.constant 0 : i32
    return %c0_i32, %c0_i32_0 : i32, i32
  }
  func.func @transform_14(%arg0: i32) -> (i32, i32) {
    %c0_i32 = arith.constant 0 : i32
    %c0_i32_0 = arith.constant 0 : i32
    %c0_i32_1 = arith.constant 0 : i32
    return %c0_i32, %c0_i32_0 : i32, i32
  }
  func.func @transform_15(%arg0: i32) -> (i32, i32) {
    %c0_i32 = arith.constant 0 : i32
    %c0_i32_0 = arith.constant 0 : i32
    %c0_i32_1 = arith.constant 0 : i32
    return %c0_i32, %c0_i32_0 : i32, i32
  }
  func.func @transform_16(%arg0: i32) -> (i32, i32) {
    %c0_i32 = arith.constant 0 : i32
    %c0_i32_0 = arith.constant 0 : i32
    %c0_i32_1 = arith.constant 0 : i32
    return %c0_i32, %c0_i32_0 : i32, i32
  }
  func.func @transform_17(%arg0: i32) -> (i32, i32) {
    %c0_i32 = arith.constant 0 : i32
    %c0_i32_0 = arith.constant 0 : i32
    %c0_i32_1 = arith.constant 0 : i32
    return %c0_i32, %c0_i32_0 : i32, i32
  }
  func.func @transform_18(%arg0: i32) -> (i32, i32) {
    %c0_i32 = arith.constant 0 : i32
    %c0_i32_0 = arith.constant 0 : i32
    %c0_i32_1 = arith.constant 0 : i32
    return %c0_i32, %c0_i32_0 : i32, i32
  }
  func.func @transform_19(%arg0: i32) -> (i32, i32) {
    %c0_i32 = arith.constant 0 : i32
    %c0_i32_0 = arith.constant 0 : i32
    %c0_i32_1 = arith.constant 0 : i32
    return %c0_i32, %c0_i32_0 : i32, i32
  }
  func.func @transform_20(%arg0: i32) -> (i32, i32) {
    %c0_i32 = arith.constant 0 : i32
    %c0_i32_0 = arith.constant 0 : i32
    %c0_i32_1 = arith.constant 0 : i32
    return %c0_i32, %c0_i32_0 : i32, i32
  }
  func.func @transform_21(%arg0: i32) -> (i32, i32) {
    %c0_i32 = arith.constant 0 : i32
    %c0_i32_0 = arith.constant 0 : i32
    %c0_i32_1 = arith.constant 0 : i32
    return %c0_i32, %c0_i32_0 : i32, i32
  }
  func.func @transform_22(%arg0: i32) -> (i32, i32) {
    %c0_i32 = arith.constant 0 : i32
    %c0_i32_0 = arith.constant 0 : i32
    %c0_i32_1 = arith.constant 0 : i32
    return %c0_i32, %c0_i32_0 : i32, i32
  }
  func.func @transform_23(%arg0: i32) -> (i32, i32) {
    %c0_i32 = arith.constant 0 : i32
    %c0_i32_0 = arith.constant 0 : i32
    %c0_i32_1 = arith.constant 0 : i32
    return %c0_i32, %c0_i32_0 : i32, i32
  }
  func.func @transform_24(%arg0: i32) -> (i32, i32) {
    %c0_i32 = arith.constant 0 : i32
    %c0_i32_0 = arith.constant 0 : i32
    %c0_i32_1 = arith.constant 0 : i32
    return %c0_i32, %c0_i32_0 : i32, i32
  }
  func.func @transform_25(%arg0: i32) -> (i32, i32) {
    %c0_i32 = arith.constant 0 : i32
    %c0_i32_0 = arith.constant 0 : i32
    %c0_i32_1 = arith.constant 0 : i32
    return %c0_i32, %c0_i32_0 : i32, i32
  }
  func.func @transform_26(%arg0: i32) -> (i32, i32, i32) {
    %c0_i32 = arith.constant 0 : i32
    %c0_i32_0 = arith.constant 0 : i32
    %c0_i32_1 = arith.constant 0 : i32
    return %arg0, %c0_i32, %c0_i32_0 : i32, i32, i32
  }
}

</mosaic_0001>

<llo_original>
// kernel: _lambda_.7
$region0: #{_lambda_.7}
  #allocation0 [shape = 'u32[]', space=smem, size = 0x4, offset = 0x4, fixed_abs, tag = 'smem constant byte address 0x4 - core index']
  #allocation1 [shape = 'u32[144,128]{1,0:T(1,128)}', space=vmem, size = 0x12000, scoped, tag = 'internal scratch']
  %s0 = inlined_call_operand.vmem [shape: f32[2,16,32], index: 0, kind: input, shape index: {}]
  %s1 = inlined_call_operand.vmem [shape: f32[2,8,32], index: 1, kind: input, shape index: {}]
  %s2 = inlined_call_operand.vmem [shape: f32[2,1,16], index: 2, kind: input, shape index: {}]
  %s3 = inlined_call_operand.vmem [shape: f32[2,1,8], index: 3, kind: input, shape index: {}]
  %s4 = inlined_call_operand.vmem [shape: bf16[32,32], index: 4, kind: input, shape index: {}]
  %s5 = inlined_call_operand.vmem [shape: f32[1,32], index: 5, kind: input, shape index: {}]
  %s6 = inlined_call_operand.vmem [shape: bf16[32,64], index: 6, kind: input, shape index: {}]
  %s7 = inlined_call_operand.vmem [shape: f32[1,64], index: 7, kind: input, shape index: {}]
  %s8 = inlined_call_operand.vmem [shape: bf16[32,32], index: 8, kind: input, shape index: {}]
  %s9 = inlined_call_operand.vmem [shape: f32[1,32], index: 9, kind: input, shape index: {}]
  %s10 = inlined_call_operand.vmem [shape: f32[1,32], index: 10, kind: input, shape index: {}, may-alias: {10,18,24}]
  %s11 = inlined_call_operand.vmem [shape: f32[1,32], index: 11, kind: input, shape index: {}, may-alias: {11,19,25}]
  %s12 = inlined_call_operand.vmem [shape: bf16[32,32], index: 12, kind: input, shape index: {}]
  %s13 = inlined_call_operand.vmem [shape: f32[1,32], index: 13, kind: input, shape index: {}]
  %s14 = inlined_call_operand.vmem [shape: bf16[32,64], index: 14, kind: input, shape index: {}]
  %s15 = inlined_call_operand.vmem [shape: f32[1,64], index: 15, kind: input, shape index: {}]
  %s16 = inlined_call_operand.vmem [shape: bf16[32,32], index: 16, kind: input, shape index: {}]
  %s17 = inlined_call_operand.vmem [shape: f32[1,32], index: 17, kind: input, shape index: {}]
  %s18 = inlined_call_operand.vmem [shape: f32[1,32], index: 18, kind: input, shape index: {}, may-alias: {10,18,24}]
  %s19 = inlined_call_operand.vmem [shape: f32[1,32], index: 19, kind: input, shape index: {}, may-alias: {11,19,25}]
  %s20 = inlined_call_operand.vmem [shape: bf16[32,64], index: 20, kind: input, shape index: {}]
  %s21 = inlined_call_operand.vmem [shape: f32[1,64], index: 21, kind: input, shape index: {}]
  %s22 = inlined_call_operand.vmem [shape: bf16[64,32], index: 22, kind: input, shape index: {}]
  %s23 = inlined_call_operand.vmem [shape: f32[1,32], index: 23, kind: input, shape index: {}]
  %s24 = inlined_call_operand.vmem [shape: f32[1,32], index: 24, kind: input, shape index: {}, may-alias: {10,18,24}]
  %s25 = inlined_call_operand.vmem [shape: f32[1,32], index: 25, kind: input, shape index: {}, may-alias: {11,19,25}]
  %s26 = inlined_call_operand.hbm [shape: f32[2,16,32], index: 26, kind: output, shape index: {}]
  %s27 = sld [smem:[#allocation0]]
  $region137: #{_lambda_.7} parent=0
    _
  %s29 = ssub.s32 1, %s27
  %s30 = scalar_select 0, %s29, %s27
  $region1: #{_lambda_.7} parent=0
    #allocation2 [shape = 'u8[16384]{0}', space=vmem, size = 0x4000, scoped, tag = 'output window, operand 0']
    #allocation3 [shape = 's32[2]{0}', space=sflag, size = 0x8, scoped, tag = 'scoped memory for _lambda_.7']
    %31 = vsyncpa [#allocation3], 0
    %s32 = scalar_lea.sflag [#allocation3], 1
    %33 = vsyncpa %s32, 0
    loop: start=0, step=1, limit=4
    $region2: #{_lambda_.7} parent=1 // loop_pre_header
      _
    $region3: #{_lambda_.7} parent=1 // loop_header
      %s35 = sphi 0, %s39
      %p36 = scmp.ge.s32.totalorder %s35, 4
      %s45 = sphi 0, %s47
      %s48 = sphi 0, %s45
      %s49 = sphi 0, %s48
      %s65 = sphi 0, %s49
      %s71 = sphi 0, %s73
      %s74 = sphi 0, %s71
      %s75 = sphi 0, %s74
      %s91 = sphi 0, %s75
      %s97 = sphi 0, %s99
      %s100 = sphi 0, %s97
      %s101 = sphi 0, %s100
      %s117 = sphi 0, %s101
      %s123 = sphi 0, %s125
      %s126 = sphi 0, %s123
      %s127 = sphi 0, %s126
      %s143 = sphi 0, %s127
      %s147 = sphi 0, %s147
      %s149 = sphi 0, %s147
      %s150 = sphi 0, %s149
      %s164 = sphi 0, %s150
      %s168 = sphi 0, %s168
      %s170 = sphi 0, %s168
      %s171 = sphi 0, %s170
      %s185 = sphi 0, %s171
      %s189 = sphi 0, %s189
      %s191 = sphi 0, %s189
      %s192 = sphi 0, %s191
      %s206 = sphi 0, %s192
      %s210 = sphi 0, %s210
      %s212 = sphi 0, %s210
      %s213 = sphi 0, %s212
      %s227 = sphi 0, %s213
      %s231 = sphi 0, %s231
      %s233 = sphi 0, %s231
      %s234 = sphi 0, %s233
      %s248 = sphi 0, %s234
      %s252 = sphi 0, %s252
      %s254 = sphi 0, %s252
      %s255 = sphi 0, %s254
      %s269 = sphi 0, %s255
      %s273 = sphi 0, %s273
      %s275 = sphi 0, %s273
      %s276 = sphi 0, %s275
      %s290 = sphi 0, %s276
      %s294 = sphi 0, %s294
      %s296 = sphi 0, %s294
      %s297 = sphi 0, %s296
      %s311 = sphi 0, %s297
      %s315 = sphi 0, %s315
      %s317 = sphi 0, %s315
      %s318 = sphi 0, %s317
      %s332 = sphi 0, %s318
      %s336 = sphi 0, %s336
      %s338 = sphi 0, %s336
      %s339 = sphi 0, %s338
      %s353 = sphi 0, %s339
      %s357 = sphi 0, %s357
      %s359 = sphi 0, %s357
      %s360 = sphi 0, %s359
      %s374 = sphi 0, %s360
      %s378 = sphi 0, %s378
      %s380 = sphi 0, %s378
      %s381 = sphi 0, %s380
      %s395 = sphi 0, %s381
      %s399 = sphi 0, %s399
      %s401 = sphi 0, %s399
      %s402 = sphi 0, %s401
      %s416 = sphi 0, %s402
      %s420 = sphi 0, %s420
      %s422 = sphi 0, %s420
      %s423 = sphi 0, %s422
      %s437 = sphi 0, %s423
      %s441 = sphi 0, %s441
      %s443 = sphi 0, %s441
      %s444 = sphi 0, %s443
      %s458 = sphi 0, %s444
      %s462 = sphi 0, %s462
      %s464 = sphi 0, %s462
      %s465 = sphi 0, %s464
      %s479 = sphi 0, %s465
      %s483 = sphi 0, %s483
      %s485 = sphi 0, %s483
      %s486 = sphi 0, %s485
      %s500 = sphi 0, %s486
      %s504 = sphi 0, %s504
      %s506 = sphi 0, %s504
      %s507 = sphi 0, %s506
      %s521 = sphi 0, %s507
      %s525 = sphi 0, %s525
      %s527 = sphi 0, %s525
      %s528 = sphi 0, %s527
      %s542 = sphi 0, %s528
      %s546 = sphi 0, %s546
      %s548 = sphi 0, %s546
      %s549 = sphi 0, %s548
      %s563 = sphi 0, %s549
      %s567 = sphi 0, %s567
      %s569 = sphi 0, %s567
      %s570 = sphi 0, %s569
      %s584 = sphi 0, %s570
      %s588 = sphi 0, %s588
      %s590 = sphi 0, %s588
      %s591 = sphi 0, %s590
      %s605 = sphi 0, %s591
      %s611 = sphi 0, %s613
      %s614 = sphi 0, %s611
      %s615 = sphi 0, %s614
      %s631 = sphi 0, %s615
    $region4: #{_lambda_.7} parent=1 // loop_header_branch
      %38 = sbr.rel (%p36) target = $region8
    $region5: #{_lambda_.7} parent=1 // loop_body
      %s40 = ssub.s32 %s35, 1
      %s41 = ssub.s32 %s35, 2
      %s42 = sadd.s32 %s35, 1
      %s43 = ssub.s32 %s35, %s42
      %p44 = scmp.eq.s32.totalorder %s43, 0
      %s46 = sadd.s32 %s45, 1
      %s47 = scalar_select %p44, %s45, %s46
      %p50 = pneg %p44
      %p51 = scmp.eq.s32.totalorder %s35, 1
      %p52 = por %p50, %p51
      %p53 = scmp.ne.s32.totalorder %s45, %s48
      %p54 = scmp.eq.s32.totalorder %s35, 0
      %p55 = por %p53, %p54
      %p56 = scmp.ne.s32.totalorder %s45, %s48
      %p57 = scmp.eq.s32.totalorder %s40, 1
      %p58 = por %p56, %p57
      %p59 = scmp.ne.s32.totalorder %s48, %s49
      %p60 = scmp.eq.s32.totalorder %s40, 0
      %p61 = por %p59, %p60
      %p62 = scmp.ne.s32.totalorder %s48, %s49
      %p63 = scmp.eq.s32.totalorder %s41, 1
      %p64 = por %p62, %p63
      %p66 = scmp.ne.s32.totalorder %s49, %s65
      %p67 = scmp.eq.s32.totalorder %s41, 0
      %p68 = por %p66, %p67
      %s69 = ssub.s32 %s35, %s42
      %p70 = scmp.eq.s32.totalorder %s69, 0
      %s72 = sadd.s32 %s71, 1
      %s73 = scalar_select %p70, %s71, %s72
      %p76 = pneg %p70
      %p77 = scmp.eq.s32.totalorder %s35, 1
      %p78 = por %p76, %p77
      %p79 = scmp.ne.s32.totalorder %s71, %s74
      %p80 = scmp.eq.s32.totalorder %s35, 0
      %p81 = por %p79, %p80
      %p82 = scmp.ne.s32.totalorder %s71, %s74
      %p83 = scmp.eq.s32.totalorder %s40, 1
      %p84 = por %p82, %p83
      %p85 = scmp.ne.s32.totalorder %s74, %s75
      %p86 = scmp.eq.s32.totalorder %s40, 0
      %p87 = por %p85, %p86
      %p88 = scmp.ne.s32.totalorder %s74, %s75
      %p89 = scmp.eq.s32.totalorder %s41, 1
      %p90 = por %p88, %p89
      %p92 = scmp.ne.s32.totalorder %s75, %s91
      %p93 = scmp.eq.s32.totalorder %s41, 0
      %p94 = por %p92, %p93
      %s95 = ssub.s32 %s35, %s42
      %p96 = scmp.eq.s32.totalorder %s95, 0
      %s98 = sadd.s32 %s97, 1
      %s99 = scalar_select %p96, %s97, %s98
      %p102 = pneg %p96
      %p103 = scmp.eq.s32.totalorder %s35, 1
      %p104 = por %p102, %p103
      %p105 = scmp.ne.s32.totalorder %s97, %s100
      %p106 = scmp.eq.s32.totalorder %s35, 0
      %p107 = por %p105, %p106
      %p108 = scmp.ne.s32.totalorder %s97, %s100
      %p109 = scmp.eq.s32.totalorder %s40, 1
      %p110 = por %p108, %p109
      %p111 = scmp.ne.s32.totalorder %s100, %s101
      %p112 = scmp.eq.s32.totalorder %s40, 0
      %p113 = por %p111, %p112
      %p114 = scmp.ne.s32.totalorder %s100, %s101
      %p115 = scmp.eq.s32.totalorder %s41, 1
      %p116 = por %p114, %p115
      %p118 = scmp.ne.s32.totalorder %s101, %s117
      %p119 = scmp.eq.s32.totalorder %s41, 0
      %p120 = por %p118, %p119
      %s121 = ssub.s32 %s35, %s42
      %p122 = scmp.eq.s32.totalorder %s121, 0
      %s124 = sadd.s32 %s123, 1
      %s125 = scalar_select %p122, %s123, %s124
      %p128 = pneg %p122
      %p129 = scmp.eq.s32.totalorder %s35, 1
      %p130 = por %p128, %p129
      %p131 = scmp.ne.s32.totalorder %s123, %s126
      %p132 = scmp.eq.s32.totalorder %s35, 0
      %p133 = por %p131, %p132
      %p134 = scmp.ne.s32.totalorder %s123, %s126
      %p135 = scmp.eq.s32.totalorder %s40, 1
      %p136 = por %p134, %p135
      %p137 = scmp.ne.s32.totalorder %s126, %s127
      %p138 = scmp.eq.s32.totalorder %s40, 0
      %p139 = por %p137, %p138
      %p140 = scmp.ne.s32.totalorder %s126, %s127
      %p141 = scmp.eq.s32.totalorder %s41, 1
      %p142 = por %p140, %p141
      %p144 = scmp.ne.s32.totalorder %s127, %s143
      %p145 = scmp.eq.s32.totalorder %s41, 0
      %p146 = por %p144, %p145
      %s148 = sadd.s32 %s147, 1
      %p151 = scmp.eq.s32.totalorder %s35, 1
      %p152 = scmp.ne.s32.totalorder %s147, %s149
      %p153 = scmp.eq.s32.totalorder %s35, 0
      %p154 = por %p152, %p153
      %p155 = scmp.ne.s32.totalorder %s147, %s149
      %p156 = scmp.eq.s32.totalorder %s40, 1
      %p157 = por %p155, %p156
      %p158 = scmp.ne.s32.totalorder %s149, %s150
      %p159 = scmp.eq.s32.totalorder %s40, 0
      %p160 = por %p158, %p159
      %p161 = scmp.ne.s32.totalorder %s149, %s150
      %p162 = scmp.eq.s32.totalorder %s41, 1
      %p163 = por %p161, %p162
      %p165 = scmp.ne.s32.totalorder %s150, %s164
      %p166 = scmp.eq.s32.totalorder %s41, 0
      %p167 = por %p165, %p166
      %s169 = sadd.s32 %s168, 1
      %p172 = scmp.eq.s32.totalorder %s35, 1
      %p173 = scmp.ne.s32.totalorder %s168, %s170
      %p174 = scmp.eq.s32.totalorder %s35, 0
      %p175 = por %p173, %p174
      %p176 = scmp.ne.s32.totalorder %s168, %s170
      %p177 = scmp.eq.s32.totalorder %s40, 1
      %p178 = por %p176, %p177
      %p179 = scmp.ne.s32.totalorder %s170, %s171
      %p180 = scmp.eq.s32.totalorder %s40, 0
      %p181 = por %p179, %p180
      %p182 = scmp.ne.s32.totalorder %s170, %s171
      %p183 = scmp.eq.s32.totalorder %s41, 1
      %p184 = por %p182, %p183
      %p186 = scmp.ne.s32.totalorder %s171, %s185
      %p187 = scmp.eq.s32.totalorder %s41, 0
      %p188 = por %p186, %p187
      %s190 = sadd.s32 %s189, 1
      %p193 = scmp.eq.s32.totalorder %s35, 1
      %p194 = scmp.ne.s32.totalorder %s189, %s191
      %p195 = scmp.eq.s32.totalorder %s35, 0
      %p196 = por %p194, %p195
      %p197 = scmp.ne.s32.totalorder %s189, %s191
      %p198 = scmp.eq.s32.totalorder %s40, 1
      %p199 = por %p197, %p198
      %p200 = scmp.ne.s32.totalorder %s191, %s192
      %p201 = scmp.eq.s32.totalorder %s40, 0
      %p202 = por %p200, %p201
      %p203 = scmp.ne.s32.totalorder %s191, %s192
      %p204 = scmp.eq.s32.totalorder %s41, 1
      %p205 = por %p203, %p204
      %p207 = scmp.ne.s32.totalorder %s192, %s206
      %p208 = scmp.eq.s32.totalorder %s41, 0
      %p209 = por %p207, %p208
      %s211 = sadd.s32 %s210, 1
      %p214 = scmp.eq.s32.totalorder %s35, 1
      %p215 = scmp.ne.s32.totalorder %s210, %s212
      %p216 = scmp.eq.s32.totalorder %s35, 0
      %p217 = por %p215, %p216
      %p218 = scmp.ne.s32.totalorder %s210, %s212
      %p219 = scmp.eq.s32.totalorder %s40, 1
      %p220 = por %p218, %p219
      %p221 = scmp.ne.s32.totalorder %s212, %s213
      %p222 = scmp.eq.s32.totalorder %s40, 0
      %p223 = por %p221, %p222
      %p224 = scmp.ne.s32.totalorder %s212, %s213
      %p225 = scmp.eq.s32.totalorder %s41, 1
      %p226 = por %p224, %p225
      %p228 = scmp.ne.s32.totalorder %s213, %s227
      %p229 = scmp.eq.s32.totalorder %s41, 0
      %p230 = por %p228, %p229
      %s232 = sadd.s32 %s231, 1
      %p235 = scmp.eq.s32.totalorder %s35, 1
      %p236 = scmp.ne.s32.totalorder %s231, %s233
      %p237 = scmp.eq.s32.totalorder %s35, 0
      %p238 = por %p236, %p237
      %p239 = scmp.ne.s32.totalorder %s231, %s233
      %p240 = scmp.eq.s32.totalorder %s40, 1
      %p241 = por %p239, %p240
      %p242 = scmp.ne.s32.totalorder %s233, %s234
      %p243 = scmp.eq.s32.totalorder %s40, 0
      %p244 = por %p242, %p243
      %p245 = scmp.ne.s32.totalorder %s233, %s234
      %p246 = scmp.eq.s32.totalorder %s41, 1
      %p247 = por %p245, %p246
      %p249 = scmp.ne.s32.totalorder %s234, %s248
      %p250 = scmp.eq.s32.totalorder %s41, 0
      %p251 = por %p249, %p250
      %s253 = sadd.s32 %s252, 1
      %p256 = scmp.eq.s32.totalorder %s35, 1
      %p257 = scmp.ne.s32.totalorder %s252, %s254
      %p258 = scmp.eq.s32.totalorder %s35, 0
      %p259 = por %p257, %p258
      %p260 = scmp.ne.s32.totalorder %s252, %s254
      %p261 = scmp.eq.s32.totalorder %s40, 1
      %p262 = por %p260, %p261
      %p263 = scmp.ne.s32.totalorder %s254, %s255
      %p264 = scmp.eq.s32.totalorder %s40, 0
      %p265 = por %p263, %p264
      %p266 = scmp.ne.s32.totalorder %s254, %s255
      %p267 = scmp.eq.s32.totalorder %s41, 1
      %p268 = por %p266, %p267
      %p270 = scmp.ne.s32.totalorder %s255, %s269
      %p271 = scmp.eq.s32.totalorder %s41, 0
      %p272 = por %p270, %p271
      %s274 = sadd.s32 %s273, 1
      %p277 = scmp.eq.s32.totalorder %s35, 1
      %p278 = scmp.ne.s32.totalorder %s273, %s275
      %p279 = scmp.eq.s32.totalorder %s35, 0
      %p280 = por %p278, %p279
      %p281 = scmp.ne.s32.totalorder %s273, %s275
      %p282 = scmp.eq.s32.totalorder %s40, 1
      %p283 = por %p281, %p282
      %p284 = scmp.ne.s32.totalorder %s275, %s276
      %p285 = scmp.eq.s32.totalorder %s40, 0
      %p286 = por %p284, %p285
      %p287 = scmp.ne.s32.totalorder %s275, %s276
      %p288 = scmp.eq.s32.totalorder %s41, 1
      %p289 = por %p287, %p288
      %p291 = scmp.ne.s32.totalorder %s276, %s290
      %p292 = scmp.eq.s32.totalorder %s41, 0
      %p293 = por %p291, %p292
      %s295 = sadd.s32 %s294, 1
      %p298 = scmp.eq.s32.totalorder %s35, 1
      %p299 = scmp.ne.s32.totalorder %s294, %s296
      %p300 = scmp.eq.s32.totalorder %s35, 0
      %p301 = por %p299, %p300
      %p302 = scmp.ne.s32.totalorder %s294, %s296
      %p303 = scmp.eq.s32.totalorder %s40, 1
      %p304 = por %p302, %p303
      %p305 = scmp.ne.s32.totalorder %s296, %s297
      %p306 = scmp.eq.s32.totalorder %s40, 0
      %p307 = por %p305, %p306
      %p308 = scmp.ne.s32.totalorder %s296, %s297
      %p309 = scmp.eq.s32.totalorder %s41, 1
      %p310 = por %p308, %p309
      %p312 = scmp.ne.s32.totalorder %s297, %s311
      %p313 = scmp.eq.s32.totalorder %s41, 0
      %p314 = por %p312, %p313
      %s316 = sadd.s32 %s315, 1
      %p319 = scmp.eq.s32.totalorder %s35, 1
      %p320 = scmp.ne.s32.totalorder %s315, %s317
      %p321 = scmp.eq.s32.totalorder %s35, 0
      %p322 = por %p320, %p321
      %p323 = scmp.ne.s32.totalorder %s315, %s317
      %p324 = scmp.eq.s32.totalorder %s40, 1
      %p325 = por %p323, %p324
      %p326 = scmp.ne.s32.totalorder %s317, %s318
      %p327 = scmp.eq.s32.totalorder %s40, 0
      %p328 = por %p326, %p327
      %p329 = scmp.ne.s32.totalorder %s317, %s318
      %p330 = scmp.eq.s32.totalorder %s41, 1
      %p331 = por %p329, %p330
      %p333 = scmp.ne.s32.totalorder %s318, %s332
      %p334 = scmp.eq.s32.totalorder %s41, 0
      %p335 = por %p333, %p334
      %s337 = sadd.s32 %s336, 1
      %p340 = scmp.eq.s32.totalorder %s35, 1
      %p341 = scmp.ne.s32.totalorder %s336, %s338
      %p342 = scmp.eq.s32.totalorder %s35, 0
      %p343 = por %p341, %p342
      %p344 = scmp.ne.s32.totalorder %s336, %s338
      %p345 = scmp.eq.s32.totalorder %s40, 1
      %p346 = por %p344, %p345
      %p347 = scmp.ne.s32.totalorder %s338, %s339
      %p348 = scmp.eq.s32.totalorder %s40, 0
      %p349 = por %p347, %p348
      %p350 = scmp.ne.s32.totalorder %s338, %s339
      %p351 = scmp.eq.s32.totalorder %s41, 1
      %p352 = por %p350, %p351
      %p354 = scmp.ne.s32.totalorder %s339, %s353
      %p355 = scmp.eq.s32.totalorder %s41, 0
      %p356 = por %p354, %p355
      %s358 = sadd.s32 %s357, 1
      %p361 = scmp.eq.s32.totalorder %s35, 1
      %p362 = scmp.ne.s32.totalorder %s357, %s359
      %p363 = scmp.eq.s32.totalorder %s35, 0
      %p364 = por %p362, %p363
      %p365 = scmp.ne.s32.totalorder %s357, %s359
      %p366 = scmp.eq.s32.totalorder %s40, 1
      %p367 = por %p365, %p366
      %p368 = scmp.ne.s32.totalorder %s359, %s360
      %p369 = scmp.eq.s32.totalorder %s40, 0
      %p370 = por %p368, %p369
      %p371 = scmp.ne.s32.totalorder %s359, %s360
      %p372 = scmp.eq.s32.totalorder %s41, 1
      %p373 = por %p371, %p372
      %p375 = scmp.ne.s32.totalorder %s360, %s374
      %p376 = scmp.eq.s32.totalorder %s41, 0
      %p377 = por %p375, %p376
      %s379 = sadd.s32 %s378, 1
      %p382 = scmp.eq.s32.totalorder %s35, 1
      %p383 = scmp.ne.s32.totalorder %s378, %s380
      %p384 = scmp.eq.s32.totalorder %s35, 0
      %p385 = por %p383, %p384
      %p386 = scmp.ne.s32.totalorder %s378, %s380
      %p387 = scmp.eq.s32.totalorder %s40, 1
      %p388 = por %p386, %p387
      %p389 = scmp.ne.s32.totalorder %s380, %s381
      %p390 = scmp.eq.s32.totalorder %s40, 0
      %p391 = por %p389, %p390
      %p392 = scmp.ne.s32.totalorder %s380, %s381
      %p393 = scmp.eq.s32.totalorder %s41, 1
      %p394 = por %p392, %p393
      %p396 = scmp.ne.s32.totalorder %s381, %s395
      %p397 = scmp.eq.s32.totalorder %s41, 0
      %p398 = por %p396, %p397
      %s400 = sadd.s32 %s399, 1
      %p403 = scmp.eq.s32.totalorder %s35, 1
      %p404 = scmp.ne.s32.totalorder %s399, %s401
      %p405 = scmp.eq.s32.totalorder %s35, 0
      %p406 = por %p404, %p405
      %p407 = scmp.ne.s32.totalorder %s399, %s401
      %p408 = scmp.eq.s32.totalorder %s40, 1
      %p409 = por %p407, %p408
      %p410 = scmp.ne.s32.totalorder %s401, %s402
      %p411 = scmp.eq.s32.totalorder %s40, 0
      %p412 = por %p410, %p411
      %p413 = scmp.ne.s32.totalorder %s401, %s402
      %p414 = scmp.eq.s32.totalorder %s41, 1
      %p415 = por %p413, %p414
      %p417 = scmp.ne.s32.totalorder %s402, %s416
      %p418 = scmp.eq.s32.totalorder %s41, 0
      %p419 = por %p417, %p418
      %s421 = sadd.s32 %s420, 1
      %p424 = scmp.eq.s32.totalorder %s35, 1
      %p425 = scmp.ne.s32.totalorder %s420, %s422
      %p426 = scmp.eq.s32.totalorder %s35, 0
      %p427 = por %p425, %p426
      %p428 = scmp.ne.s32.totalorder %s420, %s422
      %p429 = scmp.eq.s32.totalorder %s40, 1
      %p430 = por %p428, %p429
      %p431 = scmp.ne.s32.totalorder %s422, %s423
      %p432 = scmp.eq.s32.totalorder %s40, 0
      %p433 = por %p431, %p432
      %p434 = scmp.ne.s32.totalorder %s422, %s423
      %p435 = scmp.eq.s32.totalorder %s41, 1
      %p436 = por %p434, %p435
      %p438 = scmp.ne.s32.totalorder %s423, %s437
      %p439 = scmp.eq.s32.totalorder %s41, 0
      %p440 = por %p438, %p439
      %s442 = sadd.s32 %s441, 1
      %p445 = scmp.eq.s32.totalorder %s35, 1
      %p446 = scmp.ne.s32.totalorder %s441, %s443
      %p447 = scmp.eq.s32.totalorder %s35, 0
      %p448 = por %p446, %p447
      %p449 = scmp.ne.s32.totalorder %s441, %s443
      %p450 = scmp.eq.s32.totalorder %s40, 1
      %p451 = por %p449, %p450
      %p452 = scmp.ne.s32.totalorder %s443, %s444
      %p453 = scmp.eq.s32.totalorder %s40, 0
      %p454 = por %p452, %p453
      %p455 = scmp.ne.s32.totalorder %s443, %s444
      %p456 = scmp.eq.s32.totalorder %s41, 1
      %p457 = por %p455, %p456
      %p459 = scmp.ne.s32.totalorder %s444, %s458
      %p460 = scmp.eq.s32.totalorder %s41, 0
      %p461 = por %p459, %p460
      %s463 = sadd.s32 %s462, 1
      %p466 = scmp.eq.s32.totalorder %s35, 1
      %p467 = scmp.ne.s32.totalorder %s462, %s464
      %p468 = scmp.eq.s32.totalorder %s35, 0
      %p469 = por %p467, %p468
      %p470 = scmp.ne.s32.totalorder %s462, %s464
      %p471 = scmp.eq.s32.totalorder %s40, 1
      %p472 = por %p470, %p471
      %p473 = scmp.ne.s32.totalorder %s464, %s465
      %p474 = scmp.eq.s32.totalorder %s40, 0
      %p475 = por %p473, %p474
      %p476 = scmp.ne.s32.totalorder %s464, %s465
      %p477 = scmp.eq.s32.totalorder %s41, 1
      %p478 = por %p476, %p477
      %p480 = scmp.ne.s32.totalorder %s465, %s479
      %p481 = scmp.eq.s32.totalorder %s41, 0
      %p482 = por %p480, %p481
      %s484 = sadd.s32 %s483, 1
      %p487 = scmp.eq.s32.totalorder %s35, 1
      %p488 = scmp.ne.s32.totalorder %s483, %s485
      %p489 = scmp.eq.s32.totalorder %s35, 0
      %p490 = por %p488, %p489
      %p491 = scmp.ne.s32.totalorder %s483, %s485
      %p492 = scmp.eq.s32.totalorder %s40, 1
      %p493 = por %p491, %p492
      %p494 = scmp.ne.s32.totalorder %s485, %s486
      %p495 = scmp.eq.s32.totalorder %s40, 0
      %p496 = por %p494, %p495
      %p497 = scmp.ne.s32.totalorder %s485, %s486
      %p498 = scmp.eq.s32.totalorder %s41, 1
      %p499 = por %p497, %p498
      %p501 = scmp.ne.s32.totalorder %s486, %s500
      %p502 = scmp.eq.s32.totalorder %s41, 0
      %p503 = por %p501, %p502
      %s505 = sadd.s32 %s504, 1
      %p508 = scmp.eq.s32.totalorder %s35, 1
      %p509 = scmp.ne.s32.totalorder %s504, %s506
      %p510 = scmp.eq.s32.totalorder %s35, 0
      %p511 = por %p509, %p510
      %p512 = scmp.ne.s32.totalorder %s504, %s506
      %p513 = scmp.eq.s32.totalorder %s40, 1
      %p514 = por %p512, %p513
      %p515 = scmp.ne.s32.totalorder %s506, %s507
      %p516 = scmp.eq.s32.totalorder %s40, 0
      %p517 = por %p515, %p516
      %p518 = scmp.ne.s32.totalorder %s506, %s507
      %p519 = scmp.eq.s32.totalorder %s41, 1
      %p520 = por %p518, %p519
      %p522 = scmp.ne.s32.totalorder %s507, %s521
      %p523 = scmp.eq.s32.totalorder %s41, 0
      %p524 = por %p522, %p523
      %s526 = sadd.s32 %s525, 1
      %p529 = scmp.eq.s32.totalorder %s35, 1
      %p530 = scmp.ne.s32.totalorder %s525, %s527
      %p531 = scmp.eq.s32.totalorder %s35, 0
      %p532 = por %p530, %p531
      %p533 = scmp.ne.s32.totalorder %s525, %s527
      %p534 = scmp.eq.s32.totalorder %s40, 1
      %p535 = por %p533, %p534
      %p536 = scmp.ne.s32.totalorder %s527, %s528
      %p537 = scmp.eq.s32.totalorder %s40, 0
      %p538 = por %p536, %p537
      %p539 = scmp.ne.s32.totalorder %s527, %s528
      %p540 = scmp.eq.s32.totalorder %s41, 1
      %p541 = por %p539, %p540
      %p543 = scmp.ne.s32.totalorder %s528, %s542
      %p544 = scmp.eq.s32.totalorder %s41, 0
      %p545 = por %p543, %p544
      %s547 = sadd.s32 %s546, 1
      %p550 = scmp.eq.s32.totalorder %s35, 1
      %p551 = scmp.ne.s32.totalorder %s546, %s548
      %p552 = scmp.eq.s32.totalorder %s35, 0
      %p553 = por %p551, %p552
      %p554 = scmp.ne.s32.totalorder %s546, %s548
      %p555 = scmp.eq.s32.totalorder %s40, 1
      %p556 = por %p554, %p555
      %p557 = scmp.ne.s32.totalorder %s548, %s549
      %p558 = scmp.eq.s32.totalorder %s40, 0
      %p559 = por %p557, %p558
      %p560 = scmp.ne.s32.totalorder %s548, %s549
      %p561 = scmp.eq.s32.totalorder %s41, 1
      %p562 = por %p560, %p561
      %p564 = scmp.ne.s32.totalorder %s549, %s563
      %p565 = scmp.eq.s32.totalorder %s41, 0
      %p566 = por %p564, %p565
      %s568 = sadd.s32 %s567, 1
      %p571 = scmp.eq.s32.totalorder %s35, 1
      %p572 = scmp.ne.s32.totalorder %s567, %s569
      %p573 = scmp.eq.s32.totalorder %s35, 0
      %p574 = por %p572, %p573
      %p575 = scmp.ne.s32.totalorder %s567, %s569
      %p576 = scmp.eq.s32.totalorder %s40, 1
      %p577 = por %p575, %p576
      %p578 = scmp.ne.s32.totalorder %s569, %s570
      %p579 = scmp.eq.s32.totalorder %s40, 0
      %p580 = por %p578, %p579
      %p581 = scmp.ne.s32.totalorder %s569, %s570
      %p582 = scmp.eq.s32.totalorder %s41, 1
      %p583 = por %p581, %p582
      %p585 = scmp.ne.s32.totalorder %s570, %s584
      %p586 = scmp.eq.s32.totalorder %s41, 0
      %p587 = por %p585, %p586
      %s589 = sadd.s32 %s588, 1
      %p592 = scmp.eq.s32.totalorder %s35, 1
      %p593 = scmp.ne.s32.totalorder %s588, %s590
      %p594 = scmp.eq.s32.totalorder %s35, 0
      %p595 = por %p593, %p594
      %p596 = scmp.ne.s32.totalorder %s588, %s590
      %p597 = scmp.eq.s32.totalorder %s40, 1
      %p598 = por %p596, %p597
      %p599 = scmp.ne.s32.totalorder %s590, %s591
      %p600 = scmp.eq.s32.totalorder %s40, 0
      %p601 = por %p599, %p600
      %p602 = scmp.ne.s32.totalorder %s590, %s591
      %p603 = scmp.eq.s32.totalorder %s41, 1
      %p604 = por %p602, %p603
      %p606 = scmp.ne.s32.totalorder %s591, %s605
      %p607 = scmp.eq.s32.totalorder %s41, 0
      %p608 = por %p606, %p607
      %s609 = ssub.s32 %s35, %s42
      %p610 = scmp.eq.s32.totalorder %s609, 0
      %s612 = sadd.s32 %s611, 1
      %s613 = scalar_select %p610, %s611, %s612
      %p616 = pneg %p610
      %p617 = scmp.eq.s32.totalorder %s35, 1
      %p618 = por %p616, %p617
      %p619 = scmp.ne.s32.totalorder %s611, %s614
      %p620 = scmp.eq.s32.totalorder %s35, 0
      %p621 = por %p619, %p620
      %p622 = scmp.ne.s32.totalorder %s611, %s614
      %p623 = scmp.eq.s32.totalorder %s40, 1
      %p624 = por %p622, %p623
      %p625 = scmp.ne.s32.totalorder %s614, %s615
      %p626 = scmp.eq.s32.totalorder %s40, 0
      %p627 = por %p625, %p626
      %p628 = scmp.ne.s32.totalorder %s614, %s615
      %p629 = scmp.eq.s32.totalorder %s41, 1
      %p630 = por %p628, %p629
      %p632 = scmp.ne.s32.totalorder %s615, %s631
      %p633 = scmp.eq.s32.totalorder %s41, 0
      %p634 = por %p632, %p633
      %p635 = scmp.le.s32.totalorder 1, %s35
      %p636 = scmp.lt.s32.totalorder %s35, 3
      %p637 = pnand %p635, %p636
      %p638 = pneg %p637
      // Predicated region
      $region9: #{_lambda_.7} parent=5 // pred_check
        _
      $region10: #{_lambda_.7} parent=5 // pred_check_branch
        %640 = sbr.rel (%p637) target = $region12
      $region11: #{_lambda_.7} parent=5 // pred_region
        %s641 = ssub.s32 %s35, 1
        // Predicated region
        $region13: #{_lambda_.7} parent=11 // pred_check
          %p642 = pneg %p160
        $region14: #{_lambda_.7} parent=11 // pred_check_branch
          %644 = sbr.rel (%p642) target = $region16
        $region15: #{_lambda_.7} parent=11 // pred_region
          _
        $region16: #{_lambda_.7} parent=11 // pred_fallthru
          _
        // Predicated region
        $region17: #{_lambda_.7} parent=11 // pred_check
          %p645 = pneg %p181
        $region18: #{_lambda_.7} parent=11 // pred_check_branch
          %647 = sbr.rel (%p645) target = $region20
        $region19: #{_lambda_.7} parent=11 // pred_region
          _
        $region20: #{_lambda_.7} parent=11 // pred_fallthru
          _
        // Predicated region
        $region21: #{_lambda_.7} parent=11 // pred_check
          %p648 = pneg %p202
        $region22: #{_lambda_.7} parent=11 // pred_check_branch
          %650 = sbr.rel (%p648) target = $region24
        $region23: #{_lambda_.7} parent=11 // pred_region
          _
        $region24: #{_lambda_.7} parent=11 // pred_fallthru
          _
        // Predicated region
        $region25: #{_lambda_.7} parent=11 // pred_check
          %p651 = pneg %p223
        $region26: #{_lambda_.7} parent=11 // pred_check_branch
          %653 = sbr.rel (%p651) target = $region28
        $region27: #{_lambda_.7} parent=11 // pred_region
          _
        $region28: #{_lambda_.7} parent=11 // pred_fallthru
          _
        // Predicated region
        $region29: #{_lambda_.7} parent=11 // pred_check
          %p654 = pneg %p244
        $region30: #{_lambda_.7} parent=11 // pred_check_branch
          %656 = sbr.rel (%p654) target = $region32
        $region31: #{_lambda_.7} parent=11 // pred_region
          _
        $region32: #{_lambda_.7} parent=11 // pred_fallthru
          _
        // Predicated region
        $region33: #{_lambda_.7} parent=11 // pred_check
          %p657 = pneg %p265
        $region34: #{_lambda_.7} parent=11 // pred_check_branch
          %659 = sbr.rel (%p657) target = $region36
        $region35: #{_lambda_.7} parent=11 // pred_region
          _
        $region36: #{_lambda_.7} parent=11 // pred_fallthru
          _
        // Predicated region
        $region37: #{_lambda_.7} parent=11 // pred_check
          %p660 = pneg %p286
        $region38: #{_lambda_.7} parent=11 // pred_check_branch
          %662 = sbr.rel (%p660) target = $region40
        $region39: #{_lambda_.7} parent=11 // pred_region
          _
        $region40: #{_lambda_.7} parent=11 // pred_fallthru
          _
        // Predicated region
        $region41: #{_lambda_.7} parent=11 // pred_check
          %p663 = pneg %p307
        $region42: #{_lambda_.7} parent=11 // pred_check_branch
          %665 = sbr.rel (%p663) target = $region44
        $region43: #{_lambda_.7} parent=11 // pred_region
          _
        $region44: #{_lambda_.7} parent=11 // pred_fallthru
          _
        // Predicated region
        $region45: #{_lambda_.7} parent=11 // pred_check
          %p666 = pneg %p328
        $region46: #{_lambda_.7} parent=11 // pred_check_branch
          %668 = sbr.rel (%p666) target = $region48
        $region47: #{_lambda_.7} parent=11 // pred_region
          _
        $region48: #{_lambda_.7} parent=11 // pred_fallthru
          _
        // Predicated region
        $region49: #{_lambda_.7} parent=11 // pred_check
          %p669 = pneg %p349
        $region50: #{_lambda_.7} parent=11 // pred_check_branch
          %671 = sbr.rel (%p669) target = $region52
        $region51: #{_lambda_.7} parent=11 // pred_region
          _
        $region52: #{_lambda_.7} parent=11 // pred_fallthru
          _
        // Predicated region
        $region53: #{_lambda_.7} parent=11 // pred_check
          %p672 = pneg %p370
        $region54: #{_lambda_.7} parent=11 // pred_check_branch
          %674 = sbr.rel (%p672) target = $region56
        $region55: #{_lambda_.7} parent=11 // pred_region
          _
        $region56: #{_lambda_.7} parent=11 // pred_fallthru
          _
        // Predicated region
        $region57: #{_lambda_.7} parent=11 // pred_check
          %p675 = pneg %p391
        $region58: #{_lambda_.7} parent=11 // pred_check_branch
          %677 = sbr.rel (%p675) target = $region60
        $region59: #{_lambda_.7} parent=11 // pred_region
          _
        $region60: #{_lambda_.7} parent=11 // pred_fallthru
          _
        // Predicated region
        $region61: #{_lambda_.7} parent=11 // pred_check
          %p678 = pneg %p412
        $region62: #{_lambda_.7} parent=11 // pred_check_branch
          %680 = sbr.rel (%p678) target = $region64
        $region63: #{_lambda_.7} parent=11 // pred_region
          _
        $region64: #{_lambda_.7} parent=11 // pred_fallthru
          _
        // Predicated region
        $region65: #{_lambda_.7} parent=11 // pred_check
          %p681 = pneg %p433
        $region66: #{_lambda_.7} parent=11 // pred_check_branch
          %683 = sbr.rel (%p681) target = $region68
        $region67: #{_lambda_.7} parent=11 // pred_region
          _
        $region68: #{_lambda_.7} parent=11 // pred_fallthru
          _
        // Predicated region
        $region69: #{_lambda_.7} parent=11 // pred_check
          %p684 = pneg %p454
        $region70: #{_lambda_.7} parent=11 // pred_check_branch
          %686 = sbr.rel (%p684) target = $region72
        $region71: #{_lambda_.7} parent=11 // pred_region
          _
        $region72: #{_lambda_.7} parent=11 // pred_fallthru
          _
        // Predicated region
        $region73: #{_lambda_.7} parent=11 // pred_check
          %p687 = pneg %p475
        $region74: #{_lambda_.7} parent=11 // pred_check_branch
          %689 = sbr.rel (%p687) target = $region76
        $region75: #{_lambda_.7} parent=11 // pred_region
          _
        $region76: #{_lambda_.7} parent=11 // pred_fallthru
          _
        // Predicated region
        $region77: #{_lambda_.7} parent=11 // pred_check
          %p690 = pneg %p496
        $region78: #{_lambda_.7} parent=11 // pred_check_branch
          %692 = sbr.rel (%p690) target = $region80
        $region79: #{_lambda_.7} parent=11 // pred_region
          _
        $region80: #{_lambda_.7} parent=11 // pred_fallthru
          _
        // Predicated region
        $region81: #{_lambda_.7} parent=11 // pred_check
          %p693 = pneg %p517
        $region82: #{_lambda_.7} parent=11 // pred_check_branch
          %695 = sbr.rel (%p693) target = $region84
        $region83: #{_lambda_.7} parent=11 // pred_region
          _
        $region84: #{_lambda_.7} parent=11 // pred_fallthru
          _
        // Predicated region
        $region85: #{_lambda_.7} parent=11 // pred_check
          %p696 = pneg %p538
        $region86: #{_lambda_.7} parent=11 // pred_check_branch
          %698 = sbr.rel (%p696) target = $region88
        $region87: #{_lambda_.7} parent=11 // pred_region
          _
        $region88: #{_lambda_.7} parent=11 // pred_fallthru
          _
        // Predicated region
        $region89: #{_lambda_.7} parent=11 // pred_check
          %p699 = pneg %p559
        $region90: #{_lambda_.7} parent=11 // pred_check_branch
          %701 = sbr.rel (%p699) target = $region92
        $region91: #{_lambda_.7} parent=11 // pred_region
          _
        $region92: #{_lambda_.7} parent=11 // pred_fallthru
          _
        // Predicated region
        $region93: #{_lambda_.7} parent=11 // pred_check
          %p702 = pneg %p580
        $region94: #{_lambda_.7} parent=11 // pred_check_branch
          %704 = sbr.rel (%p702) target = $region96
        $region95: #{_lambda_.7} parent=11 // pred_region
          _
        $region96: #{_lambda_.7} parent=11 // pred_fallthru
          _
        // Predicated region
        $region97: #{_lambda_.7} parent=11 // pred_check
          %p705 = pneg %p601
        $region98: #{_lambda_.7} parent=11 // pred_check_branch
          %707 = sbr.rel (%p705) target = $region100
        $region99: #{_lambda_.7} parent=11 // pred_region
          _
        $region100: #{_lambda_.7} parent=11 // pred_fallthru
          _
      $region12: #{_lambda_.7} parent=5 // pred_fallthru
        _
      %p708 = scmp.lt.s32.totalorder %s35, 2
      // Predicated region
      $region101: #{_lambda_.7} parent=5 // pred_check
        %p709 = pneg %p708
      $region102: #{_lambda_.7} parent=5 // pred_check_branch
        %711 = sbr.rel (%p709) target = $region104
      $region103: #{_lambda_.7} parent=5 // pred_region
        // Predicated region
        $region105: #{_lambda_.7} parent=103 // pred_check
          %p712 = pneg %p55
        $region106: #{_lambda_.7} parent=103 // pred_check_branch
          %714 = sbr.rel (%p712) target = $region108
        $region107: #{_lambda_.7} parent=103 // pred_region
          %p715 = scmp.lt.s32.totalorder %s35, 1
          %s716 = scalar_select %p715, %s35, 1
          %s717 = smul.addr %s716, 2
          %s718 = smul.addr %s717, 8
          %s719 = scalar_lea.vmem %s0, %s718
        $region108: #{_lambda_.7} parent=103 // pred_fallthru
          _
        // Predicated region
        $region109: #{_lambda_.7} parent=103 // pred_check
          %p720 = pneg %p81
        $region110: #{_lambda_.7} parent=103 // pred_check_branch
          %722 = sbr.rel (%p720) target = $region112
        $region111: #{_lambda_.7} parent=103 // pred_region
          %p723 = scmp.lt.s32.totalorder %s35, 1
          %s724 = scalar_select %p723, %s35, 1
          %s725 = smul.addr %s724, 8
          %s726 = scalar_lea.vmem %s1, %s725
        $region112: #{_lambda_.7} parent=103 // pred_fallthru
          _
        // Predicated region
        $region113: #{_lambda_.7} parent=103 // pred_check
          %p727 = pneg %p107
        $region114: #{_lambda_.7} parent=103 // pred_check_branch
          %729 = sbr.rel (%p727) target = $region116
        $region115: #{_lambda_.7} parent=103 // pred_region
          %p730 = scmp.lt.s32.totalorder %s35, 1
          %s731 = scalar_select %p730, %s35, 1
          %s732 = scalar_lea.vmem %s2, %s731
        $region116: #{_lambda_.7} parent=103 // pred_fallthru
          _
        // Predicated region
        $region117: #{_lambda_.7} parent=103 // pred_check
          %p733 = pneg %p133
        $region118: #{_lambda_.7} parent=103 // pred_check_branch
          %735 = sbr.rel (%p733) target = $region120
        $region119: #{_lambda_.7} parent=103 // pred_region
          %p736 = scmp.lt.s32.totalorder %s35, 1
          %s737 = scalar_select %p736, %s35, 1
          %s738 = scalar_lea.vmem %s3, %s737
        $region120: #{_lambda_.7} parent=103 // pred_fallthru
          _
      $region104: #{_lambda_.7} parent=5 // pred_fallthru
        _
      %p739 = scmp.le.s32.totalorder 1, %s35
      %p740 = scmp.lt.s32.totalorder %s35, 3
      %p741 = pnand %p739, %p740
      %p742 = pneg %p741
      // Predicated region
      $region121: #{_lambda_.7} parent=5 // pred_check
        _
      $region122: #{_lambda_.7} parent=5 // pred_check_branch
        %744 = sbr.rel (%p741) target = $region124
      $region123: #{_lambda_.7} parent=5 // pred_region
        %s745 = ssub.s32 %s35, 1
        %p746 = scmp.lt.s32.totalorder %s40, 1
        %s747 = scalar_select %p746, %s40, 1
        %s748 = smul.addr %s747, 2
        %s749 = smul.addr %s748, 8
        %s750 = scalar_lea.vmem %s0, %s749
        %p751 = pneg %p61
        %p752 = pneg %p58
        %p753 = scmp.lt.s32.totalorder %s40, 1
        %s754 = scalar_select %p753, %s40, 1
        %s755 = smul.addr %s754, 8
        %s756 = scalar_lea.vmem %s1, %s755
        %p757 = pneg %p87
        %p758 = pneg %p84
        %p759 = scmp.lt.s32.totalorder %s40, 1
        %s760 = scalar_select %p759, %s40, 1
        %s761 = scalar_lea.vmem %s2, %s760
        %p762 = pneg %p113
        %p763 = pneg %p110
        %p764 = scmp.lt.s32.totalorder %s40, 1
        %s765 = scalar_select %p764, %s40, 1
        %s766 = scalar_lea.vmem %s3, %s765
        %p767 = pneg %p139
        %p768 = pneg %p136
        %p769 = pneg %p160
        %p770 = pneg %p157
        %p771 = pneg %p181
        %p772 = pneg %p178
        %p773 = pneg %p202
        %p774 = pneg %p199
        %p775 = pneg %p223
        %p776 = pneg %p220
        %p777 = pneg %p244
        %p778 = pneg %p241
        %p779 = pneg %p265
        %p780 = pneg %p262
        %p781 = pneg %p286
        %p782 = pneg %p283
        %p783 = pneg %p307
        %p784 = pneg %p304
        %p785 = pneg %p328
        %p786 = pneg %p325
        %p787 = pneg %p349
        %p788 = pneg %p346
        %p789 = pneg %p370
        %p790 = pneg %p367
        %p791 = pneg %p391
        %p792 = pneg %p388
        %p793 = pneg %p412
        %p794 = pneg %p409
        %p795 = pneg %p433
        %p796 = pneg %p430
        %p797 = pneg %p454
        %p798 = pneg %p451
        %p799 = pneg %p475
        %p800 = pneg %p472
        %p801 = pneg %p496
        %p802 = pneg %p493
        %p803 = pneg %p517
        %p804 = pneg %p514
        %p805 = pneg %p538
        %p806 = pneg %p535
        %p807 = pneg %p559
        %p808 = pneg %p556
        %p809 = pneg %p580
        %p810 = pneg %p577
        %p811 = pneg %p601
        %p812 = pneg %p598
        %p813 = pneg %p627
        %p814 = pneg %p624
        %s815 = sand.u32 %s614, 1
        %s816 = scalar_lea.sflag [#allocation3], %s815
        %s817 = sand.u32 %s614, 1
        %s818 = smul.addr %s817, 16
        %s819 = scalar_lea.vmem [#allocation2], %s818
        %p820 = scmp.lt.s32.totalorder %s40, 1
        %s821 = scalar_select %p820, %s40, 1
        %s822 = smul.addr %s821, 2
        %s823 = smul.addr %s822, 8
        %s824 = scalar_lea.vmem %s0, %s823
        %p825 = scmp.lt.s32.totalorder %s40, 1
        %s826 = scalar_select %p825, %s40, 1
        %s827 = smul.addr %s826, 8
        %s828 = scalar_lea.vmem %s1, %s827
        %p829 = scmp.lt.s32.totalorder %s40, 1
        %s830 = scalar_select %p829, %s40, 1
        %s831 = scalar_lea.vmem %s2, %s830
        %p832 = scmp.lt.s32.totalorder %s40, 1
        %s833 = scalar_select %p832, %s40, 1
        %s834 = scalar_lea.vmem %s3, %s833
        %v836 = vld [vmem:[%s824] sm:$0xff]
        %v837 = vld [vmem:[%s824 + $0x8] sm:$0xff]
        %v838 = vld [vmem:[%s828] sm:$0xff]
        %v839 = vld [vmem:[%s831] sm:$0x1]
        %v840 = vld [vmem:[%s834] sm:$0x1]
        %v841 = vld [vmem:[%s4] sm:$0xf]
        %v842 = vld [vmem:[%s4 + $0x4] sm:$0xf]
        %v843 = vld [vmem:[%s4 + $0x8] sm:$0xf]
        %v844 = vld [vmem:[%s4 + $0xc] sm:$0xf]
        %v845 = vld [vmem:[%s5] sm:$0x1]
        %v846 = vld [vmem:[%s6] sm:$0xf]
        %v847 = vld [vmem:[%s6 + $0x4] sm:$0xf]
        %v848 = vld [vmem:[%s6 + $0x8] sm:$0xf]
        %v849 = vld [vmem:[%s6 + $0xc] sm:$0xf]
        %v850 = vld [vmem:[%s7] sm:$0x1]
        %v851 = vld [vmem:[%s8] sm:$0xf]
        %v852 = vld [vmem:[%s8 + $0x4] sm:$0xf]
        %v853 = vld [vmem:[%s8 + $0x8] sm:$0xf]
        %v854 = vld [vmem:[%s8 + $0xc] sm:$0xf]
        %v855 = vld [vmem:[%s9] sm:$0x1]
        %v856 = vpack.c.bf16 %v837, %v836
        %v858 = vlaneseq
        %v859 = vshrl.u32 %v858, 7
        %v860 = vsub.s32 0, %v859
        %v861 = vrot.slane %v845, %v860
        %v867 = vunpack.c.l.b16 %v841
        %v868 = vunpack.c.l.b16 %v842
        %v869 = vunpack.c.l.b16 %v843
        %v870 = vunpack.c.l.b16 %v844
        %v871 = vpack.c.b16 %v868, %v867
        %v872 = vpack.c.b16 %v870, %v869
        %vm875 = vcmask 261120
        %v877 = vsel %vm875, %v856, 0
        %879 = vmatprep.subr.bf16.mxu0 0
        %880 = vmatpush1.bf16.msra.mxu0 %v871
        %881 = vmatprep.subr.bf16.mxu0 0
        %882 = vmatpush1.bf16.msra.mxu0 %v872
        %883 = vmatprep.subr.bf16.mxu0 0
        %884 = vmatpush1.bf16.msra.mxu0 0
        %885 = vmatprep.subr.bf16.mxu0 0
        %886 = vmatpush1.bf16.msra.mxu0 0
        %887 = vmatprep.subr.bf16.mxu0 0
        %888 = vmatpush1.bf16.msra.mxu0 0
        %889 = vmatprep.subr.bf16.mxu0 0
        %890 = vmatpush1.bf16.msra.mxu0 0
        %891 = vmatprep.subr.bf16.mxu0 0
        %892 = vmatpush1.bf16.msra.mxu0 0
        %893 = vmatprep.subr.bf16.mxu0 0
        %894 = vmatpush1.bf16.msra.mxu0 0
        %895 = vmatprep.subr.bf16.mxu0 0
        %896 = vmatpush1.bf16.msra.mxu0 0
        %897 = vmatprep.subr.bf16.mxu0 0
        %898 = vmatpush1.bf16.msra.mxu0 0
        %899 = vmatprep.subr.bf16.mxu0 0
        %900 = vmatpush1.bf16.msra.mxu0 0
        %901 = vmatprep.subr.bf16.mxu0 0
        %902 = vmatpush1.bf16.msra.mxu0 0
        %903 = vmatprep.subr.bf16.mxu0 0
        %904 = vmatpush1.bf16.msra.mxu0 0
        %905 = vmatprep.subr.bf16.mxu0 0
        %906 = vmatpush1.bf16.msra.mxu0 0
        %907 = vmatprep.subr.bf16.mxu0 0
        %908 = vmatpush1.bf16.msra.mxu0 0
        %909 = vmatprep.subr.bf16.mxu0 0
        %910 = vmatpush1.bf16.msra.mxu0 0
        %911 = vmatprep.mubr.bf16.mxu0 0
        %912 = vmatmul.mubr.bf16.gmra.mrb[0].mxu0 %v877
        %v913 = vpop.f32.mrb[0].mxu0
        %v914 = vadd.f32 %v861, %v913
        %v915 = vpop.f32.mrb[0].mxu0
        %v916 = vpop.f32.mrb[0].mxu0
        %v917 = vadd.f32 %v861, %v916
        %v918 = vpop.f32.mrb[0].mxu0
        %919 = vdwg.mxu0
        %v921 = vlaneseq
        %v922 = vshrl.u32 %v921, 7
        %v923 = vsub.s32 0, %v922
        %v924 = vrot.slane %v850, %v923
        %v930 = vunpack.c.l.b16 %v846
        %v931 = vunpack.c.l.b16 %v847
        %v932 = vunpack.c.l.b16 %v848
        %v933 = vunpack.c.l.b16 %v849
        %v934 = vpack.c.b16 %v931, %v930
        %v935 = vpack.c.b16 %v933, %v932
        %938 = vmatprep.subr.bf16.mxu0 0
        %939 = vmatpush1.bf16.msra.mxu0 %v934
        %940 = vmatprep.subr.bf16.mxu0 0
        %941 = vmatpush1.bf16.msra.mxu0 %v935
        %942 = vmatprep.subr.bf16.mxu0 0
        %943 = vmatpush1.bf16.msra.mxu0 0
        %944 = vmatprep.subr.bf16.mxu0 0
        %945 = vmatpush1.bf16.msra.mxu0 0
        %946 = vmatprep.subr.bf16.mxu0 0
        %947 = vmatpush1.bf16.msra.mxu0 0
        %948 = vmatprep.subr.bf16.mxu0 0
        %949 = vmatpush1.bf16.msra.mxu0 0
        %950 = vmatprep.subr.bf16.mxu0 0
        %951 = vmatpush1.bf16.msra.mxu0 0
        %952 = vmatprep.subr.bf16.mxu0 0
        %953 = vmatpush1.bf16.msra.mxu0 0
        %954 = vmatprep.subr.bf16.mxu0 0
        %955 = vmatpush1.bf16.msra.mxu0 0
        %956 = vmatprep.subr.bf16.mxu0 0
        %957 = vmatpush1.bf16.msra.mxu0 0
        %958 = vmatprep.subr.bf16.mxu0 0
        %959 = vmatpush1.bf16.msra.mxu0 0
        %960 = vmatprep.subr.bf16.mxu0 0
        %961 = vmatpush1.bf16.msra.mxu0 0
        %962 = vmatprep.subr.bf16.mxu0 0
        %963 = vmatpush1.bf16.msra.mxu0 0
        %964 = vmatprep.subr.bf16.mxu0 0
        %965 = vmatpush1.bf16.msra.mxu0 0
        %966 = vmatprep.subr.bf16.mxu0 0
        %967 = vmatpush1.bf16.msra.mxu0 0
        %968 = vmatprep.subr.bf16.mxu0 0
        %969 = vmatpush1.bf16.msra.mxu0 0
        %970 = vmatprep.mubr.bf16.mxu0 0
        %971 = vmatmul.mubr.bf16.gmra.mrb[0].mxu0 %v877
        %v972 = vpop.f32.mrb[0].mxu0
        %v973 = vadd.f32 %v924, %v972
        %v974 = vpop.f32.mrb[0].mxu0
        %v975 = vpop.f32.mrb[0].mxu0
        %v976 = vadd.f32 %v924, %v975
        %v977 = vpop.f32.mrb[0].mxu0
        %978 = vdwg.mxu0
        %v979 = vmul.f32 %v914, 0.35355338
        %v980 = vmul.f32 %v917, 0.35355338
        %v981 = vpack.c.bf16 %v980, %v979
        %v982 = vpack.c.bf16 %v976, %v973
        %v984 = vlaneseq
        %v985 = vshrl.u32 %v984, 7
        %v986 = vsub.s32 0, %v985
        %v987 = vrot.slane %v839, %v986
        %vm989 = vcmask 64512
        %v991 = vsel %vm989, %v981, 0
        %v994 = vsel %vm989, %v982, 0
        %996 = vmatprep.subr.bf16.mxu0 0
        %997 = vmatpush1.bf16.xpose.msra.mxu0 %v994
        %998 = vmatprep.subr.bf16.mxu0 0
        %999 = vmatpush1.bf16.xpose.msra.mxu0 0
        %1000 = vmatprep.subr.bf16.mxu0 0
        %1001 = vmatpush1.bf16.xpose.msra.mxu0 0
        %1002 = vmatprep.subr.bf16.mxu0 0
        %1003 = vmatpush1.bf16.xpose.msra.mxu0 0
        %1004 = vmatprep.subr.bf16.mxu0 0
        %1005 = vmatpush1.bf16.xpose.msra.mxu0 0
        %1006 = vmatprep.subr.bf16.mxu0 0
        %1007 = vmatpush1.bf16.xpose.msra.mxu0 0
        %1008 = vmatprep.subr.bf16.mxu0 0
        %1009 = vmatpush1.bf16.xpose.msra.mxu0 0
        %1010 = vmatprep.subr.bf16.mxu0 0
        %1011 = vmatpush1.bf16.xpose.msra.mxu0 0
        %1012 = vmatprep.subr.bf16.mxu0 0
        %1013 = vmatpush1.bf16.xpose.msra.mxu0 0
        %1014 = vmatprep.subr.bf16.mxu0 0
        %1015 = vmatpush1.bf16.xpose.msra.mxu0 0
        %1016 = vmatprep.subr.bf16.mxu0 0
        %1017 = vmatpush1.bf16.xpose.msra.mxu0 0
        %1018 = vmatprep.subr.bf16.mxu0 0
        %1019 = vmatpush1.bf16.xpose.msra.mxu0 0
        %1020 = vmatprep.subr.bf16.mxu0 0
        %1021 = vmatpush1.bf16.xpose.msra.mxu0 0
        %1022 = vmatprep.subr.bf16.mxu0 0
        %1023 = vmatpush1.bf16.xpose.msra.mxu0 0
        %1024 = vmatprep.subr.bf16.mxu0 0
        %1025 = vmatpush1.bf16.xpose.msra.mxu0 0
        %1026 = vmatprep.subr.bf16.mxu0 0
        %1027 = vmatpush1.bf16.xpose.msra.mxu0 0
        %1028 = vmatprep.mubr.bf16.mxu0 0
        %1029 = vmatmul.mubr.bf16.gmra.mrb[0].mxu0 %v991
        %v1030 = vpop.f32.mrb[0].mxu0
        %v1031 = vadd.f32 %v987, %v1030
        %v1032 = vpop.f32.mrb[0].mxu0
        %v1033 = vpop.f32.mrb[0].mxu0
        %v1034 = vadd.f32 %v987, %v1033
        %v1035 = vpop.f32.mrb[0].mxu0
        %1036 = vdwg.mxu0
        %vm1037 = vcmask 130048
        %v1038 = vsel %vm1037, %v1031, -inf
        %1039 = vmax.xlane.f32.xlu0 %v1038
        %v1040 = vpop.xlane.xlu0 %1039
        %v1041 = vsel %vm1037, %v1034, -inf
        %1042 = vmax.xlane.f32.xlu0 %v1041
        %v1043 = vpop.xlane.xlu0 %1042
        %v1044 = vsub.f32 %v1031, %v1040
        %v1045 = vsub.f32 %v1034, %v1043
        %v1046 = vmul.f32 %v1044, 1.442695
        %v1047 = vpow.pop %v1046
        %v1048 = vmul.f32 %v1045, 1.442695
        %v1049 = vpow.pop %v1048
        %v1050 = vsel %vm1037, %v1047, 0.0
        %1051 = vadd.xlane.f32.xlu0 %v1050
        %v1052 = vpop.xlane.xlu0 %1051
        %v1053 = vsel %vm1037, %v1049, 0.0
        %1054 = vadd.xlane.f32.xlu0 %v1053
        %v1055 = vpop.xlane.xlu0 %1054
        %v1056 = vrcp.pop %v1052
        %v1057 = vrcp.pop %v1055
        %v1058 = vmul.f32 %v1047, %v1056
        %v1059 = vmul.f32 %v1049, %v1057
        %v1060 = vpack.c.bf16 %v1059, %v1058
        %1062 = vrot.lane.b32.xlu0 %v982, 96
        %v1063 = vpop.permute.xlu0 %1062
        %v1066 = vsel %vm1037, %v1060, 0
        %1068 = vmatprep.subr.bf16.mxu0 0
        %1069 = vmatpush1.bf16.msra.mxu0 %v1063
        %1070 = vmatprep.subr.bf16.mxu0 0
        %1071 = vmatpush1.bf16.msra.mxu0 0
        %1072 = vmatprep.subr.bf16.mxu0 0
        %1073 = vmatpush1.bf16.msra.mxu0 0
        %1074 = vmatprep.subr.bf16.mxu0 0
        %1075 = vmatpush1.bf16.msra.mxu0 0
        %1076 = vmatprep.subr.bf16.mxu0 0
        %1077 = vmatpush1.bf16.msra.mxu0 0
        %1078 = vmatprep.subr.bf16.mxu0 0
        %1079 = vmatpush1.bf16.msra.mxu0 0
        %1080 = vmatprep.subr.bf16.mxu0 0
        %1081 = vmatpush1.bf16.msra.mxu0 0
        %1082 = vmatprep.subr.bf16.mxu0 0
        %1083 = vmatpush1.bf16.msra.mxu0 0
        %1084 = vmatprep.subr.bf16.mxu0 0
        %1085 = vmatpush1.bf16.msra.mxu0 0
        %1086 = vmatprep.subr.bf16.mxu0 0
        %1087 = vmatpush1.bf16.msra.mxu0 0
        %1088 = vmatprep.subr.bf16.mxu0 0
        %1089 = vmatpush1.bf16.msra.mxu0 0
        %1090 = vmatprep.subr.bf16.mxu0 0
        %1091 = vmatpush1.bf16.msra.mxu0 0
        %1092 = vmatprep.subr.bf16.mxu0 0
        %1093 = vmatpush1.bf16.msra.mxu0 0
        %1094 = vmatprep.subr.bf16.mxu0 0
        %1095 = vmatpush1.bf16.msra.mxu0 0
        %1096 = vmatprep.subr.bf16.mxu0 0
        %1097 = vmatpush1.bf16.msra.mxu0 0
        %1098 = vmatprep.subr.bf16.mxu0 0
        %1099 = vmatpush1.bf16.msra.mxu0 0
        %1100 = vmatprep.mubr.bf16.mxu0 0
        %1101 = vmatmul.mubr.bf16.gmra.mrb[0].mxu0 %v1066
        %v1102 = vpop.f32.mrb[0].mxu0
        %v1103 = vadd.f32 0.0, %v1102
        %v1104 = vpop.f32.mrb[0].mxu0
        %v1105 = vpop.f32.mrb[0].mxu0
        %v1106 = vadd.f32 0.0, %v1105
        %v1107 = vpop.f32.mrb[0].mxu0
        %1108 = vdwg.mxu0
        %1110 = vrot.lane.b32.xlu0 %v981, 120
        %v1111 = vpop.permute.xlu0 %1110
        %1112 = vrot.lane.b32.xlu0 %v982, 120
        %v1113 = vpop.permute.xlu0 %1112
        %v1115 = vsel %vm989, %v1111, 0
        %v1118 = vsel %vm989, %v1113, 0
        %1120 = vmatprep.subr.bf16.mxu0 0
        %1121 = vmatpush1.bf16.xpose.msra.mxu0 %v1118
        %1122 = vmatprep.subr.bf16.mxu0 0
        %1123 = vmatpush1.bf16.xpose.msra.mxu0 0
        %1124 = vmatprep.subr.bf16.mxu0 0
        %1125 = vmatpush1.bf16.xpose.msra.mxu0 0
        %1126 = vmatprep.subr.bf16.mxu0 0
        %1127 = vmatpush1.bf16.xpose.msra.mxu0 0
        %1128 = vmatprep.subr.bf16.mxu0 0
        %1129 = vmatpush1.bf16.xpose.msra.mxu0 0
        %1130 = vmatprep.subr.bf16.mxu0 0
        %1131 = vmatpush1.bf16.xpose.msra.mxu0 0
        %1132 = vmatprep.subr.bf16.mxu0 0
        %1133 = vmatpush1.bf16.xpose.msra.mxu0 0
        %1134 = vmatprep.subr.bf16.mxu0 0
        %1135 = vmatpush1.bf16.xpose.msra.mxu0 0
        %1136 = vmatprep.subr.bf16.mxu0 0
        %1137 = vmatpush1.bf16.xpose.msra.mxu0 0
        %1138 = vmatprep.subr.bf16.mxu0 0
        %1139 = vmatpush1.bf16.xpose.msra.mxu0 0
        %1140 = vmatprep.subr.bf16.mxu0 0
        %1141 = vmatpush1.bf16.xpose.msra.mxu0 0
        %1142 = vmatprep.subr.bf16.mxu0 0
        %1143 = vmatpush1.bf16.xpose.msra.mxu0 0
        %1144 = vmatprep.subr.bf16.mxu0 0
        %1145 = vmatpush1.bf16.xpose.msra.mxu0 0
        %1146 = vmatprep.subr.bf16.mxu0 0
        %1147 = vmatpush1.bf16.xpose.msra.mxu0 0
        %1148 = vmatprep.subr.bf16.mxu0 0
        %1149 = vmatpush1.bf16.xpose.msra.mxu0 0
        %1150 = vmatprep.subr.bf16.mxu0 0
        %1151 = vmatpush1.bf16.xpose.msra.mxu0 0
        %1152 = vmatprep.mubr.bf16.mxu0 0
        %1153 = vmatmul.mubr.bf16.gmra.mrb[0].mxu0 %v1115
        %v1154 = vpop.f32.mrb[0].mxu0
        %v1155 = vadd.f32 %v987, %v1154
        %v1156 = vpop.f32.mrb[0].mxu0
        %v1157 = vpop.f32.mrb[0].mxu0
        %v1158 = vadd.f32 %v987, %v1157
        %v1159 = vpop.f32.mrb[0].mxu0
        %1160 = vdwg.mxu0
        %v1161 = vsel %vm1037, %v1155, -inf
        %1162 = vmax.xlane.f32.xlu0 %v1161
        %v1163 = vpop.xlane.xlu0 %1162
        %v1164 = vsel %vm1037, %v1158, -inf
        %1165 = vmax.xlane.f32.xlu0 %v1164
        %v1166 = vpop.xlane.xlu0 %1165
        %v1167 = vsub.f32 %v1155, %v1163
        %v1168 = vsub.f32 %v1158, %v1166
        %v1169 = vmul.f32 %v1167, 1.442695
        %v1170 = vpow.pop %v1169
        %v1171 = vmul.f32 %v1168, 1.442695
        %v1172 = vpow.pop %v1171
        %v1173 = vsel %vm1037, %v1170, 0.0
        %1174 = vadd.xlane.f32.xlu0 %v1173
        %v1175 = vpop.xlane.xlu0 %1174
        %v1176 = vsel %vm1037, %v1172, 0.0
        %1177 = vadd.xlane.f32.xlu0 %v1176
        %v1178 = vpop.xlane.xlu0 %1177
        %v1179 = vrcp.pop %v1175
        %v1180 = vrcp.pop %v1178
        %v1181 = vmul.f32 %v1170, %v1179
        %v1182 = vmul.f32 %v1172, %v1180
        %v1183 = vpack.c.bf16 %v1182, %v1181
        %1184 = vrot.lane.b32.xlu0 %v982, 88
        %v1185 = vpop.permute.xlu0 %1184
        %v1188 = vsel %vm1037, %v1183, 0
        %1190 = vmatprep.subr.bf16.mxu0 0
        %1191 = vmatpush1.bf16.msra.mxu0 %v1185
        %1192 = vmatprep.subr.bf16.mxu0 0
        %1193 = vmatpush1.bf16.msra.mxu0 0
        %1194 = vmatprep.subr.bf16.mxu0 0
        %1195 = vmatpush1.bf16.msra.mxu0 0
        %1196 = vmatprep.subr.bf16.mxu0 0
        %1197 = vmatpush1.bf16.msra.mxu0 0
        %1198 = vmatprep.subr.bf16.mxu0 0
        %1199 = vmatpush1.bf16.msra.mxu0 0
        %1200 = vmatprep.subr.bf16.mxu0 0
        %1201 = vmatpush1.bf16.msra.mxu0 0
        %1202 = vmatprep.subr.bf16.mxu0 0
        %1203 = vmatpush1.bf16.msra.mxu0 0
        %1204 = vmatprep.subr.bf16.mxu0 0
        %1205 = vmatpush1.bf16.msra.mxu0 0
        %1206 = vmatprep.subr.bf16.mxu0 0
        %1207 = vmatpush1.bf16.msra.mxu0 0
        %1208 = vmatprep.subr.bf16.mxu0 0
        %1209 = vmatpush1.bf16.msra.mxu0 0
        %1210 = vmatprep.subr.bf16.mxu0 0
        %1211 = vmatpush1.bf16.msra.mxu0 0
        %1212 = vmatprep.subr.bf16.mxu0 0
        %1213 = vmatpush1.bf16.msra.mxu0 0
        %1214 = vmatprep.subr.bf16.mxu0 0
        %1215 = vmatpush1.bf16.msra.mxu0 0
        %1216 = vmatprep.subr.bf16.mxu0 0
        %1217 = vmatpush1.bf16.msra.mxu0 0
        %1218 = vmatprep.subr.bf16.mxu0 0
        %1219 = vmatpush1.bf16.msra.mxu0 0
        %1220 = vmatprep.subr.bf16.mxu0 0
        %1221 = vmatpush1.bf16.msra.mxu0 0
        %1222 = vmatprep.mubr.bf16.mxu0 0
        %1223 = vmatmul.mubr.bf16.gmra.mrb[0].mxu0 %v1188
        %v1224 = vpop.f32.mrb[0].mxu0
        %v1225 = vadd.f32 0.0, %v1224
        %v1226 = vpop.f32.mrb[0].mxu0
        %v1227 = vpop.f32.mrb[0].mxu0
        %v1228 = vadd.f32 0.0, %v1227
        %v1229 = vpop.f32.mrb[0].mxu0
        %1230 = vdwg.mxu0
        %1231 = vrot.lane.b32.xlu0 %v981, 112
        %v1232 = vpop.permute.xlu0 %1231
        %1233 = vrot.lane.b32.xlu0 %v982, 112
        %v1234 = vpop.permute.xlu0 %1233
        %v1236 = vsel %vm989, %v1232, 0
        %v1239 = vsel %vm989, %v1234, 0
        %1241 = vmatprep.subr.bf16.mxu0 0
        %1242 = vmatpush1.bf16.xpose.msra.mxu0 %v1239
        %1243 = vmatprep.subr.bf16.mxu0 0
        %1244 = vmatpush1.bf16.xpose.msra.mxu0 0
        %1245 = vmatprep.subr.bf16.mxu0 0
        %1246 = vmatpush1.bf16.xpose.msra.mxu0 0
        %1247 = vmatprep.subr.bf16.mxu0 0
        %1248 = vmatpush1.bf16.xpose.msra.mxu0 0
        %1249 = vmatprep.subr.bf16.mxu0 0
        %1250 = vmatpush1.bf16.xpose.msra.mxu0 0
        %1251 = vmatprep.subr.bf16.mxu0 0
        %1252 = vmatpush1.bf16.xpose.msra.mxu0 0
        %1253 = vmatprep.subr.bf16.mxu0 0
        %1254 = vmatpush1.bf16.xpose.msra.mxu0 0
        %1255 = vmatprep.subr.bf16.mxu0 0
        %1256 = vmatpush1.bf16.xpose.msra.mxu0 0
        %1257 = vmatprep.subr.bf16.mxu0 0
        %1258 = vmatpush1.bf16.xpose.msra.mxu0 0
        %1259 = vmatprep.subr.bf16.mxu0 0
        %1260 = vmatpush1.bf16.xpose.msra.mxu0 0
        %1261 = vmatprep.subr.bf16.mxu0 0
        %1262 = vmatpush1.bf16.xpose.msra.mxu0 0
        %1263 = vmatprep.subr.bf16.mxu0 0
        %1264 = vmatpush1.bf16.xpose.msra.mxu0 0
        %1265 = vmatprep.subr.bf16.mxu0 0
        %1266 = vmatpush1.bf16.xpose.msra.mxu0 0
        %1267 = vmatprep.subr.bf16.mxu0 0
        %1268 = vmatpush1.bf16.xpose.msra.mxu0 0
        %1269 = vmatprep.subr.bf16.mxu0 0
        %1270 = vmatpush1.bf16.xpose.msra.mxu0 0
        %1271 = vmatprep.subr.bf16.mxu0 0
        %1272 = vmatpush1.bf16.xpose.msra.mxu0 0
        %1273 = vmatprep.mubr.bf16.mxu0 0
        %1274 = vmatmul.mubr.bf16.gmra.mrb[0].mxu0 %v1236
        %v1275 = vpop.f32.mrb[0].mxu0
        %v1276 = vadd.f32 %v987, %v1275
        %v1277 = vpop.f32.mrb[0].mxu0
        %v1278 = vpop.f32.mrb[0].mxu0
        %v1279 = vadd.f32 %v987, %v1278
        %v1280 = vpop.f32.mrb[0].mxu0
        %1281 = vdwg.mxu0
        %v1282 = vsel %vm1037, %v1276, -inf
        %1283 = vmax.xlane.f32.xlu0 %v1282
        %v1284 = vpop.xlane.xlu0 %1283
        %v1285 = vsel %vm1037, %v1279, -inf
        %1286 = vmax.xlane.f32.xlu0 %v1285
        %v1287 = vpop.xlane.xlu0 %1286
        %v1288 = vsub.f32 %v1276, %v1284
        %v1289 = vsub.f32 %v1279, %v1287
        %v1290 = vmul.f32 %v1288, 1.442695
        %v1291 = vpow.pop %v1290
        %v1292 = vmul.f32 %v1289, 1.442695
        %v1293 = vpow.pop %v1292
        %v1294 = vsel %vm1037, %v1291, 0.0
        %1295 = vadd.xlane.f32.xlu0 %v1294
        %v1296 = vpop.xlane.xlu0 %1295
        %v1297 = vsel %vm1037, %v1293, 0.0
        %1298 = vadd.xlane.f32.xlu0 %v1297
        %v1299 = vpop.xlane.xlu0 %1298
        %v1300 = vrcp.pop %v1296
        %v1301 = vrcp.pop %v1299
        %v1302 = vmul.f32 %v1291, %v1300
        %v1303 = vmul.f32 %v1293, %v1301
        %v1304 = vpack.c.bf16 %v1303, %v1302
        %1305 = vrot.lane.b32.xlu0 %v982, 80
        %v1306 = vpop.permute.xlu0 %1305
        %v1309 = vsel %vm1037, %v1304, 0
        %1311 = vmatprep.subr.bf16.mxu0 0
        %1312 = vmatpush1.bf16.msra.mxu0 %v1306
        %1313 = vmatprep.subr.bf16.mxu0 0
        %1314 = vmatpush1.bf16.msra.mxu0 0
        %1315 = vmatprep.subr.bf16.mxu0 0
        %1316 = vmatpush1.bf16.msra.mxu0 0
        %1317 = vmatprep.subr.bf16.mxu0 0
        %1318 = vmatpush1.bf16.msra.mxu0 0
        %1319 = vmatprep.subr.bf16.mxu0 0
        %1320 = vmatpush1.bf16.msra.mxu0 0
        %1321 = vmatprep.subr.bf16.mxu0 0
        %1322 = vmatpush1.bf16.msra.mxu0 0
        %1323 = vmatprep.subr.bf16.mxu0 0
        %1324 = vmatpush1.bf16.msra.mxu0 0
        %1325 = vmatprep.subr.bf16.mxu0 0
        %1326 = vmatpush1.bf16.msra.mxu0 0
        %1327 = vmatprep.subr.bf16.mxu0 0
        %1328 = vmatpush1.bf16.msra.mxu0 0
        %1329 = vmatprep.subr.bf16.mxu0 0
        %1330 = vmatpush1.bf16.msra.mxu0 0
        %1331 = vmatprep.subr.bf16.mxu0 0
        %1332 = vmatpush1.bf16.msra.mxu0 0
        %1333 = vmatprep.subr.bf16.mxu0 0
        %1334 = vmatpush1.bf16.msra.mxu0 0
        %1335 = vmatprep.subr.bf16.mxu0 0
        %1336 = vmatpush1.bf16.msra.mxu0 0
        %1337 = vmatprep.subr.bf16.mxu0 0
        %1338 = vmatpush1.bf16.msra.mxu0 0
        %1339 = vmatprep.subr.bf16.mxu0 0
        %1340 = vmatpush1.bf16.msra.mxu0 0
        %1341 = vmatprep.subr.bf16.mxu0 0
        %1342 = vmatpush1.bf16.msra.mxu0 0
        %1343 = vmatprep.mubr.bf16.mxu0 0
        %1344 = vmatmul.mubr.bf16.gmra.mrb[0].mxu0 %v1309
        %v1345 = vpop.f32.mrb[0].mxu0
        %v1346 = vadd.f32 0.0, %v1345
        %v1347 = vpop.f32.mrb[0].mxu0
        %v1348 = vpop.f32.mrb[0].mxu0
        %v1349 = vadd.f32 0.0, %v1348
        %v1350 = vpop.f32.mrb[0].mxu0
        %1351 = vdwg.mxu0
        %1352 = vrot.lane.b32.xlu0 %v981, 104
        %v1353 = vpop.permute.xlu0 %1352
        %1354 = vrot.lane.b32.xlu0 %v982, 104
        %v1355 = vpop.permute.xlu0 %1354
        %v1357 = vsel %vm989, %v1353, 0
        %v1360 = vsel %vm989, %v1355, 0
        %1362 = vmatprep.subr.bf16.mxu0 0
        %1363 = vmatpush1.bf16.xpose.msra.mxu0 %v1360
        %1364 = vmatprep.subr.bf16.mxu0 0
        %1365 = vmatpush1.bf16.xpose.msra.mxu0 0
        %1366 = vmatprep.subr.bf16.mxu0 0
        %1367 = vmatpush1.bf16.xpose.msra.mxu0 0
        %1368 = vmatprep.subr.bf16.mxu0 0
        %1369 = vmatpush1.bf16.xpose.msra.mxu0 0
        %1370 = vmatprep.subr.bf16.mxu0 0
        %1371 = vmatpush1.bf16.xpose.msra.mxu0 0
        %1372 = vmatprep.subr.bf16.mxu0 0
        %1373 = vmatpush1.bf16.xpose.msra.mxu0 0
        %1374 = vmatprep.subr.bf16.mxu0 0
        %1375 = vmatpush1.bf16.xpose.msra.mxu0 0
        %1376 = vmatprep.subr.bf16.mxu0 0
        %1377 = vmatpush1.bf16.xpose.msra.mxu0 0
        %1378 = vmatprep.subr.bf16.mxu0 0
        %1379 = vmatpush1.bf16.xpose.msra.mxu0 0
        %1380 = vmatprep.subr.bf16.mxu0 0
        %1381 = vmatpush1.bf16.xpose.msra.mxu0 0
        %1382 = vmatprep.subr.bf16.mxu0 0
        %1383 = vmatpush1.bf16.xpose.msra.mxu0 0
        %1384 = vmatprep.subr.bf16.mxu0 0
        %1385 = vmatpush1.bf16.xpose.msra.mxu0 0
        %1386 = vmatprep.subr.bf16.mxu0 0
        %1387 = vmatpush1.bf16.xpose.msra.mxu0 0
        %1388 = vmatprep.subr.bf16.mxu0 0
        %1389 = vmatpush1.bf16.xpose.msra.mxu0 0
        %1390 = vmatprep.subr.bf16.mxu0 0
        %1391 = vmatpush1.bf16.xpose.msra.mxu0 0
        %1392 = vmatprep.subr.bf16.mxu0 0
        %1393 = vmatpush1.bf16.xpose.msra.mxu0 0
        %1394 = vmatprep.mubr.bf16.mxu0 0
        %1395 = vmatmul.mubr.bf16.gmra.mrb[0].mxu0 %v1357
        %v1396 = vpop.f32.mrb[0].mxu0
        %v1397 = vadd.f32 %v987, %v1396
        %v1398 = vpop.f32.mrb[0].mxu0
        %v1399 = vpop.f32.mrb[0].mxu0
        %v1400 = vadd.f32 %v987, %v1399
        %v1401 = vpop.f32.mrb[0].mxu0
        %1402 = vdwg.mxu0
        %v1403 = vsel %vm1037, %v1397, -inf
        %1404 = vmax.xlane.f32.xlu0 %v1403
        %v1405 = vpop.xlane.xlu0 %1404
        %v1406 = vsel %vm1037, %v1400, -inf
        %1407 = vmax.xlane.f32.xlu0 %v1406
        %v1408 = vpop.xlane.xlu0 %1407
        %v1409 = vsub.f32 %v1397, %v1405
        %v1410 = vsub.f32 %v1400, %v1408
        %v1411 = vmul.f32 %v1409, 1.442695
        %v1412 = vpow.pop %v1411
        %v1413 = vmul.f32 %v1410, 1.442695
        %v1414 = vpow.pop %v1413
        %v1415 = vsel %vm1037, %v1412, 0.0
        %1416 = vadd.xlane.f32.xlu0 %v1415
        %v1417 = vpop.xlane.xlu0 %1416
        %v1418 = vsel %vm1037, %v1414, 0.0
        %1419 = vadd.xlane.f32.xlu0 %v1418
        %v1420 = vpop.xlane.xlu0 %1419
        %v1421 = vrcp.pop %v1417
        %v1422 = vrcp.pop %v1420
        %v1423 = vmul.f32 %v1412, %v1421
        %v1424 = vmul.f32 %v1414, %v1422
        %v1425 = vpack.c.bf16 %v1424, %v1423
        %1426 = vrot.lane.b32.xlu0 %v982, 72
        %v1427 = vpop.permute.xlu0 %1426
        %v1430 = vsel %vm1037, %v1425, 0
        %1432 = vmatprep.subr.bf16.mxu0 0
        %1433 = vmatpush1.bf16.msra.mxu0 %v1427
        %1434 = vmatprep.subr.bf16.mxu0 0
        %1435 = vmatpush1.bf16.msra.mxu0 0
        %1436 = vmatprep.subr.bf16.mxu0 0
        %1437 = vmatpush1.bf16.msra.mxu0 0
        %1438 = vmatprep.subr.bf16.mxu0 0
        %1439 = vmatpush1.bf16.msra.mxu0 0
        %1440 = vmatprep.subr.bf16.mxu0 0
        %1441 = vmatpush1.bf16.msra.mxu0 0
        %1442 = vmatprep.subr.bf16.mxu0 0
        %1443 = vmatpush1.bf16.msra.mxu0 0
        %1444 = vmatprep.subr.bf16.mxu0 0
        %1445 = vmatpush1.bf16.msra.mxu0 0
        %1446 = vmatprep.subr.bf16.mxu0 0
        %1447 = vmatpush1.bf16.msra.mxu0 0
        %1448 = vmatprep.subr.bf16.mxu0 0
        %1449 = vmatpush1.bf16.msra.mxu0 0
        %1450 = vmatprep.subr.bf16.mxu0 0
        %1451 = vmatpush1.bf16.msra.mxu0 0
        %1452 = vmatprep.subr.bf16.mxu0 0
        %1453 = vmatpush1.bf16.msra.mxu0 0
        %1454 = vmatprep.subr.bf16.mxu0 0
        %1455 = vmatpush1.bf16.msra.mxu0 0
        %1456 = vmatprep.subr.bf16.mxu0 0
        %1457 = vmatpush1.bf16.msra.mxu0 0
        %1458 = vmatprep.subr.bf16.mxu0 0
        %1459 = vmatpush1.bf16.msra.mxu0 0
        %1460 = vmatprep.subr.bf16.mxu0 0
        %1461 = vmatpush1.bf16.msra.mxu0 0
        %1462 = vmatprep.subr.bf16.mxu0 0
        %1463 = vmatpush1.bf16.msra.mxu0 0
        %1464 = vmatprep.mubr.bf16.mxu0 0
        %1465 = vmatmul.mubr.bf16.gmra.mrb[0].mxu0 %v1430
        %v1466 = vpop.f32.mrb[0].mxu0
        %v1467 = vadd.f32 0.0, %v1466
        %v1468 = vpop.f32.mrb[0].mxu0
        %v1469 = vpop.f32.mrb[0].mxu0
        %v1470 = vadd.f32 0.0, %v1469
        %v1471 = vpop.f32.mrb[0].mxu0
        %1472 = vdwg.mxu0
        %1475 = vrot.lane.b32.xlu0 %v1225, 8
        %v1476 = vpop.permute.xlu0 %1475
        %1477 = vrot.lane.b32.xlu0 %v1228, 8
        %v1478 = vpop.permute.xlu0 %1477
        %1483 = vrot.lane.b32.xlu0 %v1346, 16
        %v1484 = vpop.permute.xlu0 %1483
        %1485 = vrot.lane.b32.xlu0 %v1349, 16
        %v1486 = vpop.permute.xlu0 %1485
        %1491 = vrot.lane.b32.xlu0 %v1467, 24
        %v1492 = vpop.permute.xlu0 %1491
        %1493 = vrot.lane.b32.xlu0 %v1470, 24
        %v1494 = vpop.permute.xlu0 %1493
        %v1497 = vsel %vm989, %v1103, %v1476
        %v1498 = vsel %vm989, %v1106, %v1478
        %v1499 = vsel %vm1037, %v1497, %v1484
        %v1500 = vsel %vm1037, %v1498, %v1486
        %vm1501 = vcmask 195584
        %v1502 = vsel %vm1501, %v1499, %v1492
        %v1503 = vsel %vm1501, %v1500, %v1494
        %v1504 = vpack.c.bf16 %v1503, %v1502
        %v1506 = vlaneseq
        %v1507 = vshrl.u32 %v1506, 7
        %v1508 = vsub.s32 0, %v1507
        %v1509 = vrot.slane %v855, %v1508
        %v1515 = vunpack.c.l.b16 %v851
        %v1516 = vunpack.c.l.b16 %v852
        %v1517 = vunpack.c.l.b16 %v853
        %v1518 = vunpack.c.l.b16 %v854
        %v1519 = vpack.c.b16 %v1516, %v1515
        %v1520 = vpack.c.b16 %v1518, %v1517
        %v1524 = vsel %vm875, %v1504, 0
        %1526 = vmatprep.subr.bf16.mxu0 0
        %1527 = vmatpush1.bf16.msra.mxu0 %v1519
        %1528 = vmatprep.subr.bf16.mxu0 0
        %1529 = vmatpush1.bf16.msra.mxu0 %v1520
        %1530 = vmatprep.subr.bf16.mxu0 0
        %1531 = vmatpush1.bf16.msra.mxu0 0
        %1532 = vmatprep.subr.bf16.mxu0 0
        %1533 = vmatpush1.bf16.msra.mxu0 0
        %1534 = vmatprep.subr.bf16.mxu0 0
        %1535 = vmatpush1.bf16.msra.mxu0 0
        %1536 = vmatprep.subr.bf16.mxu0 0
        %1537 = vmatpush1.bf16.msra.mxu0 0
        %1538 = vmatprep.subr.bf16.mxu0 0
        %1539 = vmatpush1.bf16.msra.mxu0 0
        %1540 = vmatprep.subr.bf16.mxu0 0
        %1541 = vmatpush1.bf16.msra.mxu0 0
        %1542 = vmatprep.subr.bf16.mxu0 0
        %1543 = vmatpush1.bf16.msra.mxu0 0
        %1544 = vmatprep.subr.bf16.mxu0 0
        %1545 = vmatpush1.bf16.msra.mxu0 0
        %1546 = vmatprep.subr.bf16.mxu0 0
        %1547 = vmatpush1.bf16.msra.mxu0 0
        %1548 = vmatprep.subr.bf16.mxu0 0
        %1549 = vmatpush1.bf16.msra.mxu0 0
        %1550 = vmatprep.subr.bf16.mxu0 0
        %1551 = vmatpush1.bf16.msra.mxu0 0
        %1552 = vmatprep.subr.bf16.mxu0 0
        %1553 = vmatpush1.bf16.msra.mxu0 0
        %1554 = vmatprep.subr.bf16.mxu0 0
        %1555 = vmatpush1.bf16.msra.mxu0 0
        %1556 = vmatprep.subr.bf16.mxu0 0
        %1557 = vmatpush1.bf16.msra.mxu0 0
        %1558 = vmatprep.mubr.bf16.mxu0 0
        %1559 = vmatmul.mubr.bf16.gmra.mrb[0].mxu0 %v1524
        %v1560 = vpop.f32.mrb[0].mxu0
        %v1561 = vadd.f32 %v1509, %v1560
        %v1562 = vpop.f32.mrb[0].mxu0
        %v1563 = vpop.f32.mrb[0].mxu0
        %v1564 = vadd.f32 %v1509, %v1563
        %v1565 = vpop.f32.mrb[0].mxu0
        %1566 = vdwg.mxu0
        %v1567 = vadd.f32 %v836, %v1561
        %v1568 = vadd.f32 %v837, %v1564
        %v1569 = vld [vmem:[%s10] sm:$0x1]
        %v1570 = vld [vmem:[%s11] sm:$0x1]
        %v1571 = vsel %vm875, %v1567, 0.0
        %1572 = vadd.xlane.f32.xlu0 %v1571
        %v1573 = vpop.xlane.xlu0 %1572
        %v1574 = vsel %vm875, %v1568, 0.0
        %1575 = vadd.xlane.f32.xlu0 %v1574
        %v1576 = vpop.xlane.xlu0 %1575
        %v1577 = vrcp.pop 32.0
        %v1578 = vmul.f32 %v1573, %v1577
        %v1579 = vmul.f32 %v1576, %v1577
        %v1580 = vsub.f32 %v1567, %v1578
        %v1581 = vsub.f32 %v1568, %v1579
        %v1582 = vmul.f32 %v1580, %v1580
        %v1583 = vmul.f32 %v1581, %v1581
        %v1584 = vsel %vm875, %v1582, 0.0
        %1585 = vadd.xlane.f32.xlu0 %v1584
        %v1586 = vpop.xlane.xlu0 %1585
        %v1587 = vsel %vm875, %v1583, 0.0
        %1588 = vadd.xlane.f32.xlu0 %v1587
        %v1589 = vpop.xlane.xlu0 %1588
        %v1590 = vmul.f32 %v1586, %v1577
        %v1591 = vmul.f32 %v1589, %v1577
        %v1592 = vadd.f32 %v1590, 1e-06
        %v1593 = vadd.f32 %v1591, 1e-06
        %v1594 = vrsqrt.pop %v1592
        %v1595 = vrsqrt.pop %v1593
        %v1596 = vmul.f32 %v1580, %v1594
        %v1597 = vmul.f32 %v1581, %v1595
        %v1599 = vlaneseq
        %v1600 = vshrl.u32 %v1599, 7
        %v1601 = vsub.s32 0, %v1600
        %v1602 = vrot.slane %v1569, %v1601
        %v1604 = vmul.f32 %v1596, %v1602
        %v1605 = vmul.f32 %v1597, %v1602
        %v1607 = vlaneseq
        %v1608 = vshrl.u32 %v1607, 7
        %v1609 = vsub.s32 0, %v1608
        %v1610 = vrot.slane %v1570, %v1609
        %v1612 = vadd.f32 %v1604, %v1610
        %v1613 = vadd.f32 %v1605, %v1610
        %v1614 = vld [vmem:[%s12] sm:$0xf]
        %v1615 = vld [vmem:[%s12 + $0x4] sm:$0xf]
        %v1616 = vld [vmem:[%s12 + $0x8] sm:$0xf]
        %v1617 = vld [vmem:[%s12 + $0xc] sm:$0xf]
        %v1618 = vld [vmem:[%s13] sm:$0x1]
        %v1619 = vld [vmem:[%s14] sm:$0xf]
        %v1620 = vld [vmem:[%s14 + $0x4] sm:$0xf]
        %v1621 = vld [vmem:[%s14 + $0x8] sm:$0xf]
        %v1622 = vld [vmem:[%s14 + $0xc] sm:$0xf]
        %v1623 = vld [vmem:[%s15] sm:$0x1]
        %v1624 = vld [vmem:[%s16] sm:$0xf]
        %v1625 = vld [vmem:[%s16 + $0x4] sm:$0xf]
        %v1626 = vld [vmem:[%s16 + $0x8] sm:$0xf]
        %v1627 = vld [vmem:[%s16 + $0xc] sm:$0xf]
        %v1628 = vld [vmem:[%s17] sm:$0x1]
        %v1629 = vpack.c.bf16 %v1613, %v1612
        %v1631 = vlaneseq
        %v1632 = vshrl.u32 %v1631, 7
        %v1633 = vsub.s32 0, %v1632
        %v1634 = vrot.slane %v1618, %v1633
        %v1640 = vunpack.c.l.b16 %v1614
        %v1641 = vunpack.c.l.b16 %v1615
        %v1642 = vunpack.c.l.b16 %v1616
        %v1643 = vunpack.c.l.b16 %v1617
        %v1644 = vpack.c.b16 %v1641, %v1640
        %v1645 = vpack.c.b16 %v1643, %v1642
        %v1649 = vsel %vm875, %v1629, 0
        %1651 = vmatprep.subr.bf16.mxu0 0
        %1652 = vmatpush1.bf16.msra.mxu0 %v1644
        %1653 = vmatprep.subr.bf16.mxu0 0
        %1654 = vmatpush1.bf16.msra.mxu0 %v1645
        %1655 = vmatprep.subr.bf16.mxu0 0
        %1656 = vmatpush1.bf16.msra.mxu0 0
        %1657 = vmatprep.subr.bf16.mxu0 0
        %1658 = vmatpush1.bf16.msra.mxu0 0
        %1659 = vmatprep.subr.bf16.mxu0 0
        %1660 = vmatpush1.bf16.msra.mxu0 0
        %1661 = vmatprep.subr.bf16.mxu0 0
        %1662 = vmatpush1.bf16.msra.mxu0 0
        %1663 = vmatprep.subr.bf16.mxu0 0
        %1664 = vmatpush1.bf16.msra.mxu0 0
        %1665 = vmatprep.subr.bf16.mxu0 0
        %1666 = vmatpush1.bf16.msra.mxu0 0
        %1667 = vmatprep.subr.bf16.mxu0 0
        %1668 = vmatpush1.bf16.msra.mxu0 0
        %1669 = vmatprep.subr.bf16.mxu0 0
        %1670 = vmatpush1.bf16.msra.mxu0 0
        %1671 = vmatprep.subr.bf16.mxu0 0
        %1672 = vmatpush1.bf16.msra.mxu0 0
        %1673 = vmatprep.subr.bf16.mxu0 0
        %1674 = vmatpush1.bf16.msra.mxu0 0
        %1675 = vmatprep.subr.bf16.mxu0 0
        %1676 = vmatpush1.bf16.msra.mxu0 0
        %1677 = vmatprep.subr.bf16.mxu0 0
        %1678 = vmatpush1.bf16.msra.mxu0 0
        %1679 = vmatprep.subr.bf16.mxu0 0
        %1680 = vmatpush1.bf16.msra.mxu0 0
        %1681 = vmatprep.subr.bf16.mxu0 0
        %1682 = vmatpush1.bf16.msra.mxu0 0
        %1683 = vmatprep.mubr.bf16.mxu0 0
        %1684 = vmatmul.mubr.bf16.gmra.mrb[0].mxu0 %v1649
        %v1685 = vpop.f32.mrb[0].mxu0
        %v1686 = vadd.f32 %v1634, %v1685
        %v1687 = vpop.f32.mrb[0].mxu0
        %v1688 = vpop.f32.mrb[0].mxu0
        %v1689 = vadd.f32 %v1634, %v1688
        %v1690 = vpop.f32.mrb[0].mxu0
        %1691 = vdwg.mxu0
        %v1692 = vpack.c.bf16 %v838, %v838
        %v1694 = vlaneseq
        %v1695 = vshrl.u32 %v1694, 7
        %v1696 = vsub.s32 0, %v1695
        %v1697 = vrot.slane %v1623, %v1696
        %v1703 = vunpack.c.l.b16 %v1619
        %v1704 = vunpack.c.l.b16 %v1620
        %v1705 = vunpack.c.l.b16 %v1621
        %v1706 = vunpack.c.l.b16 %v1622
        %v1707 = vpack.c.b16 %v1704, %v1703
        %v1708 = vpack.c.b16 %v1706, %v1705
        %v1712 = vsel %vm875, %v1692, 0
        %1714 = vmatprep.subr.bf16.mxu0 0
        %1715 = vmatpush1.bf16.msra.mxu0 %v1707
        %1716 = vmatprep.subr.bf16.mxu0 0
        %1717 = vmatpush1.bf16.msra.mxu0 %v1708
        %1718 = vmatprep.subr.bf16.mxu0 0
        %1719 = vmatpush1.bf16.msra.mxu0 0
        %1720 = vmatprep.subr.bf16.mxu0 0
        %1721 = vmatpush1.bf16.msra.mxu0 0
        %1722 = vmatprep.subr.bf16.mxu0 0
        %1723 = vmatpush1.bf16.msra.mxu0 0
        %1724 = vmatprep.subr.bf16.mxu0 0
        %1725 = vmatpush1.bf16.msra.mxu0 0
        %1726 = vmatprep.subr.bf16.mxu0 0
        %1727 = vmatpush1.bf16.msra.mxu0 0
        %1728 = vmatprep.subr.bf16.mxu0 0
        %1729 = vmatpush1.bf16.msra.mxu0 0
        %1730 = vmatprep.subr.bf16.mxu0 0
        %1731 = vmatpush1.bf16.msra.mxu0 0
        %1732 = vmatprep.subr.bf16.mxu0 0
        %1733 = vmatpush1.bf16.msra.mxu0 0
        %1734 = vmatprep.subr.bf16.mxu0 0
        %1735 = vmatpush1.bf16.msra.mxu0 0
        %1736 = vmatprep.subr.bf16.mxu0 0
        %1737 = vmatpush1.bf16.msra.mxu0 0
        %1738 = vmatprep.subr.bf16.mxu0 0
        %1739 = vmatpush1.bf16.msra.mxu0 0
        %1740 = vmatprep.subr.bf16.mxu0 0
        %1741 = vmatpush1.bf16.msra.mxu0 0
        %1742 = vmatprep.subr.bf16.mxu0 0
        %1743 = vmatpush1.bf16.msra.mxu0 0
        %1744 = vmatprep.subr.bf16.mxu0 0
        %1745 = vmatpush1.bf16.msra.mxu0 0
        %1746 = vmatprep.mubr.bf16.mxu0 0
        %1747 = vmatmul.mubr.bf16.gmra.mrb[0].mxu0 %v1712
        %v1748 = vpop.f32.mrb[0].mxu0
        %v1749 = vadd.f32 %v1697, %v1748
        %v1750 = vpop.f32.mrb[0].mxu0
        %v1751 = vpop.f32.mrb[0].mxu0
        %v1752 = vpop.f32.mrb[0].mxu0
        %1753 = vdwg.mxu0
        %v1754 = vmul.f32 %v1686, 0.35355338
        %v1755 = vmul.f32 %v1689, 0.35355338
        %v1756 = vpack.c.bf16 %v1755, %v1754
        %v1757 = vpack.c.bf16 %v1749, %v1749
        %v1759 = vlaneseq
        %v1760 = vshrl.u32 %v1759, 7
        %v1761 = vsub.s32 0, %v1760
        %v1762 = vrot.slane %v840, %v1761
        %v1765 = vsel %vm989, %v1756, 0
        %v1768 = vsel %vm989, %v1757, 0
        %1770 = vmatprep.subr.bf16.mxu0 0
        %1771 = vmatpush1.bf16.xpose.msra.mxu0 %v1768
        %1772 = vmatprep.subr.bf16.mxu0 0
        %1773 = vmatpush1.bf16.xpose.msra.mxu0 0
        %1774 = vmatprep.subr.bf16.mxu0 0
        %1775 = vmatpush1.bf16.xpose.msra.mxu0 0
        %1776 = vmatprep.subr.bf16.mxu0 0
        %1777 = vmatpush1.bf16.xpose.msra.mxu0 0
        %1778 = vmatprep.subr.bf16.mxu0 0
        %1779 = vmatpush1.bf16.xpose.msra.mxu0 0
        %1780 = vmatprep.subr.bf16.mxu0 0
        %1781 = vmatpush1.bf16.xpose.msra.mxu0 0
        %1782 = vmatprep.subr.bf16.mxu0 0
        %1783 = vmatpush1.bf16.xpose.msra.mxu0 0
        %1784 = vmatprep.subr.bf16.mxu0 0
        %1785 = vmatpush1.bf16.xpose.msra.mxu0 0
        %1786 = vmatprep.subr.bf16.mxu0 0
        %1787 = vmatpush1.bf16.xpose.msra.mxu0 0
        %1788 = vmatprep.subr.bf16.mxu0 0
        %1789 = vmatpush1.bf16.xpose.msra.mxu0 0
        %1790 = vmatprep.subr.bf16.mxu0 0
        %1791 = vmatpush1.bf16.xpose.msra.mxu0 0
        %1792 = vmatprep.subr.bf16.mxu0 0
        %1793 = vmatpush1.bf16.xpose.msra.mxu0 0
        %1794 = vmatprep.subr.bf16.mxu0 0
        %1795 = vmatpush1.bf16.xpose.msra.mxu0 0
        %1796 = vmatprep.subr.bf16.mxu0 0
        %1797 = vmatpush1.bf16.xpose.msra.mxu0 0
        %1798 = vmatprep.subr.bf16.mxu0 0
        %1799 = vmatpush1.bf16.xpose.msra.mxu0 0
        %1800 = vmatprep.subr.bf16.mxu0 0
        %1801 = vmatpush1.bf16.xpose.msra.mxu0 0
        %1802 = vmatprep.mubr.bf16.mxu0 0
        %1803 = vmatmul.mubr.bf16.gmra.mrb[0].mxu0 %v1765
        %v1804 = vpop.f32.mrb[0].mxu0
        %v1805 = vadd.f32 %v1762, %v1804
        %v1806 = vpop.f32.mrb[0].mxu0
        %v1807 = vpop.f32.mrb[0].mxu0
        %v1808 = vadd.f32 %v1762, %v1807
        %v1809 = vpop.f32.mrb[0].mxu0
        %1810 = vdwg.mxu0
        %v1811 = vsel %vm989, %v1805, -inf
        %1812 = vmax.xlane.f32.xlu0 %v1811
        %v1813 = vpop.xlane.xlu0 %1812
        %v1814 = vsel %vm989, %v1808, -inf
        %1815 = vmax.xlane.f32.xlu0 %v1814
        %v1816 = vpop.xlane.xlu0 %1815
        %v1817 = vsub.f32 %v1805, %v1813
        %v1818 = vsub.f32 %v1808, %v1816
        %v1819 = vmul.f32 %v1817, 1.442695
        %v1820 = vpow.pop %v1819
        %v1821 = vmul.f32 %v1818, 1.442695
        %v1822 = vpow.pop %v1821
        %v1823 = vsel %vm989, %v1820, 0.0
        %1824 = vadd.xlane.f32.xlu0 %v1823
        %v1825 = vpop.xlane.xlu0 %1824
        %v1826 = vsel %vm989, %v1822, 0.0
        %1827 = vadd.xlane.f32.xlu0 %v1826
        %v1828 = vpop.xlane.xlu0 %1827
        %v1829 = vrcp.pop %v1825
        %v1830 = vrcp.pop %v1828
        %v1831 = vmul.f32 %v1820, %v1829
        %v1832 = vmul.f32 %v1822, %v1830
        %v1833 = vpack.c.bf16 %v1832, %v1831
        %1835 = vrot.lane.b32.xlu0 %v1757, 96
        %v1836 = vpop.permute.xlu0 %1835
        %v1838 = vsel %vm989, %v1833, 0
        %vm1840 = vcmask 1043456
        %v1842 = vsel %vm1840, %v1836, 0
        %1844 = vmatprep.subr.bf16.mxu0 0
        %1845 = vmatpush1.bf16.msra.mxu0 %v1842
        %1846 = vmatprep.subr.bf16.mxu0 0
        %1847 = vmatpush1.bf16.msra.mxu0 0
        %1848 = vmatprep.subr.bf16.mxu0 0
        %1849 = vmatpush1.bf16.msra.mxu0 0
        %1850 = vmatprep.subr.bf16.mxu0 0
        %1851 = vmatpush1.bf16.msra.mxu0 0
        %1852 = vmatprep.subr.bf16.mxu0 0
        %1853 = vmatpush1.bf16.msra.mxu0 0
        %1854 = vmatprep.subr.bf16.mxu0 0
        %1855 = vmatpush1.bf16.msra.mxu0 0
        %1856 = vmatprep.subr.bf16.mxu0 0
        %1857 = vmatpush1.bf16.msra.mxu0 0
        %1858 = vmatprep.subr.bf16.mxu0 0
        %1859 = vmatpush1.bf16.msra.mxu0 0
        %1860 = vmatprep.subr.bf16.mxu0 0
        %1861 = vmatpush1.bf16.msra.mxu0 0
        %1862 = vmatprep.subr.bf16.mxu0 0
        %1863 = vmatpush1.bf16.msra.mxu0 0
        %1864 = vmatprep.subr.bf16.mxu0 0
        %1865 = vmatpush1.bf16.msra.mxu0 0
        %1866 = vmatprep.subr.bf16.mxu0 0
        %1867 = vmatpush1.bf16.msra.mxu0 0
        %1868 = vmatprep.subr.bf16.mxu0 0
        %1869 = vmatpush1.bf16.msra.mxu0 0
        %1870 = vmatprep.subr.bf16.mxu0 0
        %1871 = vmatpush1.bf16.msra.mxu0 0
        %1872 = vmatprep.subr.bf16.mxu0 0
        %1873 = vmatpush1.bf16.msra.mxu0 0
        %1874 = vmatprep.subr.bf16.mxu0 0
        %1875 = vmatpush1.bf16.msra.mxu0 0
        %1876 = vmatprep.mubr.bf16.mxu0 0
        %1877 = vmatmul.mubr.bf16.gmra.mrb[0].mxu0 %v1838
        %v1878 = vpop.f32.mrb[0].mxu0
        %v1879 = vadd.f32 0.0, %v1878
        %v1880 = vpop.f32.mrb[0].mxu0
        %v1881 = vpop.f32.mrb[0].mxu0
        %v1882 = vadd.f32 0.0, %v1881
        %v1883 = vpop.f32.mrb[0].mxu0
        %1884 = vdwg.mxu0
        %1886 = vrot.lane.b32.xlu0 %v1756, 120
        %v1887 = vpop.permute.xlu0 %1886
        %1888 = vrot.lane.b32.xlu0 %v1757, 120
        %v1889 = vpop.permute.xlu0 %1888
        %v1891 = vsel %vm989, %v1887, 0
        %v1894 = vsel %vm989, %v1889, 0
        %1896 = vmatprep.subr.bf16.mxu0 0
        %1897 = vmatpush1.bf16.xpose.msra.mxu0 %v1894
        %1898 = vmatprep.subr.bf16.mxu0 0
        %1899 = vmatpush1.bf16.xpose.msra.mxu0 0
        %1900 = vmatprep.subr.bf16.mxu0 0
        %1901 = vmatpush1.bf16.xpose.msra.mxu0 0
        %1902 = vmatprep.subr.bf16.mxu0 0
        %1903 = vmatpush1.bf16.xpose.msra.mxu0 0
        %1904 = vmatprep.subr.bf16.mxu0 0
        %1905 = vmatpush1.bf16.xpose.msra.mxu0 0
        %1906 = vmatprep.subr.bf16.mxu0 0
        %1907 = vmatpush1.bf16.xpose.msra.mxu0 0
        %1908 = vmatprep.subr.bf16.mxu0 0
        %1909 = vmatpush1.bf16.xpose.msra.mxu0 0
        %1910 = vmatprep.subr.bf16.mxu0 0
        %1911 = vmatpush1.bf16.xpose.msra.mxu0 0
        %1912 = vmatprep.subr.bf16.mxu0 0
        %1913 = vmatpush1.bf16.xpose.msra.mxu0 0
        %1914 = vmatprep.subr.bf16.mxu0 0
        %1915 = vmatpush1.bf16.xpose.msra.mxu0 0
        %1916 = vmatprep.subr.bf16.mxu0 0
        %1917 = vmatpush1.bf16.xpose.msra.mxu0 0
        %1918 = vmatprep.subr.bf16.mxu0 0
        %1919 = vmatpush1.bf16.xpose.msra.mxu0 0
        %1920 = vmatprep.subr.bf16.mxu0 0
        %1921 = vmatpush1.bf16.xpose.msra.mxu0 0
        %1922 = vmatprep.subr.bf16.mxu0 0
        %1923 = vmatpush1.bf16.xpose.msra.mxu0 0
        %1924 = vmatprep.subr.bf16.mxu0 0
        %1925 = vmatpush1.bf16.xpose.msra.mxu0 0
        %1926 = vmatprep.subr.bf16.mxu0 0
        %1927 = vmatpush1.bf16.xpose.msra.mxu0 0
        %1928 = vmatprep.mubr.bf16.mxu0 0
        %1929 = vmatmul.mubr.bf16.gmra.mrb[0].mxu0 %v1891
        %v1930 = vpop.f32.mrb[0].mxu0
        %v1931 = vadd.f32 %v1762, %v1930
        %v1932 = vpop.f32.mrb[0].mxu0
        %v1933 = vpop.f32.mrb[0].mxu0
        %v1934 = vadd.f32 %v1762, %v1933
        %v1935 = vpop.f32.mrb[0].mxu0
        %1936 = vdwg.mxu0
        %v1937 = vsel %vm989, %v1931, -inf
        %1938 = vmax.xlane.f32.xlu0 %v1937
        %v1939 = vpop.xlane.xlu0 %1938
        %v1940 = vsel %vm989, %v1934, -inf
        %1941 = vmax.xlane.f32.xlu0 %v1940
        %v1942 = vpop.xlane.xlu0 %1941
        %v1943 = vsub.f32 %v1931, %v1939
        %v1944 = vsub.f32 %v1934, %v1942
        %v1945 = vmul.f32 %v1943, 1.442695
        %v1946 = vpow.pop %v1945
        %v1947 = vmul.f32 %v1944, 1.442695
        %v1948 = vpow.pop %v1947
        %v1949 = vsel %vm989, %v1946, 0.0
        %1950 = vadd.xlane.f32.xlu0 %v1949
        %v1951 = vpop.xlane.xlu0 %1950
        %v1952 = vsel %vm989, %v1948, 0.0
        %1953 = vadd.xlane.f32.xlu0 %v1952
        %v1954 = vpop.xlane.xlu0 %1953
        %v1955 = vrcp.pop %v1951
        %v1956 = vrcp.pop %v1954
        %v1957 = vmul.f32 %v1946, %v1955
        %v1958 = vmul.f32 %v1948, %v1956
        %v1959 = vpack.c.bf16 %v1958, %v1957
        %1960 = vrot.lane.b32.xlu0 %v1757, 88
        %v1961 = vpop.permute.xlu0 %1960
        %v1963 = vsel %vm989, %v1959, 0
        %v1966 = vsel %vm1840, %v1961, 0
        %1968 = vmatprep.subr.bf16.mxu0 0
        %1969 = vmatpush1.bf16.msra.mxu0 %v1966
        %1970 = vmatprep.subr.bf16.mxu0 0
        %1971 = vmatpush1.bf16.msra.mxu0 0
        %1972 = vmatprep.subr.bf16.mxu0 0
        %1973 = vmatpush1.bf16.msra.mxu0 0
        %1974 = vmatprep.subr.bf16.mxu0 0
        %1975 = vmatpush1.bf16.msra.mxu0 0
        %1976 = vmatprep.subr.bf16.mxu0 0
        %1977 = vmatpush1.bf16.msra.mxu0 0
        %1978 = vmatprep.subr.bf16.mxu0 0
        %1979 = vmatpush1.bf16.msra.mxu0 0
        %1980 = vmatprep.subr.bf16.mxu0 0
        %1981 = vmatpush1.bf16.msra.mxu0 0
        %1982 = vmatprep.subr.bf16.mxu0 0
        %1983 = vmatpush1.bf16.msra.mxu0 0
        %1984 = vmatprep.subr.bf16.mxu0 0
        %1985 = vmatpush1.bf16.msra.mxu0 0
        %1986 = vmatprep.subr.bf16.mxu0 0
        %1987 = vmatpush1.bf16.msra.mxu0 0
        %1988 = vmatprep.subr.bf16.mxu0 0
        %1989 = vmatpush1.bf16.msra.mxu0 0
        %1990 = vmatprep.subr.bf16.mxu0 0
        %1991 = vmatpush1.bf16.msra.mxu0 0
        %1992 = vmatprep.subr.bf16.mxu0 0
        %1993 = vmatpush1.bf16.msra.mxu0 0
        %1994 = vmatprep.subr.bf16.mxu0 0
        %1995 = vmatpush1.bf16.msra.mxu0 0
        %1996 = vmatprep.subr.bf16.mxu0 0
        %1997 = vmatpush1.bf16.msra.mxu0 0
        %1998 = vmatprep.subr.bf16.mxu0 0
        %1999 = vmatpush1.bf16.msra.mxu0 0
        %2000 = vmatprep.mubr.bf16.mxu0 0
        %2001 = vmatmul.mubr.bf16.gmra.mrb[0].mxu0 %v1963
        %v2002 = vpop.f32.mrb[0].mxu0
        %v2003 = vadd.f32 0.0, %v2002
        %v2004 = vpop.f32.mrb[0].mxu0
        %v2005 = vpop.f32.mrb[0].mxu0
        %v2006 = vadd.f32 0.0, %v2005
        %v2007 = vpop.f32.mrb[0].mxu0
        %2008 = vdwg.mxu0
        %2009 = vrot.lane.b32.xlu0 %v1756, 112
        %v2010 = vpop.permute.xlu0 %2009
        %2011 = vrot.lane.b32.xlu0 %v1757, 112
        %v2012 = vpop.permute.xlu0 %2011
        %v2014 = vsel %vm989, %v2010, 0
        %v2017 = vsel %vm989, %v2012, 0
        %2019 = vmatprep.subr.bf16.mxu0 0
        %2020 = vmatpush1.bf16.xpose.msra.mxu0 %v2017
        %2021 = vmatprep.subr.bf16.mxu0 0
        %2022 = vmatpush1.bf16.xpose.msra.mxu0 0
        %2023 = vmatprep.subr.bf16.mxu0 0
        %2024 = vmatpush1.bf16.xpose.msra.mxu0 0
        %2025 = vmatprep.subr.bf16.mxu0 0
        %2026 = vmatpush1.bf16.xpose.msra.mxu0 0
        %2027 = vmatprep.subr.bf16.mxu0 0
        %2028 = vmatpush1.bf16.xpose.msra.mxu0 0
        %2029 = vmatprep.subr.bf16.mxu0 0
        %2030 = vmatpush1.bf16.xpose.msra.mxu0 0
        %2031 = vmatprep.subr.bf16.mxu0 0
        %2032 = vmatpush1.bf16.xpose.msra.mxu0 0
        %2033 = vmatprep.subr.bf16.mxu0 0
        %2034 = vmatpush1.bf16.xpose.msra.mxu0 0
        %2035 = vmatprep.subr.bf16.mxu0 0
        %2036 = vmatpush1.bf16.xpose.msra.mxu0 0
        %2037 = vmatprep.subr.bf16.mxu0 0
        %2038 = vmatpush1.bf16.xpose.msra.mxu0 0
        %2039 = vmatprep.subr.bf16.mxu0 0
        %2040 = vmatpush1.bf16.xpose.msra.mxu0 0
        %2041 = vmatprep.subr.bf16.mxu0 0
        %2042 = vmatpush1.bf16.xpose.msra.mxu0 0
        %2043 = vmatprep.subr.bf16.mxu0 0
        %2044 = vmatpush1.bf16.xpose.msra.mxu0 0
        %2045 = vmatprep.subr.bf16.mxu0 0
        %2046 = vmatpush1.bf16.xpose.msra.mxu0 0
        %2047 = vmatprep.subr.bf16.mxu0 0
        %2048 = vmatpush1.bf16.xpose.msra.mxu0 0
        %2049 = vmatprep.subr.bf16.mxu0 0
        %2050 = vmatpush1.bf16.xpose.msra.mxu0 0
        %2051 = vmatprep.mubr.bf16.mxu0 0
        %2052 = vmatmul.mubr.bf16.gmra.mrb[0].mxu0 %v2014
        %v2053 = vpop.f32.mrb[0].mxu0
        %v2054 = vadd.f32 %v1762, %v2053
        %v2055 = vpop.f32.mrb[0].mxu0
        %v2056 = vpop.f32.mrb[0].mxu0
        %v2057 = vadd.f32 %v1762, %v2056
        %v2058 = vpop.f32.mrb[0].mxu0
        %2059 = vdwg.mxu0
        %v2060 = vsel %vm989, %v2054, -inf
        %2061 = vmax.xlane.f32.xlu0 %v2060
        %v2062 = vpop.xlane.xlu0 %2061
        %v2063 = vsel %vm989, %v2057, -inf
        %2064 = vmax.xlane.f32.xlu0 %v2063
        %v2065 = vpop.xlane.xlu0 %2064
        %v2066 = vsub.f32 %v2054, %v2062
        %v2067 = vsub.f32 %v2057, %v2065
        %v2068 = vmul.f32 %v2066, 1.442695
        %v2069 = vpow.pop %v2068
        %v2070 = vmul.f32 %v2067, 1.442695
        %v2071 = vpow.pop %v2070
        %v2072 = vsel %vm989, %v2069, 0.0
        %2073 = vadd.xlane.f32.xlu0 %v2072
        %v2074 = vpop.xlane.xlu0 %2073
        %v2075 = vsel %vm989, %v2071, 0.0
        %2076 = vadd.xlane.f32.xlu0 %v2075
        %v2077 = vpop.xlane.xlu0 %2076
        %v2078 = vrcp.pop %v2074
        %v2079 = vrcp.pop %v2077
        %v2080 = vmul.f32 %v2069, %v2078
        %v2081 = vmul.f32 %v2071, %v2079
        %v2082 = vpack.c.bf16 %v2081, %v2080
        %2083 = vrot.lane.b32.xlu0 %v1757, 80
        %v2084 = vpop.permute.xlu0 %2083
        %v2086 = vsel %vm989, %v2082, 0
        %v2089 = vsel %vm1840, %v2084, 0
        %2091 = vmatprep.subr.bf16.mxu0 0
        %2092 = vmatpush1.bf16.msra.mxu0 %v2089
        %2093 = vmatprep.subr.bf16.mxu0 0
        %2094 = vmatpush1.bf16.msra.mxu0 0
        %2095 = vmatprep.subr.bf16.mxu0 0
        %2096 = vmatpush1.bf16.msra.mxu0 0
        %2097 = vmatprep.subr.bf16.mxu0 0
        %2098 = vmatpush1.bf16.msra.mxu0 0
        %2099 = vmatprep.subr.bf16.mxu0 0
        %2100 = vmatpush1.bf16.msra.mxu0 0
        %2101 = vmatprep.subr.bf16.mxu0 0
        %2102 = vmatpush1.bf16.msra.mxu0 0
        %2103 = vmatprep.subr.bf16.mxu0 0
        %2104 = vmatpush1.bf16.msra.mxu0 0
        %2105 = vmatprep.subr.bf16.mxu0 0
        %2106 = vmatpush1.bf16.msra.mxu0 0
        %2107 = vmatprep.subr.bf16.mxu0 0
        %2108 = vmatpush1.bf16.msra.mxu0 0
        %2109 = vmatprep.subr.bf16.mxu0 0
        %2110 = vmatpush1.bf16.msra.mxu0 0
        %2111 = vmatprep.subr.bf16.mxu0 0
        %2112 = vmatpush1.bf16.msra.mxu0 0
        %2113 = vmatprep.subr.bf16.mxu0 0
        %2114 = vmatpush1.bf16.msra.mxu0 0
        %2115 = vmatprep.subr.bf16.mxu0 0
        %2116 = vmatpush1.bf16.msra.mxu0 0
        %2117 = vmatprep.subr.bf16.mxu0 0
        %2118 = vmatpush1.bf16.msra.mxu0 0
        %2119 = vmatprep.subr.bf16.mxu0 0
        %2120 = vmatpush1.bf16.msra.mxu0 0
        %2121 = vmatprep.subr.bf16.mxu0 0
        %2122 = vmatpush1.bf16.msra.mxu0 0
        %2123 = vmatprep.mubr.bf16.mxu0 0
        %2124 = vmatmul.mubr.bf16.gmra.mrb[0].mxu0 %v2086
        %v2125 = vpop.f32.mrb[0].mxu0
        %v2126 = vadd.f32 0.0, %v2125
        %v2127 = vpop.f32.mrb[0].mxu0
        %v2128 = vpop.f32.mrb[0].mxu0
        %v2129 = vadd.f32 0.0, %v2128
        %v2130 = vpop.f32.mrb[0].mxu0
        %2131 = vdwg.mxu0
        %2132 = vrot.lane.b32.xlu0 %v1756, 104
        %v2133 = vpop.permute.xlu0 %2132
        %2134 = vrot.lane.b32.xlu0 %v1757, 104
        %v2135 = vpop.permute.xlu0 %2134
        %v2137 = vsel %vm989, %v2133, 0
        %v2140 = vsel %vm989, %v2135, 0
        %2142 = vmatprep.subr.bf16.mxu0 0
        %2143 = vmatpush1.bf16.xpose.msra.mxu0 %v2140
        %2144 = vmatprep.subr.bf16.mxu0 0
        %2145 = vmatpush1.bf16.xpose.msra.mxu0 0
        %2146 = vmatprep.subr.bf16.mxu0 0
        %2147 = vmatpush1.bf16.xpose.msra.mxu0 0
        %2148 = vmatprep.subr.bf16.mxu0 0
        %2149 = vmatpush1.bf16.xpose.msra.mxu0 0
        %2150 = vmatprep.subr.bf16.mxu0 0
        %2151 = vmatpush1.bf16.xpose.msra.mxu0 0
        %2152 = vmatprep.subr.bf16.mxu0 0
        %2153 = vmatpush1.bf16.xpose.msra.mxu0 0
        %2154 = vmatprep.subr.bf16.mxu0 0
        %2155 = vmatpush1.bf16.xpose.msra.mxu0 0
        %2156 = vmatprep.subr.bf16.mxu0 0
        %2157 = vmatpush1.bf16.xpose.msra.mxu0 0
        %2158 = vmatprep.subr.bf16.mxu0 0
        %2159 = vmatpush1.bf16.xpose.msra.mxu0 0
        %2160 = vmatprep.subr.bf16.mxu0 0
        %2161 = vmatpush1.bf16.xpose.msra.mxu0 0
        %2162 = vmatprep.subr.bf16.mxu0 0
        %2163 = vmatpush1.bf16.xpose.msra.mxu0 0
        %2164 = vmatprep.subr.bf16.mxu0 0
        %2165 = vmatpush1.bf16.xpose.msra.mxu0 0
        %2166 = vmatprep.subr.bf16.mxu0 0
        %2167 = vmatpush1.bf16.xpose.msra.mxu0 0
        %2168 = vmatprep.subr.bf16.mxu0 0
        %2169 = vmatpush1.bf16.xpose.msra.mxu0 0
        %2170 = vmatprep.subr.bf16.mxu0 0
        %2171 = vmatpush1.bf16.xpose.msra.mxu0 0
        %2172 = vmatprep.subr.bf16.mxu0 0
        %2173 = vmatpush1.bf16.xpose.msra.mxu0 0
        %2174 = vmatprep.mubr.bf16.mxu0 0
        %2175 = vmatmul.mubr.bf16.gmra.mrb[0].mxu0 %v2137
        %v2176 = vpop.f32.mrb[0].mxu0
        %v2177 = vadd.f32 %v1762, %v2176
        %v2178 = vpop.f32.mrb[0].mxu0
        %v2179 = vpop.f32.mrb[0].mxu0
        %v2180 = vadd.f32 %v1762, %v2179
        %v2181 = vpop.f32.mrb[0].mxu0
        %2182 = vdwg.mxu0
        %v2183 = vsel %vm989, %v2177, -inf
        %2184 = vmax.xlane.f32.xlu0 %v2183
        %v2185 = vpop.xlane.xlu0 %2184
        %v2186 = vsel %vm989, %v2180, -inf
        %2187 = vmax.xlane.f32.xlu0 %v2186
        %v2188 = vpop.xlane.xlu0 %2187
        %v2189 = vsub.f32 %v2177, %v2185
        %v2190 = vsub.f32 %v2180, %v2188
        %v2191 = vmul.f32 %v2189, 1.442695
        %v2192 = vpow.pop %v2191
        %v2193 = vmul.f32 %v2190, 1.442695
        %v2194 = vpow.pop %v2193
        %v2195 = vsel %vm989, %v2192, 0.0
        %2196 = vadd.xlane.f32.xlu0 %v2195
        %v2197 = vpop.xlane.xlu0 %2196
        %v2198 = vsel %vm989, %v2194, 0.0
        %2199 = vadd.xlane.f32.xlu0 %v2198
        %v2200 = vpop.xlane.xlu0 %2199
        %v2201 = vrcp.pop %v2197
        %v2202 = vrcp.pop %v2200
        %v2203 = vmul.f32 %v2192, %v2201
        %v2204 = vmul.f32 %v2194, %v2202
        %v2205 = vpack.c.bf16 %v2204, %v2203
        %2206 = vrot.lane.b32.xlu0 %v1757, 72
        %v2207 = vpop.permute.xlu0 %2206
        %v2209 = vsel %vm989, %v2205, 0
        %v2212 = vsel %vm1840, %v2207, 0
        %2214 = vmatprep.subr.bf16.mxu0 0
        %2215 = vmatpush1.bf16.msra.mxu0 %v2212
        %2216 = vmatprep.subr.bf16.mxu0 0
        %2217 = vmatpush1.bf16.msra.mxu0 0
        %2218 = vmatprep.subr.bf16.mxu0 0
        %2219 = vmatpush1.bf16.msra.mxu0 0
        %2220 = vmatprep.subr.bf16.mxu0 0
        %2221 = vmatpush1.bf16.msra.mxu0 0
        %2222 = vmatprep.subr.bf16.mxu0 0
        %2223 = vmatpush1.bf16.msra.mxu0 0
        %2224 = vmatprep.subr.bf16.mxu0 0
        %2225 = vmatpush1.bf16.msra.mxu0 0
        %2226 = vmatprep.subr.bf16.mxu0 0
        %2227 = vmatpush1.bf16.msra.mxu0 0
        %2228 = vmatprep.subr.bf16.mxu0 0
        %2229 = vmatpush1.bf16.msra.mxu0 0
        %2230 = vmatprep.subr.bf16.mxu0 0
        %2231 = vmatpush1.bf16.msra.mxu0 0
        %2232 = vmatprep.subr.bf16.mxu0 0
        %2233 = vmatpush1.bf16.msra.mxu0 0
        %2234 = vmatprep.subr.bf16.mxu0 0
        %2235 = vmatpush1.bf16.msra.mxu0 0
        %2236 = vmatprep.subr.bf16.mxu0 0
        %2237 = vmatpush1.bf16.msra.mxu0 0
        %2238 = vmatprep.subr.bf16.mxu0 0
        %2239 = vmatpush1.bf16.msra.mxu0 0
        %2240 = vmatprep.subr.bf16.mxu0 0
        %2241 = vmatpush1.bf16.msra.mxu0 0
        %2242 = vmatprep.subr.bf16.mxu0 0
        %2243 = vmatpush1.bf16.msra.mxu0 0
        %2244 = vmatprep.subr.bf16.mxu0 0
        %2245 = vmatpush1.bf16.msra.mxu0 0
        %2246 = vmatprep.mubr.bf16.mxu0 0
        %2247 = vmatmul.mubr.bf16.gmra.mrb[0].mxu0 %v2209
        %v2248 = vpop.f32.mrb[0].mxu0
        %v2249 = vadd.f32 0.0, %v2248
        %v2250 = vpop.f32.mrb[0].mxu0
        %v2251 = vpop.f32.mrb[0].mxu0
        %v2252 = vadd.f32 0.0, %v2251
        %v2253 = vpop.f32.mrb[0].mxu0
        %2254 = vdwg.mxu0
        %2257 = vrot.lane.b32.xlu0 %v2003, 8
        %v2258 = vpop.permute.xlu0 %2257
        %2259 = vrot.lane.b32.xlu0 %v2006, 8
        %v2260 = vpop.permute.xlu0 %2259
        %2265 = vrot.lane.b32.xlu0 %v2126, 16
        %v2266 = vpop.permute.xlu0 %2265
        %2267 = vrot.lane.b32.xlu0 %v2129, 16
        %v2268 = vpop.permute.xlu0 %2267
        %2273 = vrot.lane.b32.xlu0 %v2249, 24
        %v2274 = vpop.permute.xlu0 %2273
        %2275 = vrot.lane.b32.xlu0 %v2252, 24
        %v2276 = vpop.permute.xlu0 %2275
        %v2279 = vsel %vm989, %v1879, %v2258
        %v2280 = vsel %vm989, %v1882, %v2260
        %v2281 = vsel %vm1037, %v2279, %v2266
        %v2282 = vsel %vm1037, %v2280, %v2268
        %v2283 = vsel %vm1501, %v2281, %v2274
        %v2284 = vsel %vm1501, %v2282, %v2276
        %v2285 = vpack.c.bf16 %v2284, %v2283
        %v2287 = vlaneseq
        %v2288 = vshrl.u32 %v2287, 7
        %v2289 = vsub.s32 0, %v2288
        %v2290 = vrot.slane %v1628, %v2289
        %v2296 = vunpack.c.l.b16 %v1624
        %v2297 = vunpack.c.l.b16 %v1625
        %v2298 = vunpack.c.l.b16 %v1626
        %v2299 = vunpack.c.l.b16 %v1627
        %v2300 = vpack.c.b16 %v2297, %v2296
        %v2301 = vpack.c.b16 %v2299, %v2298
        %v2305 = vsel %vm875, %v2285, 0
        %2307 = vmatprep.subr.bf16.mxu0 0
        %2308 = vmatpush1.bf16.msra.mxu0 %v2300
        %2309 = vmatprep.subr.bf16.mxu0 0
        %2310 = vmatpush1.bf16.msra.mxu0 %v2301
        %2311 = vmatprep.subr.bf16.mxu0 0
        %2312 = vmatpush1.bf16.msra.mxu0 0
        %2313 = vmatprep.subr.bf16.mxu0 0
        %2314 = vmatpush1.bf16.msra.mxu0 0
        %2315 = vmatprep.subr.bf16.mxu0 0
        %2316 = vmatpush1.bf16.msra.mxu0 0
        %2317 = vmatprep.subr.bf16.mxu0 0
        %2318 = vmatpush1.bf16.msra.mxu0 0
        %2319 = vmatprep.subr.bf16.mxu0 0
        %2320 = vmatpush1.bf16.msra.mxu0 0
        %2321 = vmatprep.subr.bf16.mxu0 0
        %2322 = vmatpush1.bf16.msra.mxu0 0
        %2323 = vmatprep.subr.bf16.mxu0 0
        %2324 = vmatpush1.bf16.msra.mxu0 0
        %2325 = vmatprep.subr.bf16.mxu0 0
        %2326 = vmatpush1.bf16.msra.mxu0 0
        %2327 = vmatprep.subr.bf16.mxu0 0
        %2328 = vmatpush1.bf16.msra.mxu0 0
        %2329 = vmatprep.subr.bf16.mxu0 0
        %2330 = vmatpush1.bf16.msra.mxu0 0
        %2331 = vmatprep.subr.bf16.mxu0 0
        %2332 = vmatpush1.bf16.msra.mxu0 0
        %2333 = vmatprep.subr.bf16.mxu0 0
        %2334 = vmatpush1.bf16.msra.mxu0 0
        %2335 = vmatprep.subr.bf16.mxu0 0
        %2336 = vmatpush1.bf16.msra.mxu0 0
        %2337 = vmatprep.subr.bf16.mxu0 0
        %2338 = vmatpush1.bf16.msra.mxu0 0
        %2339 = vmatprep.mubr.bf16.mxu0 0
        %2340 = vmatmul.mubr.bf16.gmra.mrb[0].mxu0 %v2305
        %v2341 = vpop.f32.mrb[0].mxu0
        %v2342 = vadd.f32 %v2290, %v2341
        %v2343 = vpop.f32.mrb[0].mxu0
        %v2344 = vpop.f32.mrb[0].mxu0
        %v2345 = vadd.f32 %v2290, %v2344
        %v2346 = vpop.f32.mrb[0].mxu0
        %2347 = vdwg.mxu0
        %v2348 = vadd.f32 %v1612, %v2342
        %v2349 = vadd.f32 %v1613, %v2345
        %v2350 = vld [vmem:[%s18] sm:$0x1]
        %v2351 = vld [vmem:[%s19] sm:$0x1]
        %v2352 = vsel %vm875, %v2348, 0.0
        %2353 = vadd.xlane.f32.xlu0 %v2352
        %v2354 = vpop.xlane.xlu0 %2353
        %v2355 = vsel %vm875, %v2349, 0.0
        %2356 = vadd.xlane.f32.xlu0 %v2355
        %v2357 = vpop.xlane.xlu0 %2356
        %v2358 = vmul.f32 %v2354, %v1577
        %v2359 = vmul.f32 %v2357, %v1577
        %v2360 = vsub.f32 %v2348, %v2358
        %v2361 = vsub.f32 %v2349, %v2359
        %v2362 = vmul.f32 %v2360, %v2360
        %v2363 = vmul.f32 %v2361, %v2361
        %v2364 = vsel %vm875, %v2362, 0.0
        %2365 = vadd.xlane.f32.xlu0 %v2364
        %v2366 = vpop.xlane.xlu0 %2365
        %v2367 = vsel %vm875, %v2363, 0.0
        %2368 = vadd.xlane.f32.xlu0 %v2367
        %v2369 = vpop.xlane.xlu0 %2368
        %v2370 = vmul.f32 %v2366, %v1577
        %v2371 = vmul.f32 %v2369, %v1577
        %v2372 = vadd.f32 %v2370, 1e-06
        %v2373 = vadd.f32 %v2371, 1e-06
        %v2374 = vrsqrt.pop %v2372
        %v2375 = vrsqrt.pop %v2373
        %v2376 = vmul.f32 %v2360, %v2374
        %v2377 = vmul.f32 %v2361, %v2375
        %v2379 = vlaneseq
        %v2380 = vshrl.u32 %v2379, 7
        %v2381 = vsub.s32 0, %v2380
        %v2382 = vrot.slane %v2350, %v2381
        %v2384 = vmul.f32 %v2376, %v2382
        %v2385 = vmul.f32 %v2377, %v2382
        %v2387 = vlaneseq
        %v2388 = vshrl.u32 %v2387, 7
        %v2389 = vsub.s32 0, %v2388
        %v2390 = vrot.slane %v2351, %v2389
        %v2392 = vadd.f32 %v2384, %v2390
        %v2393 = vadd.f32 %v2385, %v2390
        %v2394 = vpack.c.bf16 %v2393, %v2392
        %v2395 = vld [vmem:[%s20] sm:$0xf]
        %v2396 = vld [vmem:[%s20 + $0x4] sm:$0xf]
        %v2397 = vld [vmem:[%s20 + $0x8] sm:$0xf]
        %v2398 = vld [vmem:[%s20 + $0xc] sm:$0xf]
        %v2399 = vld [vmem:[%s21] sm:$0x1]
        %v2401 = vlaneseq
        %v2402 = vshrl.u32 %v2401, 7
        %v2403 = vsub.s32 0, %v2402
        %v2404 = vrot.slane %v2399, %v2403
        %v2410 = vunpack.c.l.b16 %v2395
        %v2411 = vunpack.c.l.b16 %v2396
        %v2412 = vunpack.c.l.b16 %v2397
        %v2413 = vunpack.c.l.b16 %v2398
        %v2414 = vpack.c.b16 %v2411, %v2410
        %v2415 = vpack.c.b16 %v2413, %v2412
        %v2419 = vsel %vm875, %v2394, 0
        %2421 = vmatprep.subr.bf16.mxu0 0
        %2422 = vmatpush1.bf16.msra.mxu0 %v2414
        %2423 = vmatprep.subr.bf16.mxu0 0
        %2424 = vmatpush1.bf16.msra.mxu0 %v2415
        %2425 = vmatprep.subr.bf16.mxu0 0
        %2426 = vmatpush1.bf16.msra.mxu0 0
        %2427 = vmatprep.subr.bf16.mxu0 0
        %2428 = vmatpush1.bf16.msra.mxu0 0
        %2429 = vmatprep.subr.bf16.mxu0 0
        %2430 = vmatpush1.bf16.msra.mxu0 0
        %2431 = vmatprep.subr.bf16.mxu0 0
        %2432 = vmatpush1.bf16.msra.mxu0 0
        %2433 = vmatprep.subr.bf16.mxu0 0
        %2434 = vmatpush1.bf16.msra.mxu0 0
        %2435 = vmatprep.subr.bf16.mxu0 0
        %2436 = vmatpush1.bf16.msra.mxu0 0
        %2437 = vmatprep.subr.bf16.mxu0 0
        %2438 = vmatpush1.bf16.msra.mxu0 0
        %2439 = vmatprep.subr.bf16.mxu0 0
        %2440 = vmatpush1.bf16.msra.mxu0 0
        %2441 = vmatprep.subr.bf16.mxu0 0
        %2442 = vmatpush1.bf16.msra.mxu0 0
        %2443 = vmatprep.subr.bf16.mxu0 0
        %2444 = vmatpush1.bf16.msra.mxu0 0
        %2445 = vmatprep.subr.bf16.mxu0 0
        %2446 = vmatpush1.bf16.msra.mxu0 0
        %2447 = vmatprep.subr.bf16.mxu0 0
        %2448 = vmatpush1.bf16.msra.mxu0 0
        %2449 = vmatprep.subr.bf16.mxu0 0
        %2450 = vmatpush1.bf16.msra.mxu0 0
        %2451 = vmatprep.subr.bf16.mxu0 0
        %2452 = vmatpush1.bf16.msra.mxu0 0
        %2453 = vmatprep.mubr.bf16.mxu0 0
        %2454 = vmatmul.mubr.bf16.gmra.mrb[0].mxu0 %v2419
        %v2455 = vpop.f32.mrb[0].mxu0
        %v2456 = vadd.f32 %v2404, %v2455
        %v2457 = vpop.f32.mrb[0].mxu0
        %v2458 = vpop.f32.mrb[0].mxu0
        %v2459 = vadd.f32 %v2404, %v2458
        %v2460 = vpop.f32.mrb[0].mxu0
        %2461 = vdwg.mxu0
        %v2462 = vmax.f32 %v2456, 0.0
        %v2463 = vmax.f32 %v2459, 0.0
        %v2464 = vpack.c.bf16 %v2463, %v2462
        %v2465 = vld [vmem:[%s22] sm:$0xf]
        %v2466 = vld [vmem:[%s22 + $0x4] sm:$0xf]
        %v2467 = vld [vmem:[%s22 + $0x8] sm:$0xf]
        %v2468 = vld [vmem:[%s22 + $0xc] sm:$0xf]
        %v2469 = vld [vmem:[%s22 + $0x10] sm:$0xf]
        %v2470 = vld [vmem:[%s22 + $0x14] sm:$0xf]
        %v2471 = vld [vmem:[%s22 + $0x18] sm:$0xf]
        %v2472 = vld [vmem:[%s22 + $0x1c] sm:$0xf]
        %v2473 = vld [vmem:[%s23] sm:$0x1]
        %v2475 = vlaneseq
        %v2476 = vshrl.u32 %v2475, 7
        %v2477 = vsub.s32 0, %v2476
        %v2478 = vrot.slane %v2473, %v2477
        %v2488 = vunpack.c.l.b16 %v2465
        %v2489 = vunpack.c.l.b16 %v2466
        %v2490 = vunpack.c.l.b16 %v2467
        %v2491 = vunpack.c.l.b16 %v2468
        %v2492 = vunpack.c.l.b16 %v2469
        %v2493 = vunpack.c.l.b16 %v2470
        %v2494 = vunpack.c.l.b16 %v2471
        %v2495 = vunpack.c.l.b16 %v2472
        %v2496 = vpack.c.b16 %v2489, %v2488
        %v2497 = vpack.c.b16 %v2491, %v2490
        %v2498 = vpack.c.b16 %v2493, %v2492
        %v2499 = vpack.c.b16 %v2495, %v2494
        %vm2504 = vcmask 523264
        %v2506 = vsel %vm2504, %v2464, 0
        %2508 = vmatprep.subr.bf16.mxu0 0
        %2509 = vmatpush1.bf16.msra.mxu0 %v2496
        %2510 = vmatprep.subr.bf16.mxu0 0
        %2511 = vmatpush1.bf16.msra.mxu0 %v2497
        %2512 = vmatprep.subr.bf16.mxu0 0
        %2513 = vmatpush1.bf16.msra.mxu0 %v2498
        %2514 = vmatprep.subr.bf16.mxu0 0
        %2515 = vmatpush1.bf16.msra.mxu0 %v2499
        %2516 = vmatprep.subr.bf16.mxu0 0
        %2517 = vmatpush1.bf16.msra.mxu0 0
        %2518 = vmatprep.subr.bf16.mxu0 0
        %2519 = vmatpush1.bf16.msra.mxu0 0
        %2520 = vmatprep.subr.bf16.mxu0 0
        %2521 = vmatpush1.bf16.msra.mxu0 0
        %2522 = vmatprep.subr.bf16.mxu0 0
        %2523 = vmatpush1.bf16.msra.mxu0 0
        %2524 = vmatprep.subr.bf16.mxu0 0
        %2525 = vmatpush1.bf16.msra.mxu0 0
        %2526 = vmatprep.subr.bf16.mxu0 0
        %2527 = vmatpush1.bf16.msra.mxu0 0
        %2528 = vmatprep.subr.bf16.mxu0 0
        %2529 = vmatpush1.bf16.msra.mxu0 0
        %2530 = vmatprep.subr.bf16.mxu0 0
        %2531 = vmatpush1.bf16.msra.mxu0 0
        %2532 = vmatprep.subr.bf16.mxu0 0
        %2533 = vmatpush1.bf16.msra.mxu0 0
        %2534 = vmatprep.subr.bf16.mxu0 0
        %2535 = vmatpush1.bf16.msra.mxu0 0
        %2536 = vmatprep.subr.bf16.mxu0 0
        %2537 = vmatpush1.bf16.msra.mxu0 0
        %2538 = vmatprep.subr.bf16.mxu0 0
        %2539 = vmatpush1.bf16.msra.mxu0 0
        %2540 = vmatprep.mubr.bf16.mxu0 0
        %2541 = vmatmul.mubr.bf16.gmra.mrb[0].mxu0 %v2506
        %v2542 = vpop.f32.mrb[0].mxu0
        %v2543 = vadd.f32 %v2478, %v2542
        %v2544 = vpop.f32.mrb[0].mxu0
        %v2545 = vpop.f32.mrb[0].mxu0
        %v2546 = vadd.f32 %v2478, %v2545
        %v2547 = vpop.f32.mrb[0].mxu0
        %2548 = vdwg.mxu0
        %v2549 = vadd.f32 %v2392, %v2543
        %v2550 = vadd.f32 %v2393, %v2546
        %v2551 = vld [vmem:[%s24] sm:$0x1]
        %v2552 = vld [vmem:[%s25] sm:$0x1]
        %v2553 = vsel %vm875, %v2549, 0.0
        %2554 = vadd.xlane.f32.xlu0 %v2553
        %v2555 = vpop.xlane.xlu0 %2554
        %v2556 = vsel %vm875, %v2550, 0.0
        %2557 = vadd.xlane.f32.xlu0 %v2556
        %v2558 = vpop.xlane.xlu0 %2557
        %v2559 = vmul.f32 %v2555, %v1577
        %v2560 = vmul.f32 %v2558, %v1577
        %v2561 = vsub.f32 %v2549, %v2559
        %v2562 = vsub.f32 %v2550, %v2560
        %v2563 = vmul.f32 %v2561, %v2561
        %v2564 = vmul.f32 %v2562, %v2562
        %v2565 = vsel %vm875, %v2563, 0.0
        %2566 = vadd.xlane.f32.xlu0 %v2565
        %v2567 = vpop.xlane.xlu0 %2566
        %v2568 = vsel %vm875, %v2564, 0.0
        %2569 = vadd.xlane.f32.xlu0 %v2568
        %v2570 = vpop.xlane.xlu0 %2569
        %v2571 = vmul.f32 %v2567, %v1577
        %v2572 = vmul.f32 %v2570, %v1577
        %v2573 = vadd.f32 %v2571, 1e-06
        %v2574 = vadd.f32 %v2572, 1e-06
        %v2575 = vrsqrt.pop %v2573
        %v2576 = vrsqrt.pop %v2574
        %v2577 = vmul.f32 %v2561, %v2575
        %v2578 = vmul.f32 %v2562, %v2576
        %v2580 = vlaneseq
        %v2581 = vshrl.u32 %v2580, 7
        %v2582 = vsub.s32 0, %v2581
        %v2583 = vrot.slane %v2551, %v2582
        %v2585 = vmul.f32 %v2577, %v2583
        %v2586 = vmul.f32 %v2578, %v2583
        %v2588 = vlaneseq
        %v2589 = vshrl.u32 %v2588, 7
        %v2590 = vsub.s32 0, %v2589
        %v2591 = vrot.slane %v2552, %v2590
        %v2593 = vadd.f32 %v2585, %v2591
        %v2594 = vadd.f32 %v2586, %v2591
        %2595 = vst.msk [vmem:[%s819] sm:$0xff] %vm875, %v2593
        %2596 = vst.msk [vmem:[%s819 + $0x8] sm:$0xff] %vm875, %v2594
        %s2597 = sand.u32 %s614, 1
        %s2598 = scalar_lea.sflag [#allocation3], %s2597
        %s2599 = sand.u32 %s614, 1
        %s2600 = smul.addr %s2599, 16
        %s2601 = scalar_lea.vmem [#allocation2], %s2600
        // Predicated region
        $region125: #{_lambda_.7} parent=123 // pred_check
          %p2602 = pneg %p624
        $region126: #{_lambda_.7} parent=123 // pred_check_branch
          %2604 = sbr.rel (%p2602) target = $region128
        $region127: #{_lambda_.7} parent=123 // pred_region
          %s2606 = ssub.s32 256, 256
          %2607 = vsyncadd %s2598, %s2606
          %s2608 = smul.addr %s40, 2
          %s2609 = smul.addr %s2608, 128
          %s2610 = scalar_lea.hbm %s26, %s2609
          %s2611 = sshll.u32 %s2601, 4
          %s2612 = int_to_ptr.vmem [resolvable:$true] %s2611
          %2617 = dma.vmem_to_hbm [thread:$0]  %s2612, 256, %s2610, %s2598, 128, 128, 8
        $region128: #{_lambda_.7} parent=123 // pred_fallthru
          _
      $region124: #{_lambda_.7} parent=5 // pred_fallthru
        _
      %p2618 = scmp.le.s32.totalorder 2, %s35
      // Predicated region
      $region129: #{_lambda_.7} parent=5 // pred_check
        %p2619 = pneg %p2618
      $region130: #{_lambda_.7} parent=5 // pred_check_branch
        %2621 = sbr.rel (%p2619) target = $region132
      $region131: #{_lambda_.7} parent=5 // pred_region
        %s2622 = ssub.s32 %s35, 2
        // Predicated region
        $region133: #{_lambda_.7} parent=131 // pred_check
          %p2623 = pneg %p630
        $region134: #{_lambda_.7} parent=131 // pred_check_branch
          %2625 = sbr.rel (%p2623) target = $region136
        $region135: #{_lambda_.7} parent=131 // pred_region
          %s2626 = sand.u32 %s615, 1
          %s2627 = scalar_lea.sflag [#allocation3], %s2626
          %s2628 = sand.u32 %s615, 1
          %s2629 = smul.addr %s2628, 16
          %s2630 = scalar_lea.vmem [#allocation2], %s2629
          %2631 = dma.done %s2627, 256
        $region136: #{_lambda_.7} parent=131 // pred_fallthru
          _
      $region132: #{_lambda_.7} parent=5 // pred_fallthru
        _
    $region6: #{_lambda_.7} parent=1 // loop_footer
      %s39 = sadd.s32 1, %s35
    $region7: #{_lambda_.7} parent=1 // loop_footer_branch
      %34 = sbr.rel target = $region3
    $region8: #{_lambda_.7} parent=1 // loop_exit
      _
    %2632 = vsyncpa [#allocation3], 1
    %s2633 = scalar_lea.sflag [#allocation3], 1
    %2634 = vsyncpa %s2633, 1

// kernel: _lambda_.4
$region0: #{_lambda_.4}
  #allocation0 [shape = 'u32[]', space=smem, size = 0x4, offset = 0x4, fixed_abs, tag = 'smem constant byte address 0x4 - core index']
  #allocation1 [shape = 'u32[144,128]{1,0:T(1,128)}', space=vmem, size = 0x12000, scoped, tag = 'internal scratch']
  %s0 = inlined_call_operand.vmem [shape: f32[2,8,32], index: 0, kind: input, shape index: {}]
  %s1 = inlined_call_operand.vmem [shape: f32[2,16,32], index: 1, kind: input, shape index: {}]
  %s2 = inlined_call_operand.vmem [shape: f32[2,1,8], index: 2, kind: input, shape index: {}]
  %s3 = inlined_call_operand.vmem [shape: f32[2,1,16], index: 3, kind: input, shape index: {}]
  %s4 = inlined_call_operand.vmem [shape: bf16[32,32], index: 4, kind: input, shape index: {}]
  %s5 = inlined_call_operand.vmem [shape: f32[1,32], index: 5, kind: input, shape index: {}]
  %s6 = inlined_call_operand.vmem [shape: bf16[32,64], index: 6, kind: input, shape index: {}]
  %s7 = inlined_call_operand.vmem [shape: f32[1,64], index: 7, kind: input, shape index: {}]
  %s8 = inlined_call_operand.vmem [shape: bf16[32,32], index: 8, kind: input, shape index: {}]
  %s9 = inlined_call_operand.vmem [shape: f32[1,32], index: 9, kind: input, shape index: {}]
  %s10 = inlined_call_operand.vmem [shape: f32[1,32], index: 10, kind: input, shape index: {}, may-alias: {10,18,24}]
  %s11 = inlined_call_operand.vmem [shape: f32[1,32], index: 11, kind: input, shape index: {}, may-alias: {11,19,25}]
  %s12 = inlined_call_operand.vmem [shape: bf16[32,32], index: 12, kind: input, shape index: {}]
  %s13 = inlined_call_operand.vmem [shape: f32[1,32], index: 13, kind: input, shape index: {}]
  %s14 = inlined_call_operand.vmem [shape: bf16[32,64], index: 14, kind: input, shape index: {}]
  %s15 = inlined_call_operand.vmem [shape: f32[1,64], index: 15, kind: input, shape index: {}]
  %s16 = inlined_call_operand.vmem [shape: bf16[32,32], index: 16, kind: input, shape index: {}]
  %s17 = inlined_call_operand.vmem [shape: f32[1,32], index: 17, kind: input, shape index: {}]
  %s18 = inlined_call_operand.vmem [shape: f32[1,32], index: 18, kind: input, shape index: {}, may-alias: {10,18,24}]
  %s19 = inlined_call_operand.vmem [shape: f32[1,32], index: 19, kind: input, shape index: {}, may-alias: {11,19,25}]
  %s20 = inlined_call_operand.vmem [shape: bf16[32,64], index: 20, kind: input, shape index: {}]
  %s21 = inlined_call_operand.vmem [shape: f32[1,64], index: 21, kind: input, shape index: {}]
  %s22 = inlined_call_operand.vmem [shape: bf16[64,32], index: 22, kind: input, shape index: {}]
  %s23 = inlined_call_operand.vmem [shape: f32[1,32], index: 23, kind: input, shape index: {}]
  %s24 = inlined_call_operand.vmem [shape: f32[1,32], index: 24, kind: input, shape index: {}, may-alias: {10,18,24}]
  %s25 = inlined_call_operand.vmem [shape: f32[1,32], index: 25, kind: input, shape index: {}, may-alias: {11,19,25}]
  %s26 = inlined_call_operand.vmem [shape: f32[2,8,32], index: 26, kind: output, shape index: {}]
  %s27 = sld [smem:[#allocation0]]
  $region137: #{_lambda_.4} parent=0
    _
  %s29 = ssub.s32 1, %s27
  %s30 = scalar_select 0, %s29, %s27
  loop: start=0, step=1, limit=4
  $region2: #{_lambda_.4} parent=0 // loop_pre_header
    _
  $region3: #{_lambda_.4} parent=0 // loop_header
    %s32 = sphi 0, %s36
    %p33 = scmp.ge.s32.totalorder %s32, 4
    %s42 = sphi 0, %s44
    %s45 = sphi 0, %s42
    %s46 = sphi 0, %s45
    %s62 = sphi 0, %s46
    %s68 = sphi 0, %s70
    %s71 = sphi 0, %s68
    %s72 = sphi 0, %s71
    %s88 = sphi 0, %s72
    %s94 = sphi 0, %s96
    %s97 = sphi 0, %s94
    %s98 = sphi 0, %s97
    %s114 = sphi 0, %s98
    %s120 = sphi 0, %s122
    %s123 = sphi 0, %s120
    %s124 = sphi 0, %s123
    %s140 = sphi 0, %s124
    %s144 = sphi 0, %s144
    %s146 = sphi 0, %s144
    %s147 = sphi 0, %s146
    %s161 = sphi 0, %s147
    %s165 = sphi 0, %s165
    %s167 = sphi 0, %s165
    %s168 = sphi 0, %s167
    %s182 = sphi 0, %s168
    %s186 = sphi 0, %s186
    %s188 = sphi 0, %s186
    %s189 = sphi 0, %s188
    %s203 = sphi 0, %s189
    %s207 = sphi 0, %s207
    %s209 = sphi 0, %s207
    %s210 = sphi 0, %s209
    %s224 = sphi 0, %s210
    %s228 = sphi 0, %s228
    %s230 = sphi 0, %s228
    %s231 = sphi 0, %s230
    %s245 = sphi 0, %s231
    %s249 = sphi 0, %s249
    %s251 = sphi 0, %s249
    %s252 = sphi 0, %s251
    %s266 = sphi 0, %s252
    %s270 = sphi 0, %s270
    %s272 = sphi 0, %s270
    %s273 = sphi 0, %s272
    %s287 = sphi 0, %s273
    %s291 = sphi 0, %s291
    %s293 = sphi 0, %s291
    %s294 = sphi 0, %s293
    %s308 = sphi 0, %s294
    %s312 = sphi 0, %s312
    %s314 = sphi 0, %s312
    %s315 = sphi 0, %s314
    %s329 = sphi 0, %s315
    %s333 = sphi 0, %s333
    %s335 = sphi 0, %s333
    %s336 = sphi 0, %s335
    %s350 = sphi 0, %s336
    %s354 = sphi 0, %s354
    %s356 = sphi 0, %s354
    %s357 = sphi 0, %s356
    %s371 = sphi 0, %s357
    %s375 = sphi 0, %s375
    %s377 = sphi 0, %s375
    %s378 = sphi 0, %s377
    %s392 = sphi 0, %s378
    %s396 = sphi 0, %s396
    %s398 = sphi 0, %s396
    %s399 = sphi 0, %s398
    %s413 = sphi 0, %s399
    %s417 = sphi 0, %s417
    %s419 = sphi 0, %s417
    %s420 = sphi 0, %s419
    %s434 = sphi 0, %s420
    %s438 = sphi 0, %s438
    %s440 = sphi 0, %s438
    %s441 = sphi 0, %s440
    %s455 = sphi 0, %s441
    %s459 = sphi 0, %s459
    %s461 = sphi 0, %s459
    %s462 = sphi 0, %s461
    %s476 = sphi 0, %s462
    %s480 = sphi 0, %s480
    %s482 = sphi 0, %s480
    %s483 = sphi 0, %s482
    %s497 = sphi 0, %s483
    %s501 = sphi 0, %s501
    %s503 = sphi 0, %s501
    %s504 = sphi 0, %s503
    %s518 = sphi 0, %s504
    %s522 = sphi 0, %s522
    %s524 = sphi 0, %s522
    %s525 = sphi 0, %s524
    %s539 = sphi 0, %s525
    %s543 = sphi 0, %s543
    %s545 = sphi 0, %s543
    %s546 = sphi 0, %s545
    %s560 = sphi 0, %s546
    %s564 = sphi 0, %s564
    %s566 = sphi 0, %s564
    %s567 = sphi 0, %s566
    %s581 = sphi 0, %s567
    %s585 = sphi 0, %s585
    %s587 = sphi 0, %s585
    %s588 = sphi 0, %s587
    %s602 = sphi 0, %s588
    %s608 = sphi 0, %s610
    %s611 = sphi 0, %s608
    %s612 = sphi 0, %s611
    %s628 = sphi 0, %s612
  $region4: #{_lambda_.4} parent=0 // loop_header_branch
    %35 = sbr.rel (%p33) target = $region8
  $region5: #{_lambda_.4} parent=0 // loop_body
    %s37 = ssub.s32 %s32, 1
    %s38 = ssub.s32 %s32, 2
    %s39 = sadd.s32 %s32, 1
    %s40 = ssub.s32 %s32, %s39
    %p41 = scmp.eq.s32.totalorder %s40, 0
    %s43 = sadd.s32 %s42, 1
    %s44 = scalar_select %p41, %s42, %s43
    %p47 = pneg %p41
    %p48 = scmp.eq.s32.totalorder %s32, 1
    %p49 = por %p47, %p48
    %p50 = scmp.ne.s32.totalorder %s42, %s45
    %p51 = scmp.eq.s32.totalorder %s32, 0
    %p52 = por %p50, %p51
    %p53 = scmp.ne.s32.totalorder %s42, %s45
    %p54 = scmp.eq.s32.totalorder %s37, 1
    %p55 = por %p53, %p54
    %p56 = scmp.ne.s32.totalorder %s45, %s46
    %p57 = scmp.eq.s32.totalorder %s37, 0
    %p58 = por %p56, %p57
    %p59 = scmp.ne.s32.totalorder %s45, %s46
    %p60 = scmp.eq.s32.totalorder %s38, 1
    %p61 = por %p59, %p60
    %p63 = scmp.ne.s32.totalorder %s46, %s62
    %p64 = scmp.eq.s32.totalorder %s38, 0
    %p65 = por %p63, %p64
    %s66 = ssub.s32 %s32, %s39
    %p67 = scmp.eq.s32.totalorder %s66, 0
    %s69 = sadd.s32 %s68, 1
    %s70 = scalar_select %p67, %s68, %s69
    %p73 = pneg %p67
    %p74 = scmp.eq.s32.totalorder %s32, 1
    %p75 = por %p73, %p74
    %p76 = scmp.ne.s32.totalorder %s68, %s71
    %p77 = scmp.eq.s32.totalorder %s32, 0
    %p78 = por %p76, %p77
    %p79 = scmp.ne.s32.totalorder %s68, %s71
    %p80 = scmp.eq.s32.totalorder %s37, 1
    %p81 = por %p79, %p80
    %p82 = scmp.ne.s32.totalorder %s71, %s72
    %p83 = scmp.eq.s32.totalorder %s37, 0
    %p84 = por %p82, %p83
    %p85 = scmp.ne.s32.totalorder %s71, %s72
    %p86 = scmp.eq.s32.totalorder %s38, 1
    %p87 = por %p85, %p86
    %p89 = scmp.ne.s32.totalorder %s72, %s88
    %p90 = scmp.eq.s32.totalorder %s38, 0
    %p91 = por %p89, %p90
    %s92 = ssub.s32 %s32, %s39
    %p93 = scmp.eq.s32.totalorder %s92, 0
    %s95 = sadd.s32 %s94, 1
    %s96 = scalar_select %p93, %s94, %s95
    %p99 = pneg %p93
    %p100 = scmp.eq.s32.totalorder %s32, 1
    %p101 = por %p99, %p100
    %p102 = scmp.ne.s32.totalorder %s94, %s97
    %p103 = scmp.eq.s32.totalorder %s32, 0
    %p104 = por %p102, %p103
    %p105 = scmp.ne.s32.totalorder %s94, %s97
    %p106 = scmp.eq.s32.totalorder %s37, 1
    %p107 = por %p105, %p106
    %p108 = scmp.ne.s32.totalorder %s97, %s98
    %p109 = scmp.eq.s32.totalorder %s37, 0
    %p110 = por %p108, %p109
    %p111 = scmp.ne.s32.totalorder %s97, %s98
    %p112 = scmp.eq.s32.totalorder %s38, 1
    %p113 = por %p111, %p112
    %p115 = scmp.ne.s32.totalorder %s98, %s114
    %p116 = scmp.eq.s32.totalorder %s38, 0
    %p117 = por %p115, %p116
    %s118 = ssub.s32 %s32, %s39
    %p119 = scmp.eq.s32.totalorder %s118, 0
    %s121 = sadd.s32 %s120, 1
    %s122 = scalar_select %p119, %s120, %s121
    %p125 = pneg %p119
    %p126 = scmp.eq.s32.totalorder %s32, 1
    %p127 = por %p125, %p126
    %p128 = scmp.ne.s32.totalorder %s120, %s123
    %p129 = scmp.eq.s32.totalorder %s32, 0
    %p130 = por %p128, %p129
    %p131 = scmp.ne.s32.totalorder %s120, %s123
    %p132 = scmp.eq.s32.totalorder %s37, 1
    %p133 = por %p131, %p132
    %p134 = scmp.ne.s32.totalorder %s123, %s124
    %p135 = scmp.eq.s32.totalorder %s37, 0
    %p136 = por %p134, %p135
    %p137 = scmp.ne.s32.totalorder %s123, %s124
    %p138 = scmp.eq.s32.totalorder %s38, 1
    %p139 = por %p137, %p138
    %p141 = scmp.ne.s32.totalorder %s124, %s140
    %p142 = scmp.eq.s32.totalorder %s38, 0
    %p143 = por %p141, %p142
    %s145 = sadd.s32 %s144, 1
    %p148 = scmp.eq.s32.totalorder %s32, 1
    %p149 = scmp.ne.s32.totalorder %s144, %s146
    %p150 = scmp.eq.s32.totalorder %s32, 0
    %p151 = por %p149, %p150
    %p152 = scmp.ne.s32.totalorder %s144, %s146
    %p153 = scmp.eq.s32.totalorder %s37, 1
    %p154 = por %p152, %p153
    %p155 = scmp.ne.s32.totalorder %s146, %s147
    %p156 = scmp.eq.s32.totalorder %s37, 0
    %p157 = por %p155, %p156
    %p158 = scmp.ne.s32.totalorder %s146, %s147
    %p159 = scmp.eq.s32.totalorder %s38, 1
    %p160 = por %p158, %p159
    %p162 = scmp.ne.s32.totalorder %s147, %s161
    %p163 = scmp.eq.s32.totalorder %s38, 0
    %p164 = por %p162, %p163
    %s166 = sadd.s32 %s165, 1
    %p169 = scmp.eq.s32.totalorder %s32, 1
    %p170 = scmp.ne.s32.totalorder %s165, %s167
    %p171 = scmp.eq.s32.totalorder %s32, 0
    %p172 = por %p170, %p171
    %p173 = scmp.ne.s32.totalorder %s165, %s167
    %p174 = scmp.eq.s32.totalorder %s37, 1
    %p175 = por %p173, %p174
    %p176 = scmp.ne.s32.totalorder %s167, %s168
    %p177 = scmp.eq.s32.totalorder %s37, 0
    %p178 = por %p176, %p177
    %p179 = scmp.ne.s32.totalorder %s167, %s168
    %p180 = scmp.eq.s32.totalorder %s38, 1
    %p181 = por %p179, %p180
    %p183 = scmp.ne.s32.totalorder %s168, %s182
    %p184 = scmp.eq.s32.totalorder %s38, 0
    %p185 = por %p183, %p184
    %s187 = sadd.s32 %s186, 1
    %p190 = scmp.eq.s32.totalorder %s32, 1
    %p191 = scmp.ne.s32.totalorder %s186, %s188
    %p192 = scmp.eq.s32.totalorder %s32, 0
    %p193 = por %p191, %p192
    %p194 = scmp.ne.s32.totalorder %s186, %s188
    %p195 = scmp.eq.s32.totalorder %s37, 1
    %p196 = por %p194, %p195
    %p197 = scmp.ne.s32.totalorder %s188, %s189
    %p198 = scmp.eq.s32.totalorder %s37, 0
    %p199 = por %p197, %p198
    %p200 = scmp.ne.s32.totalorder %s188, %s189
    %p201 = scmp.eq.s32.totalorder %s38, 1
    %p202 = por %p200, %p201
    %p204 = scmp.ne.s32.totalorder %s189, %s203
    %p205 = scmp.eq.s32.totalorder %s38, 0
    %p206 = por %p204, %p205
    %s208 = sadd.s32 %s207, 1
    %p211 = scmp.eq.s32.totalorder %s32, 1
    %p212 = scmp.ne.s32.totalorder %s207, %s209
    %p213 = scmp.eq.s32.totalorder %s32, 0
    %p214 = por %p212, %p213
    %p215 = scmp.ne.s32.totalorder %s207, %s209
    %p216 = scmp.eq.s32.totalorder %s37, 1
    %p217 = por %p215, %p216
    %p218 = scmp.ne.s32.totalorder %s209, %s210
    %p219 = scmp.eq.s32.totalorder %s37, 0
    %p220 = por %p218, %p219
    %p221 = scmp.ne.s32.totalorder %s209, %s210
    %p222 = scmp.eq.s32.totalorder %s38, 1
    %p223 = por %p221, %p222
    %p225 = scmp.ne.s32.totalorder %s210, %s224
    %p226 = scmp.eq.s32.totalorder %s38, 0
    %p227 = por %p225, %p226
    %s229 = sadd.s32 %s228, 1
    %p232 = scmp.eq.s32.totalorder %s32, 1
    %p233 = scmp.ne.s32.totalorder %s228, %s230
    %p234 = scmp.eq.s32.totalorder %s32, 0
    %p235 = por %p233, %p234
    %p236 = scmp.ne.s32.totalorder %s228, %s230
    %p237 = scmp.eq.s32.totalorder %s37, 1
    %p238 = por %p236, %p237
    %p239 = scmp.ne.s32.totalorder %s230, %s231
    %p240 = scmp.eq.s32.totalorder %s37, 0
    %p241 = por %p239, %p240
    %p242 = scmp.ne.s32.totalorder %s230, %s231
    %p243 = scmp.eq.s32.totalorder %s38, 1
    %p244 = por %p242, %p243
    %p246 = scmp.ne.s32.totalorder %s231, %s245
    %p247 = scmp.eq.s32.totalorder %s38, 0
    %p248 = por %p246, %p247
    %s250 = sadd.s32 %s249, 1
    %p253 = scmp.eq.s32.totalorder %s32, 1
    %p254 = scmp.ne.s32.totalorder %s249, %s251
    %p255 = scmp.eq.s32.totalorder %s32, 0
    %p256 = por %p254, %p255
    %p257 = scmp.ne.s32.totalorder %s249, %s251
    %p258 = scmp.eq.s32.totalorder %s37, 1
    %p259 = por %p257, %p258
    %p260 = scmp.ne.s32.totalorder %s251, %s252
    %p261 = scmp.eq.s32.totalorder %s37, 0
    %p262 = por %p260, %p261
    %p263 = scmp.ne.s32.totalorder %s251, %s252
    %p264 = scmp.eq.s32.totalorder %s38, 1
    %p265 = por %p263, %p264
    %p267 = scmp.ne.s32.totalorder %s252, %s266
    %p268 = scmp.eq.s32.totalorder %s38, 0
    %p269 = por %p267, %p268
    %s271 = sadd.s32 %s270, 1
    %p274 = scmp.eq.s32.totalorder %s32, 1
    %p275 = scmp.ne.s32.totalorder %s270, %s272
    %p276 = scmp.eq.s32.totalorder %s32, 0
    %p277 = por %p275, %p276
    %p278 = scmp.ne.s32.totalorder %s270, %s272
    %p279 = scmp.eq.s32.totalorder %s37, 1
    %p280 = por %p278, %p279
    %p281 = scmp.ne.s32.totalorder %s272, %s273
    %p282 = scmp.eq.s32.totalorder %s37, 0
    %p283 = por %p281, %p282
    %p284 = scmp.ne.s32.totalorder %s272, %s273
    %p285 = scmp.eq.s32.totalorder %s38, 1
    %p286 = por %p284, %p285
    %p288 = scmp.ne.s32.totalorder %s273, %s287
    %p289 = scmp.eq.s32.totalorder %s38, 0
    %p290 = por %p288, %p289
    %s292 = sadd.s32 %s291, 1
    %p295 = scmp.eq.s32.totalorder %s32, 1
    %p296 = scmp.ne.s32.totalorder %s291, %s293
    %p297 = scmp.eq.s32.totalorder %s32, 0
    %p298 = por %p296, %p297
    %p299 = scmp.ne.s32.totalorder %s291, %s293
    %p300 = scmp.eq.s32.totalorder %s37, 1
    %p301 = por %p299, %p300
    %p302 = scmp.ne.s32.totalorder %s293, %s294
    %p303 = scmp.eq.s32.totalorder %s37, 0
    %p304 = por %p302, %p303
    %p305 = scmp.ne.s32.totalorder %s293, %s294
    %p306 = scmp.eq.s32.totalorder %s38, 1
    %p307 = por %p305, %p306
    %p309 = scmp.ne.s32.totalorder %s294, %s308
    %p310 = scmp.eq.s32.totalorder %s38, 0
    %p311 = por %p309, %p310
    %s313 = sadd.s32 %s312, 1
    %p316 = scmp.eq.s32.totalorder %s32, 1
    %p317 = scmp.ne.s32.totalorder %s312, %s314
    %p318 = scmp.eq.s32.totalorder %s32, 0
    %p319 = por %p317, %p318
    %p320 = scmp.ne.s32.totalorder %s312, %s314
    %p321 = scmp.eq.s32.totalorder %s37, 1
    %p322 = por %p320, %p321
    %p323 = scmp.ne.s32.totalorder %s314, %s315
    %p324 = scmp.eq.s32.totalorder %s37, 0
    %p325 = por %p323, %p324
    %p326 = scmp.ne.s32.totalorder %s314, %s315
    %p327 = scmp.eq.s32.totalorder %s38, 1
    %p328 = por %p326, %p327
    %p330 = scmp.ne.s32.totalorder %s315, %s329
    %p331 = scmp.eq.s32.totalorder %s38, 0
    %p332 = por %p330, %p331
    %s334 = sadd.s32 %s333, 1
    %p337 = scmp.eq.s32.totalorder %s32, 1
    %p338 = scmp.ne.s32.totalorder %s333, %s335
    %p339 = scmp.eq.s32.totalorder %s32, 0
    %p340 = por %p338, %p339
    %p341 = scmp.ne.s32.totalorder %s333, %s335
    %p342 = scmp.eq.s32.totalorder %s37, 1
    %p343 = por %p341, %p342
    %p344 = scmp.ne.s32.totalorder %s335, %s336
    %p345 = scmp.eq.s32.totalorder %s37, 0
    %p346 = por %p344, %p345
    %p347 = scmp.ne.s32.totalorder %s335, %s336
    %p348 = scmp.eq.s32.totalorder %s38, 1
    %p349 = por %p347, %p348
    %p351 = scmp.ne.s32.totalorder %s336, %s350
    %p352 = scmp.eq.s32.totalorder %s38, 0
    %p353 = por %p351, %p352
    %s355 = sadd.s32 %s354, 1
    %p358 = scmp.eq.s32.totalorder %s32, 1
    %p359 = scmp.ne.s32.totalorder %s354, %s356
    %p360 = scmp.eq.s32.totalorder %s32, 0
    %p361 = por %p359, %p360
    %p362 = scmp.ne.s32.totalorder %s354, %s356
    %p363 = scmp.eq.s32.totalorder %s37, 1
    %p364 = por %p362, %p363
    %p365 = scmp.ne.s32.totalorder %s356, %s357
    %p366 = scmp.eq.s32.totalorder %s37, 0
    %p367 = por %p365, %p366
    %p368 = scmp.ne.s32.totalorder %s356, %s357
    %p369 = scmp.eq.s32.totalorder %s38, 1
    %p370 = por %p368, %p369
    %p372 = scmp.ne.s32.totalorder %s357, %s371
    %p373 = scmp.eq.s32.totalorder %s38, 0
    %p374 = por %p372, %p373
    %s376 = sadd.s32 %s375, 1
    %p379 = scmp.eq.s32.totalorder %s32, 1
    %p380 = scmp.ne.s32.totalorder %s375, %s377
    %p381 = scmp.eq.s32.totalorder %s32, 0
    %p382 = por %p380, %p381
    %p383 = scmp.ne.s32.totalorder %s375, %s377
    %p384 = scmp.eq.s32.totalorder %s37, 1
    %p385 = por %p383, %p384
    %p386 = scmp.ne.s32.totalorder %s377, %s378
    %p387 = scmp.eq.s32.totalorder %s37, 0
    %p388 = por %p386, %p387
    %p389 = scmp.ne.s32.totalorder %s377, %s378
    %p390 = scmp.eq.s32.totalorder %s38, 1
    %p391 = por %p389, %p390
    %p393 = scmp.ne.s32.totalorder %s378, %s392
    %p394 = scmp.eq.s32.totalorder %s38, 0
    %p395 = por %p393, %p394
    %s397 = sadd.s32 %s396, 1
    %p400 = scmp.eq.s32.totalorder %s32, 1
    %p401 = scmp.ne.s32.totalorder %s396, %s398
    %p402 = scmp.eq.s32.totalorder %s32, 0
    %p403 = por %p401, %p402
    %p404 = scmp.ne.s32.totalorder %s396, %s398
    %p405 = scmp.eq.s32.totalorder %s37, 1
    %p406 = por %p404, %p405
    %p407 = scmp.ne.s32.totalorder %s398, %s399
    %p408 = scmp.eq.s32.totalorder %s37, 0
    %p409 = por %p407, %p408
    %p410 = scmp.ne.s32.totalorder %s398, %s399
    %p411 = scmp.eq.s32.totalorder %s38, 1
    %p412 = por %p410, %p411
    %p414 = scmp.ne.s32.totalorder %s399, %s413
    %p415 = scmp.eq.s32.totalorder %s38, 0
    %p416 = por %p414, %p415
    %s418 = sadd.s32 %s417, 1
    %p421 = scmp.eq.s32.totalorder %s32, 1
    %p422 = scmp.ne.s32.totalorder %s417, %s419
    %p423 = scmp.eq.s32.totalorder %s32, 0
    %p424 = por %p422, %p423
    %p425 = scmp.ne.s32.totalorder %s417, %s419
    %p426 = scmp.eq.s32.totalorder %s37, 1
    %p427 = por %p425, %p426
    %p428 = scmp.ne.s32.totalorder %s419, %s420
    %p429 = scmp.eq.s32.totalorder %s37, 0
    %p430 = por %p428, %p429
    %p431 = scmp.ne.s32.totalorder %s419, %s420
    %p432 = scmp.eq.s32.totalorder %s38, 1
    %p433 = por %p431, %p432
    %p435 = scmp.ne.s32.totalorder %s420, %s434
    %p436 = scmp.eq.s32.totalorder %s38, 0
    %p437 = por %p435, %p436
    %s439 = sadd.s32 %s438, 1
    %p442 = scmp.eq.s32.totalorder %s32, 1
    %p443 = scmp.ne.s32.totalorder %s438, %s440
    %p444 = scmp.eq.s32.totalorder %s32, 0
    %p445 = por %p443, %p444
    %p446 = scmp.ne.s32.totalorder %s438, %s440
    %p447 = scmp.eq.s32.totalorder %s37, 1
    %p448 = por %p446, %p447
    %p449 = scmp.ne.s32.totalorder %s440, %s441
    %p450 = scmp.eq.s32.totalorder %s37, 0
    %p451 = por %p449, %p450
    %p452 = scmp.ne.s32.totalorder %s440, %s441
    %p453 = scmp.eq.s32.totalorder %s38, 1
    %p454 = por %p452, %p453
    %p456 = scmp.ne.s32.totalorder %s441, %s455
    %p457 = scmp.eq.s32.totalorder %s38, 0
    %p458 = por %p456, %p457
    %s460 = sadd.s32 %s459, 1
    %p463 = scmp.eq.s32.totalorder %s32, 1
    %p464 = scmp.ne.s32.totalorder %s459, %s461
    %p465 = scmp.eq.s32.totalorder %s32, 0
    %p466 = por %p464, %p465
    %p467 = scmp.ne.s32.totalorder %s459, %s461
    %p468 = scmp.eq.s32.totalorder %s37, 1
    %p469 = por %p467, %p468
    %p470 = scmp.ne.s32.totalorder %s461, %s462
    %p471 = scmp.eq.s32.totalorder %s37, 0
    %p472 = por %p470, %p471
    %p473 = scmp.ne.s32.totalorder %s461, %s462
    %p474 = scmp.eq.s32.totalorder %s38, 1
    %p475 = por %p473, %p474
    %p477 = scmp.ne.s32.totalorder %s462, %s476
    %p478 = scmp.eq.s32.totalorder %s38, 0
    %p479 = por %p477, %p478
    %s481 = sadd.s32 %s480, 1
    %p484 = scmp.eq.s32.totalorder %s32, 1
    %p485 = scmp.ne.s32.totalorder %s480, %s482
    %p486 = scmp.eq.s32.totalorder %s32, 0
    %p487 = por %p485, %p486
    %p488 = scmp.ne.s32.totalorder %s480, %s482
    %p489 = scmp.eq.s32.totalorder %s37, 1
    %p490 = por %p488, %p489
    %p491 = scmp.ne.s32.totalorder %s482, %s483
    %p492 = scmp.eq.s32.totalorder %s37, 0
    %p493 = por %p491, %p492
    %p494 = scmp.ne.s32.totalorder %s482, %s483
    %p495 = scmp.eq.s32.totalorder %s38, 1
    %p496 = por %p494, %p495
    %p498 = scmp.ne.s32.totalorder %s483, %s497
    %p499 = scmp.eq.s32.totalorder %s38, 0
    %p500 = por %p498, %p499
    %s502 = sadd.s32 %s501, 1
    %p505 = scmp.eq.s32.totalorder %s32, 1
    %p506 = scmp.ne.s32.totalorder %s501, %s503
    %p507 = scmp.eq.s32.totalorder %s32, 0
    %p508 = por %p506, %p507
    %p509 = scmp.ne.s32.totalorder %s501, %s503
    %p510 = scmp.eq.s32.totalorder %s37, 1
    %p511 = por %p509, %p510
    %p512 = scmp.ne.s32.totalorder %s503, %s504
    %p513 = scmp.eq.s32.totalorder %s37, 0
    %p514 = por %p512, %p513
    %p515 = scmp.ne.s32.totalorder %s503, %s504
    %p516 = scmp.eq.s32.totalorder %s38, 1
    %p517 = por %p515, %p516
    %p519 = scmp.ne.s32.totalorder %s504, %s518
    %p520 = scmp.eq.s32.totalorder %s38, 0
    %p521 = por %p519, %p520
    %s523 = sadd.s32 %s522, 1
    %p526 = scmp.eq.s32.totalorder %s32, 1
    %p527 = scmp.ne.s32.totalorder %s522, %s524
    %p528 = scmp.eq.s32.totalorder %s32, 0
    %p529 = por %p527, %p528
    %p530 = scmp.ne.s32.totalorder %s522, %s524
    %p531 = scmp.eq.s32.totalorder %s37, 1
    %p532 = por %p530, %p531
    %p533 = scmp.ne.s32.totalorder %s524, %s525
    %p534 = scmp.eq.s32.totalorder %s37, 0
    %p535 = por %p533, %p534
    %p536 = scmp.ne.s32.totalorder %s524, %s525
    %p537 = scmp.eq.s32.totalorder %s38, 1
    %p538 = por %p536, %p537
    %p540 = scmp.ne.s32.totalorder %s525, %s539
    %p541 = scmp.eq.s32.totalorder %s38, 0
    %p542 = por %p540, %p541
    %s544 = sadd.s32 %s543, 1
    %p547 = scmp.eq.s32.totalorder %s32, 1
    %p548 = scmp.ne.s32.totalorder %s543, %s545
    %p549 = scmp.eq.s32.totalorder %s32, 0
    %p550 = por %p548, %p549
    %p551 = scmp.ne.s32.totalorder %s543, %s545
    %p552 = scmp.eq.s32.totalorder %s37, 1
    %p553 = por %p551, %p552
    %p554 = scmp.ne.s32.totalorder %s545, %s546
    %p555 = scmp.eq.s32.totalorder %s37, 0
    %p556 = por %p554, %p555
    %p557 = scmp.ne.s32.totalorder %s545, %s546
    %p558 = scmp.eq.s32.totalorder %s38, 1
    %p559 = por %p557, %p558
    %p561 = scmp.ne.s32.totalorder %s546, %s560
    %p562 = scmp.eq.s32.totalorder %s38, 0
    %p563 = por %p561, %p562
    %s565 = sadd.s32 %s564, 1
    %p568 = scmp.eq.s32.totalorder %s32, 1
    %p569 = scmp.ne.s32.totalorder %s564, %s566
    %p570 = scmp.eq.s32.totalorder %s32, 0
    %p571 = por %p569, %p570
    %p572 = scmp.ne.s32.totalorder %s564, %s566
    %p573 = scmp.eq.s32.totalorder %s37, 1
    %p574 = por %p572, %p573
    %p575 = scmp.ne.s32.totalorder %s566, %s567
    %p576 = scmp.eq.s32.totalorder %s37, 0
    %p577 = por %p575, %p576
    %p578 = scmp.ne.s32.totalorder %s566, %s567
    %p579 = scmp.eq.s32.totalorder %s38, 1
    %p580 = por %p578, %p579
    %p582 = scmp.ne.s32.totalorder %s567, %s581
    %p583 = scmp.eq.s32.totalorder %s38, 0
    %p584 = por %p582, %p583
    %s586 = sadd.s32 %s585, 1
    %p589 = scmp.eq.s32.totalorder %s32, 1
    %p590 = scmp.ne.s32.totalorder %s585, %s587
    %p591 = scmp.eq.s32.totalorder %s32, 0
    %p592 = por %p590, %p591
    %p593 = scmp.ne.s32.totalorder %s585, %s587
    %p594 = scmp.eq.s32.totalorder %s37, 1
    %p595 = por %p593, %p594
    %p596 = scmp.ne.s32.totalorder %s587, %s588
    %p597 = scmp.eq.s32.totalorder %s37, 0
    %p598 = por %p596, %p597
    %p599 = scmp.ne.s32.totalorder %s587, %s588
    %p600 = scmp.eq.s32.totalorder %s38, 1
    %p601 = por %p599, %p600
    %p603 = scmp.ne.s32.totalorder %s588, %s602
    %p604 = scmp.eq.s32.totalorder %s38, 0
    %p605 = por %p603, %p604
    %s606 = ssub.s32 %s32, %s39
    %p607 = scmp.eq.s32.totalorder %s606, 0
    %s609 = sadd.s32 %s608, 1
    %s610 = scalar_select %p607, %s608, %s609
    %p613 = pneg %p607
    %p614 = scmp.eq.s32.totalorder %s32, 1
    %p615 = por %p613, %p614
    %p616 = scmp.ne.s32.totalorder %s608, %s611
    %p617 = scmp.eq.s32.totalorder %s32, 0
    %p618 = por %p616, %p617
    %p619 = scmp.ne.s32.totalorder %s608, %s611
    %p620 = scmp.eq.s32.totalorder %s37, 1
    %p621 = por %p619, %p620
    %p622 = scmp.ne.s32.totalorder %s611, %s612
    %p623 = scmp.eq.s32.totalorder %s37, 0
    %p624 = por %p622, %p623
    %p625 = scmp.ne.s32.totalorder %s611, %s612
    %p626 = scmp.eq.s32.totalorder %s38, 1
    %p627 = por %p625, %p626
    %p629 = scmp.ne.s32.totalorder %s612, %s628
    %p630 = scmp.eq.s32.totalorder %s38, 0
    %p631 = por %p629, %p630
    %p632 = scmp.le.s32.totalorder 1, %s32
    %p633 = scmp.lt.s32.totalorder %s32, 3
    %p634 = pnand %p632, %p633
    %p635 = pneg %p634
    // Predicated region
    $region9: #{_lambda_.4} parent=5 // pred_check
      _
    $region10: #{_lambda_.4} parent=5 // pred_check_branch
      %637 = sbr.rel (%p634) target = $region12
    $region11: #{_lambda_.4} parent=5 // pred_region
      %s638 = ssub.s32 %s32, 1
      // Predicated region
      $region13: #{_lambda_.4} parent=11 // pred_check
        %p639 = pneg %p157
      $region14: #{_lambda_.4} parent=11 // pred_check_branch
        %641 = sbr.rel (%p639) target = $region16
      $region15: #{_lambda_.4} parent=11 // pred_region
        _
      $region16: #{_lambda_.4} parent=11 // pred_fallthru
        _
      // Predicated region
      $region17: #{_lambda_.4} parent=11 // pred_check
        %p642 = pneg %p178
      $region18: #{_lambda_.4} parent=11 // pred_check_branch
        %644 = sbr.rel (%p642) target = $region20
      $region19: #{_lambda_.4} parent=11 // pred_region
        _
      $region20: #{_lambda_.4} parent=11 // pred_fallthru
        _
      // Predicated region
      $region21: #{_lambda_.4} parent=11 // pred_check
        %p645 = pneg %p199
      $region22: #{_lambda_.4} parent=11 // pred_check_branch
        %647 = sbr.rel (%p645) target = $region24
      $region23: #{_lambda_.4} parent=11 // pred_region
        _
      $region24: #{_lambda_.4} parent=11 // pred_fallthru
        _
      // Predicated region
      $region25: #{_lambda_.4} parent=11 // pred_check
        %p648 = pneg %p220
      $region26: #{_lambda_.4} parent=11 // pred_check_branch
        %650 = sbr.rel (%p648) target = $region28
      $region27: #{_lambda_.4} parent=11 // pred_region
        _
      $region28: #{_lambda_.4} parent=11 // pred_fallthru
        _
      // Predicated region
      $region29: #{_lambda_.4} parent=11 // pred_check
        %p651 = pneg %p241
      $region30: #{_lambda_.4} parent=11 // pred_check_branch
        %653 = sbr.rel (%p651) target = $region32
      $region31: #{_lambda_.4} parent=11 // pred_region
        _
      $region32: #{_lambda_.4} parent=11 // pred_fallthru
        _
      // Predicated region
      $region33: #{_lambda_.4} parent=11 // pred_check
        %p654 = pneg %p262
      $region34: #{_lambda_.4} parent=11 // pred_check_branch
        %656 = sbr.rel (%p654) target = $region36
      $region35: #{_lambda_.4} parent=11 // pred_region
        _
      $region36: #{_lambda_.4} parent=11 // pred_fallthru
        _
      // Predicated region
      $region37: #{_lambda_.4} parent=11 // pred_check
        %p657 = pneg %p283
      $region38: #{_lambda_.4} parent=11 // pred_check_branch
        %659 = sbr.rel (%p657) target = $region40
      $region39: #{_lambda_.4} parent=11 // pred_region
        _
      $region40: #{_lambda_.4} parent=11 // pred_fallthru
        _
      // Predicated region
      $region41: #{_lambda_.4} parent=11 // pred_check
        %p660 = pneg %p304
      $region42: #{_lambda_.4} parent=11 // pred_check_branch
        %662 = sbr.rel (%p660) target = $region44
      $region43: #{_lambda_.4} parent=11 // pred_region
        _
      $region44: #{_lambda_.4} parent=11 // pred_fallthru
        _
      // Predicated region
      $region45: #{_lambda_.4} parent=11 // pred_check
        %p663 = pneg %p325
      $region46: #{_lambda_.4} parent=11 // pred_check_branch
        %665 = sbr.rel (%p663) target = $region48
      $region47: #{_lambda_.4} parent=11 // pred_region
        _
      $region48: #{_lambda_.4} parent=11 // pred_fallthru
        _
      // Predicated region
      $region49: #{_lambda_.4} parent=11 // pred_check
        %p666 = pneg %p346
      $region50: #{_lambda_.4} parent=11 // pred_check_branch
        %668 = sbr.rel (%p666) target = $region52
      $region51: #{_lambda_.4} parent=11 // pred_region
        _
      $region52: #{_lambda_.4} parent=11 // pred_fallthru
        _
      // Predicated region
      $region53: #{_lambda_.4} parent=11 // pred_check
        %p669 = pneg %p367
      $region54: #{_lambda_.4} parent=11 // pred_check_branch
        %671 = sbr.rel (%p669) target = $region56
      $region55: #{_lambda_.4} parent=11 // pred_region
        _
      $region56: #{_lambda_.4} parent=11 // pred_fallthru
        _
      // Predicated region
      $region57: #{_lambda_.4} parent=11 // pred_check
        %p672 = pneg %p388
      $region58: #{_lambda_.4} parent=11 // pred_check_branch
        %674 = sbr.rel (%p672) target = $region60
      $region59: #{_lambda_.4} parent=11 // pred_region
        _
      $region60: #{_lambda_.4} parent=11 // pred_fallthru
        _
      // Predicated region
      $region61: #{_lambda_.4} parent=11 // pred_check
        %p675 = pneg %p409
      $region62: #{_lambda_.4} parent=11 // pred_check_branch
        %677 = sbr.rel (%p675) target = $region64
      $region63: #{_lambda_.4} parent=11 // pred_region
        _
      $region64: #{_lambda_.4} parent=11 // pred_fallthru
        _
      // Predicated region
      $region65: #{_lambda_.4} parent=11 // pred_check
        %p678 = pneg %p430
      $region66: #{_lambda_.4} parent=11 // pred_check_branch
        %680 = sbr.rel (%p678) target = $region68
      $region67: #{_lambda_.4} parent=11 // pred_region
        _
      $region68: #{_lambda_.4} parent=11 // pred_fallthru
        _
      // Predicated region
      $region69: #{_lambda_.4} parent=11 // pred_check
        %p681 = pneg %p451
      $region70: #{_lambda_.4} parent=11 // pred_check_branch
        %683 = sbr.rel (%p681) target = $region72
      $region71: #{_lambda_.4} parent=11 // pred_region
        _
      $region72: #{_lambda_.4} parent=11 // pred_fallthru
        _
      // Predicated region
      $region73: #{_lambda_.4} parent=11 // pred_check
        %p684 = pneg %p472
      $region74: #{_lambda_.4} parent=11 // pred_check_branch
        %686 = sbr.rel (%p684) target = $region76
      $region75: #{_lambda_.4} parent=11 // pred_region
        _
      $region76: #{_lambda_.4} parent=11 // pred_fallthru
        _
      // Predicated region
      $region77: #{_lambda_.4} parent=11 // pred_check
        %p687 = pneg %p493
      $region78: #{_lambda_.4} parent=11 // pred_check_branch
        %689 = sbr.rel (%p687) target = $region80
      $region79: #{_lambda_.4} parent=11 // pred_region
        _
      $region80: #{_lambda_.4} parent=11 // pred_fallthru
        _
      // Predicated region
      $region81: #{_lambda_.4} parent=11 // pred_check
        %p690 = pneg %p514
      $region82: #{_lambda_.4} parent=11 // pred_check_branch
        %692 = sbr.rel (%p690) target = $region84
      $region83: #{_lambda_.4} parent=11 // pred_region
        _
      $region84: #{_lambda_.4} parent=11 // pred_fallthru
        _
      // Predicated region
      $region85: #{_lambda_.4} parent=11 // pred_check
        %p693 = pneg %p535
      $region86: #{_lambda_.4} parent=11 // pred_check_branch
        %695 = sbr.rel (%p693) target = $region88
      $region87: #{_lambda_.4} parent=11 // pred_region
        _
      $region88: #{_lambda_.4} parent=11 // pred_fallthru
        _
      // Predicated region
      $region89: #{_lambda_.4} parent=11 // pred_check
        %p696 = pneg %p556
      $region90: #{_lambda_.4} parent=11 // pred_check_branch
        %698 = sbr.rel (%p696) target = $region92
      $region91: #{_lambda_.4} parent=11 // pred_region
        _
      $region92: #{_lambda_.4} parent=11 // pred_fallthru
        _
      // Predicated region
      $region93: #{_lambda_.4} parent=11 // pred_check
        %p699 = pneg %p577
      $region94: #{_lambda_.4} parent=11 // pred_check_branch
        %701 = sbr.rel (%p699) target = $region96
      $region95: #{_lambda_.4} parent=11 // pred_region
        _
      $region96: #{_lambda_.4} parent=11 // pred_fallthru
        _
      // Predicated region
      $region97: #{_lambda_.4} parent=11 // pred_check
        %p702 = pneg %p598
      $region98: #{_lambda_.4} parent=11 // pred_check_branch
        %704 = sbr.rel (%p702) target = $region100
      $region99: #{_lambda_.4} parent=11 // pred_region
        _
      $region100: #{_lambda_.4} parent=11 // pred_fallthru
        _
    $region12: #{_lambda_.4} parent=5 // pred_fallthru
      _
    %p705 = scmp.lt.s32.totalorder %s32, 2
    // Predicated region
    $region101: #{_lambda_.4} parent=5 // pred_check
      %p706 = pneg %p705
    $region102: #{_lambda_.4} parent=5 // pred_check_branch
      %708 = sbr.rel (%p706) target = $region104
    $region103: #{_lambda_.4} parent=5 // pred_region
      // Predicated region
      $region105: #{_lambda_.4} parent=103 // pred_check
        %p709 = pneg %p52
      $region106: #{_lambda_.4} parent=103 // pred_check_branch
        %711 = sbr.rel (%p709) target = $region108
      $region107: #{_lambda_.4} parent=103 // pred_region
        %p712 = scmp.lt.s32.totalorder %s32, 1
        %s713 = scalar_select %p712, %s32, 1
        %s714 = smul.addr %s713, 8
        %s715 = scalar_lea.vmem %s0, %s714
      $region108: #{_lambda_.4} parent=103 // pred_fallthru
        _
      // Predicated region
      $region109: #{_lambda_.4} parent=103 // pred_check
        %p716 = pneg %p78
      $region110: #{_lambda_.4} parent=103 // pred_check_branch
        %718 = sbr.rel (%p716) target = $region112
      $region111: #{_lambda_.4} parent=103 // pred_region
        %p719 = scmp.lt.s32.totalorder %s32, 1
        %s720 = scalar_select %p719, %s32, 1
        %s721 = smul.addr %s720, 2
        %s722 = smul.addr %s721, 8
        %s723 = scalar_lea.vmem %s1, %s722
      $region112: #{_lambda_.4} parent=103 // pred_fallthru
        _
      // Predicated region
      $region113: #{_lambda_.4} parent=103 // pred_check
        %p724 = pneg %p104
      $region114: #{_lambda_.4} parent=103 // pred_check_branch
        %726 = sbr.rel (%p724) target = $region116
      $region115: #{_lambda_.4} parent=103 // pred_region
        %p727 = scmp.lt.s32.totalorder %s32, 1
        %s728 = scalar_select %p727, %s32, 1
        %s729 = scalar_lea.vmem %s2, %s728
      $region116: #{_lambda_.4} parent=103 // pred_fallthru
        _
      // Predicated region
      $region117: #{_lambda_.4} parent=103 // pred_check
        %p730 = pneg %p130
      $region118: #{_lambda_.4} parent=103 // pred_check_branch
        %732 = sbr.rel (%p730) target = $region120
      $region119: #{_lambda_.4} parent=103 // pred_region
        %p733 = scmp.lt.s32.totalorder %s32, 1
        %s734 = scalar_select %p733, %s32, 1
        %s735 = scalar_lea.vmem %s3, %s734
      $region120: #{_lambda_.4} parent=103 // pred_fallthru
        _
    $region104: #{_lambda_.4} parent=5 // pred_fallthru
      _
    %p736 = scmp.le.s32.totalorder 1, %s32
    %p737 = scmp.lt.s32.totalorder %s32, 3
    %p738 = pnand %p736, %p737
    %p739 = pneg %p738
    // Predicated region
    $region121: #{_lambda_.4} parent=5 // pred_check
      _
    $region122: #{_lambda_.4} parent=5 // pred_check_branch
      %741 = sbr.rel (%p738) target = $region124
    $region123: #{_lambda_.4} parent=5 // pred_region
      %s742 = ssub.s32 %s32, 1
      %p743 = scmp.lt.s32.totalorder %s37, 1
      %s744 = scalar_select %p743, %s37, 1
      %s745 = smul.addr %s744, 8
      %s746 = scalar_lea.vmem %s0, %s745
      %p747 = pneg %p58
      %p748 = pneg %p55
      %p749 = scmp.lt.s32.totalorder %s37, 1
      %s750 = scalar_select %p749, %s37, 1
      %s751 = smul.addr %s750, 2
      %s752 = smul.addr %s751, 8
      %s753 = scalar_lea.vmem %s1, %s752
      %p754 = pneg %p84
      %p755 = pneg %p81
      %p756 = scmp.lt.s32.totalorder %s37, 1
      %s757 = scalar_select %p756, %s37, 1
      %s758 = scalar_lea.vmem %s2, %s757
      %p759 = pneg %p110
      %p760 = pneg %p107
      %p761 = scmp.lt.s32.totalorder %s37, 1
      %s762 = scalar_select %p761, %s37, 1
      %s763 = scalar_lea.vmem %s3, %s762
      %p764 = pneg %p136
      %p765 = pneg %p133
      %p766 = pneg %p157
      %p767 = pneg %p154
      %p768 = pneg %p178
      %p769 = pneg %p175
      %p770 = pneg %p199
      %p771 = pneg %p196
      %p772 = pneg %p220
      %p773 = pneg %p217
      %p774 = pneg %p241
      %p775 = pneg %p238
      %p776 = pneg %p262
      %p777 = pneg %p259
      %p778 = pneg %p283
      %p779 = pneg %p280
      %p780 = pneg %p304
      %p781 = pneg %p301
      %p782 = pneg %p325
      %p783 = pneg %p322
      %p784 = pneg %p346
      %p785 = pneg %p343
      %p786 = pneg %p367
      %p787 = pneg %p364
      %p788 = pneg %p388
      %p789 = pneg %p385
      %p790 = pneg %p409
      %p791 = pneg %p406
      %p792 = pneg %p430
      %p793 = pneg %p427
      %p794 = pneg %p451
      %p795 = pneg %p448
      %p796 = pneg %p472
      %p797 = pneg %p469
      %p798 = pneg %p493
      %p799 = pneg %p490
      %p800 = pneg %p514
      %p801 = pneg %p511
      %p802 = pneg %p535
      %p803 = pneg %p532
      %p804 = pneg %p556
      %p805 = pneg %p553
      %p806 = pneg %p577
      %p807 = pneg %p574
      %p808 = pneg %p598
      %p809 = pneg %p595
      %p810 = pneg %p624
      %p811 = pneg %p621
      %p812 = scmp.lt.s32.totalorder %s37, 1
      %s813 = scalar_select %p812, %s37, 1
      %s814 = smul.addr %s813, 8
      %s815 = scalar_lea.vmem %s26, %s814
      %p816 = scmp.lt.s32.totalorder %s37, 1
      %s817 = scalar_select %p816, %s37, 1
      %s818 = smul.addr %s817, 8
      %s819 = scalar_lea.vmem %s0, %s818
      %p820 = scmp.lt.s32.totalorder %s37, 1
      %s821 = scalar_select %p820, %s37, 1
      %s822 = smul.addr %s821, 2
      %s823 = smul.addr %s822, 8
      %s824 = scalar_lea.vmem %s1, %s823
      %p825 = scmp.lt.s32.totalorder %s37, 1
      %s826 = scalar_select %p825, %s37, 1
      %s827 = scalar_lea.vmem %s2, %s826
      %p828 = scmp.lt.s32.totalorder %s37, 1
      %s829 = scalar_select %p828, %s37, 1
      %s830 = scalar_lea.vmem %s3, %s829
      %p831 = scmp.lt.s32.totalorder %s37, 1
      %s832 = scalar_select %p831, %s37, 1
      %s833 = smul.addr %s832, 8
      %s834 = scalar_lea.vmem %s26, %s833
      %v836 = vld [vmem:[%s819] sm:$0xff]
      %v837 = vld [vmem:[%s824] sm:$0xff]
      %v838 = vld [vmem:[%s824 + $0x8] sm:$0xff]
      %v839 = vld [vmem:[%s827] sm:$0x1]
      %v840 = vld [vmem:[%s830] sm:$0x1]
      %v841 = vld [vmem:[%s4] sm:$0xf]
      %v842 = vld [vmem:[%s4 + $0x4] sm:$0xf]
      %v843 = vld [vmem:[%s4 + $0x8] sm:$0xf]
      %v844 = vld [vmem:[%s4 + $0xc] sm:$0xf]
      %v845 = vld [vmem:[%s5] sm:$0x1]
      %v846 = vld [vmem:[%s6] sm:$0xf]
      %v847 = vld [vmem:[%s6 + $0x4] sm:$0xf]
      %v848 = vld [vmem:[%s6 + $0x8] sm:$0xf]
      %v849 = vld [vmem:[%s6 + $0xc] sm:$0xf]
      %v850 = vld [vmem:[%s7] sm:$0x1]
      %v851 = vld [vmem:[%s8] sm:$0xf]
      %v852 = vld [vmem:[%s8 + $0x4] sm:$0xf]
      %v853 = vld [vmem:[%s8 + $0x8] sm:$0xf]
      %v854 = vld [vmem:[%s8 + $0xc] sm:$0xf]
      %v855 = vld [vmem:[%s9] sm:$0x1]
      %v856 = vpack.c.bf16 %v836, %v836
      %v858 = vlaneseq
      %v859 = vshrl.u32 %v858, 7
      %v860 = vsub.s32 0, %v859
      %v861 = vrot.slane %v845, %v860
      %v867 = vunpack.c.l.b16 %v841
      %v868 = vunpack.c.l.b16 %v842
      %v869 = vunpack.c.l.b16 %v843
      %v870 = vunpack.c.l.b16 %v844
      %v871 = vpack.c.b16 %v868, %v867
      %v872 = vpack.c.b16 %v870, %v869
      %vm875 = vcmask 261120
      %v877 = vsel %vm875, %v856, 0
      %879 = vmatprep.subr.bf16.mxu0 0
      %880 = vmatpush1.bf16.msra.mxu0 %v871
      %881 = vmatprep.subr.bf16.mxu0 0
      %882 = vmatpush1.bf16.msra.mxu0 %v872
      %883 = vmatprep.subr.bf16.mxu0 0
      %884 = vmatpush1.bf16.msra.mxu0 0
      %885 = vmatprep.subr.bf16.mxu0 0
      %886 = vmatpush1.bf16.msra.mxu0 0
      %887 = vmatprep.subr.bf16.mxu0 0
      %888 = vmatpush1.bf16.msra.mxu0 0
      %889 = vmatprep.subr.bf16.mxu0 0
      %890 = vmatpush1.bf16.msra.mxu0 0
      %891 = vmatprep.subr.bf16.mxu0 0
      %892 = vmatpush1.bf16.msra.mxu0 0
      %893 = vmatprep.subr.bf16.mxu0 0
      %894 = vmatpush1.bf16.msra.mxu0 0
      %895 = vmatprep.subr.bf16.mxu0 0
      %896 = vmatpush1.bf16.msra.mxu0 0
      %897 = vmatprep.subr.bf16.mxu0 0
      %898 = vmatpush1.bf16.msra.mxu0 0
      %899 = vmatprep.subr.bf16.mxu0 0
      %900 = vmatpush1.bf16.msra.mxu0 0
      %901 = vmatprep.subr.bf16.mxu0 0
      %902 = vmatpush1.bf16.msra.mxu0 0
      %903 = vmatprep.subr.bf16.mxu0 0
      %904 = vmatpush1.bf16.msra.mxu0 0
      %905 = vmatprep.subr.bf16.mxu0 0
      %906 = vmatpush1.bf16.msra.mxu0 0
      %907 = vmatprep.subr.bf16.mxu0 0
      %908 = vmatpush1.bf16.msra.mxu0 0
      %909 = vmatprep.subr.bf16.mxu0 0
      %910 = vmatpush1.bf16.msra.mxu0 0
      %911 = vmatprep.mubr.bf16.mxu0 0
      %912 = vmatmul.mubr.bf16.gmra.mrb[0].mxu0 %v877
      %v913 = vpop.f32.mrb[0].mxu0
      %v914 = vadd.f32 %v861, %v913
      %v915 = vpop.f32.mrb[0].mxu0
      %v916 = vpop.f32.mrb[0].mxu0
      %v917 = vpop.f32.mrb[0].mxu0
      %918 = vdwg.mxu0
      %v920 = vlaneseq
      %v921 = vshrl.u32 %v920, 7
      %v922 = vsub.s32 0, %v921
      %v923 = vrot.slane %v850, %v922
      %v929 = vunpack.c.l.b16 %v846
      %v930 = vunpack.c.l.b16 %v847
      %v931 = vunpack.c.l.b16 %v848
      %v932 = vunpack.c.l.b16 %v849
      %v933 = vpack.c.b16 %v930, %v929
      %v934 = vpack.c.b16 %v932, %v931
      %937 = vmatprep.subr.bf16.mxu0 0
      %938 = vmatpush1.bf16.msra.mxu0 %v933
      %939 = vmatprep.subr.bf16.mxu0 0
      %940 = vmatpush1.bf16.msra.mxu0 %v934
      %941 = vmatprep.subr.bf16.mxu0 0
      %942 = vmatpush1.bf16.msra.mxu0 0
      %943 = vmatprep.subr.bf16.mxu0 0
      %944 = vmatpush1.bf16.msra.mxu0 0
      %945 = vmatprep.subr.bf16.mxu0 0
      %946 = vmatpush1.bf16.msra.mxu0 0
      %947 = vmatprep.subr.bf16.mxu0 0
      %948 = vmatpush1.bf16.msra.mxu0 0
      %949 = vmatprep.subr.bf16.mxu0 0
      %950 = vmatpush1.bf16.msra.mxu0 0
      %951 = vmatprep.subr.bf16.mxu0 0
      %952 = vmatpush1.bf16.msra.mxu0 0
      %953 = vmatprep.subr.bf16.mxu0 0
      %954 = vmatpush1.bf16.msra.mxu0 0
      %955 = vmatprep.subr.bf16.mxu0 0
      %956 = vmatpush1.bf16.msra.mxu0 0
      %957 = vmatprep.subr.bf16.mxu0 0
      %958 = vmatpush1.bf16.msra.mxu0 0
      %959 = vmatprep.subr.bf16.mxu0 0
      %960 = vmatpush1.bf16.msra.mxu0 0
      %961 = vmatprep.subr.bf16.mxu0 0
      %962 = vmatpush1.bf16.msra.mxu0 0
      %963 = vmatprep.subr.bf16.mxu0 0
      %964 = vmatpush1.bf16.msra.mxu0 0
      %965 = vmatprep.subr.bf16.mxu0 0
      %966 = vmatpush1.bf16.msra.mxu0 0
      %967 = vmatprep.subr.bf16.mxu0 0
      %968 = vmatpush1.bf16.msra.mxu0 0
      %969 = vmatprep.mubr.bf16.mxu0 0
      %970 = vmatmul.mubr.bf16.gmra.mrb[0].mxu0 %v877
      %v971 = vpop.f32.mrb[0].mxu0
      %v972 = vadd.f32 %v923, %v971
      %v973 = vpop.f32.mrb[0].mxu0
      %v974 = vpop.f32.mrb[0].mxu0
      %v975 = vpop.f32.mrb[0].mxu0
      %976 = vdwg.mxu0
      %v977 = vmul.f32 %v914, 0.35355338
      %v978 = vpack.c.bf16 %v977, %v977
      %v979 = vpack.c.bf16 %v972, %v972
      %v981 = vlaneseq
      %v982 = vshrl.u32 %v981, 7
      %v983 = vsub.s32 0, %v982
      %v984 = vrot.slane %v839, %v983
      %vm986 = vcmask 64512
      %v988 = vsel %vm986, %v978, 0
      %v991 = vsel %vm986, %v979, 0
      %993 = vmatprep.subr.bf16.mxu0 0
      %994 = vmatpush1.bf16.xpose.msra.mxu0 %v991
      %995 = vmatprep.subr.bf16.mxu0 0
      %996 = vmatpush1.bf16.xpose.msra.mxu0 0
      %997 = vmatprep.subr.bf16.mxu0 0
      %998 = vmatpush1.bf16.xpose.msra.mxu0 0
      %999 = vmatprep.subr.bf16.mxu0 0
      %1000 = vmatpush1.bf16.xpose.msra.mxu0 0
      %1001 = vmatprep.subr.bf16.mxu0 0
      %1002 = vmatpush1.bf16.xpose.msra.mxu0 0
      %1003 = vmatprep.subr.bf16.mxu0 0
      %1004 = vmatpush1.bf16.xpose.msra.mxu0 0
      %1005 = vmatprep.subr.bf16.mxu0 0
      %1006 = vmatpush1.bf16.xpose.msra.mxu0 0
      %1007 = vmatprep.subr.bf16.mxu0 0
      %1008 = vmatpush1.bf16.xpose.msra.mxu0 0
      %1009 = vmatprep.subr.bf16.mxu0 0
      %1010 = vmatpush1.bf16.xpose.msra.mxu0 0
      %1011 = vmatprep.subr.bf16.mxu0 0
      %1012 = vmatpush1.bf16.xpose.msra.mxu0 0
      %1013 = vmatprep.subr.bf16.mxu0 0
      %1014 = vmatpush1.bf16.xpose.msra.mxu0 0
      %1015 = vmatprep.subr.bf16.mxu0 0
      %1016 = vmatpush1.bf16.xpose.msra.mxu0 0
      %1017 = vmatprep.subr.bf16.mxu0 0
      %1018 = vmatpush1.bf16.xpose.msra.mxu0 0
      %1019 = vmatprep.subr.bf16.mxu0 0
      %1020 = vmatpush1.bf16.xpose.msra.mxu0 0
      %1021 = vmatprep.subr.bf16.mxu0 0
      %1022 = vmatpush1.bf16.xpose.msra.mxu0 0
      %1023 = vmatprep.subr.bf16.mxu0 0
      %1024 = vmatpush1.bf16.xpose.msra.mxu0 0
      %1025 = vmatprep.mubr.bf16.mxu0 0
      %1026 = vmatmul.mubr.bf16.gmra.mrb[0].mxu0 %v988
      %v1027 = vpop.f32.mrb[0].mxu0
      %v1028 = vadd.f32 %v984, %v1027
      %v1029 = vpop.f32.mrb[0].mxu0
      %v1030 = vpop.f32.mrb[0].mxu0
      %v1031 = vpop.f32.mrb[0].mxu0
      %1032 = vdwg.mxu0
      %v1033 = vsel %vm986, %v1028, -inf
      %1034 = vmax.xlane.f32.xlu0 %v1033
      %v1035 = vpop.xlane.xlu0 %1034
      %v1036 = vsub.f32 %v1028, %v1035
      %v1037 = vmul.f32 %v1036, 1.442695
      %v1038 = vpow.pop %v1037
      %v1039 = vsel %vm986, %v1038, 0.0
      %1040 = vadd.xlane.f32.xlu0 %v1039
      %v1041 = vpop.xlane.xlu0 %1040
      %v1042 = vrcp.pop %v1041
      %v1043 = vmul.f32 %v1038, %v1042
      %v1044 = vpack.c.bf16 %v1043, %v1043
      %1046 = vrot.lane.b32.xlu0 %v979, 96
      %v1047 = vpop.permute.xlu0 %1046
      %v1049 = vsel %vm986, %v1044, 0
      %vm1051 = vcmask 1043456
      %v1053 = vsel %vm1051, %v1047, 0
      %1055 = vmatprep.subr.bf16.mxu0 0
      %1056 = vmatpush1.bf16.msra.mxu0 %v1053
      %1057 = vmatprep.subr.bf16.mxu0 0
      %1058 = vmatpush1.bf16.msra.mxu0 0
      %1059 = vmatprep.subr.bf16.mxu0 0
      %1060 = vmatpush1.bf16.msra.mxu0 0
      %1061 = vmatprep.subr.bf16.mxu0 0
      %1062 = vmatpush1.bf16.msra.mxu0 0
      %1063 = vmatprep.subr.bf16.mxu0 0
      %1064 = vmatpush1.bf16.msra.mxu0 0
      %1065 = vmatprep.subr.bf16.mxu0 0
      %1066 = vmatpush1.bf16.msra.mxu0 0
      %1067 = vmatprep.subr.bf16.mxu0 0
      %1068 = vmatpush1.bf16.msra.mxu0 0
      %1069 = vmatprep.subr.bf16.mxu0 0
      %1070 = vmatpush1.bf16.msra.mxu0 0
      %1071 = vmatprep.subr.bf16.mxu0 0
      %1072 = vmatpush1.bf16.msra.mxu0 0
      %1073 = vmatprep.subr.bf16.mxu0 0
      %1074 = vmatpush1.bf16.msra.mxu0 0
      %1075 = vmatprep.subr.bf16.mxu0 0
      %1076 = vmatpush1.bf16.msra.mxu0 0
      %1077 = vmatprep.subr.bf16.mxu0 0
      %1078 = vmatpush1.bf16.msra.mxu0 0
      %1079 = vmatprep.subr.bf16.mxu0 0
      %1080 = vmatpush1.bf16.msra.mxu0 0
      %1081 = vmatprep.subr.bf16.mxu0 0
      %1082 = vmatpush1.bf16.msra.mxu0 0
      %1083 = vmatprep.subr.bf16.mxu0 0
      %1084 = vmatpush1.bf16.msra.mxu0 0
      %1085 = vmatprep.subr.bf16.mxu0 0
      %1086 = vmatpush1.bf16.msra.mxu0 0
      %1087 = vmatprep.mubr.bf16.mxu0 0
      %1088 = vmatmul.mubr.bf16.gmra.mrb[0].mxu0 %v1049
      %v1089 = vpop.f32.mrb[0].mxu0
      %v1090 = vadd.f32 0.0, %v1089
      %v1091 = vpop.f32.mrb[0].mxu0
      %v1092 = vpop.f32.mrb[0].mxu0
      %v1093 = vpop.f32.mrb[0].mxu0
      %1094 = vdwg.mxu0
      %1096 = vrot.lane.b32.xlu0 %v978, 120
      %v1097 = vpop.permute.xlu0 %1096
      %1098 = vrot.lane.b32.xlu0 %v979, 120
      %v1099 = vpop.permute.xlu0 %1098
      %v1101 = vsel %vm986, %v1097, 0
      %v1104 = vsel %vm986, %v1099, 0
      %1106 = vmatprep.subr.bf16.mxu0 0
      %1107 = vmatpush1.bf16.xpose.msra.mxu0 %v1104
      %1108 = vmatprep.subr.bf16.mxu0 0
      %1109 = vmatpush1.bf16.xpose.msra.mxu0 0
      %1110 = vmatprep.subr.bf16.mxu0 0
      %1111 = vmatpush1.bf16.xpose.msra.mxu0 0
      %1112 = vmatprep.subr.bf16.mxu0 0
      %1113 = vmatpush1.bf16.xpose.msra.mxu0 0
      %1114 = vmatprep.subr.bf16.mxu0 0
      %1115 = vmatpush1.bf16.xpose.msra.mxu0 0
      %1116 = vmatprep.subr.bf16.mxu0 0
      %1117 = vmatpush1.bf16.xpose.msra.mxu0 0
      %1118 = vmatprep.subr.bf16.mxu0 0
      %1119 = vmatpush1.bf16.xpose.msra.mxu0 0
      %1120 = vmatprep.subr.bf16.mxu0 0
      %1121 = vmatpush1.bf16.xpose.msra.mxu0 0
      %1122 = vmatprep.subr.bf16.mxu0 0
      %1123 = vmatpush1.bf16.xpose.msra.mxu0 0
      %1124 = vmatprep.subr.bf16.mxu0 0
      %1125 = vmatpush1.bf16.xpose.msra.mxu0 0
      %1126 = vmatprep.subr.bf16.mxu0 0
      %1127 = vmatpush1.bf16.xpose.msra.mxu0 0
      %1128 = vmatprep.subr.bf16.mxu0 0
      %1129 = vmatpush1.bf16.xpose.msra.mxu0 0
      %1130 = vmatprep.subr.bf16.mxu0 0
      %1131 = vmatpush1.bf16.xpose.msra.mxu0 0
      %1132 = vmatprep.subr.bf16.mxu0 0
      %1133 = vmatpush1.bf16.xpose.msra.mxu0 0
      %1134 = vmatprep.subr.bf16.mxu0 0
      %1135 = vmatpush1.bf16.xpose.msra.mxu0 0
      %1136 = vmatprep.subr.bf16.mxu0 0
      %1137 = vmatpush1.bf16.xpose.msra.mxu0 0
      %1138 = vmatprep.mubr.bf16.mxu0 0
      %1139 = vmatmul.mubr.bf16.gmra.mrb[0].mxu0 %v1101
      %v1140 = vpop.f32.mrb[0].mxu0
      %v1141 = vadd.f32 %v984, %v1140
      %v1142 = vpop.f32.mrb[0].mxu0
      %v1143 = vpop.f32.mrb[0].mxu0
      %v1144 = vpop.f32.mrb[0].mxu0
      %1145 = vdwg.mxu0
      %v1146 = vsel %vm986, %v1141, -inf
      %1147 = vmax.xlane.f32.xlu0 %v1146
      %v1148 = vpop.xlane.xlu0 %1147
      %v1149 = vsub.f32 %v1141, %v1148
      %v1150 = vmul.f32 %v1149, 1.442695
      %v1151 = vpow.pop %v1150
      %v1152 = vsel %vm986, %v1151, 0.0
      %1153 = vadd.xlane.f32.xlu0 %v1152
      %v1154 = vpop.xlane.xlu0 %1153
      %v1155 = vrcp.pop %v1154
      %v1156 = vmul.f32 %v1151, %v1155
      %v1157 = vpack.c.bf16 %v1156, %v1156
      %1158 = vrot.lane.b32.xlu0 %v979, 88
      %v1159 = vpop.permute.xlu0 %1158
      %v1161 = vsel %vm986, %v1157, 0
      %v1164 = vsel %vm1051, %v1159, 0
      %1166 = vmatprep.subr.bf16.mxu0 0
      %1167 = vmatpush1.bf16.msra.mxu0 %v1164
      %1168 = vmatprep.subr.bf16.mxu0 0
      %1169 = vmatpush1.bf16.msra.mxu0 0
      %1170 = vmatprep.subr.bf16.mxu0 0
      %1171 = vmatpush1.bf16.msra.mxu0 0
      %1172 = vmatprep.subr.bf16.mxu0 0
      %1173 = vmatpush1.bf16.msra.mxu0 0
      %1174 = vmatprep.subr.bf16.mxu0 0
      %1175 = vmatpush1.bf16.msra.mxu0 0
      %1176 = vmatprep.subr.bf16.mxu0 0
      %1177 = vmatpush1.bf16.msra.mxu0 0
      %1178 = vmatprep.subr.bf16.mxu0 0
      %1179 = vmatpush1.bf16.msra.mxu0 0
      %1180 = vmatprep.subr.bf16.mxu0 0
      %1181 = vmatpush1.bf16.msra.mxu0 0
      %1182 = vmatprep.subr.bf16.mxu0 0
      %1183 = vmatpush1.bf16.msra.mxu0 0
      %1184 = vmatprep.subr.bf16.mxu0 0
      %1185 = vmatpush1.bf16.msra.mxu0 0
      %1186 = vmatprep.subr.bf16.mxu0 0
      %1187 = vmatpush1.bf16.msra.mxu0 0
      %1188 = vmatprep.subr.bf16.mxu0 0
      %1189 = vmatpush1.bf16.msra.mxu0 0
      %1190 = vmatprep.subr.bf16.mxu0 0
      %1191 = vmatpush1.bf16.msra.mxu0 0
      %1192 = vmatprep.subr.bf16.mxu0 0
      %1193 = vmatpush1.bf16.msra.mxu0 0
      %1194 = vmatprep.subr.bf16.mxu0 0
      %1195 = vmatpush1.bf16.msra.mxu0 0
      %1196 = vmatprep.subr.bf16.mxu0 0
      %1197 = vmatpush1.bf16.msra.mxu0 0
      %1198 = vmatprep.mubr.bf16.mxu0 0
      %1199 = vmatmul.mubr.bf16.gmra.mrb[0].mxu0 %v1161
      %v1200 = vpop.f32.mrb[0].mxu0
      %v1201 = vadd.f32 0.0, %v1200
      %v1202 = vpop.f32.mrb[0].mxu0
      %v1203 = vpop.f32.mrb[0].mxu0
      %v1204 = vpop.f32.mrb[0].mxu0
      %1205 = vdwg.mxu0
      %1206 = vrot.lane.b32.xlu0 %v978, 112
      %v1207 = vpop.permute.xlu0 %1206
      %1208 = vrot.lane.b32.xlu0 %v979, 112
      %v1209 = vpop.permute.xlu0 %1208
      %v1211 = vsel %vm986, %v1207, 0
      %v1214 = vsel %vm986, %v1209, 0
      %1216 = vmatprep.subr.bf16.mxu0 0
      %1217 = vmatpush1.bf16.xpose.msra.mxu0 %v1214
      %1218 = vmatprep.subr.bf16.mxu0 0
      %1219 = vmatpush1.bf16.xpose.msra.mxu0 0
      %1220 = vmatprep.subr.bf16.mxu0 0
      %1221 = vmatpush1.bf16.xpose.msra.mxu0 0
      %1222 = vmatprep.subr.bf16.mxu0 0
      %1223 = vmatpush1.bf16.xpose.msra.mxu0 0
      %1224 = vmatprep.subr.bf16.mxu0 0
      %1225 = vmatpush1.bf16.xpose.msra.mxu0 0
      %1226 = vmatprep.subr.bf16.mxu0 0
      %1227 = vmatpush1.bf16.xpose.msra.mxu0 0
      %1228 = vmatprep.subr.bf16.mxu0 0
      %1229 = vmatpush1.bf16.xpose.msra.mxu0 0
      %1230 = vmatprep.subr.bf16.mxu0 0
      %1231 = vmatpush1.bf16.xpose.msra.mxu0 0
      %1232 = vmatprep.subr.bf16.mxu0 0
      %1233 = vmatpush1.bf16.xpose.msra.mxu0 0
      %1234 = vmatprep.subr.bf16.mxu0 0
      %1235 = vmatpush1.bf16.xpose.msra.mxu0 0
      %1236 = vmatprep.subr.bf16.mxu0 0
      %1237 = vmatpush1.bf16.xpose.msra.mxu0 0
      %1238 = vmatprep.subr.bf16.mxu0 0
      %1239 = vmatpush1.bf16.xpose.msra.mxu0 0
      %1240 = vmatprep.subr.bf16.mxu0 0
      %1241 = vmatpush1.bf16.xpose.msra.mxu0 0
      %1242 = vmatprep.subr.bf16.mxu0 0
      %1243 = vmatpush1.bf16.xpose.msra.mxu0 0
      %1244 = vmatprep.subr.bf16.mxu0 0
      %1245 = vmatpush1.bf16.xpose.msra.mxu0 0
      %1246 = vmatprep.subr.bf16.mxu0 0
      %1247 = vmatpush1.bf16.xpose.msra.mxu0 0
      %1248 = vmatprep.mubr.bf16.mxu0 0
      %1249 = vmatmul.mubr.bf16.gmra.mrb[0].mxu0 %v1211
      %v1250 = vpop.f32.mrb[0].mxu0
      %v1251 = vadd.f32 %v984, %v1250
      %v1252 = vpop.f32.mrb[0].mxu0
      %v1253 = vpop.f32.mrb[0].mxu0
      %v1254 = vpop.f32.mrb[0].mxu0
      %1255 = vdwg.mxu0
      %v1256 = vsel %vm986, %v1251, -inf
      %1257 = vmax.xlane.f32.xlu0 %v1256
      %v1258 = vpop.xlane.xlu0 %1257
      %v1259 = vsub.f32 %v1251, %v1258
      %v1260 = vmul.f32 %v1259, 1.442695
      %v1261 = vpow.pop %v1260
      %v1262 = vsel %vm986, %v1261, 0.0
      %1263 = vadd.xlane.f32.xlu0 %v1262
      %v1264 = vpop.xlane.xlu0 %1263
      %v1265 = vrcp.pop %v1264
      %v1266 = vmul.f32 %v1261, %v1265
      %v1267 = vpack.c.bf16 %v1266, %v1266
      %1268 = vrot.lane.b32.xlu0 %v979, 80
      %v1269 = vpop.permute.xlu0 %1268
      %v1271 = vsel %vm986, %v1267, 0
      %v1274 = vsel %vm1051, %v1269, 0
      %1276 = vmatprep.subr.bf16.mxu0 0
      %1277 = vmatpush1.bf16.msra.mxu0 %v1274
      %1278 = vmatprep.subr.bf16.mxu0 0
      %1279 = vmatpush1.bf16.msra.mxu0 0
      %1280 = vmatprep.subr.bf16.mxu0 0
      %1281 = vmatpush1.bf16.msra.mxu0 0
      %1282 = vmatprep.subr.bf16.mxu0 0
      %1283 = vmatpush1.bf16.msra.mxu0 0
      %1284 = vmatprep.subr.bf16.mxu0 0
      %1285 = vmatpush1.bf16.msra.mxu0 0
      %1286 = vmatprep.subr.bf16.mxu0 0
      %1287 = vmatpush1.bf16.msra.mxu0 0
      %1288 = vmatprep.subr.bf16.mxu0 0
      %1289 = vmatpush1.bf16.msra.mxu0 0
      %1290 = vmatprep.subr.bf16.mxu0 0
      %1291 = vmatpush1.bf16.msra.mxu0 0
      %1292 = vmatprep.subr.bf16.mxu0 0
      %1293 = vmatpush1.bf16.msra.mxu0 0
      %1294 = vmatprep.subr.bf16.mxu0 0
      %1295 = vmatpush1.bf16.msra.mxu0 0
      %1296 = vmatprep.subr.bf16.mxu0 0
      %1297 = vmatpush1.bf16.msra.mxu0 0
      %1298 = vmatprep.subr.bf16.mxu0 0
      %1299 = vmatpush1.bf16.msra.mxu0 0
      %1300 = vmatprep.subr.bf16.mxu0 0
      %1301 = vmatpush1.bf16.msra.mxu0 0
      %1302 = vmatprep.subr.bf16.mxu0 0
      %1303 = vmatpush1.bf16.msra.mxu0 0
      %1304 = vmatprep.subr.bf16.mxu0 0
      %1305 = vmatpush1.bf16.msra.mxu0 0
      %1306 = vmatprep.subr.bf16.mxu0 0
      %1307 = vmatpush1.bf16.msra.mxu0 0
      %1308 = vmatprep.mubr.bf16.mxu0 0
      %1309 = vmatmul.mubr.bf16.gmra.mrb[0].mxu0 %v1271
      %v1310 = vpop.f32.mrb[0].mxu0
      %v1311 = vadd.f32 0.0, %v1310
      %v1312 = vpop.f32.mrb[0].mxu0
      %v1313 = vpop.f32.mrb[0].mxu0
      %v1314 = vpop.f32.mrb[0].mxu0
      %1315 = vdwg.mxu0
      %1316 = vrot.lane.b32.xlu0 %v978, 104
      %v1317 = vpop.permute.xlu0 %1316
      %1318 = vrot.lane.b32.xlu0 %v979, 104
      %v1319 = vpop.permute.xlu0 %1318
      %v1321 = vsel %vm986, %v1317, 0
      %v1324 = vsel %vm986, %v1319, 0
      %1326 = vmatprep.subr.bf16.mxu0 0
      %1327 = vmatpush1.bf16.xpose.msra.mxu0 %v1324
      %1328 = vmatprep.subr.bf16.mxu0 0
      %1329 = vmatpush1.bf16.xpose.msra.mxu0 0
      %1330 = vmatprep.subr.bf16.mxu0 0
      %1331 = vmatpush1.bf16.xpose.msra.mxu0 0
      %1332 = vmatprep.subr.bf16.mxu0 0
      %1333 = vmatpush1.bf16.xpose.msra.mxu0 0
      %1334 = vmatprep.subr.bf16.mxu0 0
      %1335 = vmatpush1.bf16.xpose.msra.mxu0 0
      %1336 = vmatprep.subr.bf16.mxu0 0
      %1337 = vmatpush1.bf16.xpose.msra.mxu0 0
      %1338 = vmatprep.subr.bf16.mxu0 0
      %1339 = vmatpush1.bf16.xpose.msra.mxu0 0
      %1340 = vmatprep.subr.bf16.mxu0 0
      %1341 = vmatpush1.bf16.xpose.msra.mxu0 0
      %1342 = vmatprep.subr.bf16.mxu0 0
      %1343 = vmatpush1.bf16.xpose.msra.mxu0 0
      %1344 = vmatprep.subr.bf16.mxu0 0
      %1345 = vmatpush1.bf16.xpose.msra.mxu0 0
      %1346 = vmatprep.subr.bf16.mxu0 0
      %1347 = vmatpush1.bf16.xpose.msra.mxu0 0
      %1348 = vmatprep.subr.bf16.mxu0 0
      %1349 = vmatpush1.bf16.xpose.msra.mxu0 0
      %1350 = vmatprep.subr.bf16.mxu0 0
      %1351 = vmatpush1.bf16.xpose.msra.mxu0 0
      %1352 = vmatprep.subr.bf16.mxu0 0
      %1353 = vmatpush1.bf16.xpose.msra.mxu0 0
      %1354 = vmatprep.subr.bf16.mxu0 0
      %1355 = vmatpush1.bf16.xpose.msra.mxu0 0
      %1356 = vmatprep.subr.bf16.mxu0 0
      %1357 = vmatpush1.bf16.xpose.msra.mxu0 0
      %1358 = vmatprep.mubr.bf16.mxu0 0
      %1359 = vmatmul.mubr.bf16.gmra.mrb[0].mxu0 %v1321
      %v1360 = vpop.f32.mrb[0].mxu0
      %v1361 = vadd.f32 %v984, %v1360
      %v1362 = vpop.f32.mrb[0].mxu0
      %v1363 = vpop.f32.mrb[0].mxu0
      %v1364 = vpop.f32.mrb[0].mxu0
      %1365 = vdwg.mxu0
      %v1366 = vsel %vm986, %v1361, -inf
      %1367 = vmax.xlane.f32.xlu0 %v1366
      %v1368 = vpop.xlane.xlu0 %1367
      %v1369 = vsub.f32 %v1361, %v1368
      %v1370 = vmul.f32 %v1369, 1.442695
      %v1371 = vpow.pop %v1370
      %v1372 = vsel %vm986, %v1371, 0.0
      %1373 = vadd.xlane.f32.xlu0 %v1372
      %v1374 = vpop.xlane.xlu0 %1373
      %v1375 = vrcp.pop %v1374
      %v1376 = vmul.f32 %v1371, %v1375
      %v1377 = vpack.c.bf16 %v1376, %v1376
      %1378 = vrot.lane.b32.xlu0 %v979, 72
      %v1379 = vpop.permute.xlu0 %1378
      %v1381 = vsel %vm986, %v1377, 0
      %v1384 = vsel %vm1051, %v1379, 0
      %1386 = vmatprep.subr.bf16.mxu0 0
      %1387 = vmatpush1.bf16.msra.mxu0 %v1384
      %1388 = vmatprep.subr.bf16.mxu0 0
      %1389 = vmatpush1.bf16.msra.mxu0 0
      %1390 = vmatprep.subr.bf16.mxu0 0
      %1391 = vmatpush1.bf16.msra.mxu0 0
      %1392 = vmatprep.subr.bf16.mxu0 0
      %1393 = vmatpush1.bf16.msra.mxu0 0
      %1394 = vmatprep.subr.bf16.mxu0 0
      %1395 = vmatpush1.bf16.msra.mxu0 0
      %1396 = vmatprep.subr.bf16.mxu0 0
      %1397 = vmatpush1.bf16.msra.mxu0 0
      %1398 = vmatprep.subr.bf16.mxu0 0
      %1399 = vmatpush1.bf16.msra.mxu0 0
      %1400 = vmatprep.subr.bf16.mxu0 0
      %1401 = vmatpush1.bf16.msra.mxu0 0
      %1402 = vmatprep.subr.bf16.mxu0 0
      %1403 = vmatpush1.bf16.msra.mxu0 0
      %1404 = vmatprep.subr.bf16.mxu0 0
      %1405 = vmatpush1.bf16.msra.mxu0 0
      %1406 = vmatprep.subr.bf16.mxu0 0
      %1407 = vmatpush1.bf16.msra.mxu0 0
      %1408 = vmatprep.subr.bf16.mxu0 0
      %1409 = vmatpush1.bf16.msra.mxu0 0
      %1410 = vmatprep.subr.bf16.mxu0 0
      %1411 = vmatpush1.bf16.msra.mxu0 0
      %1412 = vmatprep.subr.bf16.mxu0 0
      %1413 = vmatpush1.bf16.msra.mxu0 0
      %1414 = vmatprep.subr.bf16.mxu0 0
      %1415 = vmatpush1.bf16.msra.mxu0 0
      %1416 = vmatprep.subr.bf16.mxu0 0
      %1417 = vmatpush1.bf16.msra.mxu0 0
      %1418 = vmatprep.mubr.bf16.mxu0 0
      %1419 = vmatmul.mubr.bf16.gmra.mrb[0].mxu0 %v1381
      %v1420 = vpop.f32.mrb[0].mxu0
      %v1421 = vadd.f32 0.0, %v1420
      %v1422 = vpop.f32.mrb[0].mxu0
      %v1423 = vpop.f32.mrb[0].mxu0
      %v1424 = vpop.f32.mrb[0].mxu0
      %1425 = vdwg.mxu0
      %1427 = vrot.lane.b32.xlu0 %v1201, 8
      %v1428 = vpop.permute.xlu0 %1427
      %1431 = vrot.lane.b32.xlu0 %v1311, 16
      %v1432 = vpop.permute.xlu0 %1431
      %1435 = vrot.lane.b32.xlu0 %v1421, 24
      %v1436 = vpop.permute.xlu0 %1435
      %v1438 = vsel %vm986, %v1090, %v1428
      %vm1439 = vcmask 130048
      %v1440 = vsel %vm1439, %v1438, %v1432
      %vm1441 = vcmask 195584
      %v1442 = vsel %vm1441, %v1440, %v1436
      %v1443 = vpack.c.bf16 %v1442, %v1442
      %v1445 = vlaneseq
      %v1446 = vshrl.u32 %v1445, 7
      %v1447 = vsub.s32 0, %v1446
      %v1448 = vrot.slane %v855, %v1447
      %v1454 = vunpack.c.l.b16 %v851
      %v1455 = vunpack.c.l.b16 %v852
      %v1456 = vunpack.c.l.b16 %v853
      %v1457 = vunpack.c.l.b16 %v854
      %v1458 = vpack.c.b16 %v1455, %v1454
      %v1459 = vpack.c.b16 %v1457, %v1456
      %v1463 = vsel %vm875, %v1443, 0
      %1465 = vmatprep.subr.bf16.mxu0 0
      %1466 = vmatpush1.bf16.msra.mxu0 %v1458
      %1467 = vmatprep.subr.bf16.mxu0 0
      %1468 = vmatpush1.bf16.msra.mxu0 %v1459
      %1469 = vmatprep.subr.bf16.mxu0 0
      %1470 = vmatpush1.bf16.msra.mxu0 0
      %1471 = vmatprep.subr.bf16.mxu0 0
      %1472 = vmatpush1.bf16.msra.mxu0 0
      %1473 = vmatprep.subr.bf16.mxu0 0
      %1474 = vmatpush1.bf16.msra.mxu0 0
      %1475 = vmatprep.subr.bf16.mxu0 0
      %1476 = vmatpush1.bf16.msra.mxu0 0
      %1477 = vmatprep.subr.bf16.mxu0 0
      %1478 = vmatpush1.bf16.msra.mxu0 0
      %1479 = vmatprep.subr.bf16.mxu0 0
      %1480 = vmatpush1.bf16.msra.mxu0 0
      %1481 = vmatprep.subr.bf16.mxu0 0
      %1482 = vmatpush1.bf16.msra.mxu0 0
      %1483 = vmatprep.subr.bf16.mxu0 0
      %1484 = vmatpush1.bf16.msra.mxu0 0
      %1485 = vmatprep.subr.bf16.mxu0 0
      %1486 = vmatpush1.bf16.msra.mxu0 0
      %1487 = vmatprep.subr.bf16.mxu0 0
      %1488 = vmatpush1.bf16.msra.mxu0 0
      %1489 = vmatprep.subr.bf16.mxu0 0
      %1490 = vmatpush1.bf16.msra.mxu0 0
      %1491 = vmatprep.subr.bf16.mxu0 0
      %1492 = vmatpush1.bf16.msra.mxu0 0
      %1493 = vmatprep.subr.bf16.mxu0 0
      %1494 = vmatpush1.bf16.msra.mxu0 0
      %1495 = vmatprep.subr.bf16.mxu0 0
      %1496 = vmatpush1.bf16.msra.mxu0 0
      %1497 = vmatprep.mubr.bf16.mxu0 0
      %1498 = vmatmul.mubr.bf16.gmra.mrb[0].mxu0 %v1463
      %v1499 = vpop.f32.mrb[0].mxu0
      %v1500 = vadd.f32 %v1448, %v1499
      %v1501 = vpop.f32.mrb[0].mxu0
      %v1502 = vpop.f32.mrb[0].mxu0
      %v1503 = vpop.f32.mrb[0].mxu0
      %1504 = vdwg.mxu0
      %v1505 = vadd.f32 %v836, %v1500
      %v1506 = vld [vmem:[%s10] sm:$0x1]
      %v1507 = vld [vmem:[%s11] sm:$0x1]
      %v1508 = vsel %vm875, %v1505, 0.0
      %1509 = vadd.xlane.f32.xlu0 %v1508
      %v1510 = vpop.xlane.xlu0 %1509
      %v1511 = vrcp.pop 32.0
      %v1512 = vmul.f32 %v1510, %v1511
      %v1513 = vsub.f32 %v1505, %v1512
      %v1514 = vmul.f32 %v1513, %v1513
      %v1515 = vsel %vm875, %v1514, 0.0
      %1516 = vadd.xlane.f32.xlu0 %v1515
      %v1517 = vpop.xlane.xlu0 %1516
      %v1518 = vmul.f32 %v1517, %v1511
      %v1519 = vadd.f32 %v1518, 1e-06
      %v1520 = vrsqrt.pop %v1519
      %v1521 = vmul.f32 %v1513, %v1520
      %v1523 = vlaneseq
      %v1524 = vshrl.u32 %v1523, 7
      %v1525 = vsub.s32 0, %v1524
      %v1526 = vrot.slane %v1506, %v1525
      %v1528 = vmul.f32 %v1521, %v1526
      %v1530 = vlaneseq
      %v1531 = vshrl.u32 %v1530, 7
      %v1532 = vsub.s32 0, %v1531
      %v1533 = vrot.slane %v1507, %v1532
      %v1535 = vadd.f32 %v1528, %v1533
      %v1536 = vld [vmem:[%s12] sm:$0xf]
      %v1537 = vld [vmem:[%s12 + $0x4] sm:$0xf]
      %v1538 = vld [vmem:[%s12 + $0x8] sm:$0xf]
      %v1539 = vld [vmem:[%s12 + $0xc] sm:$0xf]
      %v1540 = vld [vmem:[%s13] sm:$0x1]
      %v1541 = vld [vmem:[%s14] sm:$0xf]
      %v1542 = vld [vmem:[%s14 + $0x4] sm:$0xf]
      %v1543 = vld [vmem:[%s14 + $0x8] sm:$0xf]
      %v1544 = vld [vmem:[%s14 + $0xc] sm:$0xf]
      %v1545 = vld [vmem:[%s15] sm:$0x1]
      %v1546 = vld [vmem:[%s16] sm:$0xf]
      %v1547 = vld [vmem:[%s16 + $0x4] sm:$0xf]
      %v1548 = vld [vmem:[%s16 + $0x8] sm:$0xf]
      %v1549 = vld [vmem:[%s16 + $0xc] sm:$0xf]
      %v1550 = vld [vmem:[%s17] sm:$0x1]
      %v1551 = vpack.c.bf16 %v1535, %v1535
      %v1553 = vlaneseq
      %v1554 = vshrl.u32 %v1553, 7
      %v1555 = vsub.s32 0, %v1554
      %v1556 = vrot.slane %v1540, %v1555
      %v1562 = vunpack.c.l.b16 %v1536
      %v1563 = vunpack.c.l.b16 %v1537
      %v1564 = vunpack.c.l.b16 %v1538
      %v1565 = vunpack.c.l.b16 %v1539
      %v1566 = vpack.c.b16 %v1563, %v1562
      %v1567 = vpack.c.b16 %v1565, %v1564
      %v1571 = vsel %vm875, %v1551, 0
      %1573 = vmatprep.subr.bf16.mxu0 0
      %1574 = vmatpush1.bf16.msra.mxu0 %v1566
      %1575 = vmatprep.subr.bf16.mxu0 0
      %1576 = vmatpush1.bf16.msra.mxu0 %v1567
      %1577 = vmatprep.subr.bf16.mxu0 0
      %1578 = vmatpush1.bf16.msra.mxu0 0
      %1579 = vmatprep.subr.bf16.mxu0 0
      %1580 = vmatpush1.bf16.msra.mxu0 0
      %1581 = vmatprep.subr.bf16.mxu0 0
      %1582 = vmatpush1.bf16.msra.mxu0 0
      %1583 = vmatprep.subr.bf16.mxu0 0
      %1584 = vmatpush1.bf16.msra.mxu0 0
      %1585 = vmatprep.subr.bf16.mxu0 0
      %1586 = vmatpush1.bf16.msra.mxu0 0
      %1587 = vmatprep.subr.bf16.mxu0 0
      %1588 = vmatpush1.bf16.msra.mxu0 0
      %1589 = vmatprep.subr.bf16.mxu0 0
      %1590 = vmatpush1.bf16.msra.mxu0 0
      %1591 = vmatprep.subr.bf16.mxu0 0
      %1592 = vmatpush1.bf16.msra.mxu0 0
      %1593 = vmatprep.subr.bf16.mxu0 0
      %1594 = vmatpush1.bf16.msra.mxu0 0
      %1595 = vmatprep.subr.bf16.mxu0 0
      %1596 = vmatpush1.bf16.msra.mxu0 0
      %1597 = vmatprep.subr.bf16.mxu0 0
      %1598 = vmatpush1.bf16.msra.mxu0 0
      %1599 = vmatprep.subr.bf16.mxu0 0
      %1600 = vmatpush1.bf16.msra.mxu0 0
      %1601 = vmatprep.subr.bf16.mxu0 0
      %1602 = vmatpush1.bf16.msra.mxu0 0
      %1603 = vmatprep.subr.bf16.mxu0 0
      %1604 = vmatpush1.bf16.msra.mxu0 0
      %1605 = vmatprep.mubr.bf16.mxu0 0
      %1606 = vmatmul.mubr.bf16.gmra.mrb[0].mxu0 %v1571
      %v1607 = vpop.f32.mrb[0].mxu0
      %v1608 = vadd.f32 %v1556, %v1607
      %v1609 = vpop.f32.mrb[0].mxu0
      %v1610 = vpop.f32.mrb[0].mxu0
      %v1611 = vpop.f32.mrb[0].mxu0
      %1612 = vdwg.mxu0
      %v1613 = vpack.c.bf16 %v838, %v837
      %v1615 = vlaneseq
      %v1616 = vshrl.u32 %v1615, 7
      %v1617 = vsub.s32 0, %v1616
      %v1618 = vrot.slane %v1545, %v1617
      %v1624 = vunpack.c.l.b16 %v1541
      %v1625 = vunpack.c.l.b16 %v1542
      %v1626 = vunpack.c.l.b16 %v1543
      %v1627 = vunpack.c.l.b16 %v1544
      %v1628 = vpack.c.b16 %v1625, %v1624
      %v1629 = vpack.c.b16 %v1627, %v1626
      %v1633 = vsel %vm875, %v1613, 0
      %1635 = vmatprep.subr.bf16.mxu0 0
      %1636 = vmatpush1.bf16.msra.mxu0 %v1628
      %1637 = vmatprep.subr.bf16.mxu0 0
      %1638 = vmatpush1.bf16.msra.mxu0 %v1629
      %1639 = vmatprep.subr.bf16.mxu0 0
      %1640 = vmatpush1.bf16.msra.mxu0 0
      %1641 = vmatprep.subr.bf16.mxu0 0
      %1642 = vmatpush1.bf16.msra.mxu0 0
      %1643 = vmatprep.subr.bf16.mxu0 0
      %1644 = vmatpush1.bf16.msra.mxu0 0
      %1645 = vmatprep.subr.bf16.mxu0 0
      %1646 = vmatpush1.bf16.msra.mxu0 0
      %1647 = vmatprep.subr.bf16.mxu0 0
      %1648 = vmatpush1.bf16.msra.mxu0 0
      %1649 = vmatprep.subr.bf16.mxu0 0
      %1650 = vmatpush1.bf16.msra.mxu0 0
      %1651 = vmatprep.subr.bf16.mxu0 0
      %1652 = vmatpush1.bf16.msra.mxu0 0
      %1653 = vmatprep.subr.bf16.mxu0 0
      %1654 = vmatpush1.bf16.msra.mxu0 0
      %1655 = vmatprep.subr.bf16.mxu0 0
      %1656 = vmatpush1.bf16.msra.mxu0 0
      %1657 = vmatprep.subr.bf16.mxu0 0
      %1658 = vmatpush1.bf16.msra.mxu0 0
      %1659 = vmatprep.subr.bf16.mxu0 0
      %1660 = vmatpush1.bf16.msra.mxu0 0
      %1661 = vmatprep.subr.bf16.mxu0 0
      %1662 = vmatpush1.bf16.msra.mxu0 0
      %1663 = vmatprep.subr.bf16.mxu0 0
      %1664 = vmatpush1.bf16.msra.mxu0 0
      %1665 = vmatprep.subr.bf16.mxu0 0
      %1666 = vmatpush1.bf16.msra.mxu0 0
      %1667 = vmatprep.mubr.bf16.mxu0 0
      %1668 = vmatmul.mubr.bf16.gmra.mrb[0].mxu0 %v1633
      %v1669 = vpop.f32.mrb[0].mxu0
      %v1670 = vadd.f32 %v1618, %v1669
      %v1671 = vpop.f32.mrb[0].mxu0
      %v1672 = vpop.f32.mrb[0].mxu0
      %v1673 = vadd.f32 %v1618, %v1672
      %v1674 = vpop.f32.mrb[0].mxu0
      %1675 = vdwg.mxu0
      %v1676 = vmul.f32 %v1608, 0.35355338
      %v1677 = vpack.c.bf16 %v1676, %v1676
      %v1678 = vpack.c.bf16 %v1673, %v1670
      %v1680 = vlaneseq
      %v1681 = vshrl.u32 %v1680, 7
      %v1682 = vsub.s32 0, %v1681
      %v1683 = vrot.slane %v840, %v1682
      %v1686 = vsel %vm986, %v1677, 0
      %v1689 = vsel %vm986, %v1678, 0
      %1691 = vmatprep.subr.bf16.mxu0 0
      %1692 = vmatpush1.bf16.xpose.msra.mxu0 %v1689
      %1693 = vmatprep.subr.bf16.mxu0 0
      %1694 = vmatpush1.bf16.xpose.msra.mxu0 0
      %1695 = vmatprep.subr.bf16.mxu0 0
      %1696 = vmatpush1.bf16.xpose.msra.mxu0 0
      %1697 = vmatprep.subr.bf16.mxu0 0
      %1698 = vmatpush1.bf16.xpose.msra.mxu0 0
      %1699 = vmatprep.subr.bf16.mxu0 0
      %1700 = vmatpush1.bf16.xpose.msra.mxu0 0
      %1701 = vmatprep.subr.bf16.mxu0 0
      %1702 = vmatpush1.bf16.xpose.msra.mxu0 0
      %1703 = vmatprep.subr.bf16.mxu0 0
      %1704 = vmatpush1.bf16.xpose.msra.mxu0 0
      %1705 = vmatprep.subr.bf16.mxu0 0
      %1706 = vmatpush1.bf16.xpose.msra.mxu0 0
      %1707 = vmatprep.subr.bf16.mxu0 0
      %1708 = vmatpush1.bf16.xpose.msra.mxu0 0
      %1709 = vmatprep.subr.bf16.mxu0 0
      %1710 = vmatpush1.bf16.xpose.msra.mxu0 0
      %1711 = vmatprep.subr.bf16.mxu0 0
      %1712 = vmatpush1.bf16.xpose.msra.mxu0 0
      %1713 = vmatprep.subr.bf16.mxu0 0
      %1714 = vmatpush1.bf16.xpose.msra.mxu0 0
      %1715 = vmatprep.subr.bf16.mxu0 0
      %1716 = vmatpush1.bf16.xpose.msra.mxu0 0
      %1717 = vmatprep.subr.bf16.mxu0 0
      %1718 = vmatpush1.bf16.xpose.msra.mxu0 0
      %1719 = vmatprep.subr.bf16.mxu0 0
      %1720 = vmatpush1.bf16.xpose.msra.mxu0 0
      %1721 = vmatprep.subr.bf16.mxu0 0
      %1722 = vmatpush1.bf16.xpose.msra.mxu0 0
      %1723 = vmatprep.mubr.bf16.mxu0 0
      %1724 = vmatmul.mubr.bf16.gmra.mrb[0].mxu0 %v1686
      %v1725 = vpop.f32.mrb[0].mxu0
      %v1726 = vadd.f32 %v1683, %v1725
      %v1727 = vpop.f32.mrb[0].mxu0
      %v1728 = vpop.f32.mrb[0].mxu0
      %v1729 = vpop.f32.mrb[0].mxu0
      %1730 = vdwg.mxu0
      %v1731 = vsel %vm1439, %v1726, -inf
      %1732 = vmax.xlane.f32.xlu0 %v1731
      %v1733 = vpop.xlane.xlu0 %1732
      %v1734 = vsub.f32 %v1726, %v1733
      %v1735 = vmul.f32 %v1734, 1.442695
      %v1736 = vpow.pop %v1735
      %v1737 = vsel %vm1439, %v1736, 0.0
      %1738 = vadd.xlane.f32.xlu0 %v1737
      %v1739 = vpop.xlane.xlu0 %1738
      %v1740 = vrcp.pop %v1739
      %v1741 = vmul.f32 %v1736, %v1740
      %v1742 = vpack.c.bf16 %v1741, %v1741
      %1744 = vrot.lane.b32.xlu0 %v1678, 96
      %v1745 = vpop.permute.xlu0 %1744
      %v1748 = vsel %vm1439, %v1742, 0
      %1750 = vmatprep.subr.bf16.mxu0 0
      %1751 = vmatpush1.bf16.msra.mxu0 %v1745
      %1752 = vmatprep.subr.bf16.mxu0 0
      %1753 = vmatpush1.bf16.msra.mxu0 0
      %1754 = vmatprep.subr.bf16.mxu0 0
      %1755 = vmatpush1.bf16.msra.mxu0 0
      %1756 = vmatprep.subr.bf16.mxu0 0
      %1757 = vmatpush1.bf16.msra.mxu0 0
      %1758 = vmatprep.subr.bf16.mxu0 0
      %1759 = vmatpush1.bf16.msra.mxu0 0
      %1760 = vmatprep.subr.bf16.mxu0 0
      %1761 = vmatpush1.bf16.msra.mxu0 0
      %1762 = vmatprep.subr.bf16.mxu0 0
      %1763 = vmatpush1.bf16.msra.mxu0 0
      %1764 = vmatprep.subr.bf16.mxu0 0
      %1765 = vmatpush1.bf16.msra.mxu0 0
      %1766 = vmatprep.subr.bf16.mxu0 0
      %1767 = vmatpush1.bf16.msra.mxu0 0
      %1768 = vmatprep.subr.bf16.mxu0 0
      %1769 = vmatpush1.bf16.msra.mxu0 0
      %1770 = vmatprep.subr.bf16.mxu0 0
      %1771 = vmatpush1.bf16.msra.mxu0 0
      %1772 = vmatprep.subr.bf16.mxu0 0
      %1773 = vmatpush1.bf16.msra.mxu0 0
      %1774 = vmatprep.subr.bf16.mxu0 0
      %1775 = vmatpush1.bf16.msra.mxu0 0
      %1776 = vmatprep.subr.bf16.mxu0 0
      %1777 = vmatpush1.bf16.msra.mxu0 0
      %1778 = vmatprep.subr.bf16.mxu0 0
      %1779 = vmatpush1.bf16.msra.mxu0 0
      %1780 = vmatprep.subr.bf16.mxu0 0
      %1781 = vmatpush1.bf16.msra.mxu0 0
      %1782 = vmatprep.mubr.bf16.mxu0 0
      %1783 = vmatmul.mubr.bf16.gmra.mrb[0].mxu0 %v1748
      %v1784 = vpop.f32.mrb[0].mxu0
      %v1785 = vadd.f32 0.0, %v1784
      %v1786 = vpop.f32.mrb[0].mxu0
      %v1787 = vpop.f32.mrb[0].mxu0
      %v1788 = vpop.f32.mrb[0].mxu0
      %1789 = vdwg.mxu0
      %1791 = vrot.lane.b32.xlu0 %v1677, 120
      %v1792 = vpop.permute.xlu0 %1791
      %1793 = vrot.lane.b32.xlu0 %v1678, 120
      %v1794 = vpop.permute.xlu0 %1793
      %v1796 = vsel %vm986, %v1792, 0
      %v1799 = vsel %vm986, %v1794, 0
      %1801 = vmatprep.subr.bf16.mxu0 0
      %1802 = vmatpush1.bf16.xpose.msra.mxu0 %v1799
      %1803 = vmatprep.subr.bf16.mxu0 0
      %1804 = vmatpush1.bf16.xpose.msra.mxu0 0
      %1805 = vmatprep.subr.bf16.mxu0 0
      %1806 = vmatpush1.bf16.xpose.msra.mxu0 0
      %1807 = vmatprep.subr.bf16.mxu0 0
      %1808 = vmatpush1.bf16.xpose.msra.mxu0 0
      %1809 = vmatprep.subr.bf16.mxu0 0
      %1810 = vmatpush1.bf16.xpose.msra.mxu0 0
      %1811 = vmatprep.subr.bf16.mxu0 0
      %1812 = vmatpush1.bf16.xpose.msra.mxu0 0
      %1813 = vmatprep.subr.bf16.mxu0 0
      %1814 = vmatpush1.bf16.xpose.msra.mxu0 0
      %1815 = vmatprep.subr.bf16.mxu0 0
      %1816 = vmatpush1.bf16.xpose.msra.mxu0 0
      %1817 = vmatprep.subr.bf16.mxu0 0
      %1818 = vmatpush1.bf16.xpose.msra.mxu0 0
      %1819 = vmatprep.subr.bf16.mxu0 0
      %1820 = vmatpush1.bf16.xpose.msra.mxu0 0
      %1821 = vmatprep.subr.bf16.mxu0 0
      %1822 = vmatpush1.bf16.xpose.msra.mxu0 0
      %1823 = vmatprep.subr.bf16.mxu0 0
      %1824 = vmatpush1.bf16.xpose.msra.mxu0 0
      %1825 = vmatprep.subr.bf16.mxu0 0
      %1826 = vmatpush1.bf16.xpose.msra.mxu0 0
      %1827 = vmatprep.subr.bf16.mxu0 0
      %1828 = vmatpush1.bf16.xpose.msra.mxu0 0
      %1829 = vmatprep.subr.bf16.mxu0 0
      %1830 = vmatpush1.bf16.xpose.msra.mxu0 0
      %1831 = vmatprep.subr.bf16.mxu0 0
      %1832 = vmatpush1.bf16.xpose.msra.mxu0 0
      %1833 = vmatprep.mubr.bf16.mxu0 0
      %1834 = vmatmul.mubr.bf16.gmra.mrb[0].mxu0 %v1796
      %v1835 = vpop.f32.mrb[0].mxu0
      %v1836 = vadd.f32 %v1683, %v1835
      %v1837 = vpop.f32.mrb[0].mxu0
      %v1838 = vpop.f32.mrb[0].mxu0
      %v1839 = vpop.f32.mrb[0].mxu0
      %1840 = vdwg.mxu0
      %v1841 = vsel %vm1439, %v1836, -inf
      %1842 = vmax.xlane.f32.xlu0 %v1841
      %v1843 = vpop.xlane.xlu0 %1842
      %v1844 = vsub.f32 %v1836, %v1843
      %v1845 = vmul.f32 %v1844, 1.442695
      %v1846 = vpow.pop %v1845
      %v1847 = vsel %vm1439, %v1846, 0.0
      %1848 = vadd.xlane.f32.xlu0 %v1847
      %v1849 = vpop.xlane.xlu0 %1848
      %v1850 = vrcp.pop %v1849
      %v1851 = vmul.f32 %v1846, %v1850
      %v1852 = vpack.c.bf16 %v1851, %v1851
      %1853 = vrot.lane.b32.xlu0 %v1678, 88
      %v1854 = vpop.permute.xlu0 %1853
      %v1857 = vsel %vm1439, %v1852, 0
      %1859 = vmatprep.subr.bf16.mxu0 0
      %1860 = vmatpush1.bf16.msra.mxu0 %v1854
      %1861 = vmatprep.subr.bf16.mxu0 0
      %1862 = vmatpush1.bf16.msra.mxu0 0
      %1863 = vmatprep.subr.bf16.mxu0 0
      %1864 = vmatpush1.bf16.msra.mxu0 0
      %1865 = vmatprep.subr.bf16.mxu0 0
      %1866 = vmatpush1.bf16.msra.mxu0 0
      %1867 = vmatprep.subr.bf16.mxu0 0
      %1868 = vmatpush1.bf16.msra.mxu0 0
      %1869 = vmatprep.subr.bf16.mxu0 0
      %1870 = vmatpush1.bf16.msra.mxu0 0
      %1871 = vmatprep.subr.bf16.mxu0 0
      %1872 = vmatpush1.bf16.msra.mxu0 0
      %1873 = vmatprep.subr.bf16.mxu0 0
      %1874 = vmatpush1.bf16.msra.mxu0 0
      %1875 = vmatprep.subr.bf16.mxu0 0
      %1876 = vmatpush1.bf16.msra.mxu0 0
      %1877 = vmatprep.subr.bf16.mxu0 0
      %1878 = vmatpush1.bf16.msra.mxu0 0
      %1879 = vmatprep.subr.bf16.mxu0 0
      %1880 = vmatpush1.bf16.msra.mxu0 0
      %1881 = vmatprep.subr.bf16.mxu0 0
      %1882 = vmatpush1.bf16.msra.mxu0 0
      %1883 = vmatprep.subr.bf16.mxu0 0
      %1884 = vmatpush1.bf16.msra.mxu0 0
      %1885 = vmatprep.subr.bf16.mxu0 0
      %1886 = vmatpush1.bf16.msra.mxu0 0
      %1887 = vmatprep.subr.bf16.mxu0 0
      %1888 = vmatpush1.bf16.msra.mxu0 0
      %1889 = vmatprep.subr.bf16.mxu0 0
      %1890 = vmatpush1.bf16.msra.mxu0 0
      %1891 = vmatprep.mubr.bf16.mxu0 0
      %1892 = vmatmul.mubr.bf16.gmra.mrb[0].mxu0 %v1857
      %v1893 = vpop.f32.mrb[0].mxu0
      %v1894 = vadd.f32 0.0, %v1893
      %v1895 = vpop.f32.mrb[0].mxu0
      %v1896 = vpop.f32.mrb[0].mxu0
      %v1897 = vpop.f32.mrb[0].mxu0
      %1898 = vdwg.mxu0
      %1899 = vrot.lane.b32.xlu0 %v1677, 112
      %v1900 = vpop.permute.xlu0 %1899
      %1901 = vrot.lane.b32.xlu0 %v1678, 112
      %v1902 = vpop.permute.xlu0 %1901
      %v1904 = vsel %vm986, %v1900, 0
      %v1907 = vsel %vm986, %v1902, 0
      %1909 = vmatprep.subr.bf16.mxu0 0
      %1910 = vmatpush1.bf16.xpose.msra.mxu0 %v1907
      %1911 = vmatprep.subr.bf16.mxu0 0
      %1912 = vmatpush1.bf16.xpose.msra.mxu0 0
      %1913 = vmatprep.subr.bf16.mxu0 0
      %1914 = vmatpush1.bf16.xpose.msra.mxu0 0
      %1915 = vmatprep.subr.bf16.mxu0 0
      %1916 = vmatpush1.bf16.xpose.msra.mxu0 0
      %1917 = vmatprep.subr.bf16.mxu0 0
      %1918 = vmatpush1.bf16.xpose.msra.mxu0 0
      %1919 = vmatprep.subr.bf16.mxu0 0
      %1920 = vmatpush1.bf16.xpose.msra.mxu0 0
      %1921 = vmatprep.subr.bf16.mxu0 0
      %1922 = vmatpush1.bf16.xpose.msra.mxu0 0
      %1923 = vmatprep.subr.bf16.mxu0 0
      %1924 = vmatpush1.bf16.xpose.msra.mxu0 0
      %1925 = vmatprep.subr.bf16.mxu0 0
      %1926 = vmatpush1.bf16.xpose.msra.mxu0 0
      %1927 = vmatprep.subr.bf16.mxu0 0
      %1928 = vmatpush1.bf16.xpose.msra.mxu0 0
      %1929 = vmatprep.subr.bf16.mxu0 0
      %1930 = vmatpush1.bf16.xpose.msra.mxu0 0
      %1931 = vmatprep.subr.bf16.mxu0 0
      %1932 = vmatpush1.bf16.xpose.msra.mxu0 0
      %1933 = vmatprep.subr.bf16.mxu0 0
      %1934 = vmatpush1.bf16.xpose.msra.mxu0 0
      %1935 = vmatprep.subr.bf16.mxu0 0
      %1936 = vmatpush1.bf16.xpose.msra.mxu0 0
      %1937 = vmatprep.subr.bf16.mxu0 0
      %1938 = vmatpush1.bf16.xpose.msra.mxu0 0
      %1939 = vmatprep.subr.bf16.mxu0 0
      %1940 = vmatpush1.bf16.xpose.msra.mxu0 0
      %1941 = vmatprep.mubr.bf16.mxu0 0
      %1942 = vmatmul.mubr.bf16.gmra.mrb[0].mxu0 %v1904
      %v1943 = vpop.f32.mrb[0].mxu0
      %v1944 = vadd.f32 %v1683, %v1943
      %v1945 = vpop.f32.mrb[0].mxu0
      %v1946 = vpop.f32.mrb[0].mxu0
      %v1947 = vpop.f32.mrb[0].mxu0
      %1948 = vdwg.mxu0
      %v1949 = vsel %vm1439, %v1944, -inf
      %1950 = vmax.xlane.f32.xlu0 %v1949
      %v1951 = vpop.xlane.xlu0 %1950
      %v1952 = vsub.f32 %v1944, %v1951
      %v1953 = vmul.f32 %v1952, 1.442695
      %v1954 = vpow.pop %v1953
      %v1955 = vsel %vm1439, %v1954, 0.0
      %1956 = vadd.xlane.f32.xlu0 %v1955
      %v1957 = vpop.xlane.xlu0 %1956
      %v1958 = vrcp.pop %v1957
      %v1959 = vmul.f32 %v1954, %v1958
      %v1960 = vpack.c.bf16 %v1959, %v1959
      %1961 = vrot.lane.b32.xlu0 %v1678, 80
      %v1962 = vpop.permute.xlu0 %1961
      %v1965 = vsel %vm1439, %v1960, 0
      %1967 = vmatprep.subr.bf16.mxu0 0
      %1968 = vmatpush1.bf16.msra.mxu0 %v1962
      %1969 = vmatprep.subr.bf16.mxu0 0
      %1970 = vmatpush1.bf16.msra.mxu0 0
      %1971 = vmatprep.subr.bf16.mxu0 0
      %1972 = vmatpush1.bf16.msra.mxu0 0
      %1973 = vmatprep.subr.bf16.mxu0 0
      %1974 = vmatpush1.bf16.msra.mxu0 0
      %1975 = vmatprep.subr.bf16.mxu0 0
      %1976 = vmatpush1.bf16.msra.mxu0 0
      %1977 = vmatprep.subr.bf16.mxu0 0
      %1978 = vmatpush1.bf16.msra.mxu0 0
      %1979 = vmatprep.subr.bf16.mxu0 0
      %1980 = vmatpush1.bf16.msra.mxu0 0
      %1981 = vmatprep.subr.bf16.mxu0 0
      %1982 = vmatpush1.bf16.msra.mxu0 0
      %1983 = vmatprep.subr.bf16.mxu0 0
      %1984 = vmatpush1.bf16.msra.mxu0 0
      %1985 = vmatprep.subr.bf16.mxu0 0
      %1986 = vmatpush1.bf16.msra.mxu0 0
      %1987 = vmatprep.subr.bf16.mxu0 0
      %1988 = vmatpush1.bf16.msra.mxu0 0
      %1989 = vmatprep.subr.bf16.mxu0 0
      %1990 = vmatpush1.bf16.msra.mxu0 0
      %1991 = vmatprep.subr.bf16.mxu0 0
      %1992 = vmatpush1.bf16.msra.mxu0 0
      %1993 = vmatprep.subr.bf16.mxu0 0
      %1994 = vmatpush1.bf16.msra.mxu0 0
      %1995 = vmatprep.subr.bf16.mxu0 0
      %1996 = vmatpush1.bf16.msra.mxu0 0
      %1997 = vmatprep.subr.bf16.mxu0 0
      %1998 = vmatpush1.bf16.msra.mxu0 0
      %1999 = vmatprep.mubr.bf16.mxu0 0
      %2000 = vmatmul.mubr.bf16.gmra.mrb[0].mxu0 %v1965
      %v2001 = vpop.f32.mrb[0].mxu0
      %v2002 = vadd.f32 0.0, %v2001
      %v2003 = vpop.f32.mrb[0].mxu0
      %v2004 = vpop.f32.mrb[0].mxu0
      %v2005 = vpop.f32.mrb[0].mxu0
      %2006 = vdwg.mxu0
      %2007 = vrot.lane.b32.xlu0 %v1677, 104
      %v2008 = vpop.permute.xlu0 %2007
      %2009 = vrot.lane.b32.xlu0 %v1678, 104
      %v2010 = vpop.permute.xlu0 %2009
      %v2012 = vsel %vm986, %v2008, 0
      %v2015 = vsel %vm986, %v2010, 0
      %2017 = vmatprep.subr.bf16.mxu0 0
      %2018 = vmatpush1.bf16.xpose.msra.mxu0 %v2015
      %2019 = vmatprep.subr.bf16.mxu0 0
      %2020 = vmatpush1.bf16.xpose.msra.mxu0 0
      %2021 = vmatprep.subr.bf16.mxu0 0
      %2022 = vmatpush1.bf16.xpose.msra.mxu0 0
      %2023 = vmatprep.subr.bf16.mxu0 0
      %2024 = vmatpush1.bf16.xpose.msra.mxu0 0
      %2025 = vmatprep.subr.bf16.mxu0 0
      %2026 = vmatpush1.bf16.xpose.msra.mxu0 0
      %2027 = vmatprep.subr.bf16.mxu0 0
      %2028 = vmatpush1.bf16.xpose.msra.mxu0 0
      %2029 = vmatprep.subr.bf16.mxu0 0
      %2030 = vmatpush1.bf16.xpose.msra.mxu0 0
      %2031 = vmatprep.subr.bf16.mxu0 0
      %2032 = vmatpush1.bf16.xpose.msra.mxu0 0
      %2033 = vmatprep.subr.bf16.mxu0 0
      %2034 = vmatpush1.bf16.xpose.msra.mxu0 0
      %2035 = vmatprep.subr.bf16.mxu0 0
      %2036 = vmatpush1.bf16.xpose.msra.mxu0 0
      %2037 = vmatprep.subr.bf16.mxu0 0
      %2038 = vmatpush1.bf16.xpose.msra.mxu0 0
      %2039 = vmatprep.subr.bf16.mxu0 0
      %2040 = vmatpush1.bf16.xpose.msra.mxu0 0
      %2041 = vmatprep.subr.bf16.mxu0 0
      %2042 = vmatpush1.bf16.xpose.msra.mxu0 0
      %2043 = vmatprep.subr.bf16.mxu0 0
      %2044 = vmatpush1.bf16.xpose.msra.mxu0 0
      %2045 = vmatprep.subr.bf16.mxu0 0
      %2046 = vmatpush1.bf16.xpose.msra.mxu0 0
      %2047 = vmatprep.subr.bf16.mxu0 0
      %2048 = vmatpush1.bf16.xpose.msra.mxu0 0
      %2049 = vmatprep.mubr.bf16.mxu0 0
      %2050 = vmatmul.mubr.bf16.gmra.mrb[0].mxu0 %v2012
      %v2051 = vpop.f32.mrb[0].mxu0
      %v2052 = vadd.f32 %v1683, %v2051
      %v2053 = vpop.f32.mrb[0].mxu0
      %v2054 = vpop.f32.mrb[0].mxu0
      %v2055 = vpop.f32.mrb[0].mxu0
      %2056 = vdwg.mxu0
      %v2057 = vsel %vm1439, %v2052, -inf
      %2058 = vmax.xlane.f32.xlu0 %v2057
      %v2059 = vpop.xlane.xlu0 %2058
      %v2060 = vsub.f32 %v2052, %v2059
      %v2061 = vmul.f32 %v2060, 1.442695
      %v2062 = vpow.pop %v2061
      %v2063 = vsel %vm1439, %v2062, 0.0
      %2064 = vadd.xlane.f32.xlu0 %v2063
      %v2065 = vpop.xlane.xlu0 %2064
      %v2066 = vrcp.pop %v2065
      %v2067 = vmul.f32 %v2062, %v2066
      %v2068 = vpack.c.bf16 %v2067, %v2067
      %2069 = vrot.lane.b32.xlu0 %v1678, 72
      %v2070 = vpop.permute.xlu0 %2069
      %v2073 = vsel %vm1439, %v2068, 0
      %2075 = vmatprep.subr.bf16.mxu0 0
      %2076 = vmatpush1.bf16.msra.mxu0 %v2070
      %2077 = vmatprep.subr.bf16.mxu0 0
      %2078 = vmatpush1.bf16.msra.mxu0 0
      %2079 = vmatprep.subr.bf16.mxu0 0
      %2080 = vmatpush1.bf16.msra.mxu0 0
      %2081 = vmatprep.subr.bf16.mxu0 0
      %2082 = vmatpush1.bf16.msra.mxu0 0
      %2083 = vmatprep.subr.bf16.mxu0 0
      %2084 = vmatpush1.bf16.msra.mxu0 0
      %2085 = vmatprep.subr.bf16.mxu0 0
      %2086 = vmatpush1.bf16.msra.mxu0 0
      %2087 = vmatprep.subr.bf16.mxu0 0
      %2088 = vmatpush1.bf16.msra.mxu0 0
      %2089 = vmatprep.subr.bf16.mxu0 0
      %2090 = vmatpush1.bf16.msra.mxu0 0
      %2091 = vmatprep.subr.bf16.mxu0 0
      %2092 = vmatpush1.bf16.msra.mxu0 0
      %2093 = vmatprep.subr.bf16.mxu0 0
      %2094 = vmatpush1.bf16.msra.mxu0 0
      %2095 = vmatprep.subr.bf16.mxu0 0
      %2096 = vmatpush1.bf16.msra.mxu0 0
      %2097 = vmatprep.subr.bf16.mxu0 0
      %2098 = vmatpush1.bf16.msra.mxu0 0
      %2099 = vmatprep.subr.bf16.mxu0 0
      %2100 = vmatpush1.bf16.msra.mxu0 0
      %2101 = vmatprep.subr.bf16.mxu0 0
      %2102 = vmatpush1.bf16.msra.mxu0 0
      %2103 = vmatprep.subr.bf16.mxu0 0
      %2104 = vmatpush1.bf16.msra.mxu0 0
      %2105 = vmatprep.subr.bf16.mxu0 0
      %2106 = vmatpush1.bf16.msra.mxu0 0
      %2107 = vmatprep.mubr.bf16.mxu0 0
      %2108 = vmatmul.mubr.bf16.gmra.mrb[0].mxu0 %v2073
      %v2109 = vpop.f32.mrb[0].mxu0
      %v2110 = vadd.f32 0.0, %v2109
      %v2111 = vpop.f32.mrb[0].mxu0
      %v2112 = vpop.f32.mrb[0].mxu0
      %v2113 = vpop.f32.mrb[0].mxu0
      %2114 = vdwg.mxu0
      %2116 = vrot.lane.b32.xlu0 %v1894, 8
      %v2117 = vpop.permute.xlu0 %2116
      %2120 = vrot.lane.b32.xlu0 %v2002, 16
      %v2121 = vpop.permute.xlu0 %2120
      %2124 = vrot.lane.b32.xlu0 %v2110, 24
      %v2125 = vpop.permute.xlu0 %2124
      %v2127 = vsel %vm986, %v1785, %v2117
      %v2128 = vsel %vm1439, %v2127, %v2121
      %v2129 = vsel %vm1441, %v2128, %v2125
      %v2130 = vpack.c.bf16 %v2129, %v2129
      %v2132 = vlaneseq
      %v2133 = vshrl.u32 %v2132, 7
      %v2134 = vsub.s32 0, %v2133
      %v2135 = vrot.slane %v1550, %v2134
      %v2141 = vunpack.c.l.b16 %v1546
      %v2142 = vunpack.c.l.b16 %v1547
      %v2143 = vunpack.c.l.b16 %v1548
      %v2144 = vunpack.c.l.b16 %v1549
      %v2145 = vpack.c.b16 %v2142, %v2141
      %v2146 = vpack.c.b16 %v2144, %v2143
      %v2150 = vsel %vm875, %v2130, 0
      %2152 = vmatprep.subr.bf16.mxu0 0
      %2153 = vmatpush1.bf16.msra.mxu0 %v2145
      %2154 = vmatprep.subr.bf16.mxu0 0
      %2155 = vmatpush1.bf16.msra.mxu0 %v2146
      %2156 = vmatprep.subr.bf16.mxu0 0
      %2157 = vmatpush1.bf16.msra.mxu0 0
      %2158 = vmatprep.subr.bf16.mxu0 0
      %2159 = vmatpush1.bf16.msra.mxu0 0
      %2160 = vmatprep.subr.bf16.mxu0 0
      %2161 = vmatpush1.bf16.msra.mxu0 0
      %2162 = vmatprep.subr.bf16.mxu0 0
      %2163 = vmatpush1.bf16.msra.mxu0 0
      %2164 = vmatprep.subr.bf16.mxu0 0
      %2165 = vmatpush1.bf16.msra.mxu0 0
      %2166 = vmatprep.subr.bf16.mxu0 0
      %2167 = vmatpush1.bf16.msra.mxu0 0
      %2168 = vmatprep.subr.bf16.mxu0 0
      %2169 = vmatpush1.bf16.msra.mxu0 0
      %2170 = vmatprep.subr.bf16.mxu0 0
      %2171 = vmatpush1.bf16.msra.mxu0 0
      %2172 = vmatprep.subr.bf16.mxu0 0
      %2173 = vmatpush1.bf16.msra.mxu0 0
      %2174 = vmatprep.subr.bf16.mxu0 0
      %2175 = vmatpush1.bf16.msra.mxu0 0
      %2176 = vmatprep.subr.bf16.mxu0 0
      %2177 = vmatpush1.bf16.msra.mxu0 0
      %2178 = vmatprep.subr.bf16.mxu0 0
      %2179 = vmatpush1.bf16.msra.mxu0 0
      %2180 = vmatprep.subr.bf16.mxu0 0
      %2181 = vmatpush1.bf16.msra.mxu0 0
      %2182 = vmatprep.subr.bf16.mxu0 0
      %2183 = vmatpush1.bf16.msra.mxu0 0
      %2184 = vmatprep.mubr.bf16.mxu0 0
      %2185 = vmatmul.mubr.bf16.gmra.mrb[0].mxu0 %v2150
      %v2186 = vpop.f32.mrb[0].mxu0
      %v2187 = vadd.f32 %v2135, %v2186
      %v2188 = vpop.f32.mrb[0].mxu0
      %v2189 = vpop.f32.mrb[0].mxu0
      %v2190 = vpop.f32.mrb[0].mxu0
      %2191 = vdwg.mxu0
      %v2192 = vadd.f32 %v1535, %v2187
      %v2193 = vld [vmem:[%s18] sm:$0x1]
      %v2194 = vld [vmem:[%s19] sm:$0x1]
      %v2195 = vsel %vm875, %v2192, 0.0
      %2196 = vadd.xlane.f32.xlu0 %v2195
      %v2197 = vpop.xlane.xlu0 %2196
      %v2198 = vmul.f32 %v2197, %v1511
      %v2199 = vsub.f32 %v2192, %v2198
      %v2200 = vmul.f32 %v2199, %v2199
      %v2201 = vsel %vm875, %v2200, 0.0
      %2202 = vadd.xlane.f32.xlu0 %v2201
      %v2203 = vpop.xlane.xlu0 %2202
      %v2204 = vmul.f32 %v2203, %v1511
      %v2205 = vadd.f32 %v2204, 1e-06
      %v2206 = vrsqrt.pop %v2205
      %v2207 = vmul.f32 %v2199, %v2206
      %v2209 = vlaneseq
      %v2210 = vshrl.u32 %v2209, 7
      %v2211 = vsub.s32 0, %v2210
      %v2212 = vrot.slane %v2193, %v2211
      %v2214 = vmul.f32 %v2207, %v2212
      %v2216 = vlaneseq
      %v2217 = vshrl.u32 %v2216, 7
      %v2218 = vsub.s32 0, %v2217
      %v2219 = vrot.slane %v2194, %v2218
      %v2221 = vadd.f32 %v2214, %v2219
      %v2222 = vpack.c.bf16 %v2221, %v2221
      %v2223 = vld [vmem:[%s20] sm:$0xf]
      %v2224 = vld [vmem:[%s20 + $0x4] sm:$0xf]
      %v2225 = vld [vmem:[%s20 + $0x8] sm:$0xf]
      %v2226 = vld [vmem:[%s20 + $0xc] sm:$0xf]
      %v2227 = vld [vmem:[%s21] sm:$0x1]
      %v2229 = vlaneseq
      %v2230 = vshrl.u32 %v2229, 7
      %v2231 = vsub.s32 0, %v2230
      %v2232 = vrot.slane %v2227, %v2231
      %v2238 = vunpack.c.l.b16 %v2223
      %v2239 = vunpack.c.l.b16 %v2224
      %v2240 = vunpack.c.l.b16 %v2225
      %v2241 = vunpack.c.l.b16 %v2226
      %v2242 = vpack.c.b16 %v2239, %v2238
      %v2243 = vpack.c.b16 %v2241, %v2240
      %v2247 = vsel %vm875, %v2222, 0
      %2249 = vmatprep.subr.bf16.mxu0 0
      %2250 = vmatpush1.bf16.msra.mxu0 %v2242
      %2251 = vmatprep.subr.bf16.mxu0 0
      %2252 = vmatpush1.bf16.msra.mxu0 %v2243
      %2253 = vmatprep.subr.bf16.mxu0 0
      %2254 = vmatpush1.bf16.msra.mxu0 0
      %2255 = vmatprep.subr.bf16.mxu0 0
      %2256 = vmatpush1.bf16.msra.mxu0 0
      %2257 = vmatprep.subr.bf16.mxu0 0
      %2258 = vmatpush1.bf16.msra.mxu0 0
      %2259 = vmatprep.subr.bf16.mxu0 0
      %2260 = vmatpush1.bf16.msra.mxu0 0
      %2261 = vmatprep.subr.bf16.mxu0 0
      %2262 = vmatpush1.bf16.msra.mxu0 0
      %2263 = vmatprep.subr.bf16.mxu0 0
      %2264 = vmatpush1.bf16.msra.mxu0 0
      %2265 = vmatprep.subr.bf16.mxu0 0
      %2266 = vmatpush1.bf16.msra.mxu0 0
      %2267 = vmatprep.subr.bf16.mxu0 0
      %2268 = vmatpush1.bf16.msra.mxu0 0
      %2269 = vmatprep.subr.bf16.mxu0 0
      %2270 = vmatpush1.bf16.msra.mxu0 0
      %2271 = vmatprep.subr.bf16.mxu0 0
      %2272 = vmatpush1.bf16.msra.mxu0 0
      %2273 = vmatprep.subr.bf16.mxu0 0
      %2274 = vmatpush1.bf16.msra.mxu0 0
      %2275 = vmatprep.subr.bf16.mxu0 0
      %2276 = vmatpush1.bf16.msra.mxu0 0
      %2277 = vmatprep.subr.bf16.mxu0 0
      %2278 = vmatpush1.bf16.msra.mxu0 0
      %2279 = vmatprep.subr.bf16.mxu0 0
      %2280 = vmatpush1.bf16.msra.mxu0 0
      %2281 = vmatprep.mubr.bf16.mxu0 0
      %2282 = vmatmul.mubr.bf16.gmra.mrb[0].mxu0 %v2247
      %v2283 = vpop.f32.mrb[0].mxu0
      %v2284 = vadd.f32 %v2232, %v2283
      %v2285 = vpop.f32.mrb[0].mxu0
      %v2286 = vpop.f32.mrb[0].mxu0
      %v2287 = vpop.f32.mrb[0].mxu0
      %2288 = vdwg.mxu0
      %v2289 = vmax.f32 %v2284, 0.0
      %v2290 = vpack.c.bf16 %v2289, %v2289
      %v2291 = vld [vmem:[%s22] sm:$0xf]
      %v2292 = vld [vmem:[%s22 + $0x4] sm:$0xf]
      %v2293 = vld [vmem:[%s22 + $0x8] sm:$0xf]
      %v2294 = vld [vmem:[%s22 + $0xc] sm:$0xf]
      %v2295 = vld [vmem:[%s22 + $0x10] sm:$0xf]
      %v2296 = vld [vmem:[%s22 + $0x14] sm:$0xf]
      %v2297 = vld [vmem:[%s22 + $0x18] sm:$0xf]
      %v2298 = vld [vmem:[%s22 + $0x1c] sm:$0xf]
      %v2299 = vld [vmem:[%s23] sm:$0x1]
      %v2301 = vlaneseq
      %v2302 = vshrl.u32 %v2301, 7
      %v2303 = vsub.s32 0, %v2302
      %v2304 = vrot.slane %v2299, %v2303
      %v2314 = vunpack.c.l.b16 %v2291
      %v2315 = vunpack.c.l.b16 %v2292
      %v2316 = vunpack.c.l.b16 %v2293
      %v2317 = vunpack.c.l.b16 %v2294
      %v2318 = vunpack.c.l.b16 %v2295
      %v2319 = vunpack.c.l.b16 %v2296
      %v2320 = vunpack.c.l.b16 %v2297
      %v2321 = vunpack.c.l.b16 %v2298
      %v2322 = vpack.c.b16 %v2315, %v2314
      %v2323 = vpack.c.b16 %v2317, %v2316
      %v2324 = vpack.c.b16 %v2319, %v2318
      %v2325 = vpack.c.b16 %v2321, %v2320
      %vm2330 = vcmask 523264
      %v2332 = vsel %vm2330, %v2290, 0
      %2334 = vmatprep.subr.bf16.mxu0 0
      %2335 = vmatpush1.bf16.msra.mxu0 %v2322
      %2336 = vmatprep.subr.bf16.mxu0 0
      %2337 = vmatpush1.bf16.msra.mxu0 %v2323
      %2338 = vmatprep.subr.bf16.mxu0 0
      %2339 = vmatpush1.bf16.msra.mxu0 %v2324
      %2340 = vmatprep.subr.bf16.mxu0 0
      %2341 = vmatpush1.bf16.msra.mxu0 %v2325
      %2342 = vmatprep.subr.bf16.mxu0 0
      %2343 = vmatpush1.bf16.msra.mxu0 0
      %2344 = vmatprep.subr.bf16.mxu0 0
      %2345 = vmatpush1.bf16.msra.mxu0 0
      %2346 = vmatprep.subr.bf16.mxu0 0
      %2347 = vmatpush1.bf16.msra.mxu0 0
      %2348 = vmatprep.subr.bf16.mxu0 0
      %2349 = vmatpush1.bf16.msra.mxu0 0
      %2350 = vmatprep.subr.bf16.mxu0 0
      %2351 = vmatpush1.bf16.msra.mxu0 0
      %2352 = vmatprep.subr.bf16.mxu0 0
      %2353 = vmatpush1.bf16.msra.mxu0 0
      %2354 = vmatprep.subr.bf16.mxu0 0
      %2355 = vmatpush1.bf16.msra.mxu0 0
      %2356 = vmatprep.subr.bf16.mxu0 0
      %2357 = vmatpush1.bf16.msra.mxu0 0
      %2358 = vmatprep.subr.bf16.mxu0 0
      %2359 = vmatpush1.bf16.msra.mxu0 0
      %2360 = vmatprep.subr.bf16.mxu0 0
      %2361 = vmatpush1.bf16.msra.mxu0 0
      %2362 = vmatprep.subr.bf16.mxu0 0
      %2363 = vmatpush1.bf16.msra.mxu0 0
      %2364 = vmatprep.subr.bf16.mxu0 0
      %2365 = vmatpush1.bf16.msra.mxu0 0
      %2366 = vmatprep.mubr.bf16.mxu0 0
      %2367 = vmatmul.mubr.bf16.gmra.mrb[0].mxu0 %v2332
      %v2368 = vpop.f32.mrb[0].mxu0
      %v2369 = vadd.f32 %v2304, %v2368
      %v2370 = vpop.f32.mrb[0].mxu0
      %v2371 = vpop.f32.mrb[0].mxu0
      %v2372 = vpop.f32.mrb[0].mxu0
      %2373 = vdwg.mxu0
      %v2374 = vadd.f32 %v2221, %v2369
      %v2375 = vld [vmem:[%s24] sm:$0x1]
      %v2376 = vld [vmem:[%s25] sm:$0x1]
      %v2377 = vsel %vm875, %v2374, 0.0
      %2378 = vadd.xlane.f32.xlu0 %v2377
      %v2379 = vpop.xlane.xlu0 %2378
      %v2380 = vmul.f32 %v2379, %v1511
      %v2381 = vsub.f32 %v2374, %v2380
      %v2382 = vmul.f32 %v2381, %v2381
      %v2383 = vsel %vm875, %v2382, 0.0
      %2384 = vadd.xlane.f32.xlu0 %v2383
      %v2385 = vpop.xlane.xlu0 %2384
      %v2386 = vmul.f32 %v2385, %v1511
      %v2387 = vadd.f32 %v2386, 1e-06
      %v2388 = vrsqrt.pop %v2387
      %v2389 = vmul.f32 %v2381, %v2388
      %v2391 = vlaneseq
      %v2392 = vshrl.u32 %v2391, 7
      %v2393 = vsub.s32 0, %v2392
      %v2394 = vrot.slane %v2375, %v2393
      %v2396 = vmul.f32 %v2389, %v2394
      %v2398 = vlaneseq
      %v2399 = vshrl.u32 %v2398, 7
      %v2400 = vsub.s32 0, %v2399
      %v2401 = vrot.slane %v2376, %v2400
      %v2403 = vadd.f32 %v2396, %v2401
      %2404 = vst.msk [vmem:[%s834] sm:$0xff] %vm875, %v2403
      %p2405 = scmp.lt.s32.totalorder %s37, 1
      %s2406 = scalar_select %p2405, %s37, 1
      %s2407 = smul.addr %s2406, 8
      %s2408 = scalar_lea.vmem %s26, %s2407
      // Predicated region
      $region125: #{_lambda_.4} parent=123 // pred_check
        %p2409 = pneg %p621
      $region126: #{_lambda_.4} parent=123 // pred_check_branch
        %2411 = sbr.rel (%p2409) target = $region128
      $region127: #{_lambda_.4} parent=123 // pred_region
        _
      $region128: #{_lambda_.4} parent=123 // pred_fallthru
        _
    $region124: #{_lambda_.4} parent=5 // pred_fallthru
      _
    %p2412 = scmp.le.s32.totalorder 2, %s32
    // Predicated region
    $region129: #{_lambda_.4} parent=5 // pred_check
      %p2413 = pneg %p2412
    $region130: #{_lambda_.4} parent=5 // pred_check_branch
      %2415 = sbr.rel (%p2413) target = $region132
    $region131: #{_lambda_.4} parent=5 // pred_region
      %s2416 = ssub.s32 %s32, 2
      // Predicated region
      $region133: #{_lambda_.4} parent=131 // pred_check
        %p2417 = pneg %p627
      $region134: #{_lambda_.4} parent=131 // pred_check_branch
        %2419 = sbr.rel (%p2417) target = $region136
      $region135: #{_lambda_.4} parent=131 // pred_region
        %p2420 = scmp.lt.s32.totalorder %s38, 1
        %s2421 = scalar_select %p2420, %s38, 1
        %s2422 = smul.addr %s2421, 8
        %s2423 = scalar_lea.vmem %s26, %s2422
      $region136: #{_lambda_.4} parent=131 // pred_fallthru
        _
    $region132: #{_lambda_.4} parent=5 // pred_fallthru
      _
  $region6: #{_lambda_.4} parent=0 // loop_footer
    %s36 = sadd.s32 1, %s32
  $region7: #{_lambda_.4} parent=0 // loop_footer_branch
    %31 = sbr.rel target = $region3
  $region8: #{_lambda_.4} parent=0 // loop_exit
    _

// kernel: _lambda_.6
$region0: #{_lambda_.6}
  #allocation0 [shape = 'u32[]', space=smem, size = 0x4, offset = 0x4, fixed_abs, tag = 'smem constant byte address 0x4 - core index']
  #allocation1 [shape = 'u32[144,128]{1,0:T(1,128)}', space=vmem, size = 0x12000, scoped, tag = 'internal scratch']
  %s0 = inlined_call_operand.vmem [shape: f32[2,16,32], index: 0, kind: input, shape index: {}]
  %s1 = inlined_call_operand.vmem [shape: f32[2,8,32], index: 1, kind: input, shape index: {}]
  %s2 = inlined_call_operand.vmem [shape: f32[2,1,16], index: 2, kind: input, shape index: {}]
  %s3 = inlined_call_operand.vmem [shape: f32[2,1,8], index: 3, kind: input, shape index: {}]
  %s4 = inlined_call_operand.vmem [shape: bf16[32,32], index: 4, kind: input, shape index: {}]
  %s5 = inlined_call_operand.hbm [shape: f32[1,32], index: 5, kind: input, shape index: {}]
  %s6 = inlined_call_operand.vmem [shape: bf16[32,64], index: 6, kind: input, shape index: {}]
  %s7 = inlined_call_operand.hbm [shape: f32[1,64], index: 7, kind: input, shape index: {}]
  %s8 = inlined_call_operand.vmem [shape: bf16[32,32], index: 8, kind: input, shape index: {}]
  %s9 = inlined_call_operand.hbm [shape: f32[1,32], index: 9, kind: input, shape index: {}]
  %s10 = inlined_call_operand.vmem [shape: f32[1,32], index: 10, kind: input, shape index: {}, may-alias: {10,18,24}]
  %s11 = inlined_call_operand.vmem [shape: f32[1,32], index: 11, kind: input, shape index: {}, may-alias: {11,19,25}]
  %s12 = inlined_call_operand.vmem [shape: bf16[32,32], index: 12, kind: input, shape index: {}]
  %s13 = inlined_call_operand.hbm [shape: f32[1,32], index: 13, kind: input, shape index: {}]
  %s14 = inlined_call_operand.vmem [shape: bf16[32,64], index: 14, kind: input, shape index: {}]
  %s15 = inlined_call_operand.hbm [shape: f32[1,64], index: 15, kind: input, shape index: {}]
  %s16 = inlined_call_operand.vmem [shape: bf16[32,32], index: 16, kind: input, shape index: {}]
  %s17 = inlined_call_operand.hbm [shape: f32[1,32], index: 17, kind: input, shape index: {}]
  %s18 = inlined_call_operand.vmem [shape: f32[1,32], index: 18, kind: input, shape index: {}, may-alias: {10,18,24}]
  %s19 = inlined_call_operand.vmem [shape: f32[1,32], index: 19, kind: input, shape index: {}, may-alias: {11,19,25}]
  %s20 = inlined_call_operand.vmem [shape: bf16[32,64], index: 20, kind: input, shape index: {}]
  %s21 = inlined_call_operand.hbm [shape: f32[1,64], index: 21, kind: input, shape index: {}]
  %s22 = inlined_call_operand.vmem [shape: bf16[64,32], index: 22, kind: input, shape index: {}]
  %s23 = inlined_call_operand.hbm [shape: f32[1,32], index: 23, kind: input, shape index: {}]
  %s24 = inlined_call_operand.vmem [shape: f32[1,32], index: 24, kind: input, shape index: {}, may-alias: {10,18,24}]
  %s25 = inlined_call_operand.vmem [shape: f32[1,32], index: 25, kind: input, shape index: {}, may-alias: {11,19,25}]
  %s26 = inlined_call_operand.vmem [shape: f32[2,16,32], index: 26, kind: output, shape index: {}]
  %s27 = sld [smem:[#allocation0]]
  $region169: #{_lambda_.6} parent=0
    _
  %s29 = ssub.s32 1, %s27
  %s30 = scalar_select 0, %s29, %s27
  $region1: #{_lambda_.6} parent=0
    #allocation2 [shape = 'u8[512]{0}', space=vmem, size = 0x400, scoped, tag = 'input window, operand 5, single buffered']
    #allocation3 [shape = 's32[2]{0}', space=sflag, size = 0x8, scoped, tag = 'scoped memory for _lambda_.6']
    #allocation4 [shape = 'u8[512]{0}', space=vmem, size = 0x400, scoped, tag = 'input window, operand 7, single buffered']
    #allocation5 [shape = 's32[1]{0}', space=sflag, size = 0x4, scoped, tag = 'scoped memory for _lambda_.6']
    #allocation6 [shape = 'u8[512]{0}', space=vmem, size = 0x400, scoped, tag = 'input window, operand 9, single buffered']
    #allocation7 [shape = 'u8[512]{0}', space=vmem, size = 0x400, scoped, tag = 'input window, operand 13, single buffered']
    #allocation8 [shape = 's32[1]{0}', space=sflag, size = 0x4, scoped, tag = 'scoped memory for _lambda_.6']
    #allocation9 [shape = 'u8[512]{0}', space=vmem, size = 0x400, scoped, tag = 'input window, operand 15, single buffered']
    #allocation10 [shape = 'u8[512]{0}', space=vmem, size = 0x400, scoped, tag = 'input window, operand 17, single buffered']
    #allocation11 [shape = 's32[1]{0}', space=sflag, size = 0x4, scoped, tag = 'scoped memory for _lambda_.6']
    #allocation12 [shape = 'u8[512]{0}', space=vmem, size = 0x400, scoped, tag = 'input window, operand 21, single buffered']
    #allocation13 [shape = 'u8[512]{0}', space=vmem, size = 0x400, scoped, tag = 'input window, operand 23, single buffered']
    #allocation14 [shape = 's32[1]{0}', space=sflag, size = 0x4, scoped, tag = 'scoped memory for _lambda_.6']
    %31 = vsyncpa [#allocation3], 0
    %32 = vsyncpa [#allocation5], 0
    %33 = vsyncpa [#allocation8], 0
    %34 = vsyncpa [#allocation11], 0
    %35 = vsyncpa [#allocation14], 0
    loop: start=0, step=1, limit=4
    $region2: #{_lambda_.6} parent=1 // loop_pre_header
      _
    $region3: #{_lambda_.6} parent=1 // loop_header
      %s37 = sphi 0, %s41
      %p38 = scmp.ge.s32.totalorder %s37, 4
      %s47 = sphi 0, %s49
      %s50 = sphi 0, %s47
      %s51 = sphi 0, %s50
      %s67 = sphi 0, %s51
      %s73 = sphi 0, %s75
      %s76 = sphi 0, %s73
      %s77 = sphi 0, %s76
      %s93 = sphi 0, %s77
      %s99 = sphi 0, %s101
      %s102 = sphi 0, %s99
      %s103 = sphi 0, %s102
      %s119 = sphi 0, %s103
      %s125 = sphi 0, %s127
      %s128 = sphi 0, %s125
      %s129 = sphi 0, %s128
      %s145 = sphi 0, %s129
      %s149 = sphi 0, %s149
      %s151 = sphi 0, %s149
      %s152 = sphi 0, %s151
      %s166 = sphi 0, %s152
      %s170 = sphi 0, %s170
      %s172 = sphi 0, %s170
      %s173 = sphi 0, %s172
      %s187 = sphi 0, %s173
      %s191 = sphi 0, %s191
      %s193 = sphi 0, %s191
      %s194 = sphi 0, %s193
      %s208 = sphi 0, %s194
      %s212 = sphi 0, %s212
      %s214 = sphi 0, %s212
      %s215 = sphi 0, %s214
      %s229 = sphi 0, %s215
      %s233 = sphi 0, %s233
      %s235 = sphi 0, %s233
      %s236 = sphi 0, %s235
      %s250 = sphi 0, %s236
      %s254 = sphi 0, %s254
      %s256 = sphi 0, %s254
      %s257 = sphi 0, %s256
      %s271 = sphi 0, %s257
      %s275 = sphi 0, %s275
      %s277 = sphi 0, %s275
      %s278 = sphi 0, %s277
      %s292 = sphi 0, %s278
      %s296 = sphi 0, %s296
      %s298 = sphi 0, %s296
      %s299 = sphi 0, %s298
      %s313 = sphi 0, %s299
      %s317 = sphi 0, %s317
      %s319 = sphi 0, %s317
      %s320 = sphi 0, %s319
      %s334 = sphi 0, %s320
      %s338 = sphi 0, %s338
      %s340 = sphi 0, %s338
      %s341 = sphi 0, %s340
      %s355 = sphi 0, %s341
      %s359 = sphi 0, %s359
      %s361 = sphi 0, %s359
      %s362 = sphi 0, %s361
      %s376 = sphi 0, %s362
      %s380 = sphi 0, %s380
      %s382 = sphi 0, %s380
      %s383 = sphi 0, %s382
      %s397 = sphi 0, %s383
      %s401 = sphi 0, %s401
      %s403 = sphi 0, %s401
      %s404 = sphi 0, %s403
      %s418 = sphi 0, %s404
      %s422 = sphi 0, %s422
      %s424 = sphi 0, %s422
      %s425 = sphi 0, %s424
      %s439 = sphi 0, %s425
      %s443 = sphi 0, %s443
      %s445 = sphi 0, %s443
      %s446 = sphi 0, %s445
      %s460 = sphi 0, %s446
      %s464 = sphi 0, %s464
      %s466 = sphi 0, %s464
      %s467 = sphi 0, %s466
      %s481 = sphi 0, %s467
      %s485 = sphi 0, %s485
      %s487 = sphi 0, %s485
      %s488 = sphi 0, %s487
      %s502 = sphi 0, %s488
      %s506 = sphi 0, %s506
      %s508 = sphi 0, %s506
      %s509 = sphi 0, %s508
      %s523 = sphi 0, %s509
      %s527 = sphi 0, %s527
      %s529 = sphi 0, %s527
      %s530 = sphi 0, %s529
      %s544 = sphi 0, %s530
      %s548 = sphi 0, %s548
      %s550 = sphi 0, %s548
      %s551 = sphi 0, %s550
      %s565 = sphi 0, %s551
      %s569 = sphi 0, %s569
      %s571 = sphi 0, %s569
      %s572 = sphi 0, %s571
      %s586 = sphi 0, %s572
      %s590 = sphi 0, %s590
      %s592 = sphi 0, %s590
      %s593 = sphi 0, %s592
      %s607 = sphi 0, %s593
      %s613 = sphi 0, %s615
      %s616 = sphi 0, %s613
      %s617 = sphi 0, %s616
      %s633 = sphi 0, %s617
    $region4: #{_lambda_.6} parent=1 // loop_header_branch
      %40 = sbr.rel (%p38) target = $region8
    $region5: #{_lambda_.6} parent=1 // loop_body
      %s42 = ssub.s32 %s37, 1
      %s43 = ssub.s32 %s37, 2
      %s44 = sadd.s32 %s37, 1
      %s45 = ssub.s32 %s37, %s44
      %p46 = scmp.eq.s32.totalorder %s45, 0
      %s48 = sadd.s32 %s47, 1
      %s49 = scalar_select %p46, %s47, %s48
      %p52 = pneg %p46
      %p53 = scmp.eq.s32.totalorder %s37, 1
      %p54 = por %p52, %p53
      %p55 = scmp.ne.s32.totalorder %s47, %s50
      %p56 = scmp.eq.s32.totalorder %s37, 0
      %p57 = por %p55, %p56
      %p58 = scmp.ne.s32.totalorder %s47, %s50
      %p59 = scmp.eq.s32.totalorder %s42, 1
      %p60 = por %p58, %p59
      %p61 = scmp.ne.s32.totalorder %s50, %s51
      %p62 = scmp.eq.s32.totalorder %s42, 0
      %p63 = por %p61, %p62
      %p64 = scmp.ne.s32.totalorder %s50, %s51
      %p65 = scmp.eq.s32.totalorder %s43, 1
      %p66 = por %p64, %p65
      %p68 = scmp.ne.s32.totalorder %s51, %s67
      %p69 = scmp.eq.s32.totalorder %s43, 0
      %p70 = por %p68, %p69
      %s71 = ssub.s32 %s37, %s44
      %p72 = scmp.eq.s32.totalorder %s71, 0
      %s74 = sadd.s32 %s73, 1
      %s75 = scalar_select %p72, %s73, %s74
      %p78 = pneg %p72
      %p79 = scmp.eq.s32.totalorder %s37, 1
      %p80 = por %p78, %p79
      %p81 = scmp.ne.s32.totalorder %s73, %s76
      %p82 = scmp.eq.s32.totalorder %s37, 0
      %p83 = por %p81, %p82
      %p84 = scmp.ne.s32.totalorder %s73, %s76
      %p85 = scmp.eq.s32.totalorder %s42, 1
      %p86 = por %p84, %p85
      %p87 = scmp.ne.s32.totalorder %s76, %s77
      %p88 = scmp.eq.s32.totalorder %s42, 0
      %p89 = por %p87, %p88
      %p90 = scmp.ne.s32.totalorder %s76, %s77
      %p91 = scmp.eq.s32.totalorder %s43, 1
      %p92 = por %p90, %p91
      %p94 = scmp.ne.s32.totalorder %s77, %s93
      %p95 = scmp.eq.s32.totalorder %s43, 0
      %p96 = por %p94, %p95
      %s97 = ssub.s32 %s37, %s44
      %p98 = scmp.eq.s32.totalorder %s97, 0
      %s100 = sadd.s32 %s99, 1
      %s101 = scalar_select %p98, %s99, %s100
      %p104 = pneg %p98
      %p105 = scmp.eq.s32.totalorder %s37, 1
      %p106 = por %p104, %p105
      %p107 = scmp.ne.s32.totalorder %s99, %s102
      %p108 = scmp.eq.s32.totalorder %s37, 0
      %p109 = por %p107, %p108
      %p110 = scmp.ne.s32.totalorder %s99, %s102
      %p111 = scmp.eq.s32.totalorder %s42, 1
      %p112 = por %p110, %p111
      %p113 = scmp.ne.s32.totalorder %s102, %s103
      %p114 = scmp.eq.s32.totalorder %s42, 0
      %p115 = por %p113, %p114
      %p116 = scmp.ne.s32.totalorder %s102, %s103
      %p117 = scmp.eq.s32.totalorder %s43, 1
      %p118 = por %p116, %p117
      %p120 = scmp.ne.s32.totalorder %s103, %s119
      %p121 = scmp.eq.s32.totalorder %s43, 0
      %p122 = por %p120, %p121
      %s123 = ssub.s32 %s37, %s44
      %p124 = scmp.eq.s32.totalorder %s123, 0
      %s126 = sadd.s32 %s125, 1
      %s127 = scalar_select %p124, %s125, %s126
      %p130 = pneg %p124
      %p131 = scmp.eq.s32.totalorder %s37, 1
      %p132 = por %p130, %p131
      %p133 = scmp.ne.s32.totalorder %s125, %s128
      %p134 = scmp.eq.s32.totalorder %s37, 0
      %p135 = por %p133, %p134
      %p136 = scmp.ne.s32.totalorder %s125, %s128
      %p137 = scmp.eq.s32.totalorder %s42, 1
      %p138 = por %p136, %p137
      %p139 = scmp.ne.s32.totalorder %s128, %s129
      %p140 = scmp.eq.s32.totalorder %s42, 0
      %p141 = por %p139, %p140
      %p142 = scmp.ne.s32.totalorder %s128, %s129
      %p143 = scmp.eq.s32.totalorder %s43, 1
      %p144 = por %p142, %p143
      %p146 = scmp.ne.s32.totalorder %s129, %s145
      %p147 = scmp.eq.s32.totalorder %s43, 0
      %p148 = por %p146, %p147
      %s150 = sadd.s32 %s149, 1
      %p153 = scmp.eq.s32.totalorder %s37, 1
      %p154 = scmp.ne.s32.totalorder %s149, %s151
      %p155 = scmp.eq.s32.totalorder %s37, 0
      %p156 = por %p154, %p155
      %p157 = scmp.ne.s32.totalorder %s149, %s151
      %p158 = scmp.eq.s32.totalorder %s42, 1
      %p159 = por %p157, %p158
      %p160 = scmp.ne.s32.totalorder %s151, %s152
      %p161 = scmp.eq.s32.totalorder %s42, 0
      %p162 = por %p160, %p161
      %p163 = scmp.ne.s32.totalorder %s151, %s152
      %p164 = scmp.eq.s32.totalorder %s43, 1
      %p165 = por %p163, %p164
      %p167 = scmp.ne.s32.totalorder %s152, %s166
      %p168 = scmp.eq.s32.totalorder %s43, 0
      %p169 = por %p167, %p168
      %s171 = sadd.s32 %s170, 1
      %p174 = scmp.eq.s32.totalorder %s37, 1
      %p175 = scmp.ne.s32.totalorder %s170, %s172
      %p176 = scmp.eq.s32.totalorder %s37, 0
      %p177 = por %p175, %p176
      %p178 = scmp.ne.s32.totalorder %s170, %s172
      %p179 = scmp.eq.s32.totalorder %s42, 1
      %p180 = por %p178, %p179
      %p181 = scmp.ne.s32.totalorder %s172, %s173
      %p182 = scmp.eq.s32.totalorder %s42, 0
      %p183 = por %p181, %p182
      %p184 = scmp.ne.s32.totalorder %s172, %s173
      %p185 = scmp.eq.s32.totalorder %s43, 1
      %p186 = por %p184, %p185
      %p188 = scmp.ne.s32.totalorder %s173, %s187
      %p189 = scmp.eq.s32.totalorder %s43, 0
      %p190 = por %p188, %p189
      %s192 = sadd.s32 %s191, 1
      %p195 = scmp.eq.s32.totalorder %s37, 1
      %p196 = scmp.ne.s32.totalorder %s191, %s193
      %p197 = scmp.eq.s32.totalorder %s37, 0
      %p198 = por %p196, %p197
      %p199 = scmp.ne.s32.totalorder %s191, %s193
      %p200 = scmp.eq.s32.totalorder %s42, 1
      %p201 = por %p199, %p200
      %p202 = scmp.ne.s32.totalorder %s193, %s194
      %p203 = scmp.eq.s32.totalorder %s42, 0
      %p204 = por %p202, %p203
      %p205 = scmp.ne.s32.totalorder %s193, %s194
      %p206 = scmp.eq.s32.totalorder %s43, 1
      %p207 = por %p205, %p206
      %p209 = scmp.ne.s32.totalorder %s194, %s208
      %p210 = scmp.eq.s32.totalorder %s43, 0
      %p211 = por %p209, %p210
      %s213 = sadd.s32 %s212, 1
      %p216 = scmp.eq.s32.totalorder %s37, 1
      %p217 = scmp.ne.s32.totalorder %s212, %s214
      %p218 = scmp.eq.s32.totalorder %s37, 0
      %p219 = por %p217, %p218
      %p220 = scmp.ne.s32.totalorder %s212, %s214
      %p221 = scmp.eq.s32.totalorder %s42, 1
      %p222 = por %p220, %p221
      %p223 = scmp.ne.s32.totalorder %s214, %s215
      %p224 = scmp.eq.s32.totalorder %s42, 0
      %p225 = por %p223, %p224
      %p226 = scmp.ne.s32.totalorder %s214, %s215
      %p227 = scmp.eq.s32.totalorder %s43, 1
      %p228 = por %p226, %p227
      %p230 = scmp.ne.s32.totalorder %s215, %s229
      %p231 = scmp.eq.s32.totalorder %s43, 0
      %p232 = por %p230, %p231
      %s234 = sadd.s32 %s233, 1
      %p237 = scmp.eq.s32.totalorder %s37, 1
      %p238 = scmp.ne.s32.totalorder %s233, %s235
      %p239 = scmp.eq.s32.totalorder %s37, 0
      %p240 = por %p238, %p239
      %p241 = scmp.ne.s32.totalorder %s233, %s235
      %p242 = scmp.eq.s32.totalorder %s42, 1
      %p243 = por %p241, %p242
      %p244 = scmp.ne.s32.totalorder %s235, %s236
      %p245 = scmp.eq.s32.totalorder %s42, 0
      %p246 = por %p244, %p245
      %p247 = scmp.ne.s32.totalorder %s235, %s236
      %p248 = scmp.eq.s32.totalorder %s43, 1
      %p249 = por %p247, %p248
      %p251 = scmp.ne.s32.totalorder %s236, %s250
      %p252 = scmp.eq.s32.totalorder %s43, 0
      %p253 = por %p251, %p252
      %s255 = sadd.s32 %s254, 1
      %p258 = scmp.eq.s32.totalorder %s37, 1
      %p259 = scmp.ne.s32.totalorder %s254, %s256
      %p260 = scmp.eq.s32.totalorder %s37, 0
      %p261 = por %p259, %p260
      %p262 = scmp.ne.s32.totalorder %s254, %s256
      %p263 = scmp.eq.s32.totalorder %s42, 1
      %p264 = por %p262, %p263
      %p265 = scmp.ne.s32.totalorder %s256, %s257
      %p266 = scmp.eq.s32.totalorder %s42, 0
      %p267 = por %p265, %p266
      %p268 = scmp.ne.s32.totalorder %s256, %s257
      %p269 = scmp.eq.s32.totalorder %s43, 1
      %p270 = por %p268, %p269
      %p272 = scmp.ne.s32.totalorder %s257, %s271
      %p273 = scmp.eq.s32.totalorder %s43, 0
      %p274 = por %p272, %p273
      %s276 = sadd.s32 %s275, 1
      %p279 = scmp.eq.s32.totalorder %s37, 1
      %p280 = scmp.ne.s32.totalorder %s275, %s277
      %p281 = scmp.eq.s32.totalorder %s37, 0
      %p282 = por %p280, %p281
      %p283 = scmp.ne.s32.totalorder %s275, %s277
      %p284 = scmp.eq.s32.totalorder %s42, 1
      %p285 = por %p283, %p284
      %p286 = scmp.ne.s32.totalorder %s277, %s278
      %p287 = scmp.eq.s32.totalorder %s42, 0
      %p288 = por %p286, %p287
      %p289 = scmp.ne.s32.totalorder %s277, %s278
      %p290 = scmp.eq.s32.totalorder %s43, 1
      %p291 = por %p289, %p290
      %p293 = scmp.ne.s32.totalorder %s278, %s292
      %p294 = scmp.eq.s32.totalorder %s43, 0
      %p295 = por %p293, %p294
      %s297 = sadd.s32 %s296, 1
      %p300 = scmp.eq.s32.totalorder %s37, 1
      %p301 = scmp.ne.s32.totalorder %s296, %s298
      %p302 = scmp.eq.s32.totalorder %s37, 0
      %p303 = por %p301, %p302
      %p304 = scmp.ne.s32.totalorder %s296, %s298
      %p305 = scmp.eq.s32.totalorder %s42, 1
      %p306 = por %p304, %p305
      %p307 = scmp.ne.s32.totalorder %s298, %s299
      %p308 = scmp.eq.s32.totalorder %s42, 0
      %p309 = por %p307, %p308
      %p310 = scmp.ne.s32.totalorder %s298, %s299
      %p311 = scmp.eq.s32.totalorder %s43, 1
      %p312 = por %p310, %p311
      %p314 = scmp.ne.s32.totalorder %s299, %s313
      %p315 = scmp.eq.s32.totalorder %s43, 0
      %p316 = por %p314, %p315
      %s318 = sadd.s32 %s317, 1
      %p321 = scmp.eq.s32.totalorder %s37, 1
      %p322 = scmp.ne.s32.totalorder %s317, %s319
      %p323 = scmp.eq.s32.totalorder %s37, 0
      %p324 = por %p322, %p323
      %p325 = scmp.ne.s32.totalorder %s317, %s319
      %p326 = scmp.eq.s32.totalorder %s42, 1
      %p327 = por %p325, %p326
      %p328 = scmp.ne.s32.totalorder %s319, %s320
      %p329 = scmp.eq.s32.totalorder %s42, 0
      %p330 = por %p328, %p329
      %p331 = scmp.ne.s32.totalorder %s319, %s320
      %p332 = scmp.eq.s32.totalorder %s43, 1
      %p333 = por %p331, %p332
      %p335 = scmp.ne.s32.totalorder %s320, %s334
      %p336 = scmp.eq.s32.totalorder %s43, 0
      %p337 = por %p335, %p336
      %s339 = sadd.s32 %s338, 1
      %p342 = scmp.eq.s32.totalorder %s37, 1
      %p343 = scmp.ne.s32.totalorder %s338, %s340
      %p344 = scmp.eq.s32.totalorder %s37, 0
      %p345 = por %p343, %p344
      %p346 = scmp.ne.s32.totalorder %s338, %s340
      %p347 = scmp.eq.s32.totalorder %s42, 1
      %p348 = por %p346, %p347
      %p349 = scmp.ne.s32.totalorder %s340, %s341
      %p350 = scmp.eq.s32.totalorder %s42, 0
      %p351 = por %p349, %p350
      %p352 = scmp.ne.s32.totalorder %s340, %s341
      %p353 = scmp.eq.s32.totalorder %s43, 1
      %p354 = por %p352, %p353
      %p356 = scmp.ne.s32.totalorder %s341, %s355
      %p357 = scmp.eq.s32.totalorder %s43, 0
      %p358 = por %p356, %p357
      %s360 = sadd.s32 %s359, 1
      %p363 = scmp.eq.s32.totalorder %s37, 1
      %p364 = scmp.ne.s32.totalorder %s359, %s361
      %p365 = scmp.eq.s32.totalorder %s37, 0
      %p366 = por %p364, %p365
      %p367 = scmp.ne.s32.totalorder %s359, %s361
      %p368 = scmp.eq.s32.totalorder %s42, 1
      %p369 = por %p367, %p368
      %p370 = scmp.ne.s32.totalorder %s361, %s362
      %p371 = scmp.eq.s32.totalorder %s42, 0
      %p372 = por %p370, %p371
      %p373 = scmp.ne.s32.totalorder %s361, %s362
      %p374 = scmp.eq.s32.totalorder %s43, 1
      %p375 = por %p373, %p374
      %p377 = scmp.ne.s32.totalorder %s362, %s376
      %p378 = scmp.eq.s32.totalorder %s43, 0
      %p379 = por %p377, %p378
      %s381 = sadd.s32 %s380, 1
      %p384 = scmp.eq.s32.totalorder %s37, 1
      %p385 = scmp.ne.s32.totalorder %s380, %s382
      %p386 = scmp.eq.s32.totalorder %s37, 0
      %p387 = por %p385, %p386
      %p388 = scmp.ne.s32.totalorder %s380, %s382
      %p389 = scmp.eq.s32.totalorder %s42, 1
      %p390 = por %p388, %p389
      %p391 = scmp.ne.s32.totalorder %s382, %s383
      %p392 = scmp.eq.s32.totalorder %s42, 0
      %p393 = por %p391, %p392
      %p394 = scmp.ne.s32.totalorder %s382, %s383
      %p395 = scmp.eq.s32.totalorder %s43, 1
      %p396 = por %p394, %p395
      %p398 = scmp.ne.s32.totalorder %s383, %s397
      %p399 = scmp.eq.s32.totalorder %s43, 0
      %p400 = por %p398, %p399
      %s402 = sadd.s32 %s401, 1
      %p405 = scmp.eq.s32.totalorder %s37, 1
      %p406 = scmp.ne.s32.totalorder %s401, %s403
      %p407 = scmp.eq.s32.totalorder %s37, 0
      %p408 = por %p406, %p407
      %p409 = scmp.ne.s32.totalorder %s401, %s403
      %p410 = scmp.eq.s32.totalorder %s42, 1
      %p411 = por %p409, %p410
      %p412 = scmp.ne.s32.totalorder %s403, %s404
      %p413 = scmp.eq.s32.totalorder %s42, 0
      %p414 = por %p412, %p413
      %p415 = scmp.ne.s32.totalorder %s403, %s404
      %p416 = scmp.eq.s32.totalorder %s43, 1
      %p417 = por %p415, %p416
      %p419 = scmp.ne.s32.totalorder %s404, %s418
      %p420 = scmp.eq.s32.totalorder %s43, 0
      %p421 = por %p419, %p420
      %s423 = sadd.s32 %s422, 1
      %p426 = scmp.eq.s32.totalorder %s37, 1
      %p427 = scmp.ne.s32.totalorder %s422, %s424
      %p428 = scmp.eq.s32.totalorder %s37, 0
      %p429 = por %p427, %p428
      %p430 = scmp.ne.s32.totalorder %s422, %s424
      %p431 = scmp.eq.s32.totalorder %s42, 1
      %p432 = por %p430, %p431
      %p433 = scmp.ne.s32.totalorder %s424, %s425
      %p434 = scmp.eq.s32.totalorder %s42, 0
      %p435 = por %p433, %p434
      %p436 = scmp.ne.s32.totalorder %s424, %s425
      %p437 = scmp.eq.s32.totalorder %s43, 1
      %p438 = por %p436, %p437
      %p440 = scmp.ne.s32.totalorder %s425, %s439
      %p441 = scmp.eq.s32.totalorder %s43, 0
      %p442 = por %p440, %p441
      %s444 = sadd.s32 %s443, 1
      %p447 = scmp.eq.s32.totalorder %s37, 1
      %p448 = scmp.ne.s32.totalorder %s443, %s445
      %p449 = scmp.eq.s32.totalorder %s37, 0
      %p450 = por %p448, %p449
      %p451 = scmp.ne.s32.totalorder %s443, %s445
      %p452 = scmp.eq.s32.totalorder %s42, 1
      %p453 = por %p451, %p452
      %p454 = scmp.ne.s32.totalorder %s445, %s446
      %p455 = scmp.eq.s32.totalorder %s42, 0
      %p456 = por %p454, %p455
      %p457 = scmp.ne.s32.totalorder %s445, %s446
      %p458 = scmp.eq.s32.totalorder %s43, 1
      %p459 = por %p457, %p458
      %p461 = scmp.ne.s32.totalorder %s446, %s460
      %p462 = scmp.eq.s32.totalorder %s43, 0
      %p463 = por %p461, %p462
      %s465 = sadd.s32 %s464, 1
      %p468 = scmp.eq.s32.totalorder %s37, 1
      %p469 = scmp.ne.s32.totalorder %s464, %s466
      %p470 = scmp.eq.s32.totalorder %s37, 0
      %p471 = por %p469, %p470
      %p472 = scmp.ne.s32.totalorder %s464, %s466
      %p473 = scmp.eq.s32.totalorder %s42, 1
      %p474 = por %p472, %p473
      %p475 = scmp.ne.s32.totalorder %s466, %s467
      %p476 = scmp.eq.s32.totalorder %s42, 0
      %p477 = por %p475, %p476
      %p478 = scmp.ne.s32.totalorder %s466, %s467
      %p479 = scmp.eq.s32.totalorder %s43, 1
      %p480 = por %p478, %p479
      %p482 = scmp.ne.s32.totalorder %s467, %s481
      %p483 = scmp.eq.s32.totalorder %s43, 0
      %p484 = por %p482, %p483
      %s486 = sadd.s32 %s485, 1
      %p489 = scmp.eq.s32.totalorder %s37, 1
      %p490 = scmp.ne.s32.totalorder %s485, %s487
      %p491 = scmp.eq.s32.totalorder %s37, 0
      %p492 = por %p490, %p491
      %p493 = scmp.ne.s32.totalorder %s485, %s487
      %p494 = scmp.eq.s32.totalorder %s42, 1
      %p495 = por %p493, %p494
      %p496 = scmp.ne.s32.totalorder %s487, %s488
      %p497 = scmp.eq.s32.totalorder %s42, 0
      %p498 = por %p496, %p497
      %p499 = scmp.ne.s32.totalorder %s487, %s488
      %p500 = scmp.eq.s32.totalorder %s43, 1
      %p501 = por %p499, %p500
      %p503 = scmp.ne.s32.totalorder %s488, %s502
      %p504 = scmp.eq.s32.totalorder %s43, 0
      %p505 = por %p503, %p504
      %s507 = sadd.s32 %s506, 1
      %p510 = scmp.eq.s32.totalorder %s37, 1
      %p511 = scmp.ne.s32.totalorder %s506, %s508
      %p512 = scmp.eq.s32.totalorder %s37, 0
      %p513 = por %p511, %p512
      %p514 = scmp.ne.s32.totalorder %s506, %s508
      %p515 = scmp.eq.s32.totalorder %s42, 1
      %p516 = por %p514, %p515
      %p517 = scmp.ne.s32.totalorder %s508, %s509
      %p518 = scmp.eq.s32.totalorder %s42, 0
      %p519 = por %p517, %p518
      %p520 = scmp.ne.s32.totalorder %s508, %s509
      %p521 = scmp.eq.s32.totalorder %s43, 1
      %p522 = por %p520, %p521
      %p524 = scmp.ne.s32.totalorder %s509, %s523
      %p525 = scmp.eq.s32.totalorder %s43, 0
      %p526 = por %p524, %p525
      %s528 = sadd.s32 %s527, 1
      %p531 = scmp.eq.s32.totalorder %s37, 1
      %p532 = scmp.ne.s32.totalorder %s527, %s529
      %p533 = scmp.eq.s32.totalorder %s37, 0
      %p534 = por %p532, %p533
      %p535 = scmp.ne.s32.totalorder %s527, %s529
      %p536 = scmp.eq.s32.totalorder %s42, 1
      %p537 = por %p535, %p536
      %p538 = scmp.ne.s32.totalorder %s529, %s530
      %p539 = scmp.eq.s32.totalorder %s42, 0
      %p540 = por %p538, %p539
      %p541 = scmp.ne.s32.totalorder %s529, %s530
      %p542 = scmp.eq.s32.totalorder %s43, 1
      %p543 = por %p541, %p542
      %p545 = scmp.ne.s32.totalorder %s530, %s544
      %p546 = scmp.eq.s32.totalorder %s43, 0
      %p547 = por %p545, %p546
      %s549 = sadd.s32 %s548, 1
      %p552 = scmp.eq.s32.totalorder %s37, 1
      %p553 = scmp.ne.s32.totalorder %s548, %s550
      %p554 = scmp.eq.s32.totalorder %s37, 0
      %p555 = por %p553, %p554
      %p556 = scmp.ne.s32.totalorder %s548, %s550
      %p557 = scmp.eq.s32.totalorder %s42, 1
      %p558 = por %p556, %p557
      %p559 = scmp.ne.s32.totalorder %s550, %s551
      %p560 = scmp.eq.s32.totalorder %s42, 0
      %p561 = por %p559, %p560
      %p562 = scmp.ne.s32.totalorder %s550, %s551
      %p563 = scmp.eq.s32.totalorder %s43, 1
      %p564 = por %p562, %p563
      %p566 = scmp.ne.s32.totalorder %s551, %s565
      %p567 = scmp.eq.s32.totalorder %s43, 0
      %p568 = por %p566, %p567
      %s570 = sadd.s32 %s569, 1
      %p573 = scmp.eq.s32.totalorder %s37, 1
      %p574 = scmp.ne.s32.totalorder %s569, %s571
      %p575 = scmp.eq.s32.totalorder %s37, 0
      %p576 = por %p574, %p575
      %p577 = scmp.ne.s32.totalorder %s569, %s571
      %p578 = scmp.eq.s32.totalorder %s42, 1
      %p579 = por %p577, %p578
      %p580 = scmp.ne.s32.totalorder %s571, %s572
      %p581 = scmp.eq.s32.totalorder %s42, 0
      %p582 = por %p580, %p581
      %p583 = scmp.ne.s32.totalorder %s571, %s572
      %p584 = scmp.eq.s32.totalorder %s43, 1
      %p585 = por %p583, %p584
      %p587 = scmp.ne.s32.totalorder %s572, %s586
      %p588 = scmp.eq.s32.totalorder %s43, 0
      %p589 = por %p587, %p588
      %s591 = sadd.s32 %s590, 1
      %p594 = scmp.eq.s32.totalorder %s37, 1
      %p595 = scmp.ne.s32.totalorder %s590, %s592
      %p596 = scmp.eq.s32.totalorder %s37, 0
      %p597 = por %p595, %p596
      %p598 = scmp.ne.s32.totalorder %s590, %s592
      %p599 = scmp.eq.s32.totalorder %s42, 1
      %p600 = por %p598, %p599
      %p601 = scmp.ne.s32.totalorder %s592, %s593
      %p602 = scmp.eq.s32.totalorder %s42, 0
      %p603 = por %p601, %p602
      %p604 = scmp.ne.s32.totalorder %s592, %s593
      %p605 = scmp.eq.s32.totalorder %s43, 1
      %p606 = por %p604, %p605
      %p608 = scmp.ne.s32.totalorder %s593, %s607
      %p609 = scmp.eq.s32.totalorder %s43, 0
      %p610 = por %p608, %p609
      %s611 = ssub.s32 %s37, %s44
      %p612 = scmp.eq.s32.totalorder %s611, 0
      %s614 = sadd.s32 %s613, 1
      %s615 = scalar_select %p612, %s613, %s614
      %p618 = pneg %p612
      %p619 = scmp.eq.s32.totalorder %s37, 1
      %p620 = por %p618, %p619
      %p621 = scmp.ne.s32.totalorder %s613, %s616
      %p622 = scmp.eq.s32.totalorder %s37, 0
      %p623 = por %p621, %p622
      %p624 = scmp.ne.s32.totalorder %s613, %s616
      %p625 = scmp.eq.s32.totalorder %s42, 1
      %p626 = por %p624, %p625
      %p627 = scmp.ne.s32.totalorder %s616, %s617
      %p628 = scmp.eq.s32.totalorder %s42, 0
      %p629 = por %p627, %p628
      %p630 = scmp.ne.s32.totalorder %s616, %s617
      %p631 = scmp.eq.s32.totalorder %s43, 1
      %p632 = por %p630, %p631
      %p634 = scmp.ne.s32.totalorder %s617, %s633
      %p635 = scmp.eq.s32.totalorder %s43, 0
      %p636 = por %p634, %p635
      %p637 = scmp.le.s32.totalorder 1, %s37
      %p638 = scmp.lt.s32.totalorder %s37, 3
      %p639 = pnand %p637, %p638
      %p640 = pneg %p639
      // Predicated region
      $region9: #{_lambda_.6} parent=5 // pred_check
        _
      $region10: #{_lambda_.6} parent=5 // pred_check_branch
        %642 = sbr.rel (%p639) target = $region12
      $region11: #{_lambda_.6} parent=5 // pred_region
        %s643 = ssub.s32 %s37, 1
        // Predicated region
        $region13: #{_lambda_.6} parent=11 // pred_check
          %p644 = pneg %p162
        $region14: #{_lambda_.6} parent=11 // pred_check_branch
          %646 = sbr.rel (%p644) target = $region16
        $region15: #{_lambda_.6} parent=11 // pred_region
          _
        $region16: #{_lambda_.6} parent=11 // pred_fallthru
          _
        // Predicated region
        $region17: #{_lambda_.6} parent=11 // pred_check
          %p647 = pneg %p183
        $region18: #{_lambda_.6} parent=11 // pred_check_branch
          %649 = sbr.rel (%p647) target = $region20
        $region19: #{_lambda_.6} parent=11 // pred_region
          %s651 = ssub.s32 16, 16
          %652 = vsyncadd [#allocation3], %s651
          %s654 = sshll.u32 [#allocation2], 4
          %s655 = int_to_ptr.vmem [resolvable:$true] %s654
          %657 = dma.hbm_to_vmem [thread:$0]  %s5, 16, %s655, [#allocation3]
        $region20: #{_lambda_.6} parent=11 // pred_fallthru
          _
        // Predicated region
        $region21: #{_lambda_.6} parent=11 // pred_check
          %p658 = pneg %p204
        $region22: #{_lambda_.6} parent=11 // pred_check_branch
          %660 = sbr.rel (%p658) target = $region24
        $region23: #{_lambda_.6} parent=11 // pred_region
          _
        $region24: #{_lambda_.6} parent=11 // pred_fallthru
          _
        // Predicated region
        $region25: #{_lambda_.6} parent=11 // pred_check
          %p661 = pneg %p225
        $region26: #{_lambda_.6} parent=11 // pred_check_branch
          %663 = sbr.rel (%p661) target = $region28
        $region27: #{_lambda_.6} parent=11 // pred_region
          %s665 = ssub.s32 16, 16
          %666 = vsyncadd [#allocation5], %s665
          %s668 = sshll.u32 [#allocation4], 4
          %s669 = int_to_ptr.vmem [resolvable:$true] %s668
          %671 = dma.hbm_to_vmem [thread:$0]  %s7, 16, %s669, [#allocation5]
        $region28: #{_lambda_.6} parent=11 // pred_fallthru
          _
        // Predicated region
        $region29: #{_lambda_.6} parent=11 // pred_check
          %p672 = pneg %p246
        $region30: #{_lambda_.6} parent=11 // pred_check_branch
          %674 = sbr.rel (%p672) target = $region32
        $region31: #{_lambda_.6} parent=11 // pred_region
          _
        $region32: #{_lambda_.6} parent=11 // pred_fallthru
          _
        // Predicated region
        $region33: #{_lambda_.6} parent=11 // pred_check
          %p675 = pneg %p267
        $region34: #{_lambda_.6} parent=11 // pred_check_branch
          %677 = sbr.rel (%p675) target = $region36
        $region35: #{_lambda_.6} parent=11 // pred_region
          %s679 = ssub.s32 16, 16
          %680 = vsyncadd [#allocation5], %s679
          %s682 = sshll.u32 [#allocation6], 4
          %s683 = int_to_ptr.vmem [resolvable:$true] %s682
          %685 = dma.hbm_to_vmem [thread:$0]  %s9, 16, %s683, [#allocation5]
        $region36: #{_lambda_.6} parent=11 // pred_fallthru
          _
        // Predicated region
        $region37: #{_lambda_.6} parent=11 // pred_check
          %p686 = pneg %p288
        $region38: #{_lambda_.6} parent=11 // pred_check_branch
          %688 = sbr.rel (%p686) target = $region40
        $region39: #{_lambda_.6} parent=11 // pred_region
          _
        $region40: #{_lambda_.6} parent=11 // pred_fallthru
          _
        // Predicated region
        $region41: #{_lambda_.6} parent=11 // pred_check
          %p689 = pneg %p309
        $region42: #{_lambda_.6} parent=11 // pred_check_branch
          %691 = sbr.rel (%p689) target = $region44
        $region43: #{_lambda_.6} parent=11 // pred_region
          _
        $region44: #{_lambda_.6} parent=11 // pred_fallthru
          _
        // Predicated region
        $region45: #{_lambda_.6} parent=11 // pred_check
          %p692 = pneg %p330
        $region46: #{_lambda_.6} parent=11 // pred_check_branch
          %694 = sbr.rel (%p692) target = $region48
        $region47: #{_lambda_.6} parent=11 // pred_region
          _
        $region48: #{_lambda_.6} parent=11 // pred_fallthru
          _
        // Predicated region
        $region49: #{_lambda_.6} parent=11 // pred_check
          %p695 = pneg %p351
        $region50: #{_lambda_.6} parent=11 // pred_check_branch
          %697 = sbr.rel (%p695) target = $region52
        $region51: #{_lambda_.6} parent=11 // pred_region
          %s699 = ssub.s32 16, 16
          %700 = vsyncadd [#allocation8], %s699
          %s702 = sshll.u32 [#allocation7], 4
          %s703 = int_to_ptr.vmem [resolvable:$true] %s702
          %705 = dma.hbm_to_vmem [thread:$0]  %s13, 16, %s703, [#allocation8]
        $region52: #{_lambda_.6} parent=11 // pred_fallthru
          _
        // Predicated region
        $region53: #{_lambda_.6} parent=11 // pred_check
          %p706 = pneg %p372
        $region54: #{_lambda_.6} parent=11 // pred_check_branch
          %708 = sbr.rel (%p706) target = $region56
        $region55: #{_lambda_.6} parent=11 // pred_region
          _
        $region56: #{_lambda_.6} parent=11 // pred_fallthru
          _
        // Predicated region
        $region57: #{_lambda_.6} parent=11 // pred_check
          %p709 = pneg %p393
        $region58: #{_lambda_.6} parent=11 // pred_check_branch
          %711 = sbr.rel (%p709) target = $region60
        $region59: #{_lambda_.6} parent=11 // pred_region
          %s713 = ssub.s32 16, 16
          %714 = vsyncadd [#allocation8], %s713
          %s716 = sshll.u32 [#allocation9], 4
          %s717 = int_to_ptr.vmem [resolvable:$true] %s716
          %719 = dma.hbm_to_vmem [thread:$0]  %s15, 16, %s717, [#allocation8]
        $region60: #{_lambda_.6} parent=11 // pred_fallthru
          _
        // Predicated region
        $region61: #{_lambda_.6} parent=11 // pred_check
          %p720 = pneg %p414
        $region62: #{_lambda_.6} parent=11 // pred_check_branch
          %722 = sbr.rel (%p720) target = $region64
        $region63: #{_lambda_.6} parent=11 // pred_region
          _
        $region64: #{_lambda_.6} parent=11 // pred_fallthru
          _
        // Predicated region
        $region65: #{_lambda_.6} parent=11 // pred_check
          %p723 = pneg %p435
        $region66: #{_lambda_.6} parent=11 // pred_check_branch
          %725 = sbr.rel (%p723) target = $region68
        $region67: #{_lambda_.6} parent=11 // pred_region
          %s727 = ssub.s32 16, 16
          %728 = vsyncadd [#allocation11], %s727
          %s730 = sshll.u32 [#allocation10], 4
          %s731 = int_to_ptr.vmem [resolvable:$true] %s730
          %733 = dma.hbm_to_vmem [thread:$0]  %s17, 16, %s731, [#allocation11]
        $region68: #{_lambda_.6} parent=11 // pred_fallthru
          _
        // Predicated region
        $region69: #{_lambda_.6} parent=11 // pred_check
          %p734 = pneg %p456
        $region70: #{_lambda_.6} parent=11 // pred_check_branch
          %736 = sbr.rel (%p734) target = $region72
        $region71: #{_lambda_.6} parent=11 // pred_region
          _
        $region72: #{_lambda_.6} parent=11 // pred_fallthru
          _
        // Predicated region
        $region73: #{_lambda_.6} parent=11 // pred_check
          %p737 = pneg %p477
        $region74: #{_lambda_.6} parent=11 // pred_check_branch
          %739 = sbr.rel (%p737) target = $region76
        $region75: #{_lambda_.6} parent=11 // pred_region
          _
        $region76: #{_lambda_.6} parent=11 // pred_fallthru
          _
        // Predicated region
        $region77: #{_lambda_.6} parent=11 // pred_check
          %p740 = pneg %p498
        $region78: #{_lambda_.6} parent=11 // pred_check_branch
          %742 = sbr.rel (%p740) target = $region80
        $region79: #{_lambda_.6} parent=11 // pred_region
          _
        $region80: #{_lambda_.6} parent=11 // pred_fallthru
          _
        // Predicated region
        $region81: #{_lambda_.6} parent=11 // pred_check
          %p743 = pneg %p519
        $region82: #{_lambda_.6} parent=11 // pred_check_branch
          %745 = sbr.rel (%p743) target = $region84
        $region83: #{_lambda_.6} parent=11 // pred_region
          %s747 = ssub.s32 16, 16
          %748 = vsyncadd [#allocation11], %s747
          %s750 = sshll.u32 [#allocation12], 4
          %s751 = int_to_ptr.vmem [resolvable:$true] %s750
          %753 = dma.hbm_to_vmem [thread:$0]  %s21, 16, %s751, [#allocation11]
        $region84: #{_lambda_.6} parent=11 // pred_fallthru
          _
        // Predicated region
        $region85: #{_lambda_.6} parent=11 // pred_check
          %p754 = pneg %p540
        $region86: #{_lambda_.6} parent=11 // pred_check_branch
          %756 = sbr.rel (%p754) target = $region88
        $region87: #{_lambda_.6} parent=11 // pred_region
          _
        $region88: #{_lambda_.6} parent=11 // pred_fallthru
          _
        // Predicated region
        $region89: #{_lambda_.6} parent=11 // pred_check
          %p757 = pneg %p561
        $region90: #{_lambda_.6} parent=11 // pred_check_branch
          %759 = sbr.rel (%p757) target = $region92
        $region91: #{_lambda_.6} parent=11 // pred_region
          %s761 = ssub.s32 16, 16
          %762 = vsyncadd [#allocation14], %s761
          %s764 = sshll.u32 [#allocation13], 4
          %s765 = int_to_ptr.vmem [resolvable:$true] %s764
          %767 = dma.hbm_to_vmem [thread:$0]  %s23, 16, %s765, [#allocation14]
        $region92: #{_lambda_.6} parent=11 // pred_fallthru
          _
        // Predicated region
        $region93: #{_lambda_.6} parent=11 // pred_check
          %p768 = pneg %p582
        $region94: #{_lambda_.6} parent=11 // pred_check_branch
          %770 = sbr.rel (%p768) target = $region96
        $region95: #{_lambda_.6} parent=11 // pred_region
          _
        $region96: #{_lambda_.6} parent=11 // pred_fallthru
          _
        // Predicated region
        $region97: #{_lambda_.6} parent=11 // pred_check
          %p771 = pneg %p603
        $region98: #{_lambda_.6} parent=11 // pred_check_branch
          %773 = sbr.rel (%p771) target = $region100
        $region99: #{_lambda_.6} parent=11 // pred_region
          _
        $region100: #{_lambda_.6} parent=11 // pred_fallthru
          _
      $region12: #{_lambda_.6} parent=5 // pred_fallthru
        _
      %p774 = scmp.lt.s32.totalorder %s37, 2
      // Predicated region
      $region101: #{_lambda_.6} parent=5 // pred_check
        %p775 = pneg %p774
      $region102: #{_lambda_.6} parent=5 // pred_check_branch
        %777 = sbr.rel (%p775) target = $region104
      $region103: #{_lambda_.6} parent=5 // pred_region
        // Predicated region
        $region105: #{_lambda_.6} parent=103 // pred_check
          %p778 = pneg %p57
        $region106: #{_lambda_.6} parent=103 // pred_check_branch
          %780 = sbr.rel (%p778) target = $region108
        $region107: #{_lambda_.6} parent=103 // pred_region
          %p781 = scmp.lt.s32.totalorder %s37, 1
          %s782 = scalar_select %p781, %s37, 1
          %s783 = smul.addr %s782, 2
          %s784 = smul.addr %s783, 8
          %s785 = scalar_lea.vmem %s0, %s784
        $region108: #{_lambda_.6} parent=103 // pred_fallthru
          _
        // Predicated region
        $region109: #{_lambda_.6} parent=103 // pred_check
          %p786 = pneg %p83
        $region110: #{_lambda_.6} parent=103 // pred_check_branch
          %788 = sbr.rel (%p786) target = $region112
        $region111: #{_lambda_.6} parent=103 // pred_region
          %p789 = scmp.lt.s32.totalorder %s37, 1
          %s790 = scalar_select %p789, %s37, 1
          %s791 = smul.addr %s790, 8
          %s792 = scalar_lea.vmem %s1, %s791
        $region112: #{_lambda_.6} parent=103 // pred_fallthru
          _
        // Predicated region
        $region113: #{_lambda_.6} parent=103 // pred_check
          %p793 = pneg %p109
        $region114: #{_lambda_.6} parent=103 // pred_check_branch
          %795 = sbr.rel (%p793) target = $region116
        $region115: #{_lambda_.6} parent=103 // pred_region
          %p796 = scmp.lt.s32.totalorder %s37, 1
          %s797 = scalar_select %p796, %s37, 1
          %s798 = scalar_lea.vmem %s2, %s797
        $region116: #{_lambda_.6} parent=103 // pred_fallthru
          _
        // Predicated region
        $region117: #{_lambda_.6} parent=103 // pred_check
          %p799 = pneg %p135
        $region118: #{_lambda_.6} parent=103 // pred_check_branch
          %801 = sbr.rel (%p799) target = $region120
        $region119: #{_lambda_.6} parent=103 // pred_region
          %p802 = scmp.lt.s32.totalorder %s37, 1
          %s803 = scalar_select %p802, %s37, 1
          %s804 = scalar_lea.vmem %s3, %s803
        $region120: #{_lambda_.6} parent=103 // pred_fallthru
          _
      $region104: #{_lambda_.6} parent=5 // pred_fallthru
        _
      %p805 = scmp.le.s32.totalorder 1, %s37
      %p806 = scmp.lt.s32.totalorder %s37, 3
      %p807 = pnand %p805, %p806
      %p808 = pneg %p807
      // Predicated region
      $region121: #{_lambda_.6} parent=5 // pred_check
        _
      $region122: #{_lambda_.6} parent=5 // pred_check_branch
        %810 = sbr.rel (%p807) target = $region124
      $region123: #{_lambda_.6} parent=5 // pred_region
        %s811 = ssub.s32 %s37, 1
        // Predicated region
        $region125: #{_lambda_.6} parent=123 // pred_check
          %p812 = pneg %p183
        $region126: #{_lambda_.6} parent=123 // pred_check_branch
          %814 = sbr.rel (%p812) target = $region128
        $region127: #{_lambda_.6} parent=123 // pred_region
          %815 = dma.done [#allocation3], 16
        $region128: #{_lambda_.6} parent=123 // pred_fallthru
          _
        // Predicated region
        $region129: #{_lambda_.6} parent=123 // pred_check
          %p816 = pneg %p225
        $region130: #{_lambda_.6} parent=123 // pred_check_branch
          %818 = sbr.rel (%p816) target = $region132
        $region131: #{_lambda_.6} parent=123 // pred_region
          %819 = dma.done [#allocation5], 16
        $region132: #{_lambda_.6} parent=123 // pred_fallthru
          _
        // Predicated region
        $region133: #{_lambda_.6} parent=123 // pred_check
          %p820 = pneg %p267
        $region134: #{_lambda_.6} parent=123 // pred_check_branch
          %822 = sbr.rel (%p820) target = $region136
        $region135: #{_lambda_.6} parent=123 // pred_region
          %823 = dma.done [#allocation5], 16
        $region136: #{_lambda_.6} parent=123 // pred_fallthru
          _
        // Predicated region
        $region137: #{_lambda_.6} parent=123 // pred_check
          %p824 = pneg %p351
        $region138: #{_lambda_.6} parent=123 // pred_check_branch
          %826 = sbr.rel (%p824) target = $region140
        $region139: #{_lambda_.6} parent=123 // pred_region
          %827 = dma.done [#allocation8], 16
        $region140: #{_lambda_.6} parent=123 // pred_fallthru
          _
        // Predicated region
        $region141: #{_lambda_.6} parent=123 // pred_check
          %p828 = pneg %p393
        $region142: #{_lambda_.6} parent=123 // pred_check_branch
          %830 = sbr.rel (%p828) target = $region144
        $region143: #{_lambda_.6} parent=123 // pred_region
          %831 = dma.done [#allocation8], 16
        $region144: #{_lambda_.6} parent=123 // pred_fallthru
          _
        // Predicated region
        $region145: #{_lambda_.6} parent=123 // pred_check
          %p832 = pneg %p435
        $region146: #{_lambda_.6} parent=123 // pred_check_branch
          %834 = sbr.rel (%p832) target = $region148
        $region147: #{_lambda_.6} parent=123 // pred_region
          %835 = dma.done [#allocation11], 16
        $region148: #{_lambda_.6} parent=123 // pred_fallthru
          _
        // Predicated region
        $region149: #{_lambda_.6} parent=123 // pred_check
          %p836 = pneg %p519
        $region150: #{_lambda_.6} parent=123 // pred_check_branch
          %838 = sbr.rel (%p836) target = $region152
        $region151: #{_lambda_.6} parent=123 // pred_region
          %839 = dma.done [#allocation11], 16
        $region152: #{_lambda_.6} parent=123 // pred_fallthru
          _
        // Predicated region
        $region153: #{_lambda_.6} parent=123 // pred_check
          %p840 = pneg %p561
        $region154: #{_lambda_.6} parent=123 // pred_check_branch
          %842 = sbr.rel (%p840) target = $region156
        $region155: #{_lambda_.6} parent=123 // pred_region
          %843 = dma.done [#allocation14], 16
        $region156: #{_lambda_.6} parent=123 // pred_fallthru
          _
        %p844 = scmp.lt.s32.totalorder %s42, 1
        %s845 = scalar_select %p844, %s42, 1
        %s846 = smul.addr %s845, 2
        %s847 = smul.addr %s846, 8
        %s848 = scalar_lea.vmem %s0, %s847
        %p849 = pneg %p63
        %p850 = pneg %p60
        %p851 = scmp.lt.s32.totalorder %s42, 1
        %s852 = scalar_select %p851, %s42, 1
        %s853 = smul.addr %s852, 8
        %s854 = scalar_lea.vmem %s1, %s853
        %p855 = pneg %p89
        %p856 = pneg %p86
        %p857 = scmp.lt.s32.totalorder %s42, 1
        %s858 = scalar_select %p857, %s42, 1
        %s859 = scalar_lea.vmem %s2, %s858
        %p860 = pneg %p115
        %p861 = pneg %p112
        %p862 = scmp.lt.s32.totalorder %s42, 1
        %s863 = scalar_select %p862, %s42, 1
        %s864 = scalar_lea.vmem %s3, %s863
        %p865 = pneg %p141
        %p866 = pneg %p138
        %p867 = pneg %p162
        %p868 = pneg %p159
        %p869 = pneg %p183
        %p870 = pneg %p180
        %p871 = pneg %p204
        %p872 = pneg %p201
        %p873 = pneg %p225
        %p874 = pneg %p222
        %p875 = pneg %p246
        %p876 = pneg %p243
        %p877 = pneg %p267
        %p878 = pneg %p264
        %p879 = pneg %p288
        %p880 = pneg %p285
        %p881 = pneg %p309
        %p882 = pneg %p306
        %p883 = pneg %p330
        %p884 = pneg %p327
        %p885 = pneg %p351
        %p886 = pneg %p348
        %p887 = pneg %p372
        %p888 = pneg %p369
        %p889 = pneg %p393
        %p890 = pneg %p390
        %p891 = pneg %p414
        %p892 = pneg %p411
        %p893 = pneg %p435
        %p894 = pneg %p432
        %p895 = pneg %p456
        %p896 = pneg %p453
        %p897 = pneg %p477
        %p898 = pneg %p474
        %p899 = pneg %p498
        %p900 = pneg %p495
        %p901 = pneg %p519
        %p902 = pneg %p516
        %p903 = pneg %p540
        %p904 = pneg %p537
        %p905 = pneg %p561
        %p906 = pneg %p558
        %p907 = pneg %p582
        %p908 = pneg %p579
        %p909 = pneg %p603
        %p910 = pneg %p600
        %p911 = pneg %p629
        %p912 = pneg %p626
        %p913 = scmp.lt.s32.totalorder %s42, 1
        %s914 = scalar_select %p913, %s42, 1
        %s915 = smul.addr %s914, 2
        %s916 = smul.addr %s915, 8
        %s917 = scalar_lea.vmem %s26, %s916
        %p918 = scmp.lt.s32.totalorder %s42, 1
        %s919 = scalar_select %p918, %s42, 1
        %s920 = smul.addr %s919, 2
        %s921 = smul.addr %s920, 8
        %s922 = scalar_lea.vmem %s0, %s921
        %p923 = scmp.lt.s32.totalorder %s42, 1
        %s924 = scalar_select %p923, %s42, 1
        %s925 = smul.addr %s924, 8
        %s926 = scalar_lea.vmem %s1, %s925
        %p927 = scmp.lt.s32.totalorder %s42, 1
        %s928 = scalar_select %p927, %s42, 1
        %s929 = scalar_lea.vmem %s2, %s928
        %p930 = scmp.lt.s32.totalorder %s42, 1
        %s931 = scalar_select %p930, %s42, 1
        %s932 = scalar_lea.vmem %s3, %s931
        %p933 = scmp.lt.s32.totalorder %s42, 1
        %s934 = scalar_select %p933, %s42, 1
        %s935 = smul.addr %s934, 2
        %s936 = smul.addr %s935, 8
        %s937 = scalar_lea.vmem %s26, %s936
        %v939 = vld [vmem:[%s922] sm:$0xff]
        %v940 = vld [vmem:[%s922 + $0x8] sm:$0xff]
        %v941 = vld [vmem:[%s926] sm:$0xff]
        %v942 = vld [vmem:[%s929] sm:$0x1]
        %v943 = vld [vmem:[%s932] sm:$0x1]
        %v944 = vld [vmem:[%s4] sm:$0xf]
        %v945 = vld [vmem:[%s4 + $0x4] sm:$0xf]
        %v946 = vld [vmem:[%s4 + $0x8] sm:$0xf]
        %v947 = vld [vmem:[%s4 + $0xc] sm:$0xf]
        %v948 = vld [vmem:[#allocation2] sm:$0x1]
        %v949 = vld [vmem:[%s6] sm:$0xf]
        %v950 = vld [vmem:[%s6 + $0x4] sm:$0xf]
        %v951 = vld [vmem:[%s6 + $0x8] sm:$0xf]
        %v952 = vld [vmem:[%s6 + $0xc] sm:$0xf]
        %v953 = vld [vmem:[#allocation4] sm:$0x1]
        %v954 = vld [vmem:[%s8] sm:$0xf]
        %v955 = vld [vmem:[%s8 + $0x4] sm:$0xf]
        %v956 = vld [vmem:[%s8 + $0x8] sm:$0xf]
        %v957 = vld [vmem:[%s8 + $0xc] sm:$0xf]
        %v958 = vld [vmem:[#allocation6] sm:$0x1]
        %v959 = vpack.c.bf16 %v940, %v939
        %v961 = vlaneseq
        %v962 = vshrl.u32 %v961, 7
        %v963 = vsub.s32 0, %v962
        %v964 = vrot.slane %v948, %v963
        %v970 = vunpack.c.l.b16 %v944
        %v971 = vunpack.c.l.b16 %v945
        %v972 = vunpack.c.l.b16 %v946
        %v973 = vunpack.c.l.b16 %v947
        %v974 = vpack.c.b16 %v971, %v970
        %v975 = vpack.c.b16 %v973, %v972
        %vm978 = vcmask 261120
        %v980 = vsel %vm978, %v959, 0
        %982 = vmatprep.subr.bf16.mxu0 0
        %983 = vmatpush1.bf16.msra.mxu0 %v974
        %984 = vmatprep.subr.bf16.mxu0 0
        %985 = vmatpush1.bf16.msra.mxu0 %v975
        %986 = vmatprep.subr.bf16.mxu0 0
        %987 = vmatpush1.bf16.msra.mxu0 0
        %988 = vmatprep.subr.bf16.mxu0 0
        %989 = vmatpush1.bf16.msra.mxu0 0
        %990 = vmatprep.subr.bf16.mxu0 0
        %991 = vmatpush1.bf16.msra.mxu0 0
        %992 = vmatprep.subr.bf16.mxu0 0
        %993 = vmatpush1.bf16.msra.mxu0 0
        %994 = vmatprep.subr.bf16.mxu0 0
        %995 = vmatpush1.bf16.msra.mxu0 0
        %996 = vmatprep.subr.bf16.mxu0 0
        %997 = vmatpush1.bf16.msra.mxu0 0
        %998 = vmatprep.subr.bf16.mxu0 0
        %999 = vmatpush1.bf16.msra.mxu0 0
        %1000 = vmatprep.subr.bf16.mxu0 0
        %1001 = vmatpush1.bf16.msra.mxu0 0
        %1002 = vmatprep.subr.bf16.mxu0 0
        %1003 = vmatpush1.bf16.msra.mxu0 0
        %1004 = vmatprep.subr.bf16.mxu0 0
        %1005 = vmatpush1.bf16.msra.mxu0 0
        %1006 = vmatprep.subr.bf16.mxu0 0
        %1007 = vmatpush1.bf16.msra.mxu0 0
        %1008 = vmatprep.subr.bf16.mxu0 0
        %1009 = vmatpush1.bf16.msra.mxu0 0
        %1010 = vmatprep.subr.bf16.mxu0 0
        %1011 = vmatpush1.bf16.msra.mxu0 0
        %1012 = vmatprep.subr.bf16.mxu0 0
        %1013 = vmatpush1.bf16.msra.mxu0 0
        %1014 = vmatprep.mubr.bf16.mxu0 0
        %1015 = vmatmul.mubr.bf16.gmra.mrb[0].mxu0 %v980
        %v1016 = vpop.f32.mrb[0].mxu0
        %v1017 = vadd.f32 %v964, %v1016
        %v1018 = vpop.f32.mrb[0].mxu0
        %v1019 = vpop.f32.mrb[0].mxu0
        %v1020 = vadd.f32 %v964, %v1019
        %v1021 = vpop.f32.mrb[0].mxu0
        %1022 = vdwg.mxu0
        %v1024 = vlaneseq
        %v1025 = vshrl.u32 %v1024, 7
        %v1026 = vsub.s32 0, %v1025
        %v1027 = vrot.slane %v953, %v1026
        %v1033 = vunpack.c.l.b16 %v949
        %v1034 = vunpack.c.l.b16 %v950
        %v1035 = vunpack.c.l.b16 %v951
        %v1036 = vunpack.c.l.b16 %v952
        %v1037 = vpack.c.b16 %v1034, %v1033
        %v1038 = vpack.c.b16 %v1036, %v1035
        %1041 = vmatprep.subr.bf16.mxu0 0
        %1042 = vmatpush1.bf16.msra.mxu0 %v1037
        %1043 = vmatprep.subr.bf16.mxu0 0
        %1044 = vmatpush1.bf16.msra.mxu0 %v1038
        %1045 = vmatprep.subr.bf16.mxu0 0
        %1046 = vmatpush1.bf16.msra.mxu0 0
        %1047 = vmatprep.subr.bf16.mxu0 0
        %1048 = vmatpush1.bf16.msra.mxu0 0
        %1049 = vmatprep.subr.bf16.mxu0 0
        %1050 = vmatpush1.bf16.msra.mxu0 0
        %1051 = vmatprep.subr.bf16.mxu0 0
        %1052 = vmatpush1.bf16.msra.mxu0 0
        %1053 = vmatprep.subr.bf16.mxu0 0
        %1054 = vmatpush1.bf16.msra.mxu0 0
        %1055 = vmatprep.subr.bf16.mxu0 0
        %1056 = vmatpush1.bf16.msra.mxu0 0
        %1057 = vmatprep.subr.bf16.mxu0 0
        %1058 = vmatpush1.bf16.msra.mxu0 0
        %1059 = vmatprep.subr.bf16.mxu0 0
        %1060 = vmatpush1.bf16.msra.mxu0 0
        %1061 = vmatprep.subr.bf16.mxu0 0
        %1062 = vmatpush1.bf16.msra.mxu0 0
        %1063 = vmatprep.subr.bf16.mxu0 0
        %1064 = vmatpush1.bf16.msra.mxu0 0
        %1065 = vmatprep.subr.bf16.mxu0 0
        %1066 = vmatpush1.bf16.msra.mxu0 0
        %1067 = vmatprep.subr.bf16.mxu0 0
        %1068 = vmatpush1.bf16.msra.mxu0 0
        %1069 = vmatprep.subr.bf16.mxu0 0
        %1070 = vmatpush1.bf16.msra.mxu0 0
        %1071 = vmatprep.subr.bf16.mxu0 0
        %1072 = vmatpush1.bf16.msra.mxu0 0
        %1073 = vmatprep.mubr.bf16.mxu0 0
        %1074 = vmatmul.mubr.bf16.gmra.mrb[0].mxu0 %v980
        %v1075 = vpop.f32.mrb[0].mxu0
        %v1076 = vadd.f32 %v1027, %v1075
        %v1077 = vpop.f32.mrb[0].mxu0
        %v1078 = vpop.f32.mrb[0].mxu0
        %v1079 = vadd.f32 %v1027, %v1078
        %v1080 = vpop.f32.mrb[0].mxu0
        %1081 = vdwg.mxu0
        %v1082 = vmul.f32 %v1017, 0.35355338
        %v1083 = vmul.f32 %v1020, 0.35355338
        %v1084 = vpack.c.bf16 %v1083, %v1082
        %v1085 = vpack.c.bf16 %v1079, %v1076
        %v1087 = vlaneseq
        %v1088 = vshrl.u32 %v1087, 7
        %v1089 = vsub.s32 0, %v1088
        %v1090 = vrot.slane %v942, %v1089
        %vm1092 = vcmask 64512
        %v1094 = vsel %vm1092, %v1084, 0
        %v1097 = vsel %vm1092, %v1085, 0
        %1099 = vmatprep.subr.bf16.mxu0 0
        %1100 = vmatpush1.bf16.xpose.msra.mxu0 %v1097
        %1101 = vmatprep.subr.bf16.mxu0 0
        %1102 = vmatpush1.bf16.xpose.msra.mxu0 0
        %1103 = vmatprep.subr.bf16.mxu0 0
        %1104 = vmatpush1.bf16.xpose.msra.mxu0 0
        %1105 = vmatprep.subr.bf16.mxu0 0
        %1106 = vmatpush1.bf16.xpose.msra.mxu0 0
        %1107 = vmatprep.subr.bf16.mxu0 0
        %1108 = vmatpush1.bf16.xpose.msra.mxu0 0
        %1109 = vmatprep.subr.bf16.mxu0 0
        %1110 = vmatpush1.bf16.xpose.msra.mxu0 0
        %1111 = vmatprep.subr.bf16.mxu0 0
        %1112 = vmatpush1.bf16.xpose.msra.mxu0 0
        %1113 = vmatprep.subr.bf16.mxu0 0
        %1114 = vmatpush1.bf16.xpose.msra.mxu0 0
        %1115 = vmatprep.subr.bf16.mxu0 0
        %1116 = vmatpush1.bf16.xpose.msra.mxu0 0
        %1117 = vmatprep.subr.bf16.mxu0 0
        %1118 = vmatpush1.bf16.xpose.msra.mxu0 0
        %1119 = vmatprep.subr.bf16.mxu0 0
        %1120 = vmatpush1.bf16.xpose.msra.mxu0 0
        %1121 = vmatprep.subr.bf16.mxu0 0
        %1122 = vmatpush1.bf16.xpose.msra.mxu0 0
        %1123 = vmatprep.subr.bf16.mxu0 0
        %1124 = vmatpush1.bf16.xpose.msra.mxu0 0
        %1125 = vmatprep.subr.bf16.mxu0 0
        %1126 = vmatpush1.bf16.xpose.msra.mxu0 0
        %1127 = vmatprep.subr.bf16.mxu0 0
        %1128 = vmatpush1.bf16.xpose.msra.mxu0 0
        %1129 = vmatprep.subr.bf16.mxu0 0
        %1130 = vmatpush1.bf16.xpose.msra.mxu0 0
        %1131 = vmatprep.mubr.bf16.mxu0 0
        %1132 = vmatmul.mubr.bf16.gmra.mrb[0].mxu0 %v1094
        %v1133 = vpop.f32.mrb[0].mxu0
        %v1134 = vadd.f32 %v1090, %v1133
        %v1135 = vpop.f32.mrb[0].mxu0
        %v1136 = vpop.f32.mrb[0].mxu0
        %v1137 = vadd.f32 %v1090, %v1136
        %v1138 = vpop.f32.mrb[0].mxu0
        %1139 = vdwg.mxu0
        %vm1140 = vcmask 130048
        %v1141 = vsel %vm1140, %v1134, -inf
        %1142 = vmax.xlane.f32.xlu0 %v1141
        %v1143 = vpop.xlane.xlu0 %1142
        %v1144 = vsel %vm1140, %v1137, -inf
        %1145 = vmax.xlane.f32.xlu0 %v1144
        %v1146 = vpop.xlane.xlu0 %1145
        %v1147 = vsub.f32 %v1134, %v1143
        %v1148 = vsub.f32 %v1137, %v1146
        %v1149 = vmul.f32 %v1147, 1.442695
        %v1150 = vpow.pop %v1149
        %v1151 = vmul.f32 %v1148, 1.442695
        %v1152 = vpow.pop %v1151
        %v1153 = vsel %vm1140, %v1150, 0.0
        %1154 = vadd.xlane.f32.xlu0 %v1153
        %v1155 = vpop.xlane.xlu0 %1154
        %v1156 = vsel %vm1140, %v1152, 0.0
        %1157 = vadd.xlane.f32.xlu0 %v1156
        %v1158 = vpop.xlane.xlu0 %1157
        %v1159 = vrcp.pop %v1155
        %v1160 = vrcp.pop %v1158
        %v1161 = vmul.f32 %v1150, %v1159
        %v1162 = vmul.f32 %v1152, %v1160
        %v1163 = vpack.c.bf16 %v1162, %v1161
        %1165 = vrot.lane.b32.xlu0 %v1085, 96
        %v1166 = vpop.permute.xlu0 %1165
        %v1169 = vsel %vm1140, %v1163, 0
        %1171 = vmatprep.subr.bf16.mxu0 0
        %1172 = vmatpush1.bf16.msra.mxu0 %v1166
        %1173 = vmatprep.subr.bf16.mxu0 0
        %1174 = vmatpush1.bf16.msra.mxu0 0
        %1175 = vmatprep.subr.bf16.mxu0 0
        %1176 = vmatpush1.bf16.msra.mxu0 0
        %1177 = vmatprep.subr.bf16.mxu0 0
        %1178 = vmatpush1.bf16.msra.mxu0 0
        %1179 = vmatprep.subr.bf16.mxu0 0
        %1180 = vmatpush1.bf16.msra.mxu0 0
        %1181 = vmatprep.subr.bf16.mxu0 0
        %1182 = vmatpush1.bf16.msra.mxu0 0
        %1183 = vmatprep.subr.bf16.mxu0 0
        %1184 = vmatpush1.bf16.msra.mxu0 0
        %1185 = vmatprep.subr.bf16.mxu0 0
        %1186 = vmatpush1.bf16.msra.mxu0 0
        %1187 = vmatprep.subr.bf16.mxu0 0
        %1188 = vmatpush1.bf16.msra.mxu0 0
        %1189 = vmatprep.subr.bf16.mxu0 0
        %1190 = vmatpush1.bf16.msra.mxu0 0
        %1191 = vmatprep.subr.bf16.mxu0 0
        %1192 = vmatpush1.bf16.msra.mxu0 0
        %1193 = vmatprep.subr.bf16.mxu0 0
        %1194 = vmatpush1.bf16.msra.mxu0 0
        %1195 = vmatprep.subr.bf16.mxu0 0
        %1196 = vmatpush1.bf16.msra.mxu0 0
        %1197 = vmatprep.subr.bf16.mxu0 0
        %1198 = vmatpush1.bf16.msra.mxu0 0
        %1199 = vmatprep.subr.bf16.mxu0 0
        %1200 = vmatpush1.bf16.msra.mxu0 0
        %1201 = vmatprep.subr.bf16.mxu0 0
        %1202 = vmatpush1.bf16.msra.mxu0 0
        %1203 = vmatprep.mubr.bf16.mxu0 0
        %1204 = vmatmul.mubr.bf16.gmra.mrb[0].mxu0 %v1169
        %v1205 = vpop.f32.mrb[0].mxu0
        %v1206 = vadd.f32 0.0, %v1205
        %v1207 = vpop.f32.mrb[0].mxu0
        %v1208 = vpop.f32.mrb[0].mxu0
        %v1209 = vadd.f32 0.0, %v1208
        %v1210 = vpop.f32.mrb[0].mxu0
        %1211 = vdwg.mxu0
        %1213 = vrot.lane.b32.xlu0 %v1084, 120
        %v1214 = vpop.permute.xlu0 %1213
        %1215 = vrot.lane.b32.xlu0 %v1085, 120
        %v1216 = vpop.permute.xlu0 %1215
        %v1218 = vsel %vm1092, %v1214, 0
        %v1221 = vsel %vm1092, %v1216, 0
        %1223 = vmatprep.subr.bf16.mxu0 0
        %1224 = vmatpush1.bf16.xpose.msra.mxu0 %v1221
        %1225 = vmatprep.subr.bf16.mxu0 0
        %1226 = vmatpush1.bf16.xpose.msra.mxu0 0
        %1227 = vmatprep.subr.bf16.mxu0 0
        %1228 = vmatpush1.bf16.xpose.msra.mxu0 0
        %1229 = vmatprep.subr.bf16.mxu0 0
        %1230 = vmatpush1.bf16.xpose.msra.mxu0 0
        %1231 = vmatprep.subr.bf16.mxu0 0
        %1232 = vmatpush1.bf16.xpose.msra.mxu0 0
        %1233 = vmatprep.subr.bf16.mxu0 0
        %1234 = vmatpush1.bf16.xpose.msra.mxu0 0
        %1235 = vmatprep.subr.bf16.mxu0 0
        %1236 = vmatpush1.bf16.xpose.msra.mxu0 0
        %1237 = vmatprep.subr.bf16.mxu0 0
        %1238 = vmatpush1.bf16.xpose.msra.mxu0 0
        %1239 = vmatprep.subr.bf16.mxu0 0
        %1240 = vmatpush1.bf16.xpose.msra.mxu0 0
        %1241 = vmatprep.subr.bf16.mxu0 0
        %1242 = vmatpush1.bf16.xpose.msra.mxu0 0
        %1243 = vmatprep.subr.bf16.mxu0 0
        %1244 = vmatpush1.bf16.xpose.msra.mxu0 0
        %1245 = vmatprep.subr.bf16.mxu0 0
        %1246 = vmatpush1.bf16.xpose.msra.mxu0 0
        %1247 = vmatprep.subr.bf16.mxu0 0
        %1248 = vmatpush1.bf16.xpose.msra.mxu0 0
        %1249 = vmatprep.subr.bf16.mxu0 0
        %1250 = vmatpush1.bf16.xpose.msra.mxu0 0
        %1251 = vmatprep.subr.bf16.mxu0 0
        %1252 = vmatpush1.bf16.xpose.msra.mxu0 0
        %1253 = vmatprep.subr.bf16.mxu0 0
        %1254 = vmatpush1.bf16.xpose.msra.mxu0 0
        %1255 = vmatprep.mubr.bf16.mxu0 0
        %1256 = vmatmul.mubr.bf16.gmra.mrb[0].mxu0 %v1218
        %v1257 = vpop.f32.mrb[0].mxu0
        %v1258 = vadd.f32 %v1090, %v1257
        %v1259 = vpop.f32.mrb[0].mxu0
        %v1260 = vpop.f32.mrb[0].mxu0
        %v1261 = vadd.f32 %v1090, %v1260
        %v1262 = vpop.f32.mrb[0].mxu0
        %1263 = vdwg.mxu0
        %v1264 = vsel %vm1140, %v1258, -inf
        %1265 = vmax.xlane.f32.xlu0 %v1264
        %v1266 = vpop.xlane.xlu0 %1265
        %v1267 = vsel %vm1140, %v1261, -inf
        %1268 = vmax.xlane.f32.xlu0 %v1267
        %v1269 = vpop.xlane.xlu0 %1268
        %v1270 = vsub.f32 %v1258, %v1266
        %v1271 = vsub.f32 %v1261, %v1269
        %v1272 = vmul.f32 %v1270, 1.442695
        %v1273 = vpow.pop %v1272
        %v1274 = vmul.f32 %v1271, 1.442695
        %v1275 = vpow.pop %v1274
        %v1276 = vsel %vm1140, %v1273, 0.0
        %1277 = vadd.xlane.f32.xlu0 %v1276
        %v1278 = vpop.xlane.xlu0 %1277
        %v1279 = vsel %vm1140, %v1275, 0.0
        %1280 = vadd.xlane.f32.xlu0 %v1279
        %v1281 = vpop.xlane.xlu0 %1280
        %v1282 = vrcp.pop %v1278
        %v1283 = vrcp.pop %v1281
        %v1284 = vmul.f32 %v1273, %v1282
        %v1285 = vmul.f32 %v1275, %v1283
        %v1286 = vpack.c.bf16 %v1285, %v1284
        %1287 = vrot.lane.b32.xlu0 %v1085, 88
        %v1288 = vpop.permute.xlu0 %1287
        %v1291 = vsel %vm1140, %v1286, 0
        %1293 = vmatprep.subr.bf16.mxu0 0
        %1294 = vmatpush1.bf16.msra.mxu0 %v1288
        %1295 = vmatprep.subr.bf16.mxu0 0
        %1296 = vmatpush1.bf16.msra.mxu0 0
        %1297 = vmatprep.subr.bf16.mxu0 0
        %1298 = vmatpush1.bf16.msra.mxu0 0
        %1299 = vmatprep.subr.bf16.mxu0 0
        %1300 = vmatpush1.bf16.msra.mxu0 0
        %1301 = vmatprep.subr.bf16.mxu0 0
        %1302 = vmatpush1.bf16.msra.mxu0 0
        %1303 = vmatprep.subr.bf16.mxu0 0
        %1304 = vmatpush1.bf16.msra.mxu0 0
        %1305 = vmatprep.subr.bf16.mxu0 0
        %1306 = vmatpush1.bf16.msra.mxu0 0
        %1307 = vmatprep.subr.bf16.mxu0 0
        %1308 = vmatpush1.bf16.msra.mxu0 0
        %1309 = vmatprep.subr.bf16.mxu0 0
        %1310 = vmatpush1.bf16.msra.mxu0 0
        %1311 = vmatprep.subr.bf16.mxu0 0
        %1312 = vmatpush1.bf16.msra.mxu0 0
        %1313 = vmatprep.subr.bf16.mxu0 0
        %1314 = vmatpush1.bf16.msra.mxu0 0
        %1315 = vmatprep.subr.bf16.mxu0 0
        %1316 = vmatpush1.bf16.msra.mxu0 0
        %1317 = vmatprep.subr.bf16.mxu0 0
        %1318 = vmatpush1.bf16.msra.mxu0 0
        %1319 = vmatprep.subr.bf16.mxu0 0
        %1320 = vmatpush1.bf16.msra.mxu0 0
        %1321 = vmatprep.subr.bf16.mxu0 0
        %1322 = vmatpush1.bf16.msra.mxu0 0
        %1323 = vmatprep.subr.bf16.mxu0 0
        %1324 = vmatpush1.bf16.msra.mxu0 0
        %1325 = vmatprep.mubr.bf16.mxu0 0
        %1326 = vmatmul.mubr.bf16.gmra.mrb[0].mxu0 %v1291
        %v1327 = vpop.f32.mrb[0].mxu0
        %v1328 = vadd.f32 0.0, %v1327
        %v1329 = vpop.f32.mrb[0].mxu0
        %v1330 = vpop.f32.mrb[0].mxu0
        %v1331 = vadd.f32 0.0, %v1330
        %v1332 = vpop.f32.mrb[0].mxu0
        %1333 = vdwg.mxu0
        %1334 = vrot.lane.b32.xlu0 %v1084, 112
        %v1335 = vpop.permute.xlu0 %1334
        %1336 = vrot.lane.b32.xlu0 %v1085, 112
        %v1337 = vpop.permute.xlu0 %1336
        %v1339 = vsel %vm1092, %v1335, 0
        %v1342 = vsel %vm1092, %v1337, 0
        %1344 = vmatprep.subr.bf16.mxu0 0
        %1345 = vmatpush1.bf16.xpose.msra.mxu0 %v1342
        %1346 = vmatprep.subr.bf16.mxu0 0
        %1347 = vmatpush1.bf16.xpose.msra.mxu0 0
        %1348 = vmatprep.subr.bf16.mxu0 0
        %1349 = vmatpush1.bf16.xpose.msra.mxu0 0
        %1350 = vmatprep.subr.bf16.mxu0 0
        %1351 = vmatpush1.bf16.xpose.msra.mxu0 0
        %1352 = vmatprep.subr.bf16.mxu0 0
        %1353 = vmatpush1.bf16.xpose.msra.mxu0 0
        %1354 = vmatprep.subr.bf16.mxu0 0
        %1355 = vmatpush1.bf16.xpose.msra.mxu0 0
        %1356 = vmatprep.subr.bf16.mxu0 0
        %1357 = vmatpush1.bf16.xpose.msra.mxu0 0
        %1358 = vmatprep.subr.bf16.mxu0 0
        %1359 = vmatpush1.bf16.xpose.msra.mxu0 0
        %1360 = vmatprep.subr.bf16.mxu0 0
        %1361 = vmatpush1.bf16.xpose.msra.mxu0 0
        %1362 = vmatprep.subr.bf16.mxu0 0
        %1363 = vmatpush1.bf16.xpose.msra.mxu0 0
        %1364 = vmatprep.subr.bf16.mxu0 0
        %1365 = vmatpush1.bf16.xpose.msra.mxu0 0
        %1366 = vmatprep.subr.bf16.mxu0 0
        %1367 = vmatpush1.bf16.xpose.msra.mxu0 0
        %1368 = vmatprep.subr.bf16.mxu0 0
        %1369 = vmatpush1.bf16.xpose.msra.mxu0 0
        %1370 = vmatprep.subr.bf16.mxu0 0
        %1371 = vmatpush1.bf16.xpose.msra.mxu0 0
        %1372 = vmatprep.subr.bf16.mxu0 0
        %1373 = vmatpush1.bf16.xpose.msra.mxu0 0
        %1374 = vmatprep.subr.bf16.mxu0 0
        %1375 = vmatpush1.bf16.xpose.msra.mxu0 0
        %1376 = vmatprep.mubr.bf16.mxu0 0
        %1377 = vmatmul.mubr.bf16.gmra.mrb[0].mxu0 %v1339
        %v1378 = vpop.f32.mrb[0].mxu0
        %v1379 = vadd.f32 %v1090, %v1378
        %v1380 = vpop.f32.mrb[0].mxu0
        %v1381 = vpop.f32.mrb[0].mxu0
        %v1382 = vadd.f32 %v1090, %v1381
        %v1383 = vpop.f32.mrb[0].mxu0
        %1384 = vdwg.mxu0
        %v1385 = vsel %vm1140, %v1379, -inf
        %1386 = vmax.xlane.f32.xlu0 %v1385
        %v1387 = vpop.xlane.xlu0 %1386
        %v1388 = vsel %vm1140, %v1382, -inf
        %1389 = vmax.xlane.f32.xlu0 %v1388
        %v1390 = vpop.xlane.xlu0 %1389
        %v1391 = vsub.f32 %v1379, %v1387
        %v1392 = vsub.f32 %v1382, %v1390
        %v1393 = vmul.f32 %v1391, 1.442695
        %v1394 = vpow.pop %v1393
        %v1395 = vmul.f32 %v1392, 1.442695
        %v1396 = vpow.pop %v1395
        %v1397 = vsel %vm1140, %v1394, 0.0
        %1398 = vadd.xlane.f32.xlu0 %v1397
        %v1399 = vpop.xlane.xlu0 %1398
        %v1400 = vsel %vm1140, %v1396, 0.0
        %1401 = vadd.xlane.f32.xlu0 %v1400
        %v1402 = vpop.xlane.xlu0 %1401
        %v1403 = vrcp.pop %v1399
        %v1404 = vrcp.pop %v1402
        %v1405 = vmul.f32 %v1394, %v1403
        %v1406 = vmul.f32 %v1396, %v1404
        %v1407 = vpack.c.bf16 %v1406, %v1405
        %1408 = vrot.lane.b32.xlu0 %v1085, 80
        %v1409 = vpop.permute.xlu0 %1408
        %v1412 = vsel %vm1140, %v1407, 0
        %1414 = vmatprep.subr.bf16.mxu0 0
        %1415 = vmatpush1.bf16.msra.mxu0 %v1409
        %1416 = vmatprep.subr.bf16.mxu0 0
        %1417 = vmatpush1.bf16.msra.mxu0 0
        %1418 = vmatprep.subr.bf16.mxu0 0
        %1419 = vmatpush1.bf16.msra.mxu0 0
        %1420 = vmatprep.subr.bf16.mxu0 0
        %1421 = vmatpush1.bf16.msra.mxu0 0
        %1422 = vmatprep.subr.bf16.mxu0 0
        %1423 = vmatpush1.bf16.msra.mxu0 0
        %1424 = vmatprep.subr.bf16.mxu0 0
        %1425 = vmatpush1.bf16.msra.mxu0 0
        %1426 = vmatprep.subr.bf16.mxu0 0
        %1427 = vmatpush1.bf16.msra.mxu0 0
        %1428 = vmatprep.subr.bf16.mxu0 0
        %1429 = vmatpush1.bf16.msra.mxu0 0
        %1430 = vmatprep.subr.bf16.mxu0 0
        %1431 = vmatpush1.bf16.msra.mxu0 0
        %1432 = vmatprep.subr.bf16.mxu0 0
        %1433 = vmatpush1.bf16.msra.mxu0 0
        %1434 = vmatprep.subr.bf16.mxu0 0
        %1435 = vmatpush1.bf16.msra.mxu0 0
        %1436 = vmatprep.subr.bf16.mxu0 0
        %1437 = vmatpush1.bf16.msra.mxu0 0
        %1438 = vmatprep.subr.bf16.mxu0 0
        %1439 = vmatpush1.bf16.msra.mxu0 0
        %1440 = vmatprep.subr.bf16.mxu0 0
        %1441 = vmatpush1.bf16.msra.mxu0 0
        %1442 = vmatprep.subr.bf16.mxu0 0
        %1443 = vmatpush1.bf16.msra.mxu0 0
        %1444 = vmatprep.subr.bf16.mxu0 0
        %1445 = vmatpush1.bf16.msra.mxu0 0
        %1446 = vmatprep.mubr.bf16.mxu0 0
        %1447 = vmatmul.mubr.bf16.gmra.mrb[0].mxu0 %v1412
        %v1448 = vpop.f32.mrb[0].mxu0
        %v1449 = vadd.f32 0.0, %v1448
        %v1450 = vpop.f32.mrb[0].mxu0
        %v1451 = vpop.f32.mrb[0].mxu0
        %v1452 = vadd.f32 0.0, %v1451
        %v1453 = vpop.f32.mrb[0].mxu0
        %1454 = vdwg.mxu0
        %1455 = vrot.lane.b32.xlu0 %v1084, 104
        %v1456 = vpop.permute.xlu0 %1455
        %1457 = vrot.lane.b32.xlu0 %v1085, 104
        %v1458 = vpop.permute.xlu0 %1457
        %v1460 = vsel %vm1092, %v1456, 0
        %v1463 = vsel %vm1092, %v1458, 0
        %1465 = vmatprep.subr.bf16.mxu0 0
        %1466 = vmatpush1.bf16.xpose.msra.mxu0 %v1463
        %1467 = vmatprep.subr.bf16.mxu0 0
        %1468 = vmatpush1.bf16.xpose.msra.mxu0 0
        %1469 = vmatprep.subr.bf16.mxu0 0
        %1470 = vmatpush1.bf16.xpose.msra.mxu0 0
        %1471 = vmatprep.subr.bf16.mxu0 0
        %1472 = vmatpush1.bf16.xpose.msra.mxu0 0
        %1473 = vmatprep.subr.bf16.mxu0 0
        %1474 = vmatpush1.bf16.xpose.msra.mxu0 0
        %1475 = vmatprep.subr.bf16.mxu0 0
        %1476 = vmatpush1.bf16.xpose.msra.mxu0 0
        %1477 = vmatprep.subr.bf16.mxu0 0
        %1478 = vmatpush1.bf16.xpose.msra.mxu0 0
        %1479 = vmatprep.subr.bf16.mxu0 0
        %1480 = vmatpush1.bf16.xpose.msra.mxu0 0
        %1481 = vmatprep.subr.bf16.mxu0 0
        %1482 = vmatpush1.bf16.xpose.msra.mxu0 0
        %1483 = vmatprep.subr.bf16.mxu0 0
        %1484 = vmatpush1.bf16.xpose.msra.mxu0 0
        %1485 = vmatprep.subr.bf16.mxu0 0
        %1486 = vmatpush1.bf16.xpose.msra.mxu0 0
        %1487 = vmatprep.subr.bf16.mxu0 0
        %1488 = vmatpush1.bf16.xpose.msra.mxu0 0
        %1489 = vmatprep.subr.bf16.mxu0 0
        %1490 = vmatpush1.bf16.xpose.msra.mxu0 0
        %1491 = vmatprep.subr.bf16.mxu0 0
        %1492 = vmatpush1.bf16.xpose.msra.mxu0 0
        %1493 = vmatprep.subr.bf16.mxu0 0
        %1494 = vmatpush1.bf16.xpose.msra.mxu0 0
        %1495 = vmatprep.subr.bf16.mxu0 0
        %1496 = vmatpush1.bf16.xpose.msra.mxu0 0
        %1497 = vmatprep.mubr.bf16.mxu0 0
        %1498 = vmatmul.mubr.bf16.gmra.mrb[0].mxu0 %v1460
        %v1499 = vpop.f32.mrb[0].mxu0
        %v1500 = vadd.f32 %v1090, %v1499
        %v1501 = vpop.f32.mrb[0].mxu0
        %v1502 = vpop.f32.mrb[0].mxu0
        %v1503 = vadd.f32 %v1090, %v1502
        %v1504 = vpop.f32.mrb[0].mxu0
        %1505 = vdwg.mxu0
        %v1506 = vsel %vm1140, %v1500, -inf
        %1507 = vmax.xlane.f32.xlu0 %v1506
        %v1508 = vpop.xlane.xlu0 %1507
        %v1509 = vsel %vm1140, %v1503, -inf
        %1510 = vmax.xlane.f32.xlu0 %v1509
        %v1511 = vpop.xlane.xlu0 %1510
        %v1512 = vsub.f32 %v1500, %v1508
        %v1513 = vsub.f32 %v1503, %v1511
        %v1514 = vmul.f32 %v1512, 1.442695
        %v1515 = vpow.pop %v1514
        %v1516 = vmul.f32 %v1513, 1.442695
        %v1517 = vpow.pop %v1516
        %v1518 = vsel %vm1140, %v1515, 0.0
        %1519 = vadd.xlane.f32.xlu0 %v1518
        %v1520 = vpop.xlane.xlu0 %1519
        %v1521 = vsel %vm1140, %v1517, 0.0
        %1522 = vadd.xlane.f32.xlu0 %v1521
        %v1523 = vpop.xlane.xlu0 %1522
        %v1524 = vrcp.pop %v1520
        %v1525 = vrcp.pop %v1523
        %v1526 = vmul.f32 %v1515, %v1524
        %v1527 = vmul.f32 %v1517, %v1525
        %v1528 = vpack.c.bf16 %v1527, %v1526
        %1529 = vrot.lane.b32.xlu0 %v1085, 72
        %v1530 = vpop.permute.xlu0 %1529
        %v1533 = vsel %vm1140, %v1528, 0
        %1535 = vmatprep.subr.bf16.mxu0 0
        %1536 = vmatpush1.bf16.msra.mxu0 %v1530
        %1537 = vmatprep.subr.bf16.mxu0 0
        %1538 = vmatpush1.bf16.msra.mxu0 0
        %1539 = vmatprep.subr.bf16.mxu0 0
        %1540 = vmatpush1.bf16.msra.mxu0 0
        %1541 = vmatprep.subr.bf16.mxu0 0
        %1542 = vmatpush1.bf16.msra.mxu0 0
        %1543 = vmatprep.subr.bf16.mxu0 0
        %1544 = vmatpush1.bf16.msra.mxu0 0
        %1545 = vmatprep.subr.bf16.mxu0 0
        %1546 = vmatpush1.bf16.msra.mxu0 0
        %1547 = vmatprep.subr.bf16.mxu0 0
        %1548 = vmatpush1.bf16.msra.mxu0 0
        %1549 = vmatprep.subr.bf16.mxu0 0
        %1550 = vmatpush1.bf16.msra.mxu0 0
        %1551 = vmatprep.subr.bf16.mxu0 0
        %1552 = vmatpush1.bf16.msra.mxu0 0
        %1553 = vmatprep.subr.bf16.mxu0 0
        %1554 = vmatpush1.bf16.msra.mxu0 0
        %1555 = vmatprep.subr.bf16.mxu0 0
        %1556 = vmatpush1.bf16.msra.mxu0 0
        %1557 = vmatprep.subr.bf16.mxu0 0
        %1558 = vmatpush1.bf16.msra.mxu0 0
        %1559 = vmatprep.subr.bf16.mxu0 0
        %1560 = vmatpush1.bf16.msra.mxu0 0
        %1561 = vmatprep.subr.bf16.mxu0 0
        %1562 = vmatpush1.bf16.msra.mxu0 0
        %1563 = vmatprep.subr.bf16.mxu0 0
        %1564 = vmatpush1.bf16.msra.mxu0 0
        %1565 = vmatprep.subr.bf16.mxu0 0
        %1566 = vmatpush1.bf16.msra.mxu0 0
        %1567 = vmatprep.mubr.bf16.mxu0 0
        %1568 = vmatmul.mubr.bf16.gmra.mrb[0].mxu0 %v1533
        %v1569 = vpop.f32.mrb[0].mxu0
        %v1570 = vadd.f32 0.0, %v1569
        %v1571 = vpop.f32.mrb[0].mxu0
        %v1572 = vpop.f32.mrb[0].mxu0
        %v1573 = vadd.f32 0.0, %v1572
        %v1574 = vpop.f32.mrb[0].mxu0
        %1575 = vdwg.mxu0
        %1578 = vrot.lane.b32.xlu0 %v1328, 8
        %v1579 = vpop.permute.xlu0 %1578
        %1580 = vrot.lane.b32.xlu0 %v1331, 8
        %v1581 = vpop.permute.xlu0 %1580
        %1586 = vrot.lane.b32.xlu0 %v1449, 16
        %v1587 = vpop.permute.xlu0 %1586
        %1588 = vrot.lane.b32.xlu0 %v1452, 16
        %v1589 = vpop.permute.xlu0 %1588
        %1594 = vrot.lane.b32.xlu0 %v1570, 24
        %v1595 = vpop.permute.xlu0 %1594
        %1596 = vrot.lane.b32.xlu0 %v1573, 24
        %v1597 = vpop.permute.xlu0 %1596
        %v1600 = vsel %vm1092, %v1206, %v1579
        %v1601 = vsel %vm1092, %v1209, %v1581
        %v1602 = vsel %vm1140, %v1600, %v1587
        %v1603 = vsel %vm1140, %v1601, %v1589
        %vm1604 = vcmask 195584
        %v1605 = vsel %vm1604, %v1602, %v1595
        %v1606 = vsel %vm1604, %v1603, %v1597
        %v1607 = vpack.c.bf16 %v1606, %v1605
        %v1609 = vlaneseq
        %v1610 = vshrl.u32 %v1609, 7
        %v1611 = vsub.s32 0, %v1610
        %v1612 = vrot.slane %v958, %v1611
        %v1618 = vunpack.c.l.b16 %v954
        %v1619 = vunpack.c.l.b16 %v955
        %v1620 = vunpack.c.l.b16 %v956
        %v1621 = vunpack.c.l.b16 %v957
        %v1622 = vpack.c.b16 %v1619, %v1618
        %v1623 = vpack.c.b16 %v1621, %v1620
        %v1627 = vsel %vm978, %v1607, 0
        %1629 = vmatprep.subr.bf16.mxu0 0
        %1630 = vmatpush1.bf16.msra.mxu0 %v1622
        %1631 = vmatprep.subr.bf16.mxu0 0
        %1632 = vmatpush1.bf16.msra.mxu0 %v1623
        %1633 = vmatprep.subr.bf16.mxu0 0
        %1634 = vmatpush1.bf16.msra.mxu0 0
        %1635 = vmatprep.subr.bf16.mxu0 0
        %1636 = vmatpush1.bf16.msra.mxu0 0
        %1637 = vmatprep.subr.bf16.mxu0 0
        %1638 = vmatpush1.bf16.msra.mxu0 0
        %1639 = vmatprep.subr.bf16.mxu0 0
        %1640 = vmatpush1.bf16.msra.mxu0 0
        %1641 = vmatprep.subr.bf16.mxu0 0
        %1642 = vmatpush1.bf16.msra.mxu0 0
        %1643 = vmatprep.subr.bf16.mxu0 0
        %1644 = vmatpush1.bf16.msra.mxu0 0
        %1645 = vmatprep.subr.bf16.mxu0 0
        %1646 = vmatpush1.bf16.msra.mxu0 0
        %1647 = vmatprep.subr.bf16.mxu0 0
        %1648 = vmatpush1.bf16.msra.mxu0 0
        %1649 = vmatprep.subr.bf16.mxu0 0
        %1650 = vmatpush1.bf16.msra.mxu0 0
        %1651 = vmatprep.subr.bf16.mxu0 0
        %1652 = vmatpush1.bf16.msra.mxu0 0
        %1653 = vmatprep.subr.bf16.mxu0 0
        %1654 = vmatpush1.bf16.msra.mxu0 0
        %1655 = vmatprep.subr.bf16.mxu0 0
        %1656 = vmatpush1.bf16.msra.mxu0 0
        %1657 = vmatprep.subr.bf16.mxu0 0
        %1658 = vmatpush1.bf16.msra.mxu0 0
        %1659 = vmatprep.subr.bf16.mxu0 0
        %1660 = vmatpush1.bf16.msra.mxu0 0
        %1661 = vmatprep.mubr.bf16.mxu0 0
        %1662 = vmatmul.mubr.bf16.gmra.mrb[0].mxu0 %v1627
        %v1663 = vpop.f32.mrb[0].mxu0
        %v1664 = vadd.f32 %v1612, %v1663
        %v1665 = vpop.f32.mrb[0].mxu0
        %v1666 = vpop.f32.mrb[0].mxu0
        %v1667 = vadd.f32 %v1612, %v1666
        %v1668 = vpop.f32.mrb[0].mxu0
        %1669 = vdwg.mxu0
        %v1670 = vadd.f32 %v939, %v1664
        %v1671 = vadd.f32 %v940, %v1667
        %v1672 = vld [vmem:[%s10] sm:$0x1]
        %v1673 = vld [vmem:[%s11] sm:$0x1]
        %v1674 = vsel %vm978, %v1670, 0.0
        %1675 = vadd.xlane.f32.xlu0 %v1674
        %v1676 = vpop.xlane.xlu0 %1675
        %v1677 = vsel %vm978, %v1671, 0.0
        %1678 = vadd.xlane.f32.xlu0 %v1677
        %v1679 = vpop.xlane.xlu0 %1678
        %v1680 = vrcp.pop 32.0
        %v1681 = vmul.f32 %v1676, %v1680
        %v1682 = vmul.f32 %v1679, %v1680
        %v1683 = vsub.f32 %v1670, %v1681
        %v1684 = vsub.f32 %v1671, %v1682
        %v1685 = vmul.f32 %v1683, %v1683
        %v1686 = vmul.f32 %v1684, %v1684
        %v1687 = vsel %vm978, %v1685, 0.0
        %1688 = vadd.xlane.f32.xlu0 %v1687
        %v1689 = vpop.xlane.xlu0 %1688
        %v1690 = vsel %vm978, %v1686, 0.0
        %1691 = vadd.xlane.f32.xlu0 %v1690
        %v1692 = vpop.xlane.xlu0 %1691
        %v1693 = vmul.f32 %v1689, %v1680
        %v1694 = vmul.f32 %v1692, %v1680
        %v1695 = vadd.f32 %v1693, 1e-06
        %v1696 = vadd.f32 %v1694, 1e-06
        %v1697 = vrsqrt.pop %v1695
        %v1698 = vrsqrt.pop %v1696
        %v1699 = vmul.f32 %v1683, %v1697
        %v1700 = vmul.f32 %v1684, %v1698
        %v1702 = vlaneseq
        %v1703 = vshrl.u32 %v1702, 7
        %v1704 = vsub.s32 0, %v1703
        %v1705 = vrot.slane %v1672, %v1704
        %v1707 = vmul.f32 %v1699, %v1705
        %v1708 = vmul.f32 %v1700, %v1705
        %v1710 = vlaneseq
        %v1711 = vshrl.u32 %v1710, 7
        %v1712 = vsub.s32 0, %v1711
        %v1713 = vrot.slane %v1673, %v1712
        %v1715 = vadd.f32 %v1707, %v1713
        %v1716 = vadd.f32 %v1708, %v1713
        %v1717 = vld [vmem:[%s12] sm:$0xf]
        %v1718 = vld [vmem:[%s12 + $0x4] sm:$0xf]
        %v1719 = vld [vmem:[%s12 + $0x8] sm:$0xf]
        %v1720 = vld [vmem:[%s12 + $0xc] sm:$0xf]
        %v1721 = vld [vmem:[#allocation7] sm:$0x1]
        %v1722 = vld [vmem:[%s14] sm:$0xf]
        %v1723 = vld [vmem:[%s14 + $0x4] sm:$0xf]
        %v1724 = vld [vmem:[%s14 + $0x8] sm:$0xf]
        %v1725 = vld [vmem:[%s14 + $0xc] sm:$0xf]
        %v1726 = vld [vmem:[#allocation9] sm:$0x1]
        %v1727 = vld [vmem:[%s16] sm:$0xf]
        %v1728 = vld [vmem:[%s16 + $0x4] sm:$0xf]
        %v1729 = vld [vmem:[%s16 + $0x8] sm:$0xf]
        %v1730 = vld [vmem:[%s16 + $0xc] sm:$0xf]
        %v1731 = vld [vmem:[#allocation10] sm:$0x1]
        %v1732 = vpack.c.bf16 %v1716, %v1715
        %v1734 = vlaneseq
        %v1735 = vshrl.u32 %v1734, 7
        %v1736 = vsub.s32 0, %v1735
        %v1737 = vrot.slane %v1721, %v1736
        %v1743 = vunpack.c.l.b16 %v1717
        %v1744 = vunpack.c.l.b16 %v1718
        %v1745 = vunpack.c.l.b16 %v1719
        %v1746 = vunpack.c.l.b16 %v1720
        %v1747 = vpack.c.b16 %v1744, %v1743
        %v1748 = vpack.c.b16 %v1746, %v1745
        %v1752 = vsel %vm978, %v1732, 0
        %1754 = vmatprep.subr.bf16.mxu0 0
        %1755 = vmatpush1.bf16.msra.mxu0 %v1747
        %1756 = vmatprep.subr.bf16.mxu0 0
        %1757 = vmatpush1.bf16.msra.mxu0 %v1748
        %1758 = vmatprep.subr.bf16.mxu0 0
        %1759 = vmatpush1.bf16.msra.mxu0 0
        %1760 = vmatprep.subr.bf16.mxu0 0
        %1761 = vmatpush1.bf16.msra.mxu0 0
        %1762 = vmatprep.subr.bf16.mxu0 0
        %1763 = vmatpush1.bf16.msra.mxu0 0
        %1764 = vmatprep.subr.bf16.mxu0 0
        %1765 = vmatpush1.bf16.msra.mxu0 0
        %1766 = vmatprep.subr.bf16.mxu0 0
        %1767 = vmatpush1.bf16.msra.mxu0 0
        %1768 = vmatprep.subr.bf16.mxu0 0
        %1769 = vmatpush1.bf16.msra.mxu0 0
        %1770 = vmatprep.subr.bf16.mxu0 0
        %1771 = vmatpush1.bf16.msra.mxu0 0
        %1772 = vmatprep.subr.bf16.mxu0 0
        %1773 = vmatpush1.bf16.msra.mxu0 0
        %1774 = vmatprep.subr.bf16.mxu0 0
        %1775 = vmatpush1.bf16.msra.mxu0 0
        %1776 = vmatprep.subr.bf16.mxu0 0
        %1777 = vmatpush1.bf16.msra.mxu0 0
        %1778 = vmatprep.subr.bf16.mxu0 0
        %1779 = vmatpush1.bf16.msra.mxu0 0
        %1780 = vmatprep.subr.bf16.mxu0 0
        %1781 = vmatpush1.bf16.msra.mxu0 0
        %1782 = vmatprep.subr.bf16.mxu0 0
        %1783 = vmatpush1.bf16.msra.mxu0 0
        %1784 = vmatprep.subr.bf16.mxu0 0
        %1785 = vmatpush1.bf16.msra.mxu0 0
        %1786 = vmatprep.mubr.bf16.mxu0 0
        %1787 = vmatmul.mubr.bf16.gmra.mrb[0].mxu0 %v1752
        %v1788 = vpop.f32.mrb[0].mxu0
        %v1789 = vadd.f32 %v1737, %v1788
        %v1790 = vpop.f32.mrb[0].mxu0
        %v1791 = vpop.f32.mrb[0].mxu0
        %v1792 = vadd.f32 %v1737, %v1791
        %v1793 = vpop.f32.mrb[0].mxu0
        %1794 = vdwg.mxu0
        %v1795 = vpack.c.bf16 %v941, %v941
        %v1797 = vlaneseq
        %v1798 = vshrl.u32 %v1797, 7
        %v1799 = vsub.s32 0, %v1798
        %v1800 = vrot.slane %v1726, %v1799
        %v1806 = vunpack.c.l.b16 %v1722
        %v1807 = vunpack.c.l.b16 %v1723
        %v1808 = vunpack.c.l.b16 %v1724
        %v1809 = vunpack.c.l.b16 %v1725
        %v1810 = vpack.c.b16 %v1807, %v1806
        %v1811 = vpack.c.b16 %v1809, %v1808
        %v1815 = vsel %vm978, %v1795, 0
        %1817 = vmatprep.subr.bf16.mxu0 0
        %1818 = vmatpush1.bf16.msra.mxu0 %v1810
        %1819 = vmatprep.subr.bf16.mxu0 0
        %1820 = vmatpush1.bf16.msra.mxu0 %v1811
        %1821 = vmatprep.subr.bf16.mxu0 0
        %1822 = vmatpush1.bf16.msra.mxu0 0
        %1823 = vmatprep.subr.bf16.mxu0 0
        %1824 = vmatpush1.bf16.msra.mxu0 0
        %1825 = vmatprep.subr.bf16.mxu0 0
        %1826 = vmatpush1.bf16.msra.mxu0 0
        %1827 = vmatprep.subr.bf16.mxu0 0
        %1828 = vmatpush1.bf16.msra.mxu0 0
        %1829 = vmatprep.subr.bf16.mxu0 0
        %1830 = vmatpush1.bf16.msra.mxu0 0
        %1831 = vmatprep.subr.bf16.mxu0 0
        %1832 = vmatpush1.bf16.msra.mxu0 0
        %1833 = vmatprep.subr.bf16.mxu0 0
        %1834 = vmatpush1.bf16.msra.mxu0 0
        %1835 = vmatprep.subr.bf16.mxu0 0
        %1836 = vmatpush1.bf16.msra.mxu0 0
        %1837 = vmatprep.subr.bf16.mxu0 0
        %1838 = vmatpush1.bf16.msra.mxu0 0
        %1839 = vmatprep.subr.bf16.mxu0 0
        %1840 = vmatpush1.bf16.msra.mxu0 0
        %1841 = vmatprep.subr.bf16.mxu0 0
        %1842 = vmatpush1.bf16.msra.mxu0 0
        %1843 = vmatprep.subr.bf16.mxu0 0
        %1844 = vmatpush1.bf16.msra.mxu0 0
        %1845 = vmatprep.subr.bf16.mxu0 0
        %1846 = vmatpush1.bf16.msra.mxu0 0
        %1847 = vmatprep.subr.bf16.mxu0 0
        %1848 = vmatpush1.bf16.msra.mxu0 0
        %1849 = vmatprep.mubr.bf16.mxu0 0
        %1850 = vmatmul.mubr.bf16.gmra.mrb[0].mxu0 %v1815
        %v1851 = vpop.f32.mrb[0].mxu0
        %v1852 = vadd.f32 %v1800, %v1851
        %v1853 = vpop.f32.mrb[0].mxu0
        %v1854 = vpop.f32.mrb[0].mxu0
        %v1855 = vpop.f32.mrb[0].mxu0
        %1856 = vdwg.mxu0
        %v1857 = vmul.f32 %v1789, 0.35355338
        %v1858 = vmul.f32 %v1792, 0.35355338
        %v1859 = vpack.c.bf16 %v1858, %v1857
        %v1860 = vpack.c.bf16 %v1852, %v1852
        %v1862 = vlaneseq
        %v1863 = vshrl.u32 %v1862, 7
        %v1864 = vsub.s32 0, %v1863
        %v1865 = vrot.slane %v943, %v1864
        %v1868 = vsel %vm1092, %v1859, 0
        %v1871 = vsel %vm1092, %v1860, 0
        %1873 = vmatprep.subr.bf16.mxu0 0
        %1874 = vmatpush1.bf16.xpose.msra.mxu0 %v1871
        %1875 = vmatprep.subr.bf16.mxu0 0
        %1876 = vmatpush1.bf16.xpose.msra.mxu0 0
        %1877 = vmatprep.subr.bf16.mxu0 0
        %1878 = vmatpush1.bf16.xpose.msra.mxu0 0
        %1879 = vmatprep.subr.bf16.mxu0 0
        %1880 = vmatpush1.bf16.xpose.msra.mxu0 0
        %1881 = vmatprep.subr.bf16.mxu0 0
        %1882 = vmatpush1.bf16.xpose.msra.mxu0 0
        %1883 = vmatprep.subr.bf16.mxu0 0
        %1884 = vmatpush1.bf16.xpose.msra.mxu0 0
        %1885 = vmatprep.subr.bf16.mxu0 0
        %1886 = vmatpush1.bf16.xpose.msra.mxu0 0
        %1887 = vmatprep.subr.bf16.mxu0 0
        %1888 = vmatpush1.bf16.xpose.msra.mxu0 0
        %1889 = vmatprep.subr.bf16.mxu0 0
        %1890 = vmatpush1.bf16.xpose.msra.mxu0 0
        %1891 = vmatprep.subr.bf16.mxu0 0
        %1892 = vmatpush1.bf16.xpose.msra.mxu0 0
        %1893 = vmatprep.subr.bf16.mxu0 0
        %1894 = vmatpush1.bf16.xpose.msra.mxu0 0
        %1895 = vmatprep.subr.bf16.mxu0 0
        %1896 = vmatpush1.bf16.xpose.msra.mxu0 0
        %1897 = vmatprep.subr.bf16.mxu0 0
        %1898 = vmatpush1.bf16.xpose.msra.mxu0 0
        %1899 = vmatprep.subr.bf16.mxu0 0
        %1900 = vmatpush1.bf16.xpose.msra.mxu0 0
        %1901 = vmatprep.subr.bf16.mxu0 0
        %1902 = vmatpush1.bf16.xpose.msra.mxu0 0
        %1903 = vmatprep.subr.bf16.mxu0 0
        %1904 = vmatpush1.bf16.xpose.msra.mxu0 0
        %1905 = vmatprep.mubr.bf16.mxu0 0
        %1906 = vmatmul.mubr.bf16.gmra.mrb[0].mxu0 %v1868
        %v1907 = vpop.f32.mrb[0].mxu0
        %v1908 = vadd.f32 %v1865, %v1907
        %v1909 = vpop.f32.mrb[0].mxu0
        %v1910 = vpop.f32.mrb[0].mxu0
        %v1911 = vadd.f32 %v1865, %v1910
        %v1912 = vpop.f32.mrb[0].mxu0
        %1913 = vdwg.mxu0
        %v1914 = vsel %vm1092, %v1908, -inf
        %1915 = vmax.xlane.f32.xlu0 %v1914
        %v1916 = vpop.xlane.xlu0 %1915
        %v1917 = vsel %vm1092, %v1911, -inf
        %1918 = vmax.xlane.f32.xlu0 %v1917
        %v1919 = vpop.xlane.xlu0 %1918
        %v1920 = vsub.f32 %v1908, %v1916
        %v1921 = vsub.f32 %v1911, %v1919
        %v1922 = vmul.f32 %v1920, 1.442695
        %v1923 = vpow.pop %v1922
        %v1924 = vmul.f32 %v1921, 1.442695
        %v1925 = vpow.pop %v1924
        %v1926 = vsel %vm1092, %v1923, 0.0
        %1927 = vadd.xlane.f32.xlu0 %v1926
        %v1928 = vpop.xlane.xlu0 %1927
        %v1929 = vsel %vm1092, %v1925, 0.0
        %1930 = vadd.xlane.f32.xlu0 %v1929
        %v1931 = vpop.xlane.xlu0 %1930
        %v1932 = vrcp.pop %v1928
        %v1933 = vrcp.pop %v1931
        %v1934 = vmul.f32 %v1923, %v1932
        %v1935 = vmul.f32 %v1925, %v1933
        %v1936 = vpack.c.bf16 %v1935, %v1934
        %1938 = vrot.lane.b32.xlu0 %v1860, 96
        %v1939 = vpop.permute.xlu0 %1938
        %v1941 = vsel %vm1092, %v1936, 0
        %vm1943 = vcmask 1043456
        %v1945 = vsel %vm1943, %v1939, 0
        %1947 = vmatprep.subr.bf16.mxu0 0
        %1948 = vmatpush1.bf16.msra.mxu0 %v1945
        %1949 = vmatprep.subr.bf16.mxu0 0
        %1950 = vmatpush1.bf16.msra.mxu0 0
        %1951 = vmatprep.subr.bf16.mxu0 0
        %1952 = vmatpush1.bf16.msra.mxu0 0
        %1953 = vmatprep.subr.bf16.mxu0 0
        %1954 = vmatpush1.bf16.msra.mxu0 0
        %1955 = vmatprep.subr.bf16.mxu0 0
        %1956 = vmatpush1.bf16.msra.mxu0 0
        %1957 = vmatprep.subr.bf16.mxu0 0
        %1958 = vmatpush1.bf16.msra.mxu0 0
        %1959 = vmatprep.subr.bf16.mxu0 0
        %1960 = vmatpush1.bf16.msra.mxu0 0
        %1961 = vmatprep.subr.bf16.mxu0 0
        %1962 = vmatpush1.bf16.msra.mxu0 0
        %1963 = vmatprep.subr.bf16.mxu0 0
        %1964 = vmatpush1.bf16.msra.mxu0 0
        %1965 = vmatprep.subr.bf16.mxu0 0
        %1966 = vmatpush1.bf16.msra.mxu0 0
        %1967 = vmatprep.subr.bf16.mxu0 0
        %1968 = vmatpush1.bf16.msra.mxu0 0
        %1969 = vmatprep.subr.bf16.mxu0 0
        %1970 = vmatpush1.bf16.msra.mxu0 0
        %1971 = vmatprep.subr.bf16.mxu0 0
        %1972 = vmatpush1.bf16.msra.mxu0 0
        %1973 = vmatprep.subr.bf16.mxu0 0
        %1974 = vmatpush1.bf16.msra.mxu0 0
        %1975 = vmatprep.subr.bf16.mxu0 0
        %1976 = vmatpush1.bf16.msra.mxu0 0
        %1977 = vmatprep.subr.bf16.mxu0 0
        %1978 = vmatpush1.bf16.msra.mxu0 0
        %1979 = vmatprep.mubr.bf16.mxu0 0
        %1980 = vmatmul.mubr.bf16.gmra.mrb[0].mxu0 %v1941
        %v1981 = vpop.f32.mrb[0].mxu0
        %v1982 = vadd.f32 0.0, %v1981
        %v1983 = vpop.f32.mrb[0].mxu0
        %v1984 = vpop.f32.mrb[0].mxu0
        %v1985 = vadd.f32 0.0, %v1984
        %v1986 = vpop.f32.mrb[0].mxu0
        %1987 = vdwg.mxu0
        %1989 = vrot.lane.b32.xlu0 %v1859, 120
        %v1990 = vpop.permute.xlu0 %1989
        %1991 = vrot.lane.b32.xlu0 %v1860, 120
        %v1992 = vpop.permute.xlu0 %1991
        %v1994 = vsel %vm1092, %v1990, 0
        %v1997 = vsel %vm1092, %v1992, 0
        %1999 = vmatprep.subr.bf16.mxu0 0
        %2000 = vmatpush1.bf16.xpose.msra.mxu0 %v1997
        %2001 = vmatprep.subr.bf16.mxu0 0
        %2002 = vmatpush1.bf16.xpose.msra.mxu0 0
        %2003 = vmatprep.subr.bf16.mxu0 0
        %2004 = vmatpush1.bf16.xpose.msra.mxu0 0
        %2005 = vmatprep.subr.bf16.mxu0 0
        %2006 = vmatpush1.bf16.xpose.msra.mxu0 0
        %2007 = vmatprep.subr.bf16.mxu0 0
        %2008 = vmatpush1.bf16.xpose.msra.mxu0 0
        %2009 = vmatprep.subr.bf16.mxu0 0
        %2010 = vmatpush1.bf16.xpose.msra.mxu0 0
        %2011 = vmatprep.subr.bf16.mxu0 0
        %2012 = vmatpush1.bf16.xpose.msra.mxu0 0
        %2013 = vmatprep.subr.bf16.mxu0 0
        %2014 = vmatpush1.bf16.xpose.msra.mxu0 0
        %2015 = vmatprep.subr.bf16.mxu0 0
        %2016 = vmatpush1.bf16.xpose.msra.mxu0 0
        %2017 = vmatprep.subr.bf16.mxu0 0
        %2018 = vmatpush1.bf16.xpose.msra.mxu0 0
        %2019 = vmatprep.subr.bf16.mxu0 0
        %2020 = vmatpush1.bf16.xpose.msra.mxu0 0
        %2021 = vmatprep.subr.bf16.mxu0 0
        %2022 = vmatpush1.bf16.xpose.msra.mxu0 0
        %2023 = vmatprep.subr.bf16.mxu0 0
        %2024 = vmatpush1.bf16.xpose.msra.mxu0 0
        %2025 = vmatprep.subr.bf16.mxu0 0
        %2026 = vmatpush1.bf16.xpose.msra.mxu0 0
        %2027 = vmatprep.subr.bf16.mxu0 0
        %2028 = vmatpush1.bf16.xpose.msra.mxu0 0
        %2029 = vmatprep.subr.bf16.mxu0 0
        %2030 = vmatpush1.bf16.xpose.msra.mxu0 0
        %2031 = vmatprep.mubr.bf16.mxu0 0
        %2032 = vmatmul.mubr.bf16.gmra.mrb[0].mxu0 %v1994
        %v2033 = vpop.f32.mrb[0].mxu0
        %v2034 = vadd.f32 %v1865, %v2033
        %v2035 = vpop.f32.mrb[0].mxu0
        %v2036 = vpop.f32.mrb[0].mxu0
        %v2037 = vadd.f32 %v1865, %v2036
        %v2038 = vpop.f32.mrb[0].mxu0
        %2039 = vdwg.mxu0
        %v2040 = vsel %vm1092, %v2034, -inf
        %2041 = vmax.xlane.f32.xlu0 %v2040
        %v2042 = vpop.xlane.xlu0 %2041
        %v2043 = vsel %vm1092, %v2037, -inf
        %2044 = vmax.xlane.f32.xlu0 %v2043
        %v2045 = vpop.xlane.xlu0 %2044
        %v2046 = vsub.f32 %v2034, %v2042
        %v2047 = vsub.f32 %v2037, %v2045
        %v2048 = vmul.f32 %v2046, 1.442695
        %v2049 = vpow.pop %v2048
        %v2050 = vmul.f32 %v2047, 1.442695
        %v2051 = vpow.pop %v2050
        %v2052 = vsel %vm1092, %v2049, 0.0
        %2053 = vadd.xlane.f32.xlu0 %v2052
        %v2054 = vpop.xlane.xlu0 %2053
        %v2055 = vsel %vm1092, %v2051, 0.0
        %2056 = vadd.xlane.f32.xlu0 %v2055
        %v2057 = vpop.xlane.xlu0 %2056
        %v2058 = vrcp.pop %v2054
        %v2059 = vrcp.pop %v2057
        %v2060 = vmul.f32 %v2049, %v2058
        %v2061 = vmul.f32 %v2051, %v2059
        %v2062 = vpack.c.bf16 %v2061, %v2060
        %2063 = vrot.lane.b32.xlu0 %v1860, 88
        %v2064 = vpop.permute.xlu0 %2063
        %v2066 = vsel %vm1092, %v2062, 0
        %v2069 = vsel %vm1943, %v2064, 0
        %2071 = vmatprep.subr.bf16.mxu0 0
        %2072 = vmatpush1.bf16.msra.mxu0 %v2069
        %2073 = vmatprep.subr.bf16.mxu0 0
        %2074 = vmatpush1.bf16.msra.mxu0 0
        %2075 = vmatprep.subr.bf16.mxu0 0
        %2076 = vmatpush1.bf16.msra.mxu0 0
        %2077 = vmatprep.subr.bf16.mxu0 0
        %2078 = vmatpush1.bf16.msra.mxu0 0
        %2079 = vmatprep.subr.bf16.mxu0 0
        %2080 = vmatpush1.bf16.msra.mxu0 0
        %2081 = vmatprep.subr.bf16.mxu0 0
        %2082 = vmatpush1.bf16.msra.mxu0 0
        %2083 = vmatprep.subr.bf16.mxu0 0
        %2084 = vmatpush1.bf16.msra.mxu0 0
        %2085 = vmatprep.subr.bf16.mxu0 0
        %2086 = vmatpush1.bf16.msra.mxu0 0
        %2087 = vmatprep.subr.bf16.mxu0 0
        %2088 = vmatpush1.bf16.msra.mxu0 0
        %2089 = vmatprep.subr.bf16.mxu0 0
        %2090 = vmatpush1.bf16.msra.mxu0 0
        %2091 = vmatprep.subr.bf16.mxu0 0
        %2092 = vmatpush1.bf16.msra.mxu0 0
        %2093 = vmatprep.subr.bf16.mxu0 0
        %2094 = vmatpush1.bf16.msra.mxu0 0
        %2095 = vmatprep.subr.bf16.mxu0 0
        %2096 = vmatpush1.bf16.msra.mxu0 0
        %2097 = vmatprep.subr.bf16.mxu0 0
        %2098 = vmatpush1.bf16.msra.mxu0 0
        %2099 = vmatprep.subr.bf16.mxu0 0
        %2100 = vmatpush1.bf16.msra.mxu0 0
        %2101 = vmatprep.subr.bf16.mxu0 0
        %2102 = vmatpush1.bf16.msra.mxu0 0
        %2103 = vmatprep.mubr.bf16.mxu0 0
        %2104 = vmatmul.mubr.bf16.gmra.mrb[0].mxu0 %v2066
        %v2105 = vpop.f32.mrb[0].mxu0
        %v2106 = vadd.f32 0.0, %v2105
        %v2107 = vpop.f32.mrb[0].mxu0
        %v2108 = vpop.f32.mrb[0].mxu0
        %v2109 = vadd.f32 0.0, %v2108
        %v2110 = vpop.f32.mrb[0].mxu0
        %2111 = vdwg.mxu0
        %2112 = vrot.lane.b32.xlu0 %v1859, 112
        %v2113 = vpop.permute.xlu0 %2112
        %2114 = vrot.lane.b32.xlu0 %v1860, 112
        %v2115 = vpop.permute.xlu0 %2114
        %v2117 = vsel %vm1092, %v2113, 0
        %v2120 = vsel %vm1092, %v2115, 0
        %2122 = vmatprep.subr.bf16.mxu0 0
        %2123 = vmatpush1.bf16.xpose.msra.mxu0 %v2120
        %2124 = vmatprep.subr.bf16.mxu0 0
        %2125 = vmatpush1.bf16.xpose.msra.mxu0 0
        %2126 = vmatprep.subr.bf16.mxu0 0
        %2127 = vmatpush1.bf16.xpose.msra.mxu0 0
        %2128 = vmatprep.subr.bf16.mxu0 0
        %2129 = vmatpush1.bf16.xpose.msra.mxu0 0
        %2130 = vmatprep.subr.bf16.mxu0 0
        %2131 = vmatpush1.bf16.xpose.msra.mxu0 0
        %2132 = vmatprep.subr.bf16.mxu0 0
        %2133 = vmatpush1.bf16.xpose.msra.mxu0 0
        %2134 = vmatprep.subr.bf16.mxu0 0
        %2135 = vmatpush1.bf16.xpose.msra.mxu0 0
        %2136 = vmatprep.subr.bf16.mxu0 0
        %2137 = vmatpush1.bf16.xpose.msra.mxu0 0
        %2138 = vmatprep.subr.bf16.mxu0 0
        %2139 = vmatpush1.bf16.xpose.msra.mxu0 0
        %2140 = vmatprep.subr.bf16.mxu0 0
        %2141 = vmatpush1.bf16.xpose.msra.mxu0 0
        %2142 = vmatprep.subr.bf16.mxu0 0
        %2143 = vmatpush1.bf16.xpose.msra.mxu0 0
        %2144 = vmatprep.subr.bf16.mxu0 0
        %2145 = vmatpush1.bf16.xpose.msra.mxu0 0
        %2146 = vmatprep.subr.bf16.mxu0 0
        %2147 = vmatpush1.bf16.xpose.msra.mxu0 0
        %2148 = vmatprep.subr.bf16.mxu0 0
        %2149 = vmatpush1.bf16.xpose.msra.mxu0 0
        %2150 = vmatprep.subr.bf16.mxu0 0
        %2151 = vmatpush1.bf16.xpose.msra.mxu0 0
        %2152 = vmatprep.subr.bf16.mxu0 0
        %2153 = vmatpush1.bf16.xpose.msra.mxu0 0
        %2154 = vmatprep.mubr.bf16.mxu0 0
        %2155 = vmatmul.mubr.bf16.gmra.mrb[0].mxu0 %v2117
        %v2156 = vpop.f32.mrb[0].mxu0
        %v2157 = vadd.f32 %v1865, %v2156
        %v2158 = vpop.f32.mrb[0].mxu0
        %v2159 = vpop.f32.mrb[0].mxu0
        %v2160 = vadd.f32 %v1865, %v2159
        %v2161 = vpop.f32.mrb[0].mxu0
        %2162 = vdwg.mxu0
        %v2163 = vsel %vm1092, %v2157, -inf
        %2164 = vmax.xlane.f32.xlu0 %v2163
        %v2165 = vpop.xlane.xlu0 %2164
        %v2166 = vsel %vm1092, %v2160, -inf
        %2167 = vmax.xlane.f32.xlu0 %v2166
        %v2168 = vpop.xlane.xlu0 %2167
        %v2169 = vsub.f32 %v2157, %v2165
        %v2170 = vsub.f32 %v2160, %v2168
        %v2171 = vmul.f32 %v2169, 1.442695
        %v2172 = vpow.pop %v2171
        %v2173 = vmul.f32 %v2170, 1.442695
        %v2174 = vpow.pop %v2173
        %v2175 = vsel %vm1092, %v2172, 0.0
        %2176 = vadd.xlane.f32.xlu0 %v2175
        %v2177 = vpop.xlane.xlu0 %2176
        %v2178 = vsel %vm1092, %v2174, 0.0
        %2179 = vadd.xlane.f32.xlu0 %v2178
        %v2180 = vpop.xlane.xlu0 %2179
        %v2181 = vrcp.pop %v2177
        %v2182 = vrcp.pop %v2180
        %v2183 = vmul.f32 %v2172, %v2181
        %v2184 = vmul.f32 %v2174, %v2182
        %v2185 = vpack.c.bf16 %v2184, %v2183
        %2186 = vrot.lane.b32.xlu0 %v1860, 80
        %v2187 = vpop.permute.xlu0 %2186
        %v2189 = vsel %vm1092, %v2185, 0
        %v2192 = vsel %vm1943, %v2187, 0
        %2194 = vmatprep.subr.bf16.mxu0 0
        %2195 = vmatpush1.bf16.msra.mxu0 %v2192
        %2196 = vmatprep.subr.bf16.mxu0 0
        %2197 = vmatpush1.bf16.msra.mxu0 0
        %2198 = vmatprep.subr.bf16.mxu0 0
        %2199 = vmatpush1.bf16.msra.mxu0 0
        %2200 = vmatprep.subr.bf16.mxu0 0
        %2201 = vmatpush1.bf16.msra.mxu0 0
        %2202 = vmatprep.subr.bf16.mxu0 0
        %2203 = vmatpush1.bf16.msra.mxu0 0
        %2204 = vmatprep.subr.bf16.mxu0 0
        %2205 = vmatpush1.bf16.msra.mxu0 0
        %2206 = vmatprep.subr.bf16.mxu0 0
        %2207 = vmatpush1.bf16.msra.mxu0 0
        %2208 = vmatprep.subr.bf16.mxu0 0
        %2209 = vmatpush1.bf16.msra.mxu0 0
        %2210 = vmatprep.subr.bf16.mxu0 0
        %2211 = vmatpush1.bf16.msra.mxu0 0
        %2212 = vmatprep.subr.bf16.mxu0 0
        %2213 = vmatpush1.bf16.msra.mxu0 0
        %2214 = vmatprep.subr.bf16.mxu0 0
        %2215 = vmatpush1.bf16.msra.mxu0 0
        %2216 = vmatprep.subr.bf16.mxu0 0
        %2217 = vmatpush1.bf16.msra.mxu0 0
        %2218 = vmatprep.subr.bf16.mxu0 0
        %2219 = vmatpush1.bf16.msra.mxu0 0
        %2220 = vmatprep.subr.bf16.mxu0 0
        %2221 = vmatpush1.bf16.msra.mxu0 0
        %2222 = vmatprep.subr.bf16.mxu0 0
        %2223 = vmatpush1.bf16.msra.mxu0 0
        %2224 = vmatprep.subr.bf16.mxu0 0
        %2225 = vmatpush1.bf16.msra.mxu0 0
        %2226 = vmatprep.mubr.bf16.mxu0 0
        %2227 = vmatmul.mubr.bf16.gmra.mrb[0].mxu0 %v2189
        %v2228 = vpop.f32.mrb[0].mxu0
        %v2229 = vadd.f32 0.0, %v2228
        %v2230 = vpop.f32.mrb[0].mxu0
        %v2231 = vpop.f32.mrb[0].mxu0
        %v2232 = vadd.f32 0.0, %v2231
        %v2233 = vpop.f32.mrb[0].mxu0
        %2234 = vdwg.mxu0
        %2235 = vrot.lane.b32.xlu0 %v1859, 104
        %v2236 = vpop.permute.xlu0 %2235
        %2237 = vrot.lane.b32.xlu0 %v1860, 104
        %v2238 = vpop.permute.xlu0 %2237
        %v2240 = vsel %vm1092, %v2236, 0
        %v2243 = vsel %vm1092, %v2238, 0
        %2245 = vmatprep.subr.bf16.mxu0 0
        %2246 = vmatpush1.bf16.xpose.msra.mxu0 %v2243
        %2247 = vmatprep.subr.bf16.mxu0 0
        %2248 = vmatpush1.bf16.xpose.msra.mxu0 0
        %2249 = vmatprep.subr.bf16.mxu0 0
        %2250 = vmatpush1.bf16.xpose.msra.mxu0 0
        %2251 = vmatprep.subr.bf16.mxu0 0
        %2252 = vmatpush1.bf16.xpose.msra.mxu0 0
        %2253 = vmatprep.subr.bf16.mxu0 0
        %2254 = vmatpush1.bf16.xpose.msra.mxu0 0
        %2255 = vmatprep.subr.bf16.mxu0 0
        %2256 = vmatpush1.bf16.xpose.msra.mxu0 0
        %2257 = vmatprep.subr.bf16.mxu0 0
        %2258 = vmatpush1.bf16.xpose.msra.mxu0 0
        %2259 = vmatprep.subr.bf16.mxu0 0
        %2260 = vmatpush1.bf16.xpose.msra.mxu0 0
        %2261 = vmatprep.subr.bf16.mxu0 0
        %2262 = vmatpush1.bf16.xpose.msra.mxu0 0
        %2263 = vmatprep.subr.bf16.mxu0 0
        %2264 = vmatpush1.bf16.xpose.msra.mxu0 0
        %2265 = vmatprep.subr.bf16.mxu0 0
        %2266 = vmatpush1.bf16.xpose.msra.mxu0 0
        %2267 = vmatprep.subr.bf16.mxu0 0
        %2268 = vmatpush1.bf16.xpose.msra.mxu0 0
        %2269 = vmatprep.subr.bf16.mxu0 0
        %2270 = vmatpush1.bf16.xpose.msra.mxu0 0
        %2271 = vmatprep.subr.bf16.mxu0 0
        %2272 = vmatpush1.bf16.xpose.msra.mxu0 0
        %2273 = vmatprep.subr.bf16.mxu0 0
        %2274 = vmatpush1.bf16.xpose.msra.mxu0 0
        %2275 = vmatprep.subr.bf16.mxu0 0
        %2276 = vmatpush1.bf16.xpose.msra.mxu0 0
        %2277 = vmatprep.mubr.bf16.mxu0 0
        %2278 = vmatmul.mubr.bf16.gmra.mrb[0].mxu0 %v2240
        %v2279 = vpop.f32.mrb[0].mxu0
        %v2280 = vadd.f32 %v1865, %v2279
        %v2281 = vpop.f32.mrb[0].mxu0
        %v2282 = vpop.f32.mrb[0].mxu0
        %v2283 = vadd.f32 %v1865, %v2282
        %v2284 = vpop.f32.mrb[0].mxu0
        %2285 = vdwg.mxu0
        %v2286 = vsel %vm1092, %v2280, -inf
        %2287 = vmax.xlane.f32.xlu0 %v2286
        %v2288 = vpop.xlane.xlu0 %2287
        %v2289 = vsel %vm1092, %v2283, -inf
        %2290 = vmax.xlane.f32.xlu0 %v2289
        %v2291 = vpop.xlane.xlu0 %2290
        %v2292 = vsub.f32 %v2280, %v2288
        %v2293 = vsub.f32 %v2283, %v2291
        %v2294 = vmul.f32 %v2292, 1.442695
        %v2295 = vpow.pop %v2294
        %v2296 = vmul.f32 %v2293, 1.442695
        %v2297 = vpow.pop %v2296
        %v2298 = vsel %vm1092, %v2295, 0.0
        %2299 = vadd.xlane.f32.xlu0 %v2298
        %v2300 = vpop.xlane.xlu0 %2299
        %v2301 = vsel %vm1092, %v2297, 0.0
        %2302 = vadd.xlane.f32.xlu0 %v2301
        %v2303 = vpop.xlane.xlu0 %2302
        %v2304 = vrcp.pop %v2300
        %v2305 = vrcp.pop %v2303
        %v2306 = vmul.f32 %v2295, %v2304
        %v2307 = vmul.f32 %v2297, %v2305
        %v2308 = vpack.c.bf16 %v2307, %v2306
        %2309 = vrot.lane.b32.xlu0 %v1860, 72
        %v2310 = vpop.permute.xlu0 %2309
        %v2312 = vsel %vm1092, %v2308, 0
        %v2315 = vsel %vm1943, %v2310, 0
        %2317 = vmatprep.subr.bf16.mxu0 0
        %2318 = vmatpush1.bf16.msra.mxu0 %v2315
        %2319 = vmatprep.subr.bf16.mxu0 0
        %2320 = vmatpush1.bf16.msra.mxu0 0
        %2321 = vmatprep.subr.bf16.mxu0 0
        %2322 = vmatpush1.bf16.msra.mxu0 0
        %2323 = vmatprep.subr.bf16.mxu0 0
        %2324 = vmatpush1.bf16.msra.mxu0 0
        %2325 = vmatprep.subr.bf16.mxu0 0
        %2326 = vmatpush1.bf16.msra.mxu0 0
        %2327 = vmatprep.subr.bf16.mxu0 0
        %2328 = vmatpush1.bf16.msra.mxu0 0
        %2329 = vmatprep.subr.bf16.mxu0 0
        %2330 = vmatpush1.bf16.msra.mxu0 0
        %2331 = vmatprep.subr.bf16.mxu0 0
        %2332 = vmatpush1.bf16.msra.mxu0 0
        %2333 = vmatprep.subr.bf16.mxu0 0
        %2334 = vmatpush1.bf16.msra.mxu0 0
        %2335 = vmatprep.subr.bf16.mxu0 0
        %2336 = vmatpush1.bf16.msra.mxu0 0
        %2337 = vmatprep.subr.bf16.mxu0 0
        %2338 = vmatpush1.bf16.msra.mxu0 0
        %2339 = vmatprep.subr.bf16.mxu0 0
        %2340 = vmatpush1.bf16.msra.mxu0 0
        %2341 = vmatprep.subr.bf16.mxu0 0
        %2342 = vmatpush1.bf16.msra.mxu0 0
        %2343 = vmatprep.subr.bf16.mxu0 0
        %2344 = vmatpush1.bf16.msra.mxu0 0
        %2345 = vmatprep.subr.bf16.mxu0 0
        %2346 = vmatpush1.bf16.msra.mxu0 0
        %2347 = vmatprep.subr.bf16.mxu0 0
        %2348 = vmatpush1.bf16.msra.mxu0 0
        %2349 = vmatprep.mubr.bf16.mxu0 0
        %2350 = vmatmul.mubr.bf16.gmra.mrb[0].mxu0 %v2312
        %v2351 = vpop.f32.mrb[0].mxu0
        %v2352 = vadd.f32 0.0, %v2351
        %v2353 = vpop.f32.mrb[0].mxu0
        %v2354 = vpop.f32.mrb[0].mxu0
        %v2355 = vadd.f32 0.0, %v2354
        %v2356 = vpop.f32.mrb[0].mxu0
        %2357 = vdwg.mxu0
        %2360 = vrot.lane.b32.xlu0 %v2106, 8
        %v2361 = vpop.permute.xlu0 %2360
        %2362 = vrot.lane.b32.xlu0 %v2109, 8
        %v2363 = vpop.permute.xlu0 %2362
        %2368 = vrot.lane.b32.xlu0 %v2229, 16
        %v2369 = vpop.permute.xlu0 %2368
        %2370 = vrot.lane.b32.xlu0 %v2232, 16
        %v2371 = vpop.permute.xlu0 %2370
        %2376 = vrot.lane.b32.xlu0 %v2352, 24
        %v2377 = vpop.permute.xlu0 %2376
        %2378 = vrot.lane.b32.xlu0 %v2355, 24
        %v2379 = vpop.permute.xlu0 %2378
        %v2382 = vsel %vm1092, %v1982, %v2361
        %v2383 = vsel %vm1092, %v1985, %v2363
        %v2384 = vsel %vm1140, %v2382, %v2369
        %v2385 = vsel %vm1140, %v2383, %v2371
        %v2386 = vsel %vm1604, %v2384, %v2377
        %v2387 = vsel %vm1604, %v2385, %v2379
        %v2388 = vpack.c.bf16 %v2387, %v2386
        %v2390 = vlaneseq
        %v2391 = vshrl.u32 %v2390, 7
        %v2392 = vsub.s32 0, %v2391
        %v2393 = vrot.slane %v1731, %v2392
        %v2399 = vunpack.c.l.b16 %v1727
        %v2400 = vunpack.c.l.b16 %v1728
        %v2401 = vunpack.c.l.b16 %v1729
        %v2402 = vunpack.c.l.b16 %v1730
        %v2403 = vpack.c.b16 %v2400, %v2399
        %v2404 = vpack.c.b16 %v2402, %v2401
        %v2408 = vsel %vm978, %v2388, 0
        %2410 = vmatprep.subr.bf16.mxu0 0
        %2411 = vmatpush1.bf16.msra.mxu0 %v2403
        %2412 = vmatprep.subr.bf16.mxu0 0
        %2413 = vmatpush1.bf16.msra.mxu0 %v2404
        %2414 = vmatprep.subr.bf16.mxu0 0
        %2415 = vmatpush1.bf16.msra.mxu0 0
        %2416 = vmatprep.subr.bf16.mxu0 0
        %2417 = vmatpush1.bf16.msra.mxu0 0
        %2418 = vmatprep.subr.bf16.mxu0 0
        %2419 = vmatpush1.bf16.msra.mxu0 0
        %2420 = vmatprep.subr.bf16.mxu0 0
        %2421 = vmatpush1.bf16.msra.mxu0 0
        %2422 = vmatprep.subr.bf16.mxu0 0
        %2423 = vmatpush1.bf16.msra.mxu0 0
        %2424 = vmatprep.subr.bf16.mxu0 0
        %2425 = vmatpush1.bf16.msra.mxu0 0
        %2426 = vmatprep.subr.bf16.mxu0 0
        %2427 = vmatpush1.bf16.msra.mxu0 0
        %2428 = vmatprep.subr.bf16.mxu0 0
        %2429 = vmatpush1.bf16.msra.mxu0 0
        %2430 = vmatprep.subr.bf16.mxu0 0
        %2431 = vmatpush1.bf16.msra.mxu0 0
        %2432 = vmatprep.subr.bf16.mxu0 0
        %2433 = vmatpush1.bf16.msra.mxu0 0
        %2434 = vmatprep.subr.bf16.mxu0 0
        %2435 = vmatpush1.bf16.msra.mxu0 0
        %2436 = vmatprep.subr.bf16.mxu0 0
        %2437 = vmatpush1.bf16.msra.mxu0 0
        %2438 = vmatprep.subr.bf16.mxu0 0
        %2439 = vmatpush1.bf16.msra.mxu0 0
        %2440 = vmatprep.subr.bf16.mxu0 0
        %2441 = vmatpush1.bf16.msra.mxu0 0
        %2442 = vmatprep.mubr.bf16.mxu0 0
        %2443 = vmatmul.mubr.bf16.gmra.mrb[0].mxu0 %v2408
        %v2444 = vpop.f32.mrb[0].mxu0
        %v2445 = vadd.f32 %v2393, %v2444
        %v2446 = vpop.f32.mrb[0].mxu0
        %v2447 = vpop.f32.mrb[0].mxu0
        %v2448 = vadd.f32 %v2393, %v2447
        %v2449 = vpop.f32.mrb[0].mxu0
        %2450 = vdwg.mxu0
        %v2451 = vadd.f32 %v1715, %v2445
        %v2452 = vadd.f32 %v1716, %v2448
        %v2453 = vld [vmem:[%s18] sm:$0x1]
        %v2454 = vld [vmem:[%s19] sm:$0x1]
        %v2455 = vsel %vm978, %v2451, 0.0
        %2456 = vadd.xlane.f32.xlu0 %v2455
        %v2457 = vpop.xlane.xlu0 %2456
        %v2458 = vsel %vm978, %v2452, 0.0
        %2459 = vadd.xlane.f32.xlu0 %v2458
        %v2460 = vpop.xlane.xlu0 %2459
        %v2461 = vmul.f32 %v2457, %v1680
        %v2462 = vmul.f32 %v2460, %v1680
        %v2463 = vsub.f32 %v2451, %v2461
        %v2464 = vsub.f32 %v2452, %v2462
        %v2465 = vmul.f32 %v2463, %v2463
        %v2466 = vmul.f32 %v2464, %v2464
        %v2467 = vsel %vm978, %v2465, 0.0
        %2468 = vadd.xlane.f32.xlu0 %v2467
        %v2469 = vpop.xlane.xlu0 %2468
        %v2470 = vsel %vm978, %v2466, 0.0
        %2471 = vadd.xlane.f32.xlu0 %v2470
        %v2472 = vpop.xlane.xlu0 %2471
        %v2473 = vmul.f32 %v2469, %v1680
        %v2474 = vmul.f32 %v2472, %v1680
        %v2475 = vadd.f32 %v2473, 1e-06
        %v2476 = vadd.f32 %v2474, 1e-06
        %v2477 = vrsqrt.pop %v2475
        %v2478 = vrsqrt.pop %v2476
        %v2479 = vmul.f32 %v2463, %v2477
        %v2480 = vmul.f32 %v2464, %v2478
        %v2482 = vlaneseq
        %v2483 = vshrl.u32 %v2482, 7
        %v2484 = vsub.s32 0, %v2483
        %v2485 = vrot.slane %v2453, %v2484
        %v2487 = vmul.f32 %v2479, %v2485
        %v2488 = vmul.f32 %v2480, %v2485
        %v2490 = vlaneseq
        %v2491 = vshrl.u32 %v2490, 7
        %v2492 = vsub.s32 0, %v2491
        %v2493 = vrot.slane %v2454, %v2492
        %v2495 = vadd.f32 %v2487, %v2493
        %v2496 = vadd.f32 %v2488, %v2493
        %v2497 = vpack.c.bf16 %v2496, %v2495
        %v2498 = vld [vmem:[%s20] sm:$0xf]
        %v2499 = vld [vmem:[%s20 + $0x4] sm:$0xf]
        %v2500 = vld [vmem:[%s20 + $0x8] sm:$0xf]
        %v2501 = vld [vmem:[%s20 + $0xc] sm:$0xf]
        %v2502 = vld [vmem:[#allocation12] sm:$0x1]
        %v2504 = vlaneseq
        %v2505 = vshrl.u32 %v2504, 7
        %v2506 = vsub.s32 0, %v2505
        %v2507 = vrot.slane %v2502, %v2506
        %v2513 = vunpack.c.l.b16 %v2498
        %v2514 = vunpack.c.l.b16 %v2499
        %v2515 = vunpack.c.l.b16 %v2500
        %v2516 = vunpack.c.l.b16 %v2501
        %v2517 = vpack.c.b16 %v2514, %v2513
        %v2518 = vpack.c.b16 %v2516, %v2515
        %v2522 = vsel %vm978, %v2497, 0
        %2524 = vmatprep.subr.bf16.mxu0 0
        %2525 = vmatpush1.bf16.msra.mxu0 %v2517
        %2526 = vmatprep.subr.bf16.mxu0 0
        %2527 = vmatpush1.bf16.msra.mxu0 %v2518
        %2528 = vmatprep.subr.bf16.mxu0 0
        %2529 = vmatpush1.bf16.msra.mxu0 0
        %2530 = vmatprep.subr.bf16.mxu0 0
        %2531 = vmatpush1.bf16.msra.mxu0 0
        %2532 = vmatprep.subr.bf16.mxu0 0
        %2533 = vmatpush1.bf16.msra.mxu0 0
        %2534 = vmatprep.subr.bf16.mxu0 0
        %2535 = vmatpush1.bf16.msra.mxu0 0
        %2536 = vmatprep.subr.bf16.mxu0 0
        %2537 = vmatpush1.bf16.msra.mxu0 0
        %2538 = vmatprep.subr.bf16.mxu0 0
        %2539 = vmatpush1.bf16.msra.mxu0 0
        %2540 = vmatprep.subr.bf16.mxu0 0
        %2541 = vmatpush1.bf16.msra.mxu0 0
        %2542 = vmatprep.subr.bf16.mxu0 0
        %2543 = vmatpush1.bf16.msra.mxu0 0
        %2544 = vmatprep.subr.bf16.mxu0 0
        %2545 = vmatpush1.bf16.msra.mxu0 0
        %2546 = vmatprep.subr.bf16.mxu0 0
        %2547 = vmatpush1.bf16.msra.mxu0 0
        %2548 = vmatprep.subr.bf16.mxu0 0
        %2549 = vmatpush1.bf16.msra.mxu0 0
        %2550 = vmatprep.subr.bf16.mxu0 0
        %2551 = vmatpush1.bf16.msra.mxu0 0
        %2552 = vmatprep.subr.bf16.mxu0 0
        %2553 = vmatpush1.bf16.msra.mxu0 0
        %2554 = vmatprep.subr.bf16.mxu0 0
        %2555 = vmatpush1.bf16.msra.mxu0 0
        %2556 = vmatprep.mubr.bf16.mxu0 0
        %2557 = vmatmul.mubr.bf16.gmra.mrb[0].mxu0 %v2522
        %v2558 = vpop.f32.mrb[0].mxu0
        %v2559 = vadd.f32 %v2507, %v2558
        %v2560 = vpop.f32.mrb[0].mxu0
        %v2561 = vpop.f32.mrb[0].mxu0
        %v2562 = vadd.f32 %v2507, %v2561
        %v2563 = vpop.f32.mrb[0].mxu0
        %2564 = vdwg.mxu0
        %v2565 = vmax.f32 %v2559, 0.0
        %v2566 = vmax.f32 %v2562, 0.0
        %v2567 = vpack.c.bf16 %v2566, %v2565
        %v2568 = vld [vmem:[%s22] sm:$0xf]
        %v2569 = vld [vmem:[%s22 + $0x4] sm:$0xf]
        %v2570 = vld [vmem:[%s22 + $0x8] sm:$0xf]
        %v2571 = vld [vmem:[%s22 + $0xc] sm:$0xf]
        %v2572 = vld [vmem:[%s22 + $0x10] sm:$0xf]
        %v2573 = vld [vmem:[%s22 + $0x14] sm:$0xf]
        %v2574 = vld [vmem:[%s22 + $0x18] sm:$0xf]
        %v2575 = vld [vmem:[%s22 + $0x1c] sm:$0xf]
        %v2576 = vld [vmem:[#allocation13] sm:$0x1]
        %v2578 = vlaneseq
        %v2579 = vshrl.u32 %v2578, 7
        %v2580 = vsub.s32 0, %v2579
        %v2581 = vrot.slane %v2576, %v2580
        %v2591 = vunpack.c.l.b16 %v2568
        %v2592 = vunpack.c.l.b16 %v2569
        %v2593 = vunpack.c.l.b16 %v2570
        %v2594 = vunpack.c.l.b16 %v2571
        %v2595 = vunpack.c.l.b16 %v2572
        %v2596 = vunpack.c.l.b16 %v2573
        %v2597 = vunpack.c.l.b16 %v2574
        %v2598 = vunpack.c.l.b16 %v2575
        %v2599 = vpack.c.b16 %v2592, %v2591
        %v2600 = vpack.c.b16 %v2594, %v2593
        %v2601 = vpack.c.b16 %v2596, %v2595
        %v2602 = vpack.c.b16 %v2598, %v2597
        %vm2607 = vcmask 523264
        %v2609 = vsel %vm2607, %v2567, 0
        %2611 = vmatprep.subr.bf16.mxu0 0
        %2612 = vmatpush1.bf16.msra.mxu0 %v2599
        %2613 = vmatprep.subr.bf16.mxu0 0
        %2614 = vmatpush1.bf16.msra.mxu0 %v2600
        %2615 = vmatprep.subr.bf16.mxu0 0
        %2616 = vmatpush1.bf16.msra.mxu0 %v2601
        %2617 = vmatprep.subr.bf16.mxu0 0
        %2618 = vmatpush1.bf16.msra.mxu0 %v2602
        %2619 = vmatprep.subr.bf16.mxu0 0
        %2620 = vmatpush1.bf16.msra.mxu0 0
        %2621 = vmatprep.subr.bf16.mxu0 0
        %2622 = vmatpush1.bf16.msra.mxu0 0
        %2623 = vmatprep.subr.bf16.mxu0 0
        %2624 = vmatpush1.bf16.msra.mxu0 0
        %2625 = vmatprep.subr.bf16.mxu0 0
        %2626 = vmatpush1.bf16.msra.mxu0 0
        %2627 = vmatprep.subr.bf16.mxu0 0
        %2628 = vmatpush1.bf16.msra.mxu0 0
        %2629 = vmatprep.subr.bf16.mxu0 0
        %2630 = vmatpush1.bf16.msra.mxu0 0
        %2631 = vmatprep.subr.bf16.mxu0 0
        %2632 = vmatpush1.bf16.msra.mxu0 0
        %2633 = vmatprep.subr.bf16.mxu0 0
        %2634 = vmatpush1.bf16.msra.mxu0 0
        %2635 = vmatprep.subr.bf16.mxu0 0
        %2636 = vmatpush1.bf16.msra.mxu0 0
        %2637 = vmatprep.subr.bf16.mxu0 0
        %2638 = vmatpush1.bf16.msra.mxu0 0
        %2639 = vmatprep.subr.bf16.mxu0 0
        %2640 = vmatpush1.bf16.msra.mxu0 0
        %2641 = vmatprep.subr.bf16.mxu0 0
        %2642 = vmatpush1.bf16.msra.mxu0 0
        %2643 = vmatprep.mubr.bf16.mxu0 0
        %2644 = vmatmul.mubr.bf16.gmra.mrb[0].mxu0 %v2609
        %v2645 = vpop.f32.mrb[0].mxu0
        %v2646 = vadd.f32 %v2581, %v2645
        %v2647 = vpop.f32.mrb[0].mxu0
        %v2648 = vpop.f32.mrb[0].mxu0
        %v2649 = vadd.f32 %v2581, %v2648
        %v2650 = vpop.f32.mrb[0].mxu0
        %2651 = vdwg.mxu0
        %v2652 = vadd.f32 %v2495, %v2646
        %v2653 = vadd.f32 %v2496, %v2649
        %v2654 = vld [vmem:[%s24] sm:$0x1]
        %v2655 = vld [vmem:[%s25] sm:$0x1]
        %v2656 = vsel %vm978, %v2652, 0.0
        %2657 = vadd.xlane.f32.xlu0 %v2656
        %v2658 = vpop.xlane.xlu0 %2657
        %v2659 = vsel %vm978, %v2653, 0.0
        %2660 = vadd.xlane.f32.xlu0 %v2659
        %v2661 = vpop.xlane.xlu0 %2660
        %v2662 = vmul.f32 %v2658, %v1680
        %v2663 = vmul.f32 %v2661, %v1680
        %v2664 = vsub.f32 %v2652, %v2662
        %v2665 = vsub.f32 %v2653, %v2663
        %v2666 = vmul.f32 %v2664, %v2664
        %v2667 = vmul.f32 %v2665, %v2665
        %v2668 = vsel %vm978, %v2666, 0.0
        %2669 = vadd.xlane.f32.xlu0 %v2668
        %v2670 = vpop.xlane.xlu0 %2669
        %v2671 = vsel %vm978, %v2667, 0.0
        %2672 = vadd.xlane.f32.xlu0 %v2671
        %v2673 = vpop.xlane.xlu0 %2672
        %v2674 = vmul.f32 %v2670, %v1680
        %v2675 = vmul.f32 %v2673, %v1680
        %v2676 = vadd.f32 %v2674, 1e-06
        %v2677 = vadd.f32 %v2675, 1e-06
        %v2678 = vrsqrt.pop %v2676
        %v2679 = vrsqrt.pop %v2677
        %v2680 = vmul.f32 %v2664, %v2678
        %v2681 = vmul.f32 %v2665, %v2679
        %v2683 = vlaneseq
        %v2684 = vshrl.u32 %v2683, 7
        %v2685 = vsub.s32 0, %v2684
        %v2686 = vrot.slane %v2654, %v2685
        %v2688 = vmul.f32 %v2680, %v2686
        %v2689 = vmul.f32 %v2681, %v2686
        %v2691 = vlaneseq
        %v2692 = vshrl.u32 %v2691, 7
        %v2693 = vsub.s32 0, %v2692
        %v2694 = vrot.slane %v2655, %v2693
        %v2696 = vadd.f32 %v2688, %v2694
        %v2697 = vadd.f32 %v2689, %v2694
        %2698 = vst.msk [vmem:[%s937] sm:$0xff] %vm978, %v2696
        %2699 = vst.msk [vmem:[%s937 + $0x8] sm:$0xff] %vm978, %v2697
        %p2700 = scmp.lt.s32.totalorder %s42, 1
        %s2701 = scalar_select %p2700, %s42, 1
        %s2702 = smul.addr %s2701, 2
        %s2703 = smul.addr %s2702, 8
        %s2704 = scalar_lea.vmem %s26, %s2703
        // Predicated region
        $region157: #{_lambda_.6} parent=123 // pred_check
          %p2705 = pneg %p626
        $region158: #{_lambda_.6} parent=123 // pred_check_branch
          %2707 = sbr.rel (%p2705) target = $region160
        $region159: #{_lambda_.6} parent=123 // pred_region
          _
        $region160: #{_lambda_.6} parent=123 // pred_fallthru
          _
      $region124: #{_lambda_.6} parent=5 // pred_fallthru
        _
      %p2708 = scmp.le.s32.totalorder 2, %s37
      // Predicated region
      $region161: #{_lambda_.6} parent=5 // pred_check
        %p2709 = pneg %p2708
      $region162: #{_lambda_.6} parent=5 // pred_check_branch
        %2711 = sbr.rel (%p2709) target = $region164
      $region163: #{_lambda_.6} parent=5 // pred_region
        %s2712 = ssub.s32 %s37, 2
        // Predicated region
        $region165: #{_lambda_.6} parent=163 // pred_check
          %p2713 = pneg %p632
        $region166: #{_lambda_.6} parent=163 // pred_check_branch
          %2715 = sbr.rel (%p2713) target = $region168
        $region167: #{_lambda_.6} parent=163 // pred_region
          %p2716 = scmp.lt.s32.totalorder %s43, 1
          %s2717 = scalar_select %p2716, %s43, 1
          %s2718 = smul.addr %s2717, 2
          %s2719 = smul.addr %s2718, 8
          %s2720 = scalar_lea.vmem %s26, %s2719
        $region168: #{_lambda_.6} parent=163 // pred_fallthru
          _
      $region164: #{_lambda_.6} parent=5 // pred_fallthru
        _
    $region6: #{_lambda_.6} parent=1 // loop_footer
      %s41 = sadd.s32 1, %s37
    $region7: #{_lambda_.6} parent=1 // loop_footer_branch
      %36 = sbr.rel target = $region3
    $region8: #{_lambda_.6} parent=1 // loop_exit
      _
    %2721 = vsyncpa [#allocation3], 1
    %s2722 = scalar_lea.sflag [#allocation3], 1
    %2723 = vsyncpa %s2722, 1
    %2724 = vsyncpa [#allocation5], 1
    %2725 = vsyncpa [#allocation8], 1
    %2726 = vsyncpa [#allocation11], 1
    %2727 = vsyncpa [#allocation14], 1

</llo_original>
